<compile_context>
chip_gen: v7x
topology: tpu7x:2x2x1
jax: 0.10.0
libtpu: 0.0.40
codegen_flags: <defaults>
</compile_context>

<pallas_src>
import functools

import jax
import jax.numpy as jnp
from jax import lax
from jax.experimental import pallas as pl
from jax.experimental.pallas import tpu as pltpu


def _round_up(x, m):
    return (x + m - 1) // m * m


# ---------------------------------------------------------------------------
# Kernel: one grid step = `bt` images, everything resident in VMEM.
# ---------------------------------------------------------------------------
def _bottleneck_kernel(x_ref, mask_ref, w1_ref, b1_ref, w2_ref, b2_ref,
                       w3_ref, b3_ref, o_ref, s1_ref, *,
                       bt, H, W, base, compute_dtype):
    f32 = jnp.float32
    cd = compute_dtype
    HW = H * W
    PR, width = s1_ref.shape

    # --- zero only the padding ring of the scratch (cheap: ~2*W rows) -------
    s1_ref[0:base + W, :] = jnp.zeros((base + W, width), cd)
    s1_ref[base + W + HW:PR, :] = jnp.zeros((PR - (base + W + HW), width), cd)

    ml = mask_ref[0]          # (HW, 1): 0 where w == 0      (left-neighbour taps)
    mr = mask_ref[1]          # (HW, 1): 0 where w == W - 1  (right-neighbour taps)

    # --- conv1 (1x1) + bn1 + relu, batched over every image in the block ----
    x_all = x_ref[0]                                            # (bt*HW, Cin)
    a1 = jnp.dot(x_all, w1_ref[...], preferred_element_type=f32)
    a1 = jnp.maximum(a1 + b1_ref[...], 0.0)                     # (bt*HW, width)

    for b in range(bt):
        # Single contiguous, 8-sublane-aligned store of this image's conv1
        # activations between the zero pad rows (no per-row scatter).
        s1_ref[base + W:base + W + HW, :] = a1[b * HW:(b + 1) * HW, :].astype(cd)

        # --- conv2 (3x3, pad=1, stride=1): 9 shifted slices + column masks --
        acc = None
        for ky in range(3):
            for kx in range(3):
                start = base + ky * W + (kx - 1)
                tap = s1_ref[start:start + HW, :]
                if kx == 0:
                    tap = tap * ml
                elif kx == 2:
                    tap = tap * mr
                part = jnp.dot(tap, w2_ref[ky * 3 + kx],
                               preferred_element_type=f32)
                acc = part if acc is None else acc + part
        a2 = jnp.maximum(acc + b2_ref[...], 0.0).astype(cd)      # (HW, width)

        # --- conv3 (1x1) + bn3 + identity residual + relu --------------------
        y = jnp.dot(a2, w3_ref[...], preferred_element_type=f32)
        y = y + b3_ref[...] + x_all[b * HW:(b + 1) * HW, :].astype(f32)
        o_ref[0, b * HW:(b + 1) * HW, :] = jnp.maximum(y, 0.0).astype(o_ref.dtype)


# ---------------------------------------------------------------------------
# Host wrapper: BN folding, weight/mask prep, pallas_call.
# ---------------------------------------------------------------------------
def _fold_bn(gamma, beta, mean, var, eps):
    s = gamma / jnp.sqrt(var + eps)
    b = beta - mean * s
    return s, b.reshape(1, -1).astype(jnp.float32)


def _pick_images_per_step(n, hw, target_rows=512):
    bt = max(1, min(n, target_rows // max(hw, 1)))
    while n % bt:
        bt -= 1
    return max(bt, 1)


def bottleneck_pallas(x_nchw, params, compute_dtype=jnp.float32,
                      out_dtype=None, images_per_step=None, eps=1e-5):
    p = params
    n, c_in, h, w = x_nchw.shape
    width = p["w1"].shape[0]
    c_out = p["w3"].shape[0]
    assert c_in == c_out, "identity shortcut requires Cin == Cout (no downsample)"

    hw = h * w
    out_dtype = x_nchw.dtype if out_dtype is None else out_dtype
    bt = images_per_step or _pick_images_per_step(n, hw)
    assert n % bt == 0

    # Row layout of the conv2-input scratch (no horizontal pitch padding):
    #   [0, base)            front margin (zero)      base >= 1,
    #   [base, base+W)       top zero pad row         (base+W) % 8 == 0
    #   [base+W, base+W+HW)  image rows (rewritten per image)
    #   [base+W+HW, PR)      bottom zero pad row + slack
    base = (-w) % 8
    if base == 0:
        base = 8
    pr = _round_up(base + (h + 2) * w + 1, 8)

    # Fold the inference-BatchNorm scales into the conv weights (bias kept).
    s1, b1 = _fold_bn(p["g1"], p["b1"], p["m1"], p["v1"], eps)
    s2, b2 = _fold_bn(p["g2"], p["b2"], p["m2"], p["v2"], eps)
    s3, b3 = _fold_bn(p["g3"], p["b3"], p["m3"], p["v3"], eps)

    w1f = (p["w1"].reshape(width, c_in).T * s1[None, :]).astype(compute_dtype)
    w2f = (jnp.transpose(p["w2"], (2, 3, 1, 0)).reshape(9, width, width)
           * s2[None, None, :]).astype(compute_dtype)            # [t, in, out]
    w3f = (p["w3"].reshape(c_out, width).T * s3[None, :]).astype(compute_dtype)

    # Column masks that zero the horizontally-wrapped taps at the image
    # borders (0/1 values are exact in bf16).
    col = jnp.arange(hw, dtype=jnp.int32) % w
    masks = jnp.stack([(col != 0), (col != w - 1)], axis=0)
    masks = masks.astype(compute_dtype).reshape(2, hw, 1)

    # NCHW -> (N/bt, bt*H*W, C): channels last, `bt` images per grid step.
    # TODO(synk): accept NHWC at the model boundary to avoid this transpose.
    xm = jnp.transpose(x_nchw, (0, 2, 3, 1)).reshape(n // bt, bt * hw, c_in)
    xm = xm.astype(compute_dtype)

    kernel = functools.partial(_bottleneck_kernel, bt=bt, H=h, W=w, base=base,
                               compute_dtype=compute_dtype)

    itemsize = jnp.dtype(compute_dtype).itemsize
    out_itemsize = jnp.dtype(out_dtype).itemsize
    wbytes = (c_in * width + 9 * width * width + width * c_out) * itemsize
    flops = 2 * n * hw * (c_in * width + 9 * width * width + width * c_out)
    bytes_accessed = (n * hw * c_in * itemsize + n * hw * c_out * out_itemsize
                      + wbytes + (2 * width + c_out) * 4 + 2 * hw * itemsize)

    # VMEM budget: 2x double-buffered in/out blocks + weights + scratch +
    # headroom for the f32 a1/acc values (v7x has only 64 MiB physical).
    need = (2 * (bt * hw * c_in * itemsize + bt * hw * c_out * out_itemsize
                 + wbytes + 2 * hw * itemsize)
            + pr * width * itemsize + 2 * bt * hw * width * 4 + (1 << 20))
    vmem_limit = int(min(100 * 2 ** 20, max(32 * 2 ** 20, 2 * need)))

    out = pl.pallas_call(
        kernel,
        out_shape=jax.ShapeDtypeStruct((n // bt, bt * hw, c_out), out_dtype),
        grid_spec=pltpu.PrefetchScalarGridSpec(
            num_scalar_prefetch=0,
            grid=(n // bt,),
            in_specs=[
                pl.BlockSpec((1, bt * hw, c_in), lambda i: (i, 0, 0)),   # x
                pl.BlockSpec((2, hw, 1), lambda i: (0, 0, 0)),           # masks
                pl.BlockSpec((c_in, width), lambda i: (0, 0)),           # w1
                pl.BlockSpec((1, width), lambda i: (0, 0)),              # b1
                pl.BlockSpec((9, width, width), lambda i: (0, 0, 0)),    # w2
                pl.BlockSpec((1, width), lambda i: (0, 0)),              # b2
                pl.BlockSpec((width, c_out), lambda i: (0, 0)),          # w3
                pl.BlockSpec((1, c_out), lambda i: (0, 0)),              # b3
            ],
            out_specs=pl.BlockSpec((1, bt * hw, c_out), lambda i: (i, 0, 0)),
            scratch_shapes=[
                pltpu.VMEM((pr, width), compute_dtype),   # zero-ringed conv2 input
            ],
        ),
        compiler_params=pltpu.CompilerParams(
            dimension_semantics=("parallel",),
            vmem_limit_bytes=vmem_limit,
        ),
        cost_estimate=pl.CostEstimate(flops=flops, transcendentals=0,
                                      bytes_accessed=bytes_accessed),
    )(xm, masks, w1f, b1, w2f, b2, w3f, b3)

    out = out.reshape(n, h, w, c_out)
    return jnp.transpose(out, (0, 3, 1, 2))                      # NCHW


# ---------------------------------------------------------------------------
# Pure-JAX reference (NCHW, same semantics as the PyTorch module in eval mode)
# ---------------------------------------------------------------------------
def bottleneck_ref(x, p, eps=1e-5):
    def conv(x, w, padding=0):
        return lax.conv_general_dilated(
            x, w, (1, 1), [(padding, padding)] * 2,
            dimension_numbers=("NCHW", "OIHW", "NCHW"))

    def bn(x, g, b, m, v):
        g, b, m, v = (t[None, :, None, None] for t in (g, b, m, v))
        return (x - m) / jnp.sqrt(v + eps) * g + b

    out = jax.nn.relu(bn(conv(x, p["w1"]), p["g1"], p["b1"], p["m1"], p["v1"]))
    out = jax.nn.relu(bn(conv(out, p["w2"], 1), p["g2"], p["b2"], p["m2"], p["v2"]))
    out = bn(conv(out, p["w3"]), p["g3"], p["b3"], p["m3"], p["v3"])
    return jax.nn.relu(out + x)


# ---------------------------------------------------------------------------
if __name__ == "__main__":
    # Bottleneck(inplanes=16, planes=4): width=4, expansion*planes=16,
    # stride=1, downsample=None (identity shortcut).
    inplanes, planes, expansion = 16, 4, 4
    width = planes                 # base_width=64, groups=1
    c_out = planes * expansion
    n, h, w = 4, 16, 16

    key = jax.random.PRNGKey(0)
    ks = jax.random.split(key, 8)

    def bn_params(k, c):
        k1, k2, k3, k4 = jax.random.split(k, 4)
        return dict(
            gamma=jax.random.uniform(k1, (c,), jnp.float32, 0.5, 1.5),
            beta=0.1 * jax.random.normal(k2, (c,), jnp.float32),
            mean=0.1 * jax.random.normal(k3, (c,), jnp.float32),
            var=jax.random.uniform(k4, (c,), jnp.float32, 0.5, 1.5),
        )

    bn1 = bn_params(ks[3], width)
    bn2 = bn_params(ks[4], width)
    bn3 = bn_params(ks[5], c_out)

    params = dict(
        w1=0.2 * jax.random.normal(ks[0], (width, inplanes, 1, 1), jnp.float32),
        w2=0.2 * jax.random.normal(ks[1], (width, width, 3, 3), jnp.float32),
        w3=0.2 * jax.random.normal(ks[2], (c_out, width, 1, 1), jnp.float32),
        g1=bn1["gamma"], b1=bn1["beta"], m1=bn1["mean"], v1=bn1["var"],
        g2=bn2["gamma"], b2=bn2["beta"], m2=bn2["mean"], v2=bn2["var"],
        g3=bn3["gamma"], b3=bn3["beta"], m3=bn3["mean"], v3=bn3["var"],
    )

    x = jax.random.normal(ks[6], (n, inplanes, h, w), jnp.float32)
    y_ref = bottleneck_ref(x, params)

    # f32 path (strict check).
    y32 = jax.jit(bottleneck_pallas)(x, params)
    y32 = jax.block_until_ready(y32)
    assert y32.shape == y_ref.shape == (n, c_out, h, w)
    assert jnp.allclose(y32, y_ref, atol=3e-4, rtol=3e-4), (
        float(jnp.max(jnp.abs(y32 - y_ref))))

    # bf16 matmul / bf16 output path (v5e/v6e/v7x optimization), loose check.
    # NOTE: the identity residual is taken from the bf16-cast input here;
    # acceptable for inference (see review), pass f32 input if tighter
    # accuracy is needed.
    ybf = jax.jit(functools.partial(bottleneck_pallas,
                                    compute_dtype=jnp.bfloat16,
                                    out_dtype=jnp.bfloat16))(x, params)
    ybf = jax.block_until_ready(ybf)
    assert jnp.allclose(ybf.astype(jnp.float32), y_ref, atol=1e-1, rtol=1e-1), (
        float(jnp.max(jnp.abs(ybf.astype(jnp.float32) - y_ref))))

    print("KERNEL_OK")
</pallas_src>

<mosaic_0001>
module attributes {stable_mosaic.version = 11 : i64} {
  func.func @_bottleneck_kernel(%arg0: i32, %arg1: memref<1x512x16xf32, #tpu.memory_space<vmem>>, %arg2: memref<2x256x1xf32, #tpu.memory_space<vmem>>, %arg3: memref<16x4xf32, #tpu.memory_space<vmem>>, %arg4: memref<1x4xf32, #tpu.memory_space<vmem>>, %arg5: memref<9x4x4xf32, #tpu.memory_space<vmem>>, %arg6: memref<1x4xf32, #tpu.memory_space<vmem>>, %arg7: memref<4x16xf32, #tpu.memory_space<vmem>>, %arg8: memref<1x16xf32, #tpu.memory_space<vmem>>, %arg9: memref<1x512x16xf32, #tpu.memory_space<vmem>>, %arg10: memref<304x4xf32, #tpu.memory_space<vmem>>) attributes {dimension_semantics = [#tpu.dimension_semantics<parallel>], iteration_bounds = array<i64: 2>, scalar_prefetch = 0 : i64, scratch_operands = 1 : i64, tpu.core_type = #tpu.core_type<tc>, window_params = [{transform_indices = @transform_0, window_bounds = array<i64: 1, 512, 16>}, {pipeline_mode = #tpu.pipeline_mode<synchronous>, transform_indices = @transform_1, window_bounds = array<i64: 2, 256, 1>}, {pipeline_mode = #tpu.pipeline_mode<synchronous>, transform_indices = @transform_2, window_bounds = array<i64: 16, 4>}, {pipeline_mode = #tpu.pipeline_mode<synchronous>, transform_indices = @transform_3, window_bounds = array<i64: 1, 4>}, {pipeline_mode = #tpu.pipeline_mode<synchronous>, transform_indices = @transform_4, window_bounds = array<i64: 9, 4, 4>}, {pipeline_mode = #tpu.pipeline_mode<synchronous>, transform_indices = @transform_5, window_bounds = array<i64: 1, 4>}, {pipeline_mode = #tpu.pipeline_mode<synchronous>, transform_indices = @transform_6, window_bounds = array<i64: 4, 16>}, {pipeline_mode = #tpu.pipeline_mode<synchronous>, transform_indices = @transform_7, window_bounds = array<i64: 1, 16>}, {transform_indices = @transform_8, window_bounds = array<i64: 1, 512, 16>}]} {
    %cst = arith.constant 0.000000e+00 : f32
    %0 = vector.broadcast %cst : f32 to vector<24x4xf32>
    %c0 = arith.constant 0 : index
    %c0_0 = arith.constant 0 : index
    %1 = vector.load %arg10[%c0, %c0_0] : memref<304x4xf32, #tpu.memory_space<vmem>>, vector<24x4xf32>
    tpu.vector_store %arg10[%c0, %c0_0], %0 {strides = array<i32>} : memref<304x4xf32, #tpu.memory_space<vmem>>, vector<24x4xf32>,
    %cst_1 = arith.constant 0.000000e+00 : f32
    %2 = vector.broadcast %cst_1 : f32 to vector<24x4xf32>
    %c280 = arith.constant 280 : index
    %c0_2 = arith.constant 0 : index
    %3 = vector.load %arg10[%c280, %c0_2] : memref<304x4xf32, #tpu.memory_space<vmem>>, vector<24x4xf32>
    tpu.vector_store %arg10[%c280, %c0_2], %2 {strides = array<i32>} : memref<304x4xf32, #tpu.memory_space<vmem>>, vector<24x4xf32>,
    %c0_3 = arith.constant 0 : index
    %c0_4 = arith.constant 0 : index
    %c0_5 = arith.constant 0 : index
    %4 = vector.load %arg2[%c0_3, %c0_4, %c0_5] : memref<2x256x1xf32, #tpu.memory_space<vmem>>, vector<1x256x1xf32>
    %5 = vector.shape_cast %4 : vector<1x256x1xf32> to vector<256x1xf32>
    %c1 = arith.constant 1 : index
    %c0_6 = arith.constant 0 : index
    %c0_7 = arith.constant 0 : index
    %6 = vector.load %arg2[%c1, %c0_6, %c0_7] : memref<2x256x1xf32, #tpu.memory_space<vmem>>, vector<1x256x1xf32>
    %7 = vector.shape_cast %6 : vector<1x256x1xf32> to vector<256x1xf32>
    %c0_8 = arith.constant 0 : index
    %c0_9 = arith.constant 0 : index
    %c0_10 = arith.constant 0 : index
    %8 = vector.load %arg1[%c0_8, %c0_9, %c0_10] : memref<1x512x16xf32, #tpu.memory_space<vmem>>, vector<1x512x16xf32>
    %9 = vector.shape_cast %8 : vector<1x512x16xf32> to vector<512x16xf32>
    %c0_11 = arith.constant 0 : index
    %c0_12 = arith.constant 0 : index
    %10 = vector.load %arg3[%c0_11, %c0_12] : memref<16x4xf32, #tpu.memory_space<vmem>>, vector<16x4xf32>
    %cst_13 = arith.constant dense<0.000000e+00> : vector<512x4xf32>
    %11 = tpu.matmul %9, %10, %cst_13 {dimension_numbers = #tpu.dot_dimension_numbers<[1], [0], [0], [1], [0, 0, 1, 1], [], []>} : vector<512x16xf32>, vector<16x4xf32>, vector<512x4xf32> -> vector<512x4xf32>
    %c0_14 = arith.constant 0 : index
    %c0_15 = arith.constant 0 : index
    %12 = vector.load %arg4[%c0_14, %c0_15] : memref<1x4xf32, #tpu.memory_space<vmem>>, vector<1x4xf32>
    %13 = vector.broadcast %12 : vector<1x4xf32> to vector<512x4xf32>
    %14 = arith.addf %11, %13 : vector<512x4xf32>
    %cst_16 = arith.constant 0.000000e+00 : f32
    %15 = vector.broadcast %cst_16 : f32 to vector<512x4xf32>
    %16 = arith.maximumf %14, %15 : vector<512x4xf32>
    %17 = vector.extract_strided_slice %16 {offsets = [0, 0], sizes = [256, 4], strides = [1, 1]} : vector<512x4xf32> to vector<256x4xf32>
    %c24 = arith.constant 24 : index
    %c0_17 = arith.constant 0 : index
    %18 = vector.load %arg10[%c24, %c0_17] : memref<304x4xf32, #tpu.memory_space<vmem>>, vector<256x4xf32>
    tpu.vector_store %arg10[%c24, %c0_17], %17 {strides = array<i32>} : memref<304x4xf32, #tpu.memory_space<vmem>>, vector<256x4xf32>,
    %c7 = arith.constant 7 : index
    %c0_18 = arith.constant 0 : index
    %19 = vector.load %arg10[%c7, %c0_18] : memref<304x4xf32, #tpu.memory_space<vmem>>, vector<256x4xf32>
    %20 = vector.broadcast %5 : vector<256x1xf32> to vector<256x4xf32>
    %21 = arith.mulf %19, %20 : vector<256x4xf32>
    %c0_19 = arith.constant 0 : index
    %c0_20 = arith.constant 0 : index
    %c0_21 = arith.constant 0 : index
    %22 = vector.load %arg5[%c0_19, %c0_20, %c0_21] : memref<9x4x4xf32, #tpu.memory_space<vmem>>, vector<1x4x4xf32>
    %23 = vector.shape_cast %22 : vector<1x4x4xf32> to vector<4x4xf32>
    %cst_22 = arith.constant dense<0.000000e+00> : vector<256x4xf32>
    %24 = tpu.matmul %21, %23, %cst_22 {dimension_numbers = #tpu.dot_dimension_numbers<[1], [0], [0], [1], [0, 0, 1, 1], [], []>} : vector<256x4xf32>, vector<4x4xf32>, vector<256x4xf32> -> vector<256x4xf32>
    %c8 = arith.constant 8 : index
    %c0_23 = arith.constant 0 : index
    %25 = vector.load %arg10[%c8, %c0_23] : memref<304x4xf32, #tpu.memory_space<vmem>>, vector<256x4xf32>
    %c1_24 = arith.constant 1 : index
    %c0_25 = arith.constant 0 : index
    %c0_26 = arith.constant 0 : index
    %26 = vector.load %arg5[%c1_24, %c0_25, %c0_26] : memref<9x4x4xf32, #tpu.memory_space<vmem>>, vector<1x4x4xf32>
    %27 = vector.shape_cast %26 : vector<1x4x4xf32> to vector<4x4xf32>
    %cst_27 = arith.constant dense<0.000000e+00> : vector<256x4xf32>
    %28 = tpu.matmul %25, %27, %cst_27 {dimension_numbers = #tpu.dot_dimension_numbers<[1], [0], [0], [1], [0, 0, 1, 1], [], []>} : vector<256x4xf32>, vector<4x4xf32>, vector<256x4xf32> -> vector<256x4xf32>
    %29 = arith.addf %24, %28 : vector<256x4xf32>
    %c9 = arith.constant 9 : index
    %c0_28 = arith.constant 0 : index
    %30 = vector.load %arg10[%c9, %c0_28] : memref<304x4xf32, #tpu.memory_space<vmem>>, vector<256x4xf32>
    %31 = vector.broadcast %7 : vector<256x1xf32> to vector<256x4xf32>
    %32 = arith.mulf %30, %31 : vector<256x4xf32>
    %c2 = arith.constant 2 : index
    %c0_29 = arith.constant 0 : index
    %c0_30 = arith.constant 0 : index
    %33 = vector.load %arg5[%c2, %c0_29, %c0_30] : memref<9x4x4xf32, #tpu.memory_space<vmem>>, vector<1x4x4xf32>
    %34 = vector.shape_cast %33 : vector<1x4x4xf32> to vector<4x4xf32>
    %cst_31 = arith.constant dense<0.000000e+00> : vector<256x4xf32>
    %35 = tpu.matmul %32, %34, %cst_31 {dimension_numbers = #tpu.dot_dimension_numbers<[1], [0], [0], [1], [0, 0, 1, 1], [], []>} : vector<256x4xf32>, vector<4x4xf32>, vector<256x4xf32> -> vector<256x4xf32>
    %36 = arith.addf %29, %35 : vector<256x4xf32>
    %c23 = arith.constant 23 : index
    %c0_32 = arith.constant 0 : index
    %37 = vector.load %arg10[%c23, %c0_32] : memref<304x4xf32, #tpu.memory_space<vmem>>, vector<256x4xf32>
    %38 = vector.broadcast %5 : vector<256x1xf32> to vector<256x4xf32>
    %39 = arith.mulf %37, %38 : vector<256x4xf32>
    %c3 = arith.constant 3 : index
    %c0_33 = arith.constant 0 : index
    %c0_34 = arith.constant 0 : index
    %40 = vector.load %arg5[%c3, %c0_33, %c0_34] : memref<9x4x4xf32, #tpu.memory_space<vmem>>, vector<1x4x4xf32>
    %41 = vector.shape_cast %40 : vector<1x4x4xf32> to vector<4x4xf32>
    %cst_35 = arith.constant dense<0.000000e+00> : vector<256x4xf32>
    %42 = tpu.matmul %39, %41, %cst_35 {dimension_numbers = #tpu.dot_dimension_numbers<[1], [0], [0], [1], [0, 0, 1, 1], [], []>} : vector<256x4xf32>, vector<4x4xf32>, vector<256x4xf32> -> vector<256x4xf32>
    %43 = arith.addf %36, %42 : vector<256x4xf32>
    %c24_36 = arith.constant 24 : index
    %c0_37 = arith.constant 0 : index
    %44 = vector.load %arg10[%c24_36, %c0_37] : memref<304x4xf32, #tpu.memory_space<vmem>>, vector<256x4xf32>
    %c4 = arith.constant 4 : index
    %c0_38 = arith.constant 0 : index
    %c0_39 = arith.constant 0 : index
    %45 = vector.load %arg5[%c4, %c0_38, %c0_39] : memref<9x4x4xf32, #tpu.memory_space<vmem>>, vector<1x4x4xf32>
    %46 = vector.shape_cast %45 : vector<1x4x4xf32> to vector<4x4xf32>
    %cst_40 = arith.constant dense<0.000000e+00> : vector<256x4xf32>
    %47 = tpu.matmul %44, %46, %cst_40 {dimension_numbers = #tpu.dot_dimension_numbers<[1], [0], [0], [1], [0, 0, 1, 1], [], []>} : vector<256x4xf32>, vector<4x4xf32>, vector<256x4xf32> -> vector<256x4xf32>
    %48 = arith.addf %43, %47 : vector<256x4xf32>
    %c25 = arith.constant 25 : index
    %c0_41 = arith.constant 0 : index
    %49 = vector.load %arg10[%c25, %c0_41] : memref<304x4xf32, #tpu.memory_space<vmem>>, vector<256x4xf32>
    %50 = vector.broadcast %7 : vector<256x1xf32> to vector<256x4xf32>
    %51 = arith.mulf %49, %50 : vector<256x4xf32>
    %c5 = arith.constant 5 : index
    %c0_42 = arith.constant 0 : index
    %c0_43 = arith.constant 0 : index
    %52 = vector.load %arg5[%c5, %c0_42, %c0_43] : memref<9x4x4xf32, #tpu.memory_space<vmem>>, vector<1x4x4xf32>
    %53 = vector.shape_cast %52 : vector<1x4x4xf32> to vector<4x4xf32>
    %cst_44 = arith.constant dense<0.000000e+00> : vector<256x4xf32>
    %54 = tpu.matmul %51, %53, %cst_44 {dimension_numbers = #tpu.dot_dimension_numbers<[1], [0], [0], [1], [0, 0, 1, 1], [], []>} : vector<256x4xf32>, vector<4x4xf32>, vector<256x4xf32> -> vector<256x4xf32>
    %55 = arith.addf %48, %54 : vector<256x4xf32>
    %c39 = arith.constant 39 : index
    %c0_45 = arith.constant 0 : index
    %56 = vector.load %arg10[%c39, %c0_45] : memref<304x4xf32, #tpu.memory_space<vmem>>, vector<256x4xf32>
    %57 = vector.broadcast %5 : vector<256x1xf32> to vector<256x4xf32>
    %58 = arith.mulf %56, %57 : vector<256x4xf32>
    %c6 = arith.constant 6 : index
    %c0_46 = arith.constant 0 : index
    %c0_47 = arith.constant 0 : index
    %59 = vector.load %arg5[%c6, %c0_46, %c0_47] : memref<9x4x4xf32, #tpu.memory_space<vmem>>, vector<1x4x4xf32>
    %60 = vector.shape_cast %59 : vector<1x4x4xf32> to vector<4x4xf32>
    %cst_48 = arith.constant dense<0.000000e+00> : vector<256x4xf32>
    %61 = tpu.matmul %58, %60, %cst_48 {dimension_numbers = #tpu.dot_dimension_numbers<[1], [0], [0], [1], [0, 0, 1, 1], [], []>} : vector<256x4xf32>, vector<4x4xf32>, vector<256x4xf32> -> vector<256x4xf32>
    %62 = arith.addf %55, %61 : vector<256x4xf32>
    %c40 = arith.constant 40 : index
    %c0_49 = arith.constant 0 : index
    %63 = vector.load %arg10[%c40, %c0_49] : memref<304x4xf32, #tpu.memory_space<vmem>>, vector<256x4xf32>
    %c7_50 = arith.constant 7 : index
    %c0_51 = arith.constant 0 : index
    %c0_52 = arith.constant 0 : index
    %64 = vector.load %arg5[%c7_50, %c0_51, %c0_52] : memref<9x4x4xf32, #tpu.memory_space<vmem>>, vector<1x4x4xf32>
    %65 = vector.shape_cast %64 : vector<1x4x4xf32> to vector<4x4xf32>
    %cst_53 = arith.constant dense<0.000000e+00> : vector<256x4xf32>
    %66 = tpu.matmul %63, %65, %cst_53 {dimension_numbers = #tpu.dot_dimension_numbers<[1], [0], [0], [1], [0, 0, 1, 1], [], []>} : vector<256x4xf32>, vector<4x4xf32>, vector<256x4xf32> -> vector<256x4xf32>
    %67 = arith.addf %62, %66 : vector<256x4xf32>
    %c41 = arith.constant 41 : index
    %c0_54 = arith.constant 0 : index
    %68 = vector.load %arg10[%c41, %c0_54] : memref<304x4xf32, #tpu.memory_space<vmem>>, vector<256x4xf32>
    %69 = vector.broadcast %7 : vector<256x1xf32> to vector<256x4xf32>
    %70 = arith.mulf %68, %69 : vector<256x4xf32>
    %c8_55 = arith.constant 8 : index
    %c0_56 = arith.constant 0 : index
    %c0_57 = arith.constant 0 : index
    %71 = vector.load %arg5[%c8_55, %c0_56, %c0_57] : memref<9x4x4xf32, #tpu.memory_space<vmem>>, vector<1x4x4xf32>
    %72 = vector.shape_cast %71 : vector<1x4x4xf32> to vector<4x4xf32>
    %cst_58 = arith.constant dense<0.000000e+00> : vector<256x4xf32>
    %73 = tpu.matmul %70, %72, %cst_58 {dimension_numbers = #tpu.dot_dimension_numbers<[1], [0], [0], [1], [0, 0, 1, 1], [], []>} : vector<256x4xf32>, vector<4x4xf32>, vector<256x4xf32> -> vector<256x4xf32>
    %74 = arith.addf %67, %73 : vector<256x4xf32>
    %c0_59 = arith.constant 0 : index
    %c0_60 = arith.constant 0 : index
    %75 = vector.load %arg6[%c0_59, %c0_60] : memref<1x4xf32, #tpu.memory_space<vmem>>, vector<1x4xf32>
    %76 = vector.broadcast %75 : vector<1x4xf32> to vector<256x4xf32>
    %77 = arith.addf %74, %76 : vector<256x4xf32>
    %cst_61 = arith.constant 0.000000e+00 : f32
    %78 = vector.broadcast %cst_61 : f32 to vector<256x4xf32>
    %79 = arith.maximumf %77, %78 : vector<256x4xf32>
    %c0_62 = arith.constant 0 : index
    %c0_63 = arith.constant 0 : index
    %80 = vector.load %arg7[%c0_62, %c0_63] : memref<4x16xf32, #tpu.memory_space<vmem>>, vector<4x16xf32>
    %cst_64 = arith.constant dense<0.000000e+00> : vector<256x16xf32>
    %81 = tpu.matmul %79, %80, %cst_64 {dimension_numbers = #tpu.dot_dimension_numbers<[1], [0], [0], [1], [0, 0, 1, 1], [], []>} : vector<256x4xf32>, vector<4x16xf32>, vector<256x16xf32> -> vector<256x16xf32>
    %c0_65 = arith.constant 0 : index
    %c0_66 = arith.constant 0 : index
    %82 = vector.load %arg8[%c0_65, %c0_66] : memref<1x16xf32, #tpu.memory_space<vmem>>, vector<1x16xf32>
    %83 = vector.broadcast %82 : vector<1x16xf32> to vector<256x16xf32>
    %84 = arith.addf %81, %83 : vector<256x16xf32>
    %85 = vector.extract_strided_slice %9 {offsets = [0, 0], sizes = [256, 16], strides = [1, 1]} : vector<512x16xf32> to vector<256x16xf32>
    %86 = arith.addf %84, %85 : vector<256x16xf32>
    %cst_67 = arith.constant 0.000000e+00 : f32
    %87 = vector.broadcast %cst_67 : f32 to vector<256x16xf32>
    %88 = arith.maximumf %86, %87 : vector<256x16xf32>
    %c0_68 = arith.constant 0 : index
    %c0_69 = arith.constant 0 : index
    %c0_70 = arith.constant 0 : index
    %89 = vector.load %arg9[%c0_68, %c0_69, %c0_70] : memref<1x512x16xf32, #tpu.memory_space<vmem>>, vector<1x256x16xf32>
    %90 = vector.shape_cast %89 : vector<1x256x16xf32> to vector<256x16xf32>
    %91 = vector.shape_cast %88 : vector<256x16xf32> to vector<1x256x16xf32>
    tpu.vector_store %arg9[%c0_68, %c0_69, %c0_70], %91 {strides = array<i32>} : memref<1x512x16xf32, #tpu.memory_space<vmem>>, vector<1x256x16xf32>,
    %92 = vector.extract_strided_slice %16 {offsets = [256, 0], sizes = [256, 4], strides = [1, 1]} : vector<512x4xf32> to vector<256x4xf32>
    %c24_71 = arith.constant 24 : index
    %c0_72 = arith.constant 0 : index
    %93 = vector.load %arg10[%c24_71, %c0_72] : memref<304x4xf32, #tpu.memory_space<vmem>>, vector<256x4xf32>
    tpu.vector_store %arg10[%c24_71, %c0_72], %92 {strides = array<i32>} : memref<304x4xf32, #tpu.memory_space<vmem>>, vector<256x4xf32>,
    %c7_73 = arith.constant 7 : index
    %c0_74 = arith.constant 0 : index
    %94 = vector.load %arg10[%c7_73, %c0_74] : memref<304x4xf32, #tpu.memory_space<vmem>>, vector<256x4xf32>
    %95 = vector.broadcast %5 : vector<256x1xf32> to vector<256x4xf32>
    %96 = arith.mulf %94, %95 : vector<256x4xf32>
    %c0_75 = arith.constant 0 : index
    %c0_76 = arith.constant 0 : index
    %c0_77 = arith.constant 0 : index
    %97 = vector.load %arg5[%c0_75, %c0_76, %c0_77] : memref<9x4x4xf32, #tpu.memory_space<vmem>>, vector<1x4x4xf32>
    %98 = vector.shape_cast %97 : vector<1x4x4xf32> to vector<4x4xf32>
    %cst_78 = arith.constant dense<0.000000e+00> : vector<256x4xf32>
    %99 = tpu.matmul %96, %98, %cst_78 {dimension_numbers = #tpu.dot_dimension_numbers<[1], [0], [0], [1], [0, 0, 1, 1], [], []>} : vector<256x4xf32>, vector<4x4xf32>, vector<256x4xf32> -> vector<256x4xf32>
    %c8_79 = arith.constant 8 : index
    %c0_80 = arith.constant 0 : index
    %100 = vector.load %arg10[%c8_79, %c0_80] : memref<304x4xf32, #tpu.memory_space<vmem>>, vector<256x4xf32>
    %c1_81 = arith.constant 1 : index
    %c0_82 = arith.constant 0 : index
    %c0_83 = arith.constant 0 : index
    %101 = vector.load %arg5[%c1_81, %c0_82, %c0_83] : memref<9x4x4xf32, #tpu.memory_space<vmem>>, vector<1x4x4xf32>
    %102 = vector.shape_cast %101 : vector<1x4x4xf32> to vector<4x4xf32>
    %cst_84 = arith.constant dense<0.000000e+00> : vector<256x4xf32>
    %103 = tpu.matmul %100, %102, %cst_84 {dimension_numbers = #tpu.dot_dimension_numbers<[1], [0], [0], [1], [0, 0, 1, 1], [], []>} : vector<256x4xf32>, vector<4x4xf32>, vector<256x4xf32> -> vector<256x4xf32>
    %104 = arith.addf %99, %103 : vector<256x4xf32>
    %c9_85 = arith.constant 9 : index
    %c0_86 = arith.constant 0 : index
    %105 = vector.load %arg10[%c9_85, %c0_86] : memref<304x4xf32, #tpu.memory_space<vmem>>, vector<256x4xf32>
    %106 = vector.broadcast %7 : vector<256x1xf32> to vector<256x4xf32>
    %107 = arith.mulf %105, %106 : vector<256x4xf32>
    %c2_87 = arith.constant 2 : index
    %c0_88 = arith.constant 0 : index
    %c0_89 = arith.constant 0 : index
    %108 = vector.load %arg5[%c2_87, %c0_88, %c0_89] : memref<9x4x4xf32, #tpu.memory_space<vmem>>, vector<1x4x4xf32>
    %109 = vector.shape_cast %108 : vector<1x4x4xf32> to vector<4x4xf32>
    %cst_90 = arith.constant dense<0.000000e+00> : vector<256x4xf32>
    %110 = tpu.matmul %107, %109, %cst_90 {dimension_numbers = #tpu.dot_dimension_numbers<[1], [0], [0], [1], [0, 0, 1, 1], [], []>} : vector<256x4xf32>, vector<4x4xf32>, vector<256x4xf32> -> vector<256x4xf32>
    %111 = arith.addf %104, %110 : vector<256x4xf32>
    %c23_91 = arith.constant 23 : index
    %c0_92 = arith.constant 0 : index
    %112 = vector.load %arg10[%c23_91, %c0_92] : memref<304x4xf32, #tpu.memory_space<vmem>>, vector<256x4xf32>
    %113 = vector.broadcast %5 : vector<256x1xf32> to vector<256x4xf32>
    %114 = arith.mulf %112, %113 : vector<256x4xf32>
    %c3_93 = arith.constant 3 : index
    %c0_94 = arith.constant 0 : index
    %c0_95 = arith.constant 0 : index
    %115 = vector.load %arg5[%c3_93, %c0_94, %c0_95] : memref<9x4x4xf32, #tpu.memory_space<vmem>>, vector<1x4x4xf32>
    %116 = vector.shape_cast %115 : vector<1x4x4xf32> to vector<4x4xf32>
    %cst_96 = arith.constant dense<0.000000e+00> : vector<256x4xf32>
    %117 = tpu.matmul %114, %116, %cst_96 {dimension_numbers = #tpu.dot_dimension_numbers<[1], [0], [0], [1], [0, 0, 1, 1], [], []>} : vector<256x4xf32>, vector<4x4xf32>, vector<256x4xf32> -> vector<256x4xf32>
    %118 = arith.addf %111, %117 : vector<256x4xf32>
    %c24_97 = arith.constant 24 : index
    %c0_98 = arith.constant 0 : index
    %119 = vector.load %arg10[%c24_97, %c0_98] : memref<304x4xf32, #tpu.memory_space<vmem>>, vector<256x4xf32>
    %c4_99 = arith.constant 4 : index
    %c0_100 = arith.constant 0 : index
    %c0_101 = arith.constant 0 : index
    %120 = vector.load %arg5[%c4_99, %c0_100, %c0_101] : memref<9x4x4xf32, #tpu.memory_space<vmem>>, vector<1x4x4xf32>
    %121 = vector.shape_cast %120 : vector<1x4x4xf32> to vector<4x4xf32>
    %cst_102 = arith.constant dense<0.000000e+00> : vector<256x4xf32>
    %122 = tpu.matmul %119, %121, %cst_102 {dimension_numbers = #tpu.dot_dimension_numbers<[1], [0], [0], [1], [0, 0, 1, 1], [], []>} : vector<256x4xf32>, vector<4x4xf32>, vector<256x4xf32> -> vector<256x4xf32>
    %123 = arith.addf %118, %122 : vector<256x4xf32>
    %c25_103 = arith.constant 25 : index
    %c0_104 = arith.constant 0 : index
    %124 = vector.load %arg10[%c25_103, %c0_104] : memref<304x4xf32, #tpu.memory_space<vmem>>, vector<256x4xf32>
    %125 = vector.broadcast %7 : vector<256x1xf32> to vector<256x4xf32>
    %126 = arith.mulf %124, %125 : vector<256x4xf32>
    %c5_105 = arith.constant 5 : index
    %c0_106 = arith.constant 0 : index
    %c0_107 = arith.constant 0 : index
    %127 = vector.load %arg5[%c5_105, %c0_106, %c0_107] : memref<9x4x4xf32, #tpu.memory_space<vmem>>, vector<1x4x4xf32>
    %128 = vector.shape_cast %127 : vector<1x4x4xf32> to vector<4x4xf32>
    %cst_108 = arith.constant dense<0.000000e+00> : vector<256x4xf32>
    %129 = tpu.matmul %126, %128, %cst_108 {dimension_numbers = #tpu.dot_dimension_numbers<[1], [0], [0], [1], [0, 0, 1, 1], [], []>} : vector<256x4xf32>, vector<4x4xf32>, vector<256x4xf32> -> vector<256x4xf32>
    %130 = arith.addf %123, %129 : vector<256x4xf32>
    %c39_109 = arith.constant 39 : index
    %c0_110 = arith.constant 0 : index
    %131 = vector.load %arg10[%c39_109, %c0_110] : memref<304x4xf32, #tpu.memory_space<vmem>>, vector<256x4xf32>
    %132 = vector.broadcast %5 : vector<256x1xf32> to vector<256x4xf32>
    %133 = arith.mulf %131, %132 : vector<256x4xf32>
    %c6_111 = arith.constant 6 : index
    %c0_112 = arith.constant 0 : index
    %c0_113 = arith.constant 0 : index
    %134 = vector.load %arg5[%c6_111, %c0_112, %c0_113] : memref<9x4x4xf32, #tpu.memory_space<vmem>>, vector<1x4x4xf32>
    %135 = vector.shape_cast %134 : vector<1x4x4xf32> to vector<4x4xf32>
    %cst_114 = arith.constant dense<0.000000e+00> : vector<256x4xf32>
    %136 = tpu.matmul %133, %135, %cst_114 {dimension_numbers = #tpu.dot_dimension_numbers<[1], [0], [0], [1], [0, 0, 1, 1], [], []>} : vector<256x4xf32>, vector<4x4xf32>, vector<256x4xf32> -> vector<256x4xf32>
    %137 = arith.addf %130, %136 : vector<256x4xf32>
    %c40_115 = arith.constant 40 : index
    %c0_116 = arith.constant 0 : index
    %138 = vector.load %arg10[%c40_115, %c0_116] : memref<304x4xf32, #tpu.memory_space<vmem>>, vector<256x4xf32>
    %c7_117 = arith.constant 7 : index
    %c0_118 = arith.constant 0 : index
    %c0_119 = arith.constant 0 : index
    %139 = vector.load %arg5[%c7_117, %c0_118, %c0_119] : memref<9x4x4xf32, #tpu.memory_space<vmem>>, vector<1x4x4xf32>
    %140 = vector.shape_cast %139 : vector<1x4x4xf32> to vector<4x4xf32>
    %cst_120 = arith.constant dense<0.000000e+00> : vector<256x4xf32>
    %141 = tpu.matmul %138, %140, %cst_120 {dimension_numbers = #tpu.dot_dimension_numbers<[1], [0], [0], [1], [0, 0, 1, 1], [], []>} : vector<256x4xf32>, vector<4x4xf32>, vector<256x4xf32> -> vector<256x4xf32>
    %142 = arith.addf %137, %141 : vector<256x4xf32>
    %c41_121 = arith.constant 41 : index
    %c0_122 = arith.constant 0 : index
    %143 = vector.load %arg10[%c41_121, %c0_122] : memref<304x4xf32, #tpu.memory_space<vmem>>, vector<256x4xf32>
    %144 = vector.broadcast %7 : vector<256x1xf32> to vector<256x4xf32>
    %145 = arith.mulf %143, %144 : vector<256x4xf32>
    %c8_123 = arith.constant 8 : index
    %c0_124 = arith.constant 0 : index
    %c0_125 = arith.constant 0 : index
    %146 = vector.load %arg5[%c8_123, %c0_124, %c0_125] : memref<9x4x4xf32, #tpu.memory_space<vmem>>, vector<1x4x4xf32>
    %147 = vector.shape_cast %146 : vector<1x4x4xf32> to vector<4x4xf32>
    %cst_126 = arith.constant dense<0.000000e+00> : vector<256x4xf32>
    %148 = tpu.matmul %145, %147, %cst_126 {dimension_numbers = #tpu.dot_dimension_numbers<[1], [0], [0], [1], [0, 0, 1, 1], [], []>} : vector<256x4xf32>, vector<4x4xf32>, vector<256x4xf32> -> vector<256x4xf32>
    %149 = arith.addf %142, %148 : vector<256x4xf32>
    %c0_127 = arith.constant 0 : index
    %c0_128 = arith.constant 0 : index
    %150 = vector.load %arg6[%c0_127, %c0_128] : memref<1x4xf32, #tpu.memory_space<vmem>>, vector<1x4xf32>
    %151 = vector.broadcast %150 : vector<1x4xf32> to vector<256x4xf32>
    %152 = arith.addf %149, %151 : vector<256x4xf32>
    %cst_129 = arith.constant 0.000000e+00 : f32
    %153 = vector.broadcast %cst_129 : f32 to vector<256x4xf32>
    %154 = arith.maximumf %152, %153 : vector<256x4xf32>
    %c0_130 = arith.constant 0 : index
    %c0_131 = arith.constant 0 : index
    %155 = vector.load %arg7[%c0_130, %c0_131] : memref<4x16xf32, #tpu.memory_space<vmem>>, vector<4x16xf32>
    %cst_132 = arith.constant dense<0.000000e+00> : vector<256x16xf32>
    %156 = tpu.matmul %154, %155, %cst_132 {dimension_numbers = #tpu.dot_dimension_numbers<[1], [0], [0], [1], [0, 0, 1, 1], [], []>} : vector<256x4xf32>, vector<4x16xf32>, vector<256x16xf32> -> vector<256x16xf32>
    %c0_133 = arith.constant 0 : index
    %c0_134 = arith.constant 0 : index
    %157 = vector.load %arg8[%c0_133, %c0_134] : memref<1x16xf32, #tpu.memory_space<vmem>>, vector<1x16xf32>
    %158 = vector.broadcast %157 : vector<1x16xf32> to vector<256x16xf32>
    %159 = arith.addf %156, %158 : vector<256x16xf32>
    %160 = vector.extract_strided_slice %9 {offsets = [256, 0], sizes = [256, 16], strides = [1, 1]} : vector<512x16xf32> to vector<256x16xf32>
    %161 = arith.addf %159, %160 : vector<256x16xf32>
    %cst_135 = arith.constant 0.000000e+00 : f32
    %162 = vector.broadcast %cst_135 : f32 to vector<256x16xf32>
    %163 = arith.maximumf %161, %162 : vector<256x16xf32>
    %c0_136 = arith.constant 0 : index
    %c256 = arith.constant 256 : index
    %c0_137 = arith.constant 0 : index
    %164 = vector.load %arg9[%c0_136, %c256, %c0_137] : memref<1x512x16xf32, #tpu.memory_space<vmem>>, vector<1x256x16xf32>
    %165 = vector.shape_cast %164 : vector<1x256x16xf32> to vector<256x16xf32>
    %166 = vector.shape_cast %163 : vector<256x16xf32> to vector<1x256x16xf32>
    tpu.vector_store %arg9[%c0_136, %c256, %c0_137], %166 {strides = array<i32>} : memref<1x512x16xf32, #tpu.memory_space<vmem>>, vector<1x256x16xf32>,
    return
  }
  func.func @transform_0(%arg0: i32) -> (i32, i32, i32) {
    %c0_i32 = arith.constant 0 : i32
    %c0_i32_0 = arith.constant 0 : i32
    %c0_i32_1 = arith.constant 0 : i32
    return %arg0, %c0_i32, %c0_i32_0 : i32, i32, i32
  }
  func.func @transform_1(%arg0: i32) -> (i32, i32, i32) {
    %c0_i32 = arith.constant 0 : i32
    %c0_i32_0 = arith.constant 0 : i32
    %c0_i32_1 = arith.constant 0 : i32
    %c0_i32_2 = arith.constant 0 : i32
    return %c0_i32, %c0_i32_0, %c0_i32_1 : i32, i32, i32
  }
  func.func @transform_2(%arg0: i32) -> (i32, i32) {
    %c0_i32 = arith.constant 0 : i32
    %c0_i32_0 = arith.constant 0 : i32
    %c0_i32_1 = arith.constant 0 : i32
    return %c0_i32, %c0_i32_0 : i32, i32
  }
  func.func @transform_3(%arg0: i32) -> (i32, i32) {
    %c0_i32 = arith.constant 0 : i32
    %c0_i32_0 = arith.constant 0 : i32
    %c0_i32_1 = arith.constant 0 : i32
    return %c0_i32, %c0_i32_0 : i32, i32
  }
  func.func @transform_4(%arg0: i32) -> (i32, i32, i32) {
    %c0_i32 = arith.constant 0 : i32
    %c0_i32_0 = arith.constant 0 : i32
    %c0_i32_1 = arith.constant 0 : i32
    %c0_i32_2 = arith.constant 0 : i32
    return %c0_i32, %c0_i32_0, %c0_i32_1 : i32, i32, i32
  }
  func.func @transform_5(%arg0: i32) -> (i32, i32) {
    %c0_i32 = arith.constant 0 : i32
    %c0_i32_0 = arith.constant 0 : i32
    %c0_i32_1 = arith.constant 0 : i32
    return %c0_i32, %c0_i32_0 : i32, i32
  }
  func.func @transform_6(%arg0: i32) -> (i32, i32) {
    %c0_i32 = arith.constant 0 : i32
    %c0_i32_0 = arith.constant 0 : i32
    %c0_i32_1 = arith.constant 0 : i32
    return %c0_i32, %c0_i32_0 : i32, i32
  }
  func.func @transform_7(%arg0: i32) -> (i32, i32) {
    %c0_i32 = arith.constant 0 : i32
    %c0_i32_0 = arith.constant 0 : i32
    %c0_i32_1 = arith.constant 0 : i32
    return %c0_i32, %c0_i32_0 : i32, i32
  }
  func.func @transform_8(%arg0: i32) -> (i32, i32, i32) {
    %c0_i32 = arith.constant 0 : i32
    %c0_i32_0 = arith.constant 0 : i32
    %c0_i32_1 = arith.constant 0 : i32
    return %arg0, %c0_i32, %c0_i32_0 : i32, i32, i32
  }
}

</mosaic_0001>

<llo_original>
// kernel: bottleneck_pallas.1
$region0: #{bottleneck_pallas.1}
  #allocation0 [shape = 'u32[]', space=smem, size = 0x4, offset = 0x4, fixed_abs, tag = 'smem constant byte address 0x4 - core index']
  #allocation1 [shape = 'u32[144,128]{1,0:T(1,128)}', space=vmem, size = 0x12000, scoped, tag = 'internal scratch']
  #allocation2 [shape = 'f32[304,4]{1,0:T(8,128)}', space=vmem, size = 0x26000, scoped, tag = 'scratch operand']
  %s0 = inlined_call_operand.vmem [shape: f32[2,512,16], index: 0, kind: input, shape index: {}]
  %s1 = inlined_call_operand.vmem [shape: f32[2,256,1], index: 1, kind: input, shape index: {}]
  %s2 = inlined_call_operand.vmem [shape: f32[16,4], index: 2, kind: input, shape index: {}]
  %s3 = inlined_call_operand.vmem [shape: f32[1,4], index: 3, kind: input, shape index: {}]
  %s4 = inlined_call_operand.vmem [shape: f32[9,4,4], index: 4, kind: input, shape index: {}]
  %s5 = inlined_call_operand.vmem [shape: f32[1,4], index: 5, kind: input, shape index: {}]
  %s6 = inlined_call_operand.vmem [shape: f32[4,16], index: 6, kind: input, shape index: {}]
  %s7 = inlined_call_operand.vmem [shape: f32[1,16], index: 7, kind: input, shape index: {}]
  %s8 = inlined_call_operand.vmem [shape: f32[2,512,16], index: 8, kind: output, shape index: {}]
  %s9 = sld [smem:[#allocation0]]
  $region65: #{bottleneck_pallas.1} parent=0
    _
  %s11 = ssub.s32 1, %s9
  %s12 = scalar_select 0, %s11, %s9
  loop: start=0, step=1, limit=4
  $region2: #{bottleneck_pallas.1} parent=0 // loop_pre_header
    _
  $region3: #{bottleneck_pallas.1} parent=0 // loop_header
    %s14 = sphi 0, %s18
    %p15 = scmp.ge.s32.totalorder %s14, 4
    %s24 = sphi 0, %s26
    %s27 = sphi 0, %s24
    %s28 = sphi 0, %s27
    %s44 = sphi 0, %s28
    %s48 = sphi 0, %s48
    %s50 = sphi 0, %s48
    %s51 = sphi 0, %s50
    %s65 = sphi 0, %s51
    %s69 = sphi 0, %s69
    %s71 = sphi 0, %s69
    %s72 = sphi 0, %s71
    %s86 = sphi 0, %s72
    %s90 = sphi 0, %s90
    %s92 = sphi 0, %s90
    %s93 = sphi 0, %s92
    %s107 = sphi 0, %s93
    %s111 = sphi 0, %s111
    %s113 = sphi 0, %s111
    %s114 = sphi 0, %s113
    %s128 = sphi 0, %s114
    %s132 = sphi 0, %s132
    %s134 = sphi 0, %s132
    %s135 = sphi 0, %s134
    %s149 = sphi 0, %s135
    %s153 = sphi 0, %s153
    %s155 = sphi 0, %s153
    %s156 = sphi 0, %s155
    %s170 = sphi 0, %s156
    %s174 = sphi 0, %s174
    %s176 = sphi 0, %s174
    %s177 = sphi 0, %s176
    %s191 = sphi 0, %s177
    %s197 = sphi 0, %s199
    %s200 = sphi 0, %s197
    %s201 = sphi 0, %s200
    %s217 = sphi 0, %s201
  $region4: #{bottleneck_pallas.1} parent=0 // loop_header_branch
    %17 = sbr.rel (%p15) target = $region8
  $region5: #{bottleneck_pallas.1} parent=0 // loop_body
    %s19 = ssub.s32 %s14, 1
    %s20 = ssub.s32 %s14, 2
    %s21 = sadd.s32 %s14, 1
    %s22 = ssub.s32 %s14, %s21
    %p23 = scmp.eq.s32.totalorder %s22, 0
    %s25 = sadd.s32 %s24, 1
    %s26 = scalar_select %p23, %s24, %s25
    %p29 = pneg %p23
    %p30 = scmp.eq.s32.totalorder %s14, 1
    %p31 = por %p29, %p30
    %p32 = scmp.ne.s32.totalorder %s24, %s27
    %p33 = scmp.eq.s32.totalorder %s14, 0
    %p34 = por %p32, %p33
    %p35 = scmp.ne.s32.totalorder %s24, %s27
    %p36 = scmp.eq.s32.totalorder %s19, 1
    %p37 = por %p35, %p36
    %p38 = scmp.ne.s32.totalorder %s27, %s28
    %p39 = scmp.eq.s32.totalorder %s19, 0
    %p40 = por %p38, %p39
    %p41 = scmp.ne.s32.totalorder %s27, %s28
    %p42 = scmp.eq.s32.totalorder %s20, 1
    %p43 = por %p41, %p42
    %p45 = scmp.ne.s32.totalorder %s28, %s44
    %p46 = scmp.eq.s32.totalorder %s20, 0
    %p47 = por %p45, %p46
    %s49 = sadd.s32 %s48, 1
    %p52 = scmp.eq.s32.totalorder %s14, 1
    %p53 = scmp.ne.s32.totalorder %s48, %s50
    %p54 = scmp.eq.s32.totalorder %s14, 0
    %p55 = por %p53, %p54
    %p56 = scmp.ne.s32.totalorder %s48, %s50
    %p57 = scmp.eq.s32.totalorder %s19, 1
    %p58 = por %p56, %p57
    %p59 = scmp.ne.s32.totalorder %s50, %s51
    %p60 = scmp.eq.s32.totalorder %s19, 0
    %p61 = por %p59, %p60
    %p62 = scmp.ne.s32.totalorder %s50, %s51
    %p63 = scmp.eq.s32.totalorder %s20, 1
    %p64 = por %p62, %p63
    %p66 = scmp.ne.s32.totalorder %s51, %s65
    %p67 = scmp.eq.s32.totalorder %s20, 0
    %p68 = por %p66, %p67
    %s70 = sadd.s32 %s69, 1
    %p73 = scmp.eq.s32.totalorder %s14, 1
    %p74 = scmp.ne.s32.totalorder %s69, %s71
    %p75 = scmp.eq.s32.totalorder %s14, 0
    %p76 = por %p74, %p75
    %p77 = scmp.ne.s32.totalorder %s69, %s71
    %p78 = scmp.eq.s32.totalorder %s19, 1
    %p79 = por %p77, %p78
    %p80 = scmp.ne.s32.totalorder %s71, %s72
    %p81 = scmp.eq.s32.totalorder %s19, 0
    %p82 = por %p80, %p81
    %p83 = scmp.ne.s32.totalorder %s71, %s72
    %p84 = scmp.eq.s32.totalorder %s20, 1
    %p85 = por %p83, %p84
    %p87 = scmp.ne.s32.totalorder %s72, %s86
    %p88 = scmp.eq.s32.totalorder %s20, 0
    %p89 = por %p87, %p88
    %s91 = sadd.s32 %s90, 1
    %p94 = scmp.eq.s32.totalorder %s14, 1
    %p95 = scmp.ne.s32.totalorder %s90, %s92
    %p96 = scmp.eq.s32.totalorder %s14, 0
    %p97 = por %p95, %p96
    %p98 = scmp.ne.s32.totalorder %s90, %s92
    %p99 = scmp.eq.s32.totalorder %s19, 1
    %p100 = por %p98, %p99
    %p101 = scmp.ne.s32.totalorder %s92, %s93
    %p102 = scmp.eq.s32.totalorder %s19, 0
    %p103 = por %p101, %p102
    %p104 = scmp.ne.s32.totalorder %s92, %s93
    %p105 = scmp.eq.s32.totalorder %s20, 1
    %p106 = por %p104, %p105
    %p108 = scmp.ne.s32.totalorder %s93, %s107
    %p109 = scmp.eq.s32.totalorder %s20, 0
    %p110 = por %p108, %p109
    %s112 = sadd.s32 %s111, 1
    %p115 = scmp.eq.s32.totalorder %s14, 1
    %p116 = scmp.ne.s32.totalorder %s111, %s113
    %p117 = scmp.eq.s32.totalorder %s14, 0
    %p118 = por %p116, %p117
    %p119 = scmp.ne.s32.totalorder %s111, %s113
    %p120 = scmp.eq.s32.totalorder %s19, 1
    %p121 = por %p119, %p120
    %p122 = scmp.ne.s32.totalorder %s113, %s114
    %p123 = scmp.eq.s32.totalorder %s19, 0
    %p124 = por %p122, %p123
    %p125 = scmp.ne.s32.totalorder %s113, %s114
    %p126 = scmp.eq.s32.totalorder %s20, 1
    %p127 = por %p125, %p126
    %p129 = scmp.ne.s32.totalorder %s114, %s128
    %p130 = scmp.eq.s32.totalorder %s20, 0
    %p131 = por %p129, %p130
    %s133 = sadd.s32 %s132, 1
    %p136 = scmp.eq.s32.totalorder %s14, 1
    %p137 = scmp.ne.s32.totalorder %s132, %s134
    %p138 = scmp.eq.s32.totalorder %s14, 0
    %p139 = por %p137, %p138
    %p140 = scmp.ne.s32.totalorder %s132, %s134
    %p141 = scmp.eq.s32.totalorder %s19, 1
    %p142 = por %p140, %p141
    %p143 = scmp.ne.s32.totalorder %s134, %s135
    %p144 = scmp.eq.s32.totalorder %s19, 0
    %p145 = por %p143, %p144
    %p146 = scmp.ne.s32.totalorder %s134, %s135
    %p147 = scmp.eq.s32.totalorder %s20, 1
    %p148 = por %p146, %p147
    %p150 = scmp.ne.s32.totalorder %s135, %s149
    %p151 = scmp.eq.s32.totalorder %s20, 0
    %p152 = por %p150, %p151
    %s154 = sadd.s32 %s153, 1
    %p157 = scmp.eq.s32.totalorder %s14, 1
    %p158 = scmp.ne.s32.totalorder %s153, %s155
    %p159 = scmp.eq.s32.totalorder %s14, 0
    %p160 = por %p158, %p159
    %p161 = scmp.ne.s32.totalorder %s153, %s155
    %p162 = scmp.eq.s32.totalorder %s19, 1
    %p163 = por %p161, %p162
    %p164 = scmp.ne.s32.totalorder %s155, %s156
    %p165 = scmp.eq.s32.totalorder %s19, 0
    %p166 = por %p164, %p165
    %p167 = scmp.ne.s32.totalorder %s155, %s156
    %p168 = scmp.eq.s32.totalorder %s20, 1
    %p169 = por %p167, %p168
    %p171 = scmp.ne.s32.totalorder %s156, %s170
    %p172 = scmp.eq.s32.totalorder %s20, 0
    %p173 = por %p171, %p172
    %s175 = sadd.s32 %s174, 1
    %p178 = scmp.eq.s32.totalorder %s14, 1
    %p179 = scmp.ne.s32.totalorder %s174, %s176
    %p180 = scmp.eq.s32.totalorder %s14, 0
    %p181 = por %p179, %p180
    %p182 = scmp.ne.s32.totalorder %s174, %s176
    %p183 = scmp.eq.s32.totalorder %s19, 1
    %p184 = por %p182, %p183
    %p185 = scmp.ne.s32.totalorder %s176, %s177
    %p186 = scmp.eq.s32.totalorder %s19, 0
    %p187 = por %p185, %p186
    %p188 = scmp.ne.s32.totalorder %s176, %s177
    %p189 = scmp.eq.s32.totalorder %s20, 1
    %p190 = por %p188, %p189
    %p192 = scmp.ne.s32.totalorder %s177, %s191
    %p193 = scmp.eq.s32.totalorder %s20, 0
    %p194 = por %p192, %p193
    %s195 = ssub.s32 %s14, %s21
    %p196 = scmp.eq.s32.totalorder %s195, 0
    %s198 = sadd.s32 %s197, 1
    %s199 = scalar_select %p196, %s197, %s198
    %p202 = pneg %p196
    %p203 = scmp.eq.s32.totalorder %s14, 1
    %p204 = por %p202, %p203
    %p205 = scmp.ne.s32.totalorder %s197, %s200
    %p206 = scmp.eq.s32.totalorder %s14, 0
    %p207 = por %p205, %p206
    %p208 = scmp.ne.s32.totalorder %s197, %s200
    %p209 = scmp.eq.s32.totalorder %s19, 1
    %p210 = por %p208, %p209
    %p211 = scmp.ne.s32.totalorder %s200, %s201
    %p212 = scmp.eq.s32.totalorder %s19, 0
    %p213 = por %p211, %p212
    %p214 = scmp.ne.s32.totalorder %s200, %s201
    %p215 = scmp.eq.s32.totalorder %s20, 1
    %p216 = por %p214, %p215
    %p218 = scmp.ne.s32.totalorder %s201, %s217
    %p219 = scmp.eq.s32.totalorder %s20, 0
    %p220 = por %p218, %p219
    %p221 = scmp.le.s32.totalorder 1, %s14
    %p222 = scmp.lt.s32.totalorder %s14, 3
    %p223 = pnand %p221, %p222
    %p224 = pneg %p223
    // Predicated region
    $region9: #{bottleneck_pallas.1} parent=5 // pred_check
      _
    $region10: #{bottleneck_pallas.1} parent=5 // pred_check_branch
      %226 = sbr.rel (%p223) target = $region12
    $region11: #{bottleneck_pallas.1} parent=5 // pred_region
      %s227 = ssub.s32 %s14, 1
      // Predicated region
      $region13: #{bottleneck_pallas.1} parent=11 // pred_check
        %p228 = pneg %p61
      $region14: #{bottleneck_pallas.1} parent=11 // pred_check_branch
        %230 = sbr.rel (%p228) target = $region16
      $region15: #{bottleneck_pallas.1} parent=11 // pred_region
        _
      $region16: #{bottleneck_pallas.1} parent=11 // pred_fallthru
        _
      // Predicated region
      $region17: #{bottleneck_pallas.1} parent=11 // pred_check
        %p231 = pneg %p82
      $region18: #{bottleneck_pallas.1} parent=11 // pred_check_branch
        %233 = sbr.rel (%p231) target = $region20
      $region19: #{bottleneck_pallas.1} parent=11 // pred_region
        _
      $region20: #{bottleneck_pallas.1} parent=11 // pred_fallthru
        _
      // Predicated region
      $region21: #{bottleneck_pallas.1} parent=11 // pred_check
        %p234 = pneg %p103
      $region22: #{bottleneck_pallas.1} parent=11 // pred_check_branch
        %236 = sbr.rel (%p234) target = $region24
      $region23: #{bottleneck_pallas.1} parent=11 // pred_region
        _
      $region24: #{bottleneck_pallas.1} parent=11 // pred_fallthru
        _
      // Predicated region
      $region25: #{bottleneck_pallas.1} parent=11 // pred_check
        %p237 = pneg %p124
      $region26: #{bottleneck_pallas.1} parent=11 // pred_check_branch
        %239 = sbr.rel (%p237) target = $region28
      $region27: #{bottleneck_pallas.1} parent=11 // pred_region
        _
      $region28: #{bottleneck_pallas.1} parent=11 // pred_fallthru
        _
      // Predicated region
      $region29: #{bottleneck_pallas.1} parent=11 // pred_check
        %p240 = pneg %p145
      $region30: #{bottleneck_pallas.1} parent=11 // pred_check_branch
        %242 = sbr.rel (%p240) target = $region32
      $region31: #{bottleneck_pallas.1} parent=11 // pred_region
        _
      $region32: #{bottleneck_pallas.1} parent=11 // pred_fallthru
        _
      // Predicated region
      $region33: #{bottleneck_pallas.1} parent=11 // pred_check
        %p243 = pneg %p166
      $region34: #{bottleneck_pallas.1} parent=11 // pred_check_branch
        %245 = sbr.rel (%p243) target = $region36
      $region35: #{bottleneck_pallas.1} parent=11 // pred_region
        _
      $region36: #{bottleneck_pallas.1} parent=11 // pred_fallthru
        _
      // Predicated region
      $region37: #{bottleneck_pallas.1} parent=11 // pred_check
        %p246 = pneg %p187
      $region38: #{bottleneck_pallas.1} parent=11 // pred_check_branch
        %248 = sbr.rel (%p246) target = $region40
      $region39: #{bottleneck_pallas.1} parent=11 // pred_region
        _
      $region40: #{bottleneck_pallas.1} parent=11 // pred_fallthru
        _
    $region12: #{bottleneck_pallas.1} parent=5 // pred_fallthru
      _
    %p249 = scmp.lt.s32.totalorder %s14, 2
    // Predicated region
    $region41: #{bottleneck_pallas.1} parent=5 // pred_check
      %p250 = pneg %p249
    $region42: #{bottleneck_pallas.1} parent=5 // pred_check_branch
      %252 = sbr.rel (%p250) target = $region44
    $region43: #{bottleneck_pallas.1} parent=5 // pred_region
      // Predicated region
      $region45: #{bottleneck_pallas.1} parent=43 // pred_check
        %p253 = pneg %p34
      $region46: #{bottleneck_pallas.1} parent=43 // pred_check_branch
        %255 = sbr.rel (%p253) target = $region48
      $region47: #{bottleneck_pallas.1} parent=43 // pred_region
        %p256 = scmp.lt.s32.totalorder %s14, 1
        %s257 = scalar_select %p256, %s14, 1
        %s258 = smul.addr %s257, 64
        %s259 = smul.addr %s258, 8
        %s260 = scalar_lea.vmem %s0, %s259
      $region48: #{bottleneck_pallas.1} parent=43 // pred_fallthru
        _
    $region44: #{bottleneck_pallas.1} parent=5 // pred_fallthru
      _
    %p261 = scmp.le.s32.totalorder 1, %s14
    %p262 = scmp.lt.s32.totalorder %s14, 3
    %p263 = pnand %p261, %p262
    %p264 = pneg %p263
    // Predicated region
    $region49: #{bottleneck_pallas.1} parent=5 // pred_check
      _
    $region50: #{bottleneck_pallas.1} parent=5 // pred_check_branch
      %266 = sbr.rel (%p263) target = $region52
    $region51: #{bottleneck_pallas.1} parent=5 // pred_region
      %s267 = ssub.s32 %s14, 1
      %p268 = scmp.lt.s32.totalorder %s19, 1
      %s269 = scalar_select %p268, %s19, 1
      %s270 = smul.addr %s269, 64
      %s271 = smul.addr %s270, 8
      %s272 = scalar_lea.vmem %s0, %s271
      %p273 = pneg %p40
      %p274 = pneg %p37
      %p275 = pneg %p61
      %p276 = pneg %p58
      %p277 = pneg %p82
      %p278 = pneg %p79
      %p279 = pneg %p103
      %p280 = pneg %p100
      %p281 = pneg %p124
      %p282 = pneg %p121
      %p283 = pneg %p145
      %p284 = pneg %p142
      %p285 = pneg %p166
      %p286 = pneg %p163
      %p287 = pneg %p187
      %p288 = pneg %p184
      %p289 = pneg %p213
      %p290 = pneg %p210
      %p291 = scmp.lt.s32.totalorder %s19, 1
      %s292 = scalar_select %p291, %s19, 1
      %s293 = smul.addr %s292, 64
      %s294 = smul.addr %s293, 8
      %s295 = scalar_lea.vmem %s8, %s294
      %p296 = scmp.lt.s32.totalorder %s19, 1
      %s297 = scalar_select %p296, %s19, 1
      %s298 = smul.addr %s297, 64
      %s299 = smul.addr %s298, 8
      %s300 = scalar_lea.vmem %s0, %s299
      %p301 = scmp.lt.s32.totalorder %s19, 1
      %s302 = scalar_select %p301, %s19, 1
      %s303 = smul.addr %s302, 64
      %s304 = smul.addr %s303, 8
      %s305 = scalar_lea.vmem %s8, %s304
      %vm306 = vcmask 31744
      %307 = vst.msk [vmem:[#allocation2] sm:$0xff] %vm306, 0.0
      %308 = vst.msk [vmem:[#allocation2 + $0x8] sm:$0xff] %vm306, 0.0
      %309 = vst.msk [vmem:[#allocation2 + $0x10] sm:$0xff] %vm306, 0.0
      %310 = vst.msk [vmem:[#allocation2 + $0x118] sm:$0xff] %vm306, 0.0
      %311 = vst.msk [vmem:[#allocation2 + $0x120] sm:$0xff] %vm306, 0.0
      %312 = vst.msk [vmem:[#allocation2 + $0x128] sm:$0xff] %vm306, 0.0
      %v313 = vld [vmem:[%s1] sm:$0xff]
      %v314 = vld [vmem:[%s1 + $0x8] sm:$0xff]
      %v315 = vld [vmem:[%s1 + $0x10] sm:$0xff]
      %v316 = vld [vmem:[%s1 + $0x18] sm:$0xff]
      %v317 = vld [vmem:[%s1 + $0x20] sm:$0xff]
      %v318 = vld [vmem:[%s1 + $0x28] sm:$0xff]
      %v319 = vld [vmem:[%s1 + $0x30] sm:$0xff]
      %v320 = vld [vmem:[%s1 + $0x38] sm:$0xff]
      %v321 = vld [vmem:[%s1 + $0x40] sm:$0xff]
      %v322 = vld [vmem:[%s1 + $0x48] sm:$0xff]
      %v323 = vld [vmem:[%s1 + $0x50] sm:$0xff]
      %v324 = vld [vmem:[%s1 + $0x58] sm:$0xff]
      %v325 = vld [vmem:[%s1 + $0x60] sm:$0xff]
      %v326 = vld [vmem:[%s1 + $0x68] sm:$0xff]
      %v327 = vld [vmem:[%s1 + $0x70] sm:$0xff]
      %v328 = vld [vmem:[%s1 + $0x78] sm:$0xff]
      %v329 = vld [vmem:[%s1 + $0x80] sm:$0xff]
      %v330 = vld [vmem:[%s1 + $0x88] sm:$0xff]
      %v331 = vld [vmem:[%s1 + $0x90] sm:$0xff]
      %v332 = vld [vmem:[%s1 + $0x98] sm:$0xff]
      %v333 = vld [vmem:[%s1 + $0xa0] sm:$0xff]
      %v334 = vld [vmem:[%s1 + $0xa8] sm:$0xff]
      %v335 = vld [vmem:[%s1 + $0xb0] sm:$0xff]
      %v336 = vld [vmem:[%s1 + $0xb8] sm:$0xff]
      %v337 = vld [vmem:[%s1 + $0xc0] sm:$0xff]
      %v338 = vld [vmem:[%s1 + $0xc8] sm:$0xff]
      %v339 = vld [vmem:[%s1 + $0xd0] sm:$0xff]
      %v340 = vld [vmem:[%s1 + $0xd8] sm:$0xff]
      %v341 = vld [vmem:[%s1 + $0xe0] sm:$0xff]
      %v342 = vld [vmem:[%s1 + $0xe8] sm:$0xff]
      %v343 = vld [vmem:[%s1 + $0xf0] sm:$0xff]
      %v344 = vld [vmem:[%s1 + $0xf8] sm:$0xff]
      %s345 = scalar_lea.vmem %s1, 256
      %v346 = vld [vmem:[%s345] sm:$0xff]
      %v347 = vld [vmem:[%s345 + $0x8] sm:$0xff]
      %v348 = vld [vmem:[%s345 + $0x10] sm:$0xff]
      %v349 = vld [vmem:[%s345 + $0x18] sm:$0xff]
      %v350 = vld [vmem:[%s345 + $0x20] sm:$0xff]
      %v351 = vld [vmem:[%s345 + $0x28] sm:$0xff]
      %v352 = vld [vmem:[%s345 + $0x30] sm:$0xff]
      %v353 = vld [vmem:[%s345 + $0x38] sm:$0xff]
      %v354 = vld [vmem:[%s345 + $0x40] sm:$0xff]
      %v355 = vld [vmem:[%s345 + $0x48] sm:$0xff]
      %v356 = vld [vmem:[%s345 + $0x50] sm:$0xff]
      %v357 = vld [vmem:[%s345 + $0x58] sm:$0xff]
      %v358 = vld [vmem:[%s345 + $0x60] sm:$0xff]
      %v359 = vld [vmem:[%s345 + $0x68] sm:$0xff]
      %v360 = vld [vmem:[%s345 + $0x70] sm:$0xff]
      %v361 = vld [vmem:[%s345 + $0x78] sm:$0xff]
      %v362 = vld [vmem:[%s345 + $0x80] sm:$0xff]
      %v363 = vld [vmem:[%s345 + $0x88] sm:$0xff]
      %v364 = vld [vmem:[%s345 + $0x90] sm:$0xff]
      %v365 = vld [vmem:[%s345 + $0x98] sm:$0xff]
      %v366 = vld [vmem:[%s345 + $0xa0] sm:$0xff]
      %v367 = vld [vmem:[%s345 + $0xa8] sm:$0xff]
      %v368 = vld [vmem:[%s345 + $0xb0] sm:$0xff]
      %v369 = vld [vmem:[%s345 + $0xb8] sm:$0xff]
      %v370 = vld [vmem:[%s345 + $0xc0] sm:$0xff]
      %v371 = vld [vmem:[%s345 + $0xc8] sm:$0xff]
      %v372 = vld [vmem:[%s345 + $0xd0] sm:$0xff]
      %v373 = vld [vmem:[%s345 + $0xd8] sm:$0xff]
      %v374 = vld [vmem:[%s345 + $0xe0] sm:$0xff]
      %v375 = vld [vmem:[%s345 + $0xe8] sm:$0xff]
      %v376 = vld [vmem:[%s345 + $0xf0] sm:$0xff]
      %v377 = vld [vmem:[%s345 + $0xf8] sm:$0xff]
      %v378 = vld [vmem:[%s300] sm:$0xff]
      %v379 = vld [vmem:[%s300 + $0x8] sm:$0xff]
      %v380 = vld [vmem:[%s300 + $0x10] sm:$0xff]
      %v381 = vld [vmem:[%s300 + $0x18] sm:$0xff]
      %v382 = vld [vmem:[%s300 + $0x20] sm:$0xff]
      %v383 = vld [vmem:[%s300 + $0x28] sm:$0xff]
      %v384 = vld [vmem:[%s300 + $0x30] sm:$0xff]
      %v385 = vld [vmem:[%s300 + $0x38] sm:$0xff]
      %v386 = vld [vmem:[%s300 + $0x40] sm:$0xff]
      %v387 = vld [vmem:[%s300 + $0x48] sm:$0xff]
      %v388 = vld [vmem:[%s300 + $0x50] sm:$0xff]
      %v389 = vld [vmem:[%s300 + $0x58] sm:$0xff]
      %v390 = vld [vmem:[%s300 + $0x60] sm:$0xff]
      %v391 = vld [vmem:[%s300 + $0x68] sm:$0xff]
      %v392 = vld [vmem:[%s300 + $0x70] sm:$0xff]
      %v393 = vld [vmem:[%s300 + $0x78] sm:$0xff]
      %v394 = vld [vmem:[%s300 + $0x80] sm:$0xff]
      %v395 = vld [vmem:[%s300 + $0x88] sm:$0xff]
      %v396 = vld [vmem:[%s300 + $0x90] sm:$0xff]
      %v397 = vld [vmem:[%s300 + $0x98] sm:$0xff]
      %v398 = vld [vmem:[%s300 + $0xa0] sm:$0xff]
      %v399 = vld [vmem:[%s300 + $0xa8] sm:$0xff]
      %v400 = vld [vmem:[%s300 + $0xb0] sm:$0xff]
      %v401 = vld [vmem:[%s300 + $0xb8] sm:$0xff]
      %v402 = vld [vmem:[%s300 + $0xc0] sm:$0xff]
      %v403 = vld [vmem:[%s300 + $0xc8] sm:$0xff]
      %v404 = vld [vmem:[%s300 + $0xd0] sm:$0xff]
      %v405 = vld [vmem:[%s300 + $0xd8] sm:$0xff]
      %v406 = vld [vmem:[%s300 + $0xe0] sm:$0xff]
      %v407 = vld [vmem:[%s300 + $0xe8] sm:$0xff]
      %v408 = vld [vmem:[%s300 + $0xf0] sm:$0xff]
      %v409 = vld [vmem:[%s300 + $0xf8] sm:$0xff]
      %v410 = vld [vmem:[%s300 + $0x100] sm:$0xff]
      %v411 = vld [vmem:[%s300 + $0x108] sm:$0xff]
      %v412 = vld [vmem:[%s300 + $0x110] sm:$0xff]
      %v413 = vld [vmem:[%s300 + $0x118] sm:$0xff]
      %v414 = vld [vmem:[%s300 + $0x120] sm:$0xff]
      %v415 = vld [vmem:[%s300 + $0x128] sm:$0xff]
      %v416 = vld [vmem:[%s300 + $0x130] sm:$0xff]
      %v417 = vld [vmem:[%s300 + $0x138] sm:$0xff]
      %v418 = vld [vmem:[%s300 + $0x140] sm:$0xff]
      %v419 = vld [vmem:[%s300 + $0x148] sm:$0xff]
      %v420 = vld [vmem:[%s300 + $0x150] sm:$0xff]
      %v421 = vld [vmem:[%s300 + $0x158] sm:$0xff]
      %v422 = vld [vmem:[%s300 + $0x160] sm:$0xff]
      %v423 = vld [vmem:[%s300 + $0x168] sm:$0xff]
      %v424 = vld [vmem:[%s300 + $0x170] sm:$0xff]
      %v425 = vld [vmem:[%s300 + $0x178] sm:$0xff]
      %v426 = vld [vmem:[%s300 + $0x180] sm:$0xff]
      %v427 = vld [vmem:[%s300 + $0x188] sm:$0xff]
      %v428 = vld [vmem:[%s300 + $0x190] sm:$0xff]
      %v429 = vld [vmem:[%s300 + $0x198] sm:$0xff]
      %v430 = vld [vmem:[%s300 + $0x1a0] sm:$0xff]
      %v431 = vld [vmem:[%s300 + $0x1a8] sm:$0xff]
      %v432 = vld [vmem:[%s300 + $0x1b0] sm:$0xff]
      %v433 = vld [vmem:[%s300 + $0x1b8] sm:$0xff]
      %v434 = vld [vmem:[%s300 + $0x1c0] sm:$0xff]
      %v435 = vld [vmem:[%s300 + $0x1c8] sm:$0xff]
      %v436 = vld [vmem:[%s300 + $0x1d0] sm:$0xff]
      %v437 = vld [vmem:[%s300 + $0x1d8] sm:$0xff]
      %v438 = vld [vmem:[%s300 + $0x1e0] sm:$0xff]
      %v439 = vld [vmem:[%s300 + $0x1e8] sm:$0xff]
      %v440 = vld [vmem:[%s300 + $0x1f0] sm:$0xff]
      %v441 = vld [vmem:[%s300 + $0x1f8] sm:$0xff]
      %v442 = vld [vmem:[%s2] sm:$0xff]
      %v443 = vld [vmem:[%s2 + $0x8] sm:$0xff]
      %v444 = vld [vmem:[%s3] sm:$0x1]
      %v446 = vlaneseq
      %v447 = vshrl.u32 %v446, 7
      %v448 = vsub.s32 0, %v447
      %v449 = vrot.slane %v444, %v448
      %vm451 = vcmask 130048
      %v453 = vsel %vm451, %v378, 0
      %v456 = vsel %vm451, %v379, 0
      %v459 = vsel %vm451, %v380, 0
      %v462 = vsel %vm451, %v381, 0
      %v465 = vsel %vm451, %v382, 0
      %v468 = vsel %vm451, %v383, 0
      %v471 = vsel %vm451, %v384, 0
      %v474 = vsel %vm451, %v385, 0
      %v477 = vsel %vm451, %v386, 0
      %v480 = vsel %vm451, %v387, 0
      %v483 = vsel %vm451, %v388, 0
      %v486 = vsel %vm451, %v389, 0
      %v489 = vsel %vm451, %v390, 0
      %v492 = vsel %vm451, %v391, 0
      %v495 = vsel %vm451, %v392, 0
      %v498 = vsel %vm451, %v393, 0
      %v501 = vsel %vm451, %v394, 0
      %v504 = vsel %vm451, %v395, 0
      %v507 = vsel %vm451, %v396, 0
      %v510 = vsel %vm451, %v397, 0
      %v513 = vsel %vm451, %v398, 0
      %v516 = vsel %vm451, %v399, 0
      %v519 = vsel %vm451, %v400, 0
      %v522 = vsel %vm451, %v401, 0
      %v525 = vsel %vm451, %v402, 0
      %v528 = vsel %vm451, %v403, 0
      %v531 = vsel %vm451, %v404, 0
      %v534 = vsel %vm451, %v405, 0
      %v537 = vsel %vm451, %v406, 0
      %v540 = vsel %vm451, %v407, 0
      %v543 = vsel %vm451, %v408, 0
      %v546 = vsel %vm451, %v409, 0
      %v549 = vsel %vm451, %v410, 0
      %v552 = vsel %vm451, %v411, 0
      %v555 = vsel %vm451, %v412, 0
      %v558 = vsel %vm451, %v413, 0
      %v561 = vsel %vm451, %v414, 0
      %v564 = vsel %vm451, %v415, 0
      %v567 = vsel %vm451, %v416, 0
      %v570 = vsel %vm451, %v417, 0
      %v573 = vsel %vm451, %v418, 0
      %v576 = vsel %vm451, %v419, 0
      %v579 = vsel %vm451, %v420, 0
      %v582 = vsel %vm451, %v421, 0
      %v585 = vsel %vm451, %v422, 0
      %v588 = vsel %vm451, %v423, 0
      %v591 = vsel %vm451, %v424, 0
      %v594 = vsel %vm451, %v425, 0
      %v597 = vsel %vm451, %v426, 0
      %v600 = vsel %vm451, %v427, 0
      %v603 = vsel %vm451, %v428, 0
      %v606 = vsel %vm451, %v429, 0
      %v609 = vsel %vm451, %v430, 0
      %v612 = vsel %vm451, %v431, 0
      %v615 = vsel %vm451, %v432, 0
      %v618 = vsel %vm451, %v433, 0
      %v621 = vsel %vm451, %v434, 0
      %v624 = vsel %vm451, %v435, 0
      %v627 = vsel %vm451, %v436, 0
      %v630 = vsel %vm451, %v437, 0
      %v633 = vsel %vm451, %v438, 0
      %v636 = vsel %vm451, %v439, 0
      %v639 = vsel %vm451, %v440, 0
      %v642 = vsel %vm451, %v441, 0
      %644 = vmatprep.subr.mxu0 0.0
      %645 = vmatpush1.msra.mxu0 %v442
      %646 = vmatprep.subr.mxu0 0.0
      %647 = vmatpush1.msra.mxu0 %v443
      %648 = vmatprep.subr.mxu0 0.0
      %649 = vmatpush1.msra.mxu0 0.0
      %650 = vmatprep.subr.mxu0 0.0
      %651 = vmatpush1.msra.mxu0 0.0
      %652 = vmatprep.subr.mxu0 0.0
      %653 = vmatpush1.msra.mxu0 0.0
      %654 = vmatprep.subr.mxu0 0.0
      %655 = vmatpush1.msra.mxu0 0.0
      %656 = vmatprep.subr.mxu0 0.0
      %657 = vmatpush1.msra.mxu0 0.0
      %658 = vmatprep.subr.mxu0 0.0
      %659 = vmatpush1.msra.mxu0 0.0
      %660 = vmatprep.subr.mxu0 0.0
      %661 = vmatpush1.msra.mxu0 0.0
      %662 = vmatprep.subr.mxu0 0.0
      %663 = vmatpush1.msra.mxu0 0.0
      %664 = vmatprep.subr.mxu0 0.0
      %665 = vmatpush1.msra.mxu0 0.0
      %666 = vmatprep.subr.mxu0 0.0
      %667 = vmatpush1.msra.mxu0 0.0
      %668 = vmatprep.subr.mxu0 0.0
      %669 = vmatpush1.msra.mxu0 0.0
      %670 = vmatprep.subr.mxu0 0.0
      %671 = vmatpush1.msra.mxu0 0.0
      %672 = vmatprep.subr.mxu0 0.0
      %673 = vmatpush1.msra.mxu0 0.0
      %674 = vmatprep.subr.mxu0 0.0
      %675 = vmatpush1.msra.mxu0 0.0
      %676 = vmatprep.subr.mxu0 0.0
      %677 = vmatpush1.msra.mxu0 0.0
      %678 = vmatprep.subr.mxu0 0.0
      %679 = vmatpush1.msra.mxu0 0.0
      %680 = vmatprep.subr.mxu0 0.0
      %681 = vmatpush1.msra.mxu0 0.0
      %682 = vmatprep.subr.mxu0 0.0
      %683 = vmatpush1.msra.mxu0 0.0
      %684 = vmatprep.subr.mxu0 0.0
      %685 = vmatpush1.msra.mxu0 0.0
      %686 = vmatprep.subr.mxu0 0.0
      %687 = vmatpush1.msra.mxu0 0.0
      %688 = vmatprep.subr.mxu0 0.0
      %689 = vmatpush1.msra.mxu0 0.0
      %690 = vmatprep.subr.mxu0 0.0
      %691 = vmatpush1.msra.mxu0 0.0
      %692 = vmatprep.subr.mxu0 0.0
      %693 = vmatpush1.msra.mxu0 0.0
      %694 = vmatprep.subr.mxu0 0.0
      %695 = vmatpush1.msra.mxu0 0.0
      %696 = vmatprep.subr.mxu0 0.0
      %697 = vmatpush1.msra.mxu0 0.0
      %698 = vmatprep.subr.mxu0 0.0
      %699 = vmatpush1.msra.mxu0 0.0
      %700 = vmatprep.subr.mxu0 0.0
      %701 = vmatpush1.msra.mxu0 0.0
      %702 = vmatprep.subr.mxu0 0.0
      %703 = vmatpush1.msra.mxu0 0.0
      %704 = vmatprep.subr.mxu0 0.0
      %705 = vmatpush1.msra.mxu0 0.0
      %706 = vmatprep.subr.mxu0 0.0
      %707 = vmatpush1.msra.mxu0 0.0
      %708 = vmatprep.mubr.f32.mxu0 0.0
      %709 = vmatmul.mubr.f32.gmra.mrb[0].mxu0 %v453
      %v710 = vpop.f32.mrb[0].mxu0
      %v711 = vadd.f32 %v449, %v710
      %v712 = vpop.f32.mrb[0].mxu0
      %713 = vmatprep.mubr.f32.mxu0 0.0
      %714 = vmatmul.mubr.f32.gmra.mrb[0].mxu0 %v456
      %v715 = vpop.f32.mrb[0].mxu0
      %v716 = vadd.f32 %v449, %v715
      %v717 = vpop.f32.mrb[0].mxu0
      %718 = vmatprep.mubr.f32.mxu0 0.0
      %719 = vmatmul.mubr.f32.gmra.mrb[0].mxu0 %v459
      %v720 = vpop.f32.mrb[0].mxu0
      %v721 = vadd.f32 %v449, %v720
      %v722 = vpop.f32.mrb[0].mxu0
      %723 = vmatprep.mubr.f32.mxu0 0.0
      %724 = vmatmul.mubr.f32.gmra.mrb[0].mxu0 %v462
      %v725 = vpop.f32.mrb[0].mxu0
      %v726 = vadd.f32 %v449, %v725
      %v727 = vpop.f32.mrb[0].mxu0
      %728 = vmatprep.mubr.f32.mxu0 0.0
      %729 = vmatmul.mubr.f32.gmra.mrb[0].mxu0 %v465
      %v730 = vpop.f32.mrb[0].mxu0
      %v731 = vadd.f32 %v449, %v730
      %v732 = vpop.f32.mrb[0].mxu0
      %733 = vmatprep.mubr.f32.mxu0 0.0
      %734 = vmatmul.mubr.f32.gmra.mrb[0].mxu0 %v468
      %v735 = vpop.f32.mrb[0].mxu0
      %v736 = vadd.f32 %v449, %v735
      %v737 = vpop.f32.mrb[0].mxu0
      %738 = vmatprep.mubr.f32.mxu0 0.0
      %739 = vmatmul.mubr.f32.gmra.mrb[0].mxu0 %v471
      %v740 = vpop.f32.mrb[0].mxu0
      %v741 = vadd.f32 %v449, %v740
      %v742 = vpop.f32.mrb[0].mxu0
      %743 = vmatprep.mubr.f32.mxu0 0.0
      %744 = vmatmul.mubr.f32.gmra.mrb[0].mxu0 %v474
      %v745 = vpop.f32.mrb[0].mxu0
      %v746 = vadd.f32 %v449, %v745
      %v747 = vpop.f32.mrb[0].mxu0
      %748 = vmatprep.mubr.f32.mxu0 0.0
      %749 = vmatmul.mubr.f32.gmra.mrb[0].mxu0 %v477
      %v750 = vpop.f32.mrb[0].mxu0
      %v751 = vadd.f32 %v449, %v750
      %v752 = vpop.f32.mrb[0].mxu0
      %753 = vmatprep.mubr.f32.mxu0 0.0
      %754 = vmatmul.mubr.f32.gmra.mrb[0].mxu0 %v480
      %v755 = vpop.f32.mrb[0].mxu0
      %v756 = vadd.f32 %v449, %v755
      %v757 = vpop.f32.mrb[0].mxu0
      %758 = vmatprep.mubr.f32.mxu0 0.0
      %759 = vmatmul.mubr.f32.gmra.mrb[0].mxu0 %v483
      %v760 = vpop.f32.mrb[0].mxu0
      %v761 = vadd.f32 %v449, %v760
      %v762 = vpop.f32.mrb[0].mxu0
      %763 = vmatprep.mubr.f32.mxu0 0.0
      %764 = vmatmul.mubr.f32.gmra.mrb[0].mxu0 %v486
      %v765 = vpop.f32.mrb[0].mxu0
      %v766 = vadd.f32 %v449, %v765
      %v767 = vpop.f32.mrb[0].mxu0
      %768 = vmatprep.mubr.f32.mxu0 0.0
      %769 = vmatmul.mubr.f32.gmra.mrb[0].mxu0 %v489
      %v770 = vpop.f32.mrb[0].mxu0
      %v771 = vadd.f32 %v449, %v770
      %v772 = vpop.f32.mrb[0].mxu0
      %773 = vmatprep.mubr.f32.mxu0 0.0
      %774 = vmatmul.mubr.f32.gmra.mrb[0].mxu0 %v492
      %v775 = vpop.f32.mrb[0].mxu0
      %v776 = vadd.f32 %v449, %v775
      %v777 = vpop.f32.mrb[0].mxu0
      %778 = vmatprep.mubr.f32.mxu0 0.0
      %779 = vmatmul.mubr.f32.gmra.mrb[0].mxu0 %v495
      %v780 = vpop.f32.mrb[0].mxu0
      %v781 = vadd.f32 %v449, %v780
      %v782 = vpop.f32.mrb[0].mxu0
      %783 = vmatprep.mubr.f32.mxu0 0.0
      %784 = vmatmul.mubr.f32.gmra.mrb[0].mxu0 %v498
      %v785 = vpop.f32.mrb[0].mxu0
      %v786 = vadd.f32 %v449, %v785
      %v787 = vpop.f32.mrb[0].mxu0
      %788 = vmatprep.mubr.f32.mxu0 0.0
      %789 = vmatmul.mubr.f32.gmra.mrb[0].mxu0 %v501
      %v790 = vpop.f32.mrb[0].mxu0
      %v791 = vadd.f32 %v449, %v790
      %v792 = vpop.f32.mrb[0].mxu0
      %793 = vmatprep.mubr.f32.mxu0 0.0
      %794 = vmatmul.mubr.f32.gmra.mrb[0].mxu0 %v504
      %v795 = vpop.f32.mrb[0].mxu0
      %v796 = vadd.f32 %v449, %v795
      %v797 = vpop.f32.mrb[0].mxu0
      %798 = vmatprep.mubr.f32.mxu0 0.0
      %799 = vmatmul.mubr.f32.gmra.mrb[0].mxu0 %v507
      %v800 = vpop.f32.mrb[0].mxu0
      %v801 = vadd.f32 %v449, %v800
      %v802 = vpop.f32.mrb[0].mxu0
      %803 = vmatprep.mubr.f32.mxu0 0.0
      %804 = vmatmul.mubr.f32.gmra.mrb[0].mxu0 %v510
      %v805 = vpop.f32.mrb[0].mxu0
      %v806 = vadd.f32 %v449, %v805
      %v807 = vpop.f32.mrb[0].mxu0
      %808 = vmatprep.mubr.f32.mxu0 0.0
      %809 = vmatmul.mubr.f32.gmra.mrb[0].mxu0 %v513
      %v810 = vpop.f32.mrb[0].mxu0
      %v811 = vadd.f32 %v449, %v810
      %v812 = vpop.f32.mrb[0].mxu0
      %813 = vmatprep.mubr.f32.mxu0 0.0
      %814 = vmatmul.mubr.f32.gmra.mrb[0].mxu0 %v516
      %v815 = vpop.f32.mrb[0].mxu0
      %v816 = vadd.f32 %v449, %v815
      %v817 = vpop.f32.mrb[0].mxu0
      %818 = vmatprep.mubr.f32.mxu0 0.0
      %819 = vmatmul.mubr.f32.gmra.mrb[0].mxu0 %v519
      %v820 = vpop.f32.mrb[0].mxu0
      %v821 = vadd.f32 %v449, %v820
      %v822 = vpop.f32.mrb[0].mxu0
      %823 = vmatprep.mubr.f32.mxu0 0.0
      %824 = vmatmul.mubr.f32.gmra.mrb[0].mxu0 %v522
      %v825 = vpop.f32.mrb[0].mxu0
      %v826 = vadd.f32 %v449, %v825
      %v827 = vpop.f32.mrb[0].mxu0
      %828 = vmatprep.mubr.f32.mxu0 0.0
      %829 = vmatmul.mubr.f32.gmra.mrb[0].mxu0 %v525
      %v830 = vpop.f32.mrb[0].mxu0
      %v831 = vadd.f32 %v449, %v830
      %v832 = vpop.f32.mrb[0].mxu0
      %833 = vmatprep.mubr.f32.mxu0 0.0
      %834 = vmatmul.mubr.f32.gmra.mrb[0].mxu0 %v528
      %v835 = vpop.f32.mrb[0].mxu0
      %v836 = vadd.f32 %v449, %v835
      %v837 = vpop.f32.mrb[0].mxu0
      %838 = vmatprep.mubr.f32.mxu0 0.0
      %839 = vmatmul.mubr.f32.gmra.mrb[0].mxu0 %v531
      %v840 = vpop.f32.mrb[0].mxu0
      %v841 = vadd.f32 %v449, %v840
      %v842 = vpop.f32.mrb[0].mxu0
      %843 = vmatprep.mubr.f32.mxu0 0.0
      %844 = vmatmul.mubr.f32.gmra.mrb[0].mxu0 %v534
      %v845 = vpop.f32.mrb[0].mxu0
      %v846 = vadd.f32 %v449, %v845
      %v847 = vpop.f32.mrb[0].mxu0
      %848 = vmatprep.mubr.f32.mxu0 0.0
      %849 = vmatmul.mubr.f32.gmra.mrb[0].mxu0 %v537
      %v850 = vpop.f32.mrb[0].mxu0
      %v851 = vadd.f32 %v449, %v850
      %v852 = vpop.f32.mrb[0].mxu0
      %853 = vmatprep.mubr.f32.mxu0 0.0
      %854 = vmatmul.mubr.f32.gmra.mrb[0].mxu0 %v540
      %v855 = vpop.f32.mrb[0].mxu0
      %v856 = vadd.f32 %v449, %v855
      %v857 = vpop.f32.mrb[0].mxu0
      %858 = vmatprep.mubr.f32.mxu0 0.0
      %859 = vmatmul.mubr.f32.gmra.mrb[0].mxu0 %v543
      %v860 = vpop.f32.mrb[0].mxu0
      %v861 = vadd.f32 %v449, %v860
      %v862 = vpop.f32.mrb[0].mxu0
      %863 = vmatprep.mubr.f32.mxu0 0.0
      %864 = vmatmul.mubr.f32.gmra.mrb[0].mxu0 %v546
      %v865 = vpop.f32.mrb[0].mxu0
      %v866 = vadd.f32 %v449, %v865
      %v867 = vpop.f32.mrb[0].mxu0
      %868 = vmatprep.mubr.f32.mxu0 0.0
      %869 = vmatmul.mubr.f32.gmra.mrb[0].mxu0 %v549
      %v870 = vpop.f32.mrb[0].mxu0
      %v871 = vadd.f32 %v449, %v870
      %v872 = vpop.f32.mrb[0].mxu0
      %873 = vmatprep.mubr.f32.mxu0 0.0
      %874 = vmatmul.mubr.f32.gmra.mrb[0].mxu0 %v552
      %v875 = vpop.f32.mrb[0].mxu0
      %v876 = vadd.f32 %v449, %v875
      %v877 = vpop.f32.mrb[0].mxu0
      %878 = vmatprep.mubr.f32.mxu0 0.0
      %879 = vmatmul.mubr.f32.gmra.mrb[0].mxu0 %v555
      %v880 = vpop.f32.mrb[0].mxu0
      %v881 = vadd.f32 %v449, %v880
      %v882 = vpop.f32.mrb[0].mxu0
      %883 = vmatprep.mubr.f32.mxu0 0.0
      %884 = vmatmul.mubr.f32.gmra.mrb[0].mxu0 %v558
      %v885 = vpop.f32.mrb[0].mxu0
      %v886 = vadd.f32 %v449, %v885
      %v887 = vpop.f32.mrb[0].mxu0
      %888 = vmatprep.mubr.f32.mxu0 0.0
      %889 = vmatmul.mubr.f32.gmra.mrb[0].mxu0 %v561
      %v890 = vpop.f32.mrb[0].mxu0
      %v891 = vadd.f32 %v449, %v890
      %v892 = vpop.f32.mrb[0].mxu0
      %893 = vmatprep.mubr.f32.mxu0 0.0
      %894 = vmatmul.mubr.f32.gmra.mrb[0].mxu0 %v564
      %v895 = vpop.f32.mrb[0].mxu0
      %v896 = vadd.f32 %v449, %v895
      %v897 = vpop.f32.mrb[0].mxu0
      %898 = vmatprep.mubr.f32.mxu0 0.0
      %899 = vmatmul.mubr.f32.gmra.mrb[0].mxu0 %v567
      %v900 = vpop.f32.mrb[0].mxu0
      %v901 = vadd.f32 %v449, %v900
      %v902 = vpop.f32.mrb[0].mxu0
      %903 = vmatprep.mubr.f32.mxu0 0.0
      %904 = vmatmul.mubr.f32.gmra.mrb[0].mxu0 %v570
      %v905 = vpop.f32.mrb[0].mxu0
      %v906 = vadd.f32 %v449, %v905
      %v907 = vpop.f32.mrb[0].mxu0
      %908 = vmatprep.mubr.f32.mxu0 0.0
      %909 = vmatmul.mubr.f32.gmra.mrb[0].mxu0 %v573
      %v910 = vpop.f32.mrb[0].mxu0
      %v911 = vadd.f32 %v449, %v910
      %v912 = vpop.f32.mrb[0].mxu0
      %913 = vmatprep.mubr.f32.mxu0 0.0
      %914 = vmatmul.mubr.f32.gmra.mrb[0].mxu0 %v576
      %v915 = vpop.f32.mrb[0].mxu0
      %v916 = vadd.f32 %v449, %v915
      %v917 = vpop.f32.mrb[0].mxu0
      %918 = vmatprep.mubr.f32.mxu0 0.0
      %919 = vmatmul.mubr.f32.gmra.mrb[0].mxu0 %v579
      %v920 = vpop.f32.mrb[0].mxu0
      %v921 = vadd.f32 %v449, %v920
      %v922 = vpop.f32.mrb[0].mxu0
      %923 = vmatprep.mubr.f32.mxu0 0.0
      %924 = vmatmul.mubr.f32.gmra.mrb[0].mxu0 %v582
      %v925 = vpop.f32.mrb[0].mxu0
      %v926 = vadd.f32 %v449, %v925
      %v927 = vpop.f32.mrb[0].mxu0
      %928 = vmatprep.mubr.f32.mxu0 0.0
      %929 = vmatmul.mubr.f32.gmra.mrb[0].mxu0 %v585
      %v930 = vpop.f32.mrb[0].mxu0
      %v931 = vadd.f32 %v449, %v930
      %v932 = vpop.f32.mrb[0].mxu0
      %933 = vmatprep.mubr.f32.mxu0 0.0
      %934 = vmatmul.mubr.f32.gmra.mrb[0].mxu0 %v588
      %v935 = vpop.f32.mrb[0].mxu0
      %v936 = vadd.f32 %v449, %v935
      %v937 = vpop.f32.mrb[0].mxu0
      %938 = vmatprep.mubr.f32.mxu0 0.0
      %939 = vmatmul.mubr.f32.gmra.mrb[0].mxu0 %v591
      %v940 = vpop.f32.mrb[0].mxu0
      %v941 = vadd.f32 %v449, %v940
      %v942 = vpop.f32.mrb[0].mxu0
      %943 = vmatprep.mubr.f32.mxu0 0.0
      %944 = vmatmul.mubr.f32.gmra.mrb[0].mxu0 %v594
      %v945 = vpop.f32.mrb[0].mxu0
      %v946 = vadd.f32 %v449, %v945
      %v947 = vpop.f32.mrb[0].mxu0
      %948 = vmatprep.mubr.f32.mxu0 0.0
      %949 = vmatmul.mubr.f32.gmra.mrb[0].mxu0 %v597
      %v950 = vpop.f32.mrb[0].mxu0
      %v951 = vadd.f32 %v449, %v950
      %v952 = vpop.f32.mrb[0].mxu0
      %953 = vmatprep.mubr.f32.mxu0 0.0
      %954 = vmatmul.mubr.f32.gmra.mrb[0].mxu0 %v600
      %v955 = vpop.f32.mrb[0].mxu0
      %v956 = vadd.f32 %v449, %v955
      %v957 = vpop.f32.mrb[0].mxu0
      %958 = vmatprep.mubr.f32.mxu0 0.0
      %959 = vmatmul.mubr.f32.gmra.mrb[0].mxu0 %v603
      %v960 = vpop.f32.mrb[0].mxu0
      %v961 = vadd.f32 %v449, %v960
      %v962 = vpop.f32.mrb[0].mxu0
      %963 = vmatprep.mubr.f32.mxu0 0.0
      %964 = vmatmul.mubr.f32.gmra.mrb[0].mxu0 %v606
      %v965 = vpop.f32.mrb[0].mxu0
      %v966 = vadd.f32 %v449, %v965
      %v967 = vpop.f32.mrb[0].mxu0
      %968 = vmatprep.mubr.f32.mxu0 0.0
      %969 = vmatmul.mubr.f32.gmra.mrb[0].mxu0 %v609
      %v970 = vpop.f32.mrb[0].mxu0
      %v971 = vadd.f32 %v449, %v970
      %v972 = vpop.f32.mrb[0].mxu0
      %973 = vmatprep.mubr.f32.mxu0 0.0
      %974 = vmatmul.mubr.f32.gmra.mrb[0].mxu0 %v612
      %v975 = vpop.f32.mrb[0].mxu0
      %v976 = vadd.f32 %v449, %v975
      %v977 = vpop.f32.mrb[0].mxu0
      %978 = vmatprep.mubr.f32.mxu0 0.0
      %979 = vmatmul.mubr.f32.gmra.mrb[0].mxu0 %v615
      %v980 = vpop.f32.mrb[0].mxu0
      %v981 = vadd.f32 %v449, %v980
      %v982 = vpop.f32.mrb[0].mxu0
      %983 = vmatprep.mubr.f32.mxu0 0.0
      %984 = vmatmul.mubr.f32.gmra.mrb[0].mxu0 %v618
      %v985 = vpop.f32.mrb[0].mxu0
      %v986 = vadd.f32 %v449, %v985
      %v987 = vpop.f32.mrb[0].mxu0
      %988 = vmatprep.mubr.f32.mxu0 0.0
      %989 = vmatmul.mubr.f32.gmra.mrb[0].mxu0 %v621
      %v990 = vpop.f32.mrb[0].mxu0
      %v991 = vadd.f32 %v449, %v990
      %v992 = vpop.f32.mrb[0].mxu0
      %993 = vmatprep.mubr.f32.mxu0 0.0
      %994 = vmatmul.mubr.f32.gmra.mrb[0].mxu0 %v624
      %v995 = vpop.f32.mrb[0].mxu0
      %v996 = vadd.f32 %v449, %v995
      %v997 = vpop.f32.mrb[0].mxu0
      %998 = vmatprep.mubr.f32.mxu0 0.0
      %999 = vmatmul.mubr.f32.gmra.mrb[0].mxu0 %v627
      %v1000 = vpop.f32.mrb[0].mxu0
      %v1001 = vadd.f32 %v449, %v1000
      %v1002 = vpop.f32.mrb[0].mxu0
      %1003 = vmatprep.mubr.f32.mxu0 0.0
      %1004 = vmatmul.mubr.f32.gmra.mrb[0].mxu0 %v630
      %v1005 = vpop.f32.mrb[0].mxu0
      %v1006 = vadd.f32 %v449, %v1005
      %v1007 = vpop.f32.mrb[0].mxu0
      %1008 = vmatprep.mubr.f32.mxu0 0.0
      %1009 = vmatmul.mubr.f32.gmra.mrb[0].mxu0 %v633
      %v1010 = vpop.f32.mrb[0].mxu0
      %v1011 = vadd.f32 %v449, %v1010
      %v1012 = vpop.f32.mrb[0].mxu0
      %1013 = vmatprep.mubr.f32.mxu0 0.0
      %1014 = vmatmul.mubr.f32.gmra.mrb[0].mxu0 %v636
      %v1015 = vpop.f32.mrb[0].mxu0
      %v1016 = vadd.f32 %v449, %v1015
      %v1017 = vpop.f32.mrb[0].mxu0
      %1018 = vmatprep.mubr.f32.mxu0 0.0
      %1019 = vmatmul.mubr.f32.gmra.mrb[0].mxu0 %v639
      %v1020 = vpop.f32.mrb[0].mxu0
      %v1021 = vadd.f32 %v449, %v1020
      %v1022 = vpop.f32.mrb[0].mxu0
      %1023 = vmatprep.mubr.f32.mxu0 0.0
      %1024 = vmatmul.mubr.f32.gmra.mrb[0].mxu0 %v642
      %v1025 = vpop.f32.mrb[0].mxu0
      %v1026 = vadd.f32 %v449, %v1025
      %v1027 = vpop.f32.mrb[0].mxu0
      %1028 = vdwg.mxu0
      %v1029 = vmax.f32 %v711, 0.0
      %v1030 = vmax.f32 %v716, 0.0
      %v1031 = vmax.f32 %v721, 0.0
      %v1032 = vmax.f32 %v726, 0.0
      %v1033 = vmax.f32 %v731, 0.0
      %v1034 = vmax.f32 %v736, 0.0
      %v1035 = vmax.f32 %v741, 0.0
      %v1036 = vmax.f32 %v746, 0.0
      %v1037 = vmax.f32 %v751, 0.0
      %v1038 = vmax.f32 %v756, 0.0
      %v1039 = vmax.f32 %v761, 0.0
      %v1040 = vmax.f32 %v766, 0.0
      %v1041 = vmax.f32 %v771, 0.0
      %v1042 = vmax.f32 %v776, 0.0
      %v1043 = vmax.f32 %v781, 0.0
      %v1044 = vmax.f32 %v786, 0.0
      %v1045 = vmax.f32 %v791, 0.0
      %v1046 = vmax.f32 %v796, 0.0
      %v1047 = vmax.f32 %v801, 0.0
      %v1048 = vmax.f32 %v806, 0.0
      %v1049 = vmax.f32 %v811, 0.0
      %v1050 = vmax.f32 %v816, 0.0
      %v1051 = vmax.f32 %v821, 0.0
      %v1052 = vmax.f32 %v826, 0.0
      %v1053 = vmax.f32 %v831, 0.0
      %v1054 = vmax.f32 %v836, 0.0
      %v1055 = vmax.f32 %v841, 0.0
      %v1056 = vmax.f32 %v846, 0.0
      %v1057 = vmax.f32 %v851, 0.0
      %v1058 = vmax.f32 %v856, 0.0
      %v1059 = vmax.f32 %v861, 0.0
      %v1060 = vmax.f32 %v866, 0.0
      %v1061 = vmax.f32 %v871, 0.0
      %v1062 = vmax.f32 %v876, 0.0
      %v1063 = vmax.f32 %v881, 0.0
      %v1064 = vmax.f32 %v886, 0.0
      %v1065 = vmax.f32 %v891, 0.0
      %v1066 = vmax.f32 %v896, 0.0
      %v1067 = vmax.f32 %v901, 0.0
      %v1068 = vmax.f32 %v906, 0.0
      %v1069 = vmax.f32 %v911, 0.0
      %v1070 = vmax.f32 %v916, 0.0
      %v1071 = vmax.f32 %v921, 0.0
      %v1072 = vmax.f32 %v926, 0.0
      %v1073 = vmax.f32 %v931, 0.0
      %v1074 = vmax.f32 %v936, 0.0
      %v1075 = vmax.f32 %v941, 0.0
      %v1076 = vmax.f32 %v946, 0.0
      %v1077 = vmax.f32 %v951, 0.0
      %v1078 = vmax.f32 %v956, 0.0
      %v1079 = vmax.f32 %v961, 0.0
      %v1080 = vmax.f32 %v966, 0.0
      %v1081 = vmax.f32 %v971, 0.0
      %v1082 = vmax.f32 %v976, 0.0
      %v1083 = vmax.f32 %v981, 0.0
      %v1084 = vmax.f32 %v986, 0.0
      %v1085 = vmax.f32 %v991, 0.0
      %v1086 = vmax.f32 %v996, 0.0
      %v1087 = vmax.f32 %v1001, 0.0
      %v1088 = vmax.f32 %v1006, 0.0
      %v1089 = vmax.f32 %v1011, 0.0
      %v1090 = vmax.f32 %v1016, 0.0
      %v1091 = vmax.f32 %v1021, 0.0
      %v1092 = vmax.f32 %v1026, 0.0
      %1093 = vst.msk [vmem:[#allocation2 + $0x18] sm:$0xff] %vm306, %v1029
      %1094 = vst.msk [vmem:[#allocation2 + $0x20] sm:$0xff] %vm306, %v1030
      %1095 = vst.msk [vmem:[#allocation2 + $0x28] sm:$0xff] %vm306, %v1031
      %1096 = vst.msk [vmem:[#allocation2 + $0x30] sm:$0xff] %vm306, %v1032
      %1097 = vst.msk [vmem:[#allocation2 + $0x38] sm:$0xff] %vm306, %v1033
      %1098 = vst.msk [vmem:[#allocation2 + $0x40] sm:$0xff] %vm306, %v1034
      %1099 = vst.msk [vmem:[#allocation2 + $0x48] sm:$0xff] %vm306, %v1035
      %1100 = vst.msk [vmem:[#allocation2 + $0x50] sm:$0xff] %vm306, %v1036
      %1101 = vst.msk [vmem:[#allocation2 + $0x58] sm:$0xff] %vm306, %v1037
      %1102 = vst.msk [vmem:[#allocation2 + $0x60] sm:$0xff] %vm306, %v1038
      %1103 = vst.msk [vmem:[#allocation2 + $0x68] sm:$0xff] %vm306, %v1039
      %1104 = vst.msk [vmem:[#allocation2 + $0x70] sm:$0xff] %vm306, %v1040
      %1105 = vst.msk [vmem:[#allocation2 + $0x78] sm:$0xff] %vm306, %v1041
      %1106 = vst.msk [vmem:[#allocation2 + $0x80] sm:$0xff] %vm306, %v1042
      %1107 = vst.msk [vmem:[#allocation2 + $0x88] sm:$0xff] %vm306, %v1043
      %1108 = vst.msk [vmem:[#allocation2 + $0x90] sm:$0xff] %vm306, %v1044
      %1109 = vst.msk [vmem:[#allocation2 + $0x98] sm:$0xff] %vm306, %v1045
      %1110 = vst.msk [vmem:[#allocation2 + $0xa0] sm:$0xff] %vm306, %v1046
      %1111 = vst.msk [vmem:[#allocation2 + $0xa8] sm:$0xff] %vm306, %v1047
      %1112 = vst.msk [vmem:[#allocation2 + $0xb0] sm:$0xff] %vm306, %v1048
      %1113 = vst.msk [vmem:[#allocation2 + $0xb8] sm:$0xff] %vm306, %v1049
      %1114 = vst.msk [vmem:[#allocation2 + $0xc0] sm:$0xff] %vm306, %v1050
      %1115 = vst.msk [vmem:[#allocation2 + $0xc8] sm:$0xff] %vm306, %v1051
      %1116 = vst.msk [vmem:[#allocation2 + $0xd0] sm:$0xff] %vm306, %v1052
      %1117 = vst.msk [vmem:[#allocation2 + $0xd8] sm:$0xff] %vm306, %v1053
      %1118 = vst.msk [vmem:[#allocation2 + $0xe0] sm:$0xff] %vm306, %v1054
      %1119 = vst.msk [vmem:[#allocation2 + $0xe8] sm:$0xff] %vm306, %v1055
      %1120 = vst.msk [vmem:[#allocation2 + $0xf0] sm:$0xff] %vm306, %v1056
      %1121 = vst.msk [vmem:[#allocation2 + $0xf8] sm:$0xff] %vm306, %v1057
      %1122 = vst.msk [vmem:[#allocation2 + $0x100] sm:$0xff] %vm306, %v1058
      %1123 = vst.msk [vmem:[#allocation2 + $0x108] sm:$0xff] %vm306, %v1059
      %1124 = vst.msk [vmem:[#allocation2 + $0x110] sm:$0xff] %vm306, %v1060
      %v1125 = vld [vmem:[#allocation2 + $0x7] sm:$0xff]
      %v1126 = vld [vmem:[#allocation2 + $0xf] sm:$0xff]
      %v1127 = vld [vmem:[#allocation2 + $0x17] sm:$0xff]
      %v1128 = vld [vmem:[#allocation2 + $0x1f] sm:$0xff]
      %v1129 = vld [vmem:[#allocation2 + $0x27] sm:$0xff]
      %v1130 = vld [vmem:[#allocation2 + $0x2f] sm:$0xff]
      %v1131 = vld [vmem:[#allocation2 + $0x37] sm:$0xff]
      %v1132 = vld [vmem:[#allocation2 + $0x3f] sm:$0xff]
      %v1133 = vld [vmem:[#allocation2 + $0x47] sm:$0xff]
      %v1134 = vld [vmem:[#allocation2 + $0x4f] sm:$0xff]
      %v1135 = vld [vmem:[#allocation2 + $0x57] sm:$0xff]
      %v1136 = vld [vmem:[#allocation2 + $0x5f] sm:$0xff]
      %v1137 = vld [vmem:[#allocation2 + $0x67] sm:$0xff]
      %v1138 = vld [vmem:[#allocation2 + $0x6f] sm:$0xff]
      %v1139 = vld [vmem:[#allocation2 + $0x77] sm:$0xff]
      %v1140 = vld [vmem:[#allocation2 + $0x7f] sm:$0xff]
      %v1141 = vld [vmem:[#allocation2 + $0x87] sm:$0xff]
      %v1142 = vld [vmem:[#allocation2 + $0x8f] sm:$0xff]
      %v1143 = vld [vmem:[#allocation2 + $0x97] sm:$0xff]
      %v1144 = vld [vmem:[#allocation2 + $0x9f] sm:$0xff]
      %v1145 = vld [vmem:[#allocation2 + $0xa7] sm:$0xff]
      %v1146 = vld [vmem:[#allocation2 + $0xaf] sm:$0xff]
      %v1147 = vld [vmem:[#allocation2 + $0xb7] sm:$0xff]
      %v1148 = vld [vmem:[#allocation2 + $0xbf] sm:$0xff]
      %v1149 = vld [vmem:[#allocation2 + $0xc7] sm:$0xff]
      %v1150 = vld [vmem:[#allocation2 + $0xcf] sm:$0xff]
      %v1151 = vld [vmem:[#allocation2 + $0xd7] sm:$0xff]
      %v1152 = vld [vmem:[#allocation2 + $0xdf] sm:$0xff]
      %v1153 = vld [vmem:[#allocation2 + $0xe7] sm:$0xff]
      %v1154 = vld [vmem:[#allocation2 + $0xef] sm:$0xff]
      %v1155 = vld [vmem:[#allocation2 + $0xf7] sm:$0xff]
      %v1156 = vld [vmem:[#allocation2 + $0xff] sm:$0xff]
      %1158 = vset.pattern.permute.xlu0 0
      %1159 = vperm.xlu0 %1158, %v313
      %v1160 = vpop.permute.xlu0 %1159
      %1163 = vset.pattern.permute.xlu0 0
      %1164 = vperm.xlu0 %1163, %v314
      %v1165 = vpop.permute.xlu0 %1164
      %1168 = vset.pattern.permute.xlu0 0
      %1169 = vperm.xlu0 %1168, %v315
      %v1170 = vpop.permute.xlu0 %1169
      %1173 = vset.pattern.permute.xlu0 0
      %1174 = vperm.xlu0 %1173, %v316
      %v1175 = vpop.permute.xlu0 %1174
      %1178 = vset.pattern.permute.xlu0 0
      %1179 = vperm.xlu0 %1178, %v317
      %v1180 = vpop.permute.xlu0 %1179
      %1183 = vset.pattern.permute.xlu0 0
      %1184 = vperm.xlu0 %1183, %v318
      %v1185 = vpop.permute.xlu0 %1184
      %1188 = vset.pattern.permute.xlu0 0
      %1189 = vperm.xlu0 %1188, %v319
      %v1190 = vpop.permute.xlu0 %1189
      %1193 = vset.pattern.permute.xlu0 0
      %1194 = vperm.xlu0 %1193, %v320
      %v1195 = vpop.permute.xlu0 %1194
      %1198 = vset.pattern.permute.xlu0 0
      %1199 = vperm.xlu0 %1198, %v321
      %v1200 = vpop.permute.xlu0 %1199
      %1203 = vset.pattern.permute.xlu0 0
      %1204 = vperm.xlu0 %1203, %v322
      %v1205 = vpop.permute.xlu0 %1204
      %1208 = vset.pattern.permute.xlu0 0
      %1209 = vperm.xlu0 %1208, %v323
      %v1210 = vpop.permute.xlu0 %1209
      %1213 = vset.pattern.permute.xlu0 0
      %1214 = vperm.xlu0 %1213, %v324
      %v1215 = vpop.permute.xlu0 %1214
      %1218 = vset.pattern.permute.xlu0 0
      %1219 = vperm.xlu0 %1218, %v325
      %v1220 = vpop.permute.xlu0 %1219
      %1223 = vset.pattern.permute.xlu0 0
      %1224 = vperm.xlu0 %1223, %v326
      %v1225 = vpop.permute.xlu0 %1224
      %1228 = vset.pattern.permute.xlu0 0
      %1229 = vperm.xlu0 %1228, %v327
      %v1230 = vpop.permute.xlu0 %1229
      %1233 = vset.pattern.permute.xlu0 0
      %1234 = vperm.xlu0 %1233, %v328
      %v1235 = vpop.permute.xlu0 %1234
      %1238 = vset.pattern.permute.xlu0 0
      %1239 = vperm.xlu0 %1238, %v329
      %v1240 = vpop.permute.xlu0 %1239
      %1243 = vset.pattern.permute.xlu0 0
      %1244 = vperm.xlu0 %1243, %v330
      %v1245 = vpop.permute.xlu0 %1244
      %1248 = vset.pattern.permute.xlu0 0
      %1249 = vperm.xlu0 %1248, %v331
      %v1250 = vpop.permute.xlu0 %1249
      %1253 = vset.pattern.permute.xlu0 0
      %1254 = vperm.xlu0 %1253, %v332
      %v1255 = vpop.permute.xlu0 %1254
      %1258 = vset.pattern.permute.xlu0 0
      %1259 = vperm.xlu0 %1258, %v333
      %v1260 = vpop.permute.xlu0 %1259
      %1263 = vset.pattern.permute.xlu0 0
      %1264 = vperm.xlu0 %1263, %v334
      %v1265 = vpop.permute.xlu0 %1264
      %1268 = vset.pattern.permute.xlu0 0
      %1269 = vperm.xlu0 %1268, %v335
      %v1270 = vpop.permute.xlu0 %1269
      %1273 = vset.pattern.permute.xlu0 0
      %1274 = vperm.xlu0 %1273, %v336
      %v1275 = vpop.permute.xlu0 %1274
      %1278 = vset.pattern.permute.xlu0 0
      %1279 = vperm.xlu0 %1278, %v337
      %v1280 = vpop.permute.xlu0 %1279
      %1283 = vset.pattern.permute.xlu0 0
      %1284 = vperm.xlu0 %1283, %v338
      %v1285 = vpop.permute.xlu0 %1284
      %1288 = vset.pattern.permute.xlu0 0
      %1289 = vperm.xlu0 %1288, %v339
      %v1290 = vpop.permute.xlu0 %1289
      %1293 = vset.pattern.permute.xlu0 0
      %1294 = vperm.xlu0 %1293, %v340
      %v1295 = vpop.permute.xlu0 %1294
      %1298 = vset.pattern.permute.xlu0 0
      %1299 = vperm.xlu0 %1298, %v341
      %v1300 = vpop.permute.xlu0 %1299
      %1303 = vset.pattern.permute.xlu0 0
      %1304 = vperm.xlu0 %1303, %v342
      %v1305 = vpop.permute.xlu0 %1304
      %1308 = vset.pattern.permute.xlu0 0
      %1309 = vperm.xlu0 %1308, %v343
      %v1310 = vpop.permute.xlu0 %1309
      %1313 = vset.pattern.permute.xlu0 0
      %1314 = vperm.xlu0 %1313, %v344
      %v1315 = vpop.permute.xlu0 %1314
      %v1317 = vmul.f32 %v1125, %v1160
      %v1318 = vmul.f32 %v1126, %v1165
      %v1319 = vmul.f32 %v1127, %v1170
      %v1320 = vmul.f32 %v1128, %v1175
      %v1321 = vmul.f32 %v1129, %v1180
      %v1322 = vmul.f32 %v1130, %v1185
      %v1323 = vmul.f32 %v1131, %v1190
      %v1324 = vmul.f32 %v1132, %v1195
      %v1325 = vmul.f32 %v1133, %v1200
      %v1326 = vmul.f32 %v1134, %v1205
      %v1327 = vmul.f32 %v1135, %v1210
      %v1328 = vmul.f32 %v1136, %v1215
      %v1329 = vmul.f32 %v1137, %v1220
      %v1330 = vmul.f32 %v1138, %v1225
      %v1331 = vmul.f32 %v1139, %v1230
      %v1332 = vmul.f32 %v1140, %v1235
      %v1333 = vmul.f32 %v1141, %v1240
      %v1334 = vmul.f32 %v1142, %v1245
      %v1335 = vmul.f32 %v1143, %v1250
      %v1336 = vmul.f32 %v1144, %v1255
      %v1337 = vmul.f32 %v1145, %v1260
      %v1338 = vmul.f32 %v1146, %v1265
      %v1339 = vmul.f32 %v1147, %v1270
      %v1340 = vmul.f32 %v1148, %v1275
      %v1341 = vmul.f32 %v1149, %v1280
      %v1342 = vmul.f32 %v1150, %v1285
      %v1343 = vmul.f32 %v1151, %v1290
      %v1344 = vmul.f32 %v1152, %v1295
      %v1345 = vmul.f32 %v1153, %v1300
      %v1346 = vmul.f32 %v1154, %v1305
      %v1347 = vmul.f32 %v1155, %v1310
      %v1348 = vmul.f32 %v1156, %v1315
      %v1349 = vld [vmem:[%s4] sm:$0xf]
      %v1350 = vld [vmem:[#allocation2 + $0x8] sm:$0xff]
      %v1351 = vld [vmem:[#allocation2 + $0x10] sm:$0xff]
      %v1352 = vld [vmem:[#allocation2 + $0x18] sm:$0xff]
      %v1353 = vld [vmem:[#allocation2 + $0x20] sm:$0xff]
      %v1354 = vld [vmem:[#allocation2 + $0x28] sm:$0xff]
      %v1355 = vld [vmem:[#allocation2 + $0x30] sm:$0xff]
      %v1356 = vld [vmem:[#allocation2 + $0x38] sm:$0xff]
      %v1357 = vld [vmem:[#allocation2 + $0x40] sm:$0xff]
      %v1358 = vld [vmem:[#allocation2 + $0x48] sm:$0xff]
      %v1359 = vld [vmem:[#allocation2 + $0x50] sm:$0xff]
      %v1360 = vld [vmem:[#allocation2 + $0x58] sm:$0xff]
      %v1361 = vld [vmem:[#allocation2 + $0x60] sm:$0xff]
      %v1362 = vld [vmem:[#allocation2 + $0x68] sm:$0xff]
      %v1363 = vld [vmem:[#allocation2 + $0x70] sm:$0xff]
      %v1364 = vld [vmem:[#allocation2 + $0x78] sm:$0xff]
      %v1365 = vld [vmem:[#allocation2 + $0x80] sm:$0xff]
      %v1366 = vld [vmem:[#allocation2 + $0x88] sm:$0xff]
      %v1367 = vld [vmem:[#allocation2 + $0x90] sm:$0xff]
      %v1368 = vld [vmem:[#allocation2 + $0x98] sm:$0xff]
      %v1369 = vld [vmem:[#allocation2 + $0xa0] sm:$0xff]
      %v1370 = vld [vmem:[#allocation2 + $0xa8] sm:$0xff]
      %v1371 = vld [vmem:[#allocation2 + $0xb0] sm:$0xff]
      %v1372 = vld [vmem:[#allocation2 + $0xb8] sm:$0xff]
      %v1373 = vld [vmem:[#allocation2 + $0xc0] sm:$0xff]
      %v1374 = vld [vmem:[#allocation2 + $0xc8] sm:$0xff]
      %v1375 = vld [vmem:[#allocation2 + $0xd0] sm:$0xff]
      %v1376 = vld [vmem:[#allocation2 + $0xd8] sm:$0xff]
      %v1377 = vld [vmem:[#allocation2 + $0xe0] sm:$0xff]
      %v1378 = vld [vmem:[#allocation2 + $0xe8] sm:$0xff]
      %v1379 = vld [vmem:[#allocation2 + $0xf0] sm:$0xff]
      %v1380 = vld [vmem:[#allocation2 + $0xf8] sm:$0xff]
      %v1381 = vld [vmem:[#allocation2 + $0x100] sm:$0xff]
      %s1382 = scalar_lea.vmem %s4, 4
      %v1383 = vld [vmem:[%s1382] sm:$0xf]
      %v1385 = vsel %vm306, %v1350, 0
      %v1388 = vsel %vm306, %v1351, 0
      %v1391 = vsel %vm306, %v1352, 0
      %v1394 = vsel %vm306, %v1353, 0
      %v1397 = vsel %vm306, %v1354, 0
      %v1400 = vsel %vm306, %v1355, 0
      %v1403 = vsel %vm306, %v1356, 0
      %v1406 = vsel %vm306, %v1357, 0
      %v1409 = vsel %vm306, %v1358, 0
      %v1412 = vsel %vm306, %v1359, 0
      %v1415 = vsel %vm306, %v1360, 0
      %v1418 = vsel %vm306, %v1361, 0
      %v1421 = vsel %vm306, %v1362, 0
      %v1424 = vsel %vm306, %v1363, 0
      %v1427 = vsel %vm306, %v1364, 0
      %v1430 = vsel %vm306, %v1365, 0
      %v1433 = vsel %vm306, %v1366, 0
      %v1436 = vsel %vm306, %v1367, 0
      %v1439 = vsel %vm306, %v1368, 0
      %v1442 = vsel %vm306, %v1369, 0
      %v1445 = vsel %vm306, %v1370, 0
      %v1448 = vsel %vm306, %v1371, 0
      %v1451 = vsel %vm306, %v1372, 0
      %v1454 = vsel %vm306, %v1373, 0
      %v1457 = vsel %vm306, %v1374, 0
      %v1460 = vsel %vm306, %v1375, 0
      %v1463 = vsel %vm306, %v1376, 0
      %v1466 = vsel %vm306, %v1377, 0
      %v1469 = vsel %vm306, %v1378, 0
      %v1472 = vsel %vm306, %v1379, 0
      %v1475 = vsel %vm306, %v1380, 0
      %v1478 = vsel %vm306, %v1381, 0
      %vm1480 = vcmask 1043456
      %v1482 = vsel %vm1480, %v1383, 0
      %1484 = vmatprep.subr.mxu0 0.0
      %1485 = vmatpush1.msra.mxu0 %v1482
      %1486 = vmatprep.subr.mxu0 0.0
      %1487 = vmatpush1.msra.mxu0 0.0
      %1488 = vmatprep.subr.mxu0 0.0
      %1489 = vmatpush1.msra.mxu0 0.0
      %1490 = vmatprep.subr.mxu0 0.0
      %1491 = vmatpush1.msra.mxu0 0.0
      %1492 = vmatprep.subr.mxu0 0.0
      %1493 = vmatpush1.msra.mxu0 0.0
      %1494 = vmatprep.subr.mxu0 0.0
      %1495 = vmatpush1.msra.mxu0 0.0
      %1496 = vmatprep.subr.mxu0 0.0
      %1497 = vmatpush1.msra.mxu0 0.0
      %1498 = vmatprep.subr.mxu0 0.0
      %1499 = vmatpush1.msra.mxu0 0.0
      %1500 = vmatprep.subr.mxu0 0.0
      %1501 = vmatpush1.msra.mxu0 0.0
      %1502 = vmatprep.subr.mxu0 0.0
      %1503 = vmatpush1.msra.mxu0 0.0
      %1504 = vmatprep.subr.mxu0 0.0
      %1505 = vmatpush1.msra.mxu0 0.0
      %1506 = vmatprep.subr.mxu0 0.0
      %1507 = vmatpush1.msra.mxu0 0.0
      %1508 = vmatprep.subr.mxu0 0.0
      %1509 = vmatpush1.msra.mxu0 0.0
      %1510 = vmatprep.subr.mxu0 0.0
      %1511 = vmatpush1.msra.mxu0 0.0
      %1512 = vmatprep.subr.mxu0 0.0
      %1513 = vmatpush1.msra.mxu0 0.0
      %1514 = vmatprep.subr.mxu0 0.0
      %1515 = vmatpush1.msra.mxu0 0.0
      %1516 = vmatprep.subr.mxu0 0.0
      %1517 = vmatpush1.msra.mxu0 0.0
      %1518 = vmatprep.subr.mxu0 0.0
      %1519 = vmatpush1.msra.mxu0 0.0
      %1520 = vmatprep.subr.mxu0 0.0
      %1521 = vmatpush1.msra.mxu0 0.0
      %1522 = vmatprep.subr.mxu0 0.0
      %1523 = vmatpush1.msra.mxu0 0.0
      %1524 = vmatprep.subr.mxu0 0.0
      %1525 = vmatpush1.msra.mxu0 0.0
      %1526 = vmatprep.subr.mxu0 0.0
      %1527 = vmatpush1.msra.mxu0 0.0
      %1528 = vmatprep.subr.mxu0 0.0
      %1529 = vmatpush1.msra.mxu0 0.0
      %1530 = vmatprep.subr.mxu0 0.0
      %1531 = vmatpush1.msra.mxu0 0.0
      %1532 = vmatprep.subr.mxu0 0.0
      %1533 = vmatpush1.msra.mxu0 0.0
      %1534 = vmatprep.subr.mxu0 0.0
      %1535 = vmatpush1.msra.mxu0 0.0
      %1536 = vmatprep.subr.mxu0 0.0
      %1537 = vmatpush1.msra.mxu0 0.0
      %1538 = vmatprep.subr.mxu0 0.0
      %1539 = vmatpush1.msra.mxu0 0.0
      %1540 = vmatprep.subr.mxu0 0.0
      %1541 = vmatpush1.msra.mxu0 0.0
      %1542 = vmatprep.subr.mxu0 0.0
      %1543 = vmatpush1.msra.mxu0 0.0
      %1544 = vmatprep.subr.mxu0 0.0
      %1545 = vmatpush1.msra.mxu0 0.0
      %1546 = vmatprep.subr.mxu0 0.0
      %1547 = vmatpush1.msra.mxu0 0.0
      %1548 = vmatprep.mubr.f32.mxu0 0.0
      %1549 = vmatmul.mubr.f32.gmra.mrb[0].mxu0 %v1385
      %v1550 = vpop.f32.mrb[0].mxu0
      %v1551 = vadd.f32 0.0, %v1550
      %v1552 = vpop.f32.mrb[0].mxu0
      %1553 = vmatprep.mubr.f32.mxu0 0.0
      %1554 = vmatmul.mubr.f32.gmra.mrb[0].mxu0 %v1388
      %v1555 = vpop.f32.mrb[0].mxu0
      %v1556 = vadd.f32 0.0, %v1555
      %v1557 = vpop.f32.mrb[0].mxu0
      %1558 = vmatprep.mubr.f32.mxu0 0.0
      %1559 = vmatmul.mubr.f32.gmra.mrb[0].mxu0 %v1391
      %v1560 = vpop.f32.mrb[0].mxu0
      %v1561 = vadd.f32 0.0, %v1560
      %v1562 = vpop.f32.mrb[0].mxu0
      %1563 = vmatprep.mubr.f32.mxu0 0.0
      %1564 = vmatmul.mubr.f32.gmra.mrb[0].mxu0 %v1394
      %v1565 = vpop.f32.mrb[0].mxu0
      %v1566 = vadd.f32 0.0, %v1565
      %v1567 = vpop.f32.mrb[0].mxu0
      %1568 = vmatprep.mubr.f32.mxu0 0.0
      %1569 = vmatmul.mubr.f32.gmra.mrb[0].mxu0 %v1397
      %v1570 = vpop.f32.mrb[0].mxu0
      %v1571 = vadd.f32 0.0, %v1570
      %v1572 = vpop.f32.mrb[0].mxu0
      %1573 = vmatprep.mubr.f32.mxu0 0.0
      %1574 = vmatmul.mubr.f32.gmra.mrb[0].mxu0 %v1400
      %v1575 = vpop.f32.mrb[0].mxu0
      %v1576 = vadd.f32 0.0, %v1575
      %v1577 = vpop.f32.mrb[0].mxu0
      %1578 = vmatprep.mubr.f32.mxu0 0.0
      %1579 = vmatmul.mubr.f32.gmra.mrb[0].mxu0 %v1403
      %v1580 = vpop.f32.mrb[0].mxu0
      %v1581 = vadd.f32 0.0, %v1580
      %v1582 = vpop.f32.mrb[0].mxu0
      %1583 = vmatprep.mubr.f32.mxu0 0.0
      %1584 = vmatmul.mubr.f32.gmra.mrb[0].mxu0 %v1406
      %v1585 = vpop.f32.mrb[0].mxu0
      %v1586 = vadd.f32 0.0, %v1585
      %v1587 = vpop.f32.mrb[0].mxu0
      %1588 = vmatprep.mubr.f32.mxu0 0.0
      %1589 = vmatmul.mubr.f32.gmra.mrb[0].mxu0 %v1409
      %v1590 = vpop.f32.mrb[0].mxu0
      %v1591 = vadd.f32 0.0, %v1590
      %v1592 = vpop.f32.mrb[0].mxu0
      %1593 = vmatprep.mubr.f32.mxu0 0.0
      %1594 = vmatmul.mubr.f32.gmra.mrb[0].mxu0 %v1412
      %v1595 = vpop.f32.mrb[0].mxu0
      %v1596 = vadd.f32 0.0, %v1595
      %v1597 = vpop.f32.mrb[0].mxu0
      %1598 = vmatprep.mubr.f32.mxu0 0.0
      %1599 = vmatmul.mubr.f32.gmra.mrb[0].mxu0 %v1415
      %v1600 = vpop.f32.mrb[0].mxu0
      %v1601 = vadd.f32 0.0, %v1600
      %v1602 = vpop.f32.mrb[0].mxu0
      %1603 = vmatprep.mubr.f32.mxu0 0.0
      %1604 = vmatmul.mubr.f32.gmra.mrb[0].mxu0 %v1418
      %v1605 = vpop.f32.mrb[0].mxu0
      %v1606 = vadd.f32 0.0, %v1605
      %v1607 = vpop.f32.mrb[0].mxu0
      %1608 = vmatprep.mubr.f32.mxu0 0.0
      %1609 = vmatmul.mubr.f32.gmra.mrb[0].mxu0 %v1421
      %v1610 = vpop.f32.mrb[0].mxu0
      %v1611 = vadd.f32 0.0, %v1610
      %v1612 = vpop.f32.mrb[0].mxu0
      %1613 = vmatprep.mubr.f32.mxu0 0.0
      %1614 = vmatmul.mubr.f32.gmra.mrb[0].mxu0 %v1424
      %v1615 = vpop.f32.mrb[0].mxu0
      %v1616 = vadd.f32 0.0, %v1615
      %v1617 = vpop.f32.mrb[0].mxu0
      %1618 = vmatprep.mubr.f32.mxu0 0.0
      %1619 = vmatmul.mubr.f32.gmra.mrb[0].mxu0 %v1427
      %v1620 = vpop.f32.mrb[0].mxu0
      %v1621 = vadd.f32 0.0, %v1620
      %v1622 = vpop.f32.mrb[0].mxu0
      %1623 = vmatprep.mubr.f32.mxu0 0.0
      %1624 = vmatmul.mubr.f32.gmra.mrb[0].mxu0 %v1430
      %v1625 = vpop.f32.mrb[0].mxu0
      %v1626 = vadd.f32 0.0, %v1625
      %v1627 = vpop.f32.mrb[0].mxu0
      %1628 = vmatprep.mubr.f32.mxu0 0.0
      %1629 = vmatmul.mubr.f32.gmra.mrb[0].mxu0 %v1433
      %v1630 = vpop.f32.mrb[0].mxu0
      %v1631 = vadd.f32 0.0, %v1630
      %v1632 = vpop.f32.mrb[0].mxu0
      %1633 = vmatprep.mubr.f32.mxu0 0.0
      %1634 = vmatmul.mubr.f32.gmra.mrb[0].mxu0 %v1436
      %v1635 = vpop.f32.mrb[0].mxu0
      %v1636 = vadd.f32 0.0, %v1635
      %v1637 = vpop.f32.mrb[0].mxu0
      %1638 = vmatprep.mubr.f32.mxu0 0.0
      %1639 = vmatmul.mubr.f32.gmra.mrb[0].mxu0 %v1439
      %v1640 = vpop.f32.mrb[0].mxu0
      %v1641 = vadd.f32 0.0, %v1640
      %v1642 = vpop.f32.mrb[0].mxu0
      %1643 = vmatprep.mubr.f32.mxu0 0.0
      %1644 = vmatmul.mubr.f32.gmra.mrb[0].mxu0 %v1442
      %v1645 = vpop.f32.mrb[0].mxu0
      %v1646 = vadd.f32 0.0, %v1645
      %v1647 = vpop.f32.mrb[0].mxu0
      %1648 = vmatprep.mubr.f32.mxu0 0.0
      %1649 = vmatmul.mubr.f32.gmra.mrb[0].mxu0 %v1445
      %v1650 = vpop.f32.mrb[0].mxu0
      %v1651 = vadd.f32 0.0, %v1650
      %v1652 = vpop.f32.mrb[0].mxu0
      %1653 = vmatprep.mubr.f32.mxu0 0.0
      %1654 = vmatmul.mubr.f32.gmra.mrb[0].mxu0 %v1448
      %v1655 = vpop.f32.mrb[0].mxu0
      %v1656 = vadd.f32 0.0, %v1655
      %v1657 = vpop.f32.mrb[0].mxu0
      %1658 = vmatprep.mubr.f32.mxu0 0.0
      %1659 = vmatmul.mubr.f32.gmra.mrb[0].mxu0 %v1451
      %v1660 = vpop.f32.mrb[0].mxu0
      %v1661 = vadd.f32 0.0, %v1660
      %v1662 = vpop.f32.mrb[0].mxu0
      %1663 = vmatprep.mubr.f32.mxu0 0.0
      %1664 = vmatmul.mubr.f32.gmra.mrb[0].mxu0 %v1454
      %v1665 = vpop.f32.mrb[0].mxu0
      %v1666 = vadd.f32 0.0, %v1665
      %v1667 = vpop.f32.mrb[0].mxu0
      %1668 = vmatprep.mubr.f32.mxu0 0.0
      %1669 = vmatmul.mubr.f32.gmra.mrb[0].mxu0 %v1457
      %v1670 = vpop.f32.mrb[0].mxu0
      %v1671 = vadd.f32 0.0, %v1670
      %v1672 = vpop.f32.mrb[0].mxu0
      %1673 = vmatprep.mubr.f32.mxu0 0.0
      %1674 = vmatmul.mubr.f32.gmra.mrb[0].mxu0 %v1460
      %v1675 = vpop.f32.mrb[0].mxu0
      %v1676 = vadd.f32 0.0, %v1675
      %v1677 = vpop.f32.mrb[0].mxu0
      %1678 = vmatprep.mubr.f32.mxu0 0.0
      %1679 = vmatmul.mubr.f32.gmra.mrb[0].mxu0 %v1463
      %v1680 = vpop.f32.mrb[0].mxu0
      %v1681 = vadd.f32 0.0, %v1680
      %v1682 = vpop.f32.mrb[0].mxu0
      %1683 = vmatprep.mubr.f32.mxu0 0.0
      %1684 = vmatmul.mubr.f32.gmra.mrb[0].mxu0 %v1466
      %v1685 = vpop.f32.mrb[0].mxu0
      %v1686 = vadd.f32 0.0, %v1685
      %v1687 = vpop.f32.mrb[0].mxu0
      %1688 = vmatprep.mubr.f32.mxu0 0.0
      %1689 = vmatmul.mubr.f32.gmra.mrb[0].mxu0 %v1469
      %v1690 = vpop.f32.mrb[0].mxu0
      %v1691 = vadd.f32 0.0, %v1690
      %v1692 = vpop.f32.mrb[0].mxu0
      %1693 = vmatprep.mubr.f32.mxu0 0.0
      %1694 = vmatmul.mubr.f32.gmra.mrb[0].mxu0 %v1472
      %v1695 = vpop.f32.mrb[0].mxu0
      %v1696 = vadd.f32 0.0, %v1695
      %v1697 = vpop.f32.mrb[0].mxu0
      %1698 = vmatprep.mubr.f32.mxu0 0.0
      %1699 = vmatmul.mubr.f32.gmra.mrb[0].mxu0 %v1475
      %v1700 = vpop.f32.mrb[0].mxu0
      %v1701 = vadd.f32 0.0, %v1700
      %v1702 = vpop.f32.mrb[0].mxu0
      %1703 = vmatprep.mubr.f32.mxu0 0.0
      %1704 = vmatmul.mubr.f32.gmra.mrb[0].mxu0 %v1478
      %v1705 = vpop.f32.mrb[0].mxu0
      %v1706 = vadd.f32 0.0, %v1705
      %v1707 = vpop.f32.mrb[0].mxu0
      %1708 = vdwg.mxu0
      %v1710 = vsel %vm306, %v1317, 0
      %v1713 = vsel %vm306, %v1318, 0
      %v1716 = vsel %vm306, %v1319, 0
      %v1719 = vsel %vm306, %v1320, 0
      %v1722 = vsel %vm306, %v1321, 0
      %v1725 = vsel %vm306, %v1322, 0
      %v1728 = vsel %vm306, %v1323, 0
      %v1731 = vsel %vm306, %v1324, 0
      %v1734 = vsel %vm306, %v1325, 0
      %v1737 = vsel %vm306, %v1326, 0
      %v1740 = vsel %vm306, %v1327, 0
      %v1743 = vsel %vm306, %v1328, 0
      %v1746 = vsel %vm306, %v1329, 0
      %v1749 = vsel %vm306, %v1330, 0
      %v1752 = vsel %vm306, %v1331, 0
      %v1755 = vsel %vm306, %v1332, 0
      %v1758 = vsel %vm306, %v1333, 0
      %v1761 = vsel %vm306, %v1334, 0
      %v1764 = vsel %vm306, %v1335, 0
      %v1767 = vsel %vm306, %v1336, 0
      %v1770 = vsel %vm306, %v1337, 0
      %v1773 = vsel %vm306, %v1338, 0
      %v1776 = vsel %vm306, %v1339, 0
      %v1779 = vsel %vm306, %v1340, 0
      %v1782 = vsel %vm306, %v1341, 0
      %v1785 = vsel %vm306, %v1342, 0
      %v1788 = vsel %vm306, %v1343, 0
      %v1791 = vsel %vm306, %v1344, 0
      %v1794 = vsel %vm306, %v1345, 0
      %v1797 = vsel %vm306, %v1346, 0
      %v1800 = vsel %vm306, %v1347, 0
      %v1803 = vsel %vm306, %v1348, 0
      %v1806 = vsel %vm1480, %v1349, 0
      %1808 = vmatprep.subr.mxu0 0.0
      %1809 = vmatpush1.msra.mxu0 %v1806
      %1810 = vmatprep.subr.mxu0 0.0
      %1811 = vmatpush1.msra.mxu0 0.0
      %1812 = vmatprep.subr.mxu0 0.0
      %1813 = vmatpush1.msra.mxu0 0.0
      %1814 = vmatprep.subr.mxu0 0.0
      %1815 = vmatpush1.msra.mxu0 0.0
      %1816 = vmatprep.subr.mxu0 0.0
      %1817 = vmatpush1.msra.mxu0 0.0
      %1818 = vmatprep.subr.mxu0 0.0
      %1819 = vmatpush1.msra.mxu0 0.0
      %1820 = vmatprep.subr.mxu0 0.0
      %1821 = vmatpush1.msra.mxu0 0.0
      %1822 = vmatprep.subr.mxu0 0.0
      %1823 = vmatpush1.msra.mxu0 0.0
      %1824 = vmatprep.subr.mxu0 0.0
      %1825 = vmatpush1.msra.mxu0 0.0
      %1826 = vmatprep.subr.mxu0 0.0
      %1827 = vmatpush1.msra.mxu0 0.0
      %1828 = vmatprep.subr.mxu0 0.0
      %1829 = vmatpush1.msra.mxu0 0.0
      %1830 = vmatprep.subr.mxu0 0.0
      %1831 = vmatpush1.msra.mxu0 0.0
      %1832 = vmatprep.subr.mxu0 0.0
      %1833 = vmatpush1.msra.mxu0 0.0
      %1834 = vmatprep.subr.mxu0 0.0
      %1835 = vmatpush1.msra.mxu0 0.0
      %1836 = vmatprep.subr.mxu0 0.0
      %1837 = vmatpush1.msra.mxu0 0.0
      %1838 = vmatprep.subr.mxu0 0.0
      %1839 = vmatpush1.msra.mxu0 0.0
      %1840 = vmatprep.subr.mxu0 0.0
      %1841 = vmatpush1.msra.mxu0 0.0
      %1842 = vmatprep.subr.mxu0 0.0
      %1843 = vmatpush1.msra.mxu0 0.0
      %1844 = vmatprep.subr.mxu0 0.0
      %1845 = vmatpush1.msra.mxu0 0.0
      %1846 = vmatprep.subr.mxu0 0.0
      %1847 = vmatpush1.msra.mxu0 0.0
      %1848 = vmatprep.subr.mxu0 0.0
      %1849 = vmatpush1.msra.mxu0 0.0
      %1850 = vmatprep.subr.mxu0 0.0
      %1851 = vmatpush1.msra.mxu0 0.0
      %1852 = vmatprep.subr.mxu0 0.0
      %1853 = vmatpush1.msra.mxu0 0.0
      %1854 = vmatprep.subr.mxu0 0.0
      %1855 = vmatpush1.msra.mxu0 0.0
      %1856 = vmatprep.subr.mxu0 0.0
      %1857 = vmatpush1.msra.mxu0 0.0
      %1858 = vmatprep.subr.mxu0 0.0
      %1859 = vmatpush1.msra.mxu0 0.0
      %1860 = vmatprep.subr.mxu0 0.0
      %1861 = vmatpush1.msra.mxu0 0.0
      %1862 = vmatprep.subr.mxu0 0.0
      %1863 = vmatpush1.msra.mxu0 0.0
      %1864 = vmatprep.subr.mxu0 0.0
      %1865 = vmatpush1.msra.mxu0 0.0
      %1866 = vmatprep.subr.mxu0 0.0
      %1867 = vmatpush1.msra.mxu0 0.0
      %1868 = vmatprep.subr.mxu0 0.0
      %1869 = vmatpush1.msra.mxu0 0.0
      %1870 = vmatprep.subr.mxu0 0.0
      %1871 = vmatpush1.msra.mxu0 0.0
      %1872 = vmatprep.mubr.f32.mxu0 0.0
      %1873 = vmatmul.mubr.f32.gmra.mrb[0].mxu0 %v1710
      %v1874 = vpop.f32.mrb[0].mxu0
      %v1875 = vadd.f32 %v1551, %v1874
      %v1876 = vpop.f32.mrb[0].mxu0
      %1877 = vmatprep.mubr.f32.mxu0 0.0
      %1878 = vmatmul.mubr.f32.gmra.mrb[0].mxu0 %v1713
      %v1879 = vpop.f32.mrb[0].mxu0
      %v1880 = vadd.f32 %v1556, %v1879
      %v1881 = vpop.f32.mrb[0].mxu0
      %1882 = vmatprep.mubr.f32.mxu0 0.0
      %1883 = vmatmul.mubr.f32.gmra.mrb[0].mxu0 %v1716
      %v1884 = vpop.f32.mrb[0].mxu0
      %v1885 = vadd.f32 %v1561, %v1884
      %v1886 = vpop.f32.mrb[0].mxu0
      %1887 = vmatprep.mubr.f32.mxu0 0.0
      %1888 = vmatmul.mubr.f32.gmra.mrb[0].mxu0 %v1719
      %v1889 = vpop.f32.mrb[0].mxu0
      %v1890 = vadd.f32 %v1566, %v1889
      %v1891 = vpop.f32.mrb[0].mxu0
      %1892 = vmatprep.mubr.f32.mxu0 0.0
      %1893 = vmatmul.mubr.f32.gmra.mrb[0].mxu0 %v1722
      %v1894 = vpop.f32.mrb[0].mxu0
      %v1895 = vadd.f32 %v1571, %v1894
      %v1896 = vpop.f32.mrb[0].mxu0
      %1897 = vmatprep.mubr.f32.mxu0 0.0
      %1898 = vmatmul.mubr.f32.gmra.mrb[0].mxu0 %v1725
      %v1899 = vpop.f32.mrb[0].mxu0
      %v1900 = vadd.f32 %v1576, %v1899
      %v1901 = vpop.f32.mrb[0].mxu0
      %1902 = vmatprep.mubr.f32.mxu0 0.0
      %1903 = vmatmul.mubr.f32.gmra.mrb[0].mxu0 %v1728
      %v1904 = vpop.f32.mrb[0].mxu0
      %v1905 = vadd.f32 %v1581, %v1904
      %v1906 = vpop.f32.mrb[0].mxu0
      %1907 = vmatprep.mubr.f32.mxu0 0.0
      %1908 = vmatmul.mubr.f32.gmra.mrb[0].mxu0 %v1731
      %v1909 = vpop.f32.mrb[0].mxu0
      %v1910 = vadd.f32 %v1586, %v1909
      %v1911 = vpop.f32.mrb[0].mxu0
      %1912 = vmatprep.mubr.f32.mxu0 0.0
      %1913 = vmatmul.mubr.f32.gmra.mrb[0].mxu0 %v1734
      %v1914 = vpop.f32.mrb[0].mxu0
      %v1915 = vadd.f32 %v1591, %v1914
      %v1916 = vpop.f32.mrb[0].mxu0
      %1917 = vmatprep.mubr.f32.mxu0 0.0
      %1918 = vmatmul.mubr.f32.gmra.mrb[0].mxu0 %v1737
      %v1919 = vpop.f32.mrb[0].mxu0
      %v1920 = vadd.f32 %v1596, %v1919
      %v1921 = vpop.f32.mrb[0].mxu0
      %1922 = vmatprep.mubr.f32.mxu0 0.0
      %1923 = vmatmul.mubr.f32.gmra.mrb[0].mxu0 %v1740
      %v1924 = vpop.f32.mrb[0].mxu0
      %v1925 = vadd.f32 %v1601, %v1924
      %v1926 = vpop.f32.mrb[0].mxu0
      %1927 = vmatprep.mubr.f32.mxu0 0.0
      %1928 = vmatmul.mubr.f32.gmra.mrb[0].mxu0 %v1743
      %v1929 = vpop.f32.mrb[0].mxu0
      %v1930 = vadd.f32 %v1606, %v1929
      %v1931 = vpop.f32.mrb[0].mxu0
      %1932 = vmatprep.mubr.f32.mxu0 0.0
      %1933 = vmatmul.mubr.f32.gmra.mrb[0].mxu0 %v1746
      %v1934 = vpop.f32.mrb[0].mxu0
      %v1935 = vadd.f32 %v1611, %v1934
      %v1936 = vpop.f32.mrb[0].mxu0
      %1937 = vmatprep.mubr.f32.mxu0 0.0
      %1938 = vmatmul.mubr.f32.gmra.mrb[0].mxu0 %v1749
      %v1939 = vpop.f32.mrb[0].mxu0
      %v1940 = vadd.f32 %v1616, %v1939
      %v1941 = vpop.f32.mrb[0].mxu0
      %1942 = vmatprep.mubr.f32.mxu0 0.0
      %1943 = vmatmul.mubr.f32.gmra.mrb[0].mxu0 %v1752
      %v1944 = vpop.f32.mrb[0].mxu0
      %v1945 = vadd.f32 %v1621, %v1944
      %v1946 = vpop.f32.mrb[0].mxu0
      %1947 = vmatprep.mubr.f32.mxu0 0.0
      %1948 = vmatmul.mubr.f32.gmra.mrb[0].mxu0 %v1755
      %v1949 = vpop.f32.mrb[0].mxu0
      %v1950 = vadd.f32 %v1626, %v1949
      %v1951 = vpop.f32.mrb[0].mxu0
      %1952 = vmatprep.mubr.f32.mxu0 0.0
      %1953 = vmatmul.mubr.f32.gmra.mrb[0].mxu0 %v1758
      %v1954 = vpop.f32.mrb[0].mxu0
      %v1955 = vadd.f32 %v1631, %v1954
      %v1956 = vpop.f32.mrb[0].mxu0
      %1957 = vmatprep.mubr.f32.mxu0 0.0
      %1958 = vmatmul.mubr.f32.gmra.mrb[0].mxu0 %v1761
      %v1959 = vpop.f32.mrb[0].mxu0
      %v1960 = vadd.f32 %v1636, %v1959
      %v1961 = vpop.f32.mrb[0].mxu0
      %1962 = vmatprep.mubr.f32.mxu0 0.0
      %1963 = vmatmul.mubr.f32.gmra.mrb[0].mxu0 %v1764
      %v1964 = vpop.f32.mrb[0].mxu0
      %v1965 = vadd.f32 %v1641, %v1964
      %v1966 = vpop.f32.mrb[0].mxu0
      %1967 = vmatprep.mubr.f32.mxu0 0.0
      %1968 = vmatmul.mubr.f32.gmra.mrb[0].mxu0 %v1767
      %v1969 = vpop.f32.mrb[0].mxu0
      %v1970 = vadd.f32 %v1646, %v1969
      %v1971 = vpop.f32.mrb[0].mxu0
      %1972 = vmatprep.mubr.f32.mxu0 0.0
      %1973 = vmatmul.mubr.f32.gmra.mrb[0].mxu0 %v1770
      %v1974 = vpop.f32.mrb[0].mxu0
      %v1975 = vadd.f32 %v1651, %v1974
      %v1976 = vpop.f32.mrb[0].mxu0
      %1977 = vmatprep.mubr.f32.mxu0 0.0
      %1978 = vmatmul.mubr.f32.gmra.mrb[0].mxu0 %v1773
      %v1979 = vpop.f32.mrb[0].mxu0
      %v1980 = vadd.f32 %v1656, %v1979
      %v1981 = vpop.f32.mrb[0].mxu0
      %1982 = vmatprep.mubr.f32.mxu0 0.0
      %1983 = vmatmul.mubr.f32.gmra.mrb[0].mxu0 %v1776
      %v1984 = vpop.f32.mrb[0].mxu0
      %v1985 = vadd.f32 %v1661, %v1984
      %v1986 = vpop.f32.mrb[0].mxu0
      %1987 = vmatprep.mubr.f32.mxu0 0.0
      %1988 = vmatmul.mubr.f32.gmra.mrb[0].mxu0 %v1779
      %v1989 = vpop.f32.mrb[0].mxu0
      %v1990 = vadd.f32 %v1666, %v1989
      %v1991 = vpop.f32.mrb[0].mxu0
      %1992 = vmatprep.mubr.f32.mxu0 0.0
      %1993 = vmatmul.mubr.f32.gmra.mrb[0].mxu0 %v1782
      %v1994 = vpop.f32.mrb[0].mxu0
      %v1995 = vadd.f32 %v1671, %v1994
      %v1996 = vpop.f32.mrb[0].mxu0
      %1997 = vmatprep.mubr.f32.mxu0 0.0
      %1998 = vmatmul.mubr.f32.gmra.mrb[0].mxu0 %v1785
      %v1999 = vpop.f32.mrb[0].mxu0
      %v2000 = vadd.f32 %v1676, %v1999
      %v2001 = vpop.f32.mrb[0].mxu0
      %2002 = vmatprep.mubr.f32.mxu0 0.0
      %2003 = vmatmul.mubr.f32.gmra.mrb[0].mxu0 %v1788
      %v2004 = vpop.f32.mrb[0].mxu0
      %v2005 = vadd.f32 %v1681, %v2004
      %v2006 = vpop.f32.mrb[0].mxu0
      %2007 = vmatprep.mubr.f32.mxu0 0.0
      %2008 = vmatmul.mubr.f32.gmra.mrb[0].mxu0 %v1791
      %v2009 = vpop.f32.mrb[0].mxu0
      %v2010 = vadd.f32 %v1686, %v2009
      %v2011 = vpop.f32.mrb[0].mxu0
      %2012 = vmatprep.mubr.f32.mxu0 0.0
      %2013 = vmatmul.mubr.f32.gmra.mrb[0].mxu0 %v1794
      %v2014 = vpop.f32.mrb[0].mxu0
      %v2015 = vadd.f32 %v1691, %v2014
      %v2016 = vpop.f32.mrb[0].mxu0
      %2017 = vmatprep.mubr.f32.mxu0 0.0
      %2018 = vmatmul.mubr.f32.gmra.mrb[0].mxu0 %v1797
      %v2019 = vpop.f32.mrb[0].mxu0
      %v2020 = vadd.f32 %v1696, %v2019
      %v2021 = vpop.f32.mrb[0].mxu0
      %2022 = vmatprep.mubr.f32.mxu0 0.0
      %2023 = vmatmul.mubr.f32.gmra.mrb[0].mxu0 %v1800
      %v2024 = vpop.f32.mrb[0].mxu0
      %v2025 = vadd.f32 %v1701, %v2024
      %v2026 = vpop.f32.mrb[0].mxu0
      %2027 = vmatprep.mubr.f32.mxu0 0.0
      %2028 = vmatmul.mubr.f32.gmra.mrb[0].mxu0 %v1803
      %v2029 = vpop.f32.mrb[0].mxu0
      %v2030 = vadd.f32 %v1706, %v2029
      %v2031 = vpop.f32.mrb[0].mxu0
      %2032 = vdwg.mxu0
      %v2033 = vld [vmem:[#allocation2 + $0x9] sm:$0xff]
      %v2034 = vld [vmem:[#allocation2 + $0x11] sm:$0xff]
      %v2035 = vld [vmem:[#allocation2 + $0x19] sm:$0xff]
      %v2036 = vld [vmem:[#allocation2 + $0x21] sm:$0xff]
      %v2037 = vld [vmem:[#allocation2 + $0x29] sm:$0xff]
      %v2038 = vld [vmem:[#allocation2 + $0x31] sm:$0xff]
      %v2039 = vld [vmem:[#allocation2 + $0x39] sm:$0xff]
      %v2040 = vld [vmem:[#allocation2 + $0x41] sm:$0xff]
      %v2041 = vld [vmem:[#allocation2 + $0x49] sm:$0xff]
      %v2042 = vld [vmem:[#allocation2 + $0x51] sm:$0xff]
      %v2043 = vld [vmem:[#allocation2 + $0x59] sm:$0xff]
      %v2044 = vld [vmem:[#allocation2 + $0x61] sm:$0xff]
      %v2045 = vld [vmem:[#allocation2 + $0x69] sm:$0xff]
      %v2046 = vld [vmem:[#allocation2 + $0x71] sm:$0xff]
      %v2047 = vld [vmem:[#allocation2 + $0x79] sm:$0xff]
      %v2048 = vld [vmem:[#allocation2 + $0x81] sm:$0xff]
      %v2049 = vld [vmem:[#allocation2 + $0x89] sm:$0xff]
      %v2050 = vld [vmem:[#allocation2 + $0x91] sm:$0xff]
      %v2051 = vld [vmem:[#allocation2 + $0x99] sm:$0xff]
      %v2052 = vld [vmem:[#allocation2 + $0xa1] sm:$0xff]
      %v2053 = vld [vmem:[#allocation2 + $0xa9] sm:$0xff]
      %v2054 = vld [vmem:[#allocation2 + $0xb1] sm:$0xff]
      %v2055 = vld [vmem:[#allocation2 + $0xb9] sm:$0xff]
      %v2056 = vld [vmem:[#allocation2 + $0xc1] sm:$0xff]
      %v2057 = vld [vmem:[#allocation2 + $0xc9] sm:$0xff]
      %v2058 = vld [vmem:[#allocation2 + $0xd1] sm:$0xff]
      %v2059 = vld [vmem:[#allocation2 + $0xd9] sm:$0xff]
      %v2060 = vld [vmem:[#allocation2 + $0xe1] sm:$0xff]
      %v2061 = vld [vmem:[#allocation2 + $0xe9] sm:$0xff]
      %v2062 = vld [vmem:[#allocation2 + $0xf1] sm:$0xff]
      %v2063 = vld [vmem:[#allocation2 + $0xf9] sm:$0xff]
      %v2064 = vld [vmem:[#allocation2 + $0x101] sm:$0xff]
      %2066 = vset.pattern.permute.xlu0 0
      %2067 = vperm.xlu0 %2066, %v346
      %v2068 = vpop.permute.xlu0 %2067
      %2071 = vset.pattern.permute.xlu0 0
      %2072 = vperm.xlu0 %2071, %v347
      %v2073 = vpop.permute.xlu0 %2072
      %2076 = vset.pattern.permute.xlu0 0
      %2077 = vperm.xlu0 %2076, %v348
      %v2078 = vpop.permute.xlu0 %2077
      %2081 = vset.pattern.permute.xlu0 0
      %2082 = vperm.xlu0 %2081, %v349
      %v2083 = vpop.permute.xlu0 %2082
      %2086 = vset.pattern.permute.xlu0 0
      %2087 = vperm.xlu0 %2086, %v350
      %v2088 = vpop.permute.xlu0 %2087
      %2091 = vset.pattern.permute.xlu0 0
      %2092 = vperm.xlu0 %2091, %v351
      %v2093 = vpop.permute.xlu0 %2092
      %2096 = vset.pattern.permute.xlu0 0
      %2097 = vperm.xlu0 %2096, %v352
      %v2098 = vpop.permute.xlu0 %2097
      %2101 = vset.pattern.permute.xlu0 0
      %2102 = vperm.xlu0 %2101, %v353
      %v2103 = vpop.permute.xlu0 %2102
      %2106 = vset.pattern.permute.xlu0 0
      %2107 = vperm.xlu0 %2106, %v354
      %v2108 = vpop.permute.xlu0 %2107
      %2111 = vset.pattern.permute.xlu0 0
      %2112 = vperm.xlu0 %2111, %v355
      %v2113 = vpop.permute.xlu0 %2112
      %2116 = vset.pattern.permute.xlu0 0
      %2117 = vperm.xlu0 %2116, %v356
      %v2118 = vpop.permute.xlu0 %2117
      %2121 = vset.pattern.permute.xlu0 0
      %2122 = vperm.xlu0 %2121, %v357
      %v2123 = vpop.permute.xlu0 %2122
      %2126 = vset.pattern.permute.xlu0 0
      %2127 = vperm.xlu0 %2126, %v358
      %v2128 = vpop.permute.xlu0 %2127
      %2131 = vset.pattern.permute.xlu0 0
      %2132 = vperm.xlu0 %2131, %v359
      %v2133 = vpop.permute.xlu0 %2132
      %2136 = vset.pattern.permute.xlu0 0
      %2137 = vperm.xlu0 %2136, %v360
      %v2138 = vpop.permute.xlu0 %2137
      %2141 = vset.pattern.permute.xlu0 0
      %2142 = vperm.xlu0 %2141, %v361
      %v2143 = vpop.permute.xlu0 %2142
      %2146 = vset.pattern.permute.xlu0 0
      %2147 = vperm.xlu0 %2146, %v362
      %v2148 = vpop.permute.xlu0 %2147
      %2151 = vset.pattern.permute.xlu0 0
      %2152 = vperm.xlu0 %2151, %v363
      %v2153 = vpop.permute.xlu0 %2152
      %2156 = vset.pattern.permute.xlu0 0
      %2157 = vperm.xlu0 %2156, %v364
      %v2158 = vpop.permute.xlu0 %2157
      %2161 = vset.pattern.permute.xlu0 0
      %2162 = vperm.xlu0 %2161, %v365
      %v2163 = vpop.permute.xlu0 %2162
      %2166 = vset.pattern.permute.xlu0 0
      %2167 = vperm.xlu0 %2166, %v366
      %v2168 = vpop.permute.xlu0 %2167
      %2171 = vset.pattern.permute.xlu0 0
      %2172 = vperm.xlu0 %2171, %v367
      %v2173 = vpop.permute.xlu0 %2172
      %2176 = vset.pattern.permute.xlu0 0
      %2177 = vperm.xlu0 %2176, %v368
      %v2178 = vpop.permute.xlu0 %2177
      %2181 = vset.pattern.permute.xlu0 0
      %2182 = vperm.xlu0 %2181, %v369
      %v2183 = vpop.permute.xlu0 %2182
      %2186 = vset.pattern.permute.xlu0 0
      %2187 = vperm.xlu0 %2186, %v370
      %v2188 = vpop.permute.xlu0 %2187
      %2191 = vset.pattern.permute.xlu0 0
      %2192 = vperm.xlu0 %2191, %v371
      %v2193 = vpop.permute.xlu0 %2192
      %2196 = vset.pattern.permute.xlu0 0
      %2197 = vperm.xlu0 %2196, %v372
      %v2198 = vpop.permute.xlu0 %2197
      %2201 = vset.pattern.permute.xlu0 0
      %2202 = vperm.xlu0 %2201, %v373
      %v2203 = vpop.permute.xlu0 %2202
      %2206 = vset.pattern.permute.xlu0 0
      %2207 = vperm.xlu0 %2206, %v374
      %v2208 = vpop.permute.xlu0 %2207
      %2211 = vset.pattern.permute.xlu0 0
      %2212 = vperm.xlu0 %2211, %v375
      %v2213 = vpop.permute.xlu0 %2212
      %2216 = vset.pattern.permute.xlu0 0
      %2217 = vperm.xlu0 %2216, %v376
      %v2218 = vpop.permute.xlu0 %2217
      %2221 = vset.pattern.permute.xlu0 0
      %2222 = vperm.xlu0 %2221, %v377
      %v2223 = vpop.permute.xlu0 %2222
      %v2225 = vmul.f32 %v2033, %v2068
      %v2226 = vmul.f32 %v2034, %v2073
      %v2227 = vmul.f32 %v2035, %v2078
      %v2228 = vmul.f32 %v2036, %v2083
      %v2229 = vmul.f32 %v2037, %v2088
      %v2230 = vmul.f32 %v2038, %v2093
      %v2231 = vmul.f32 %v2039, %v2098
      %v2232 = vmul.f32 %v2040, %v2103
      %v2233 = vmul.f32 %v2041, %v2108
      %v2234 = vmul.f32 %v2042, %v2113
      %v2235 = vmul.f32 %v2043, %v2118
      %v2236 = vmul.f32 %v2044, %v2123
      %v2237 = vmul.f32 %v2045, %v2128
      %v2238 = vmul.f32 %v2046, %v2133
      %v2239 = vmul.f32 %v2047, %v2138
      %v2240 = vmul.f32 %v2048, %v2143
      %v2241 = vmul.f32 %v2049, %v2148
      %v2242 = vmul.f32 %v2050, %v2153
      %v2243 = vmul.f32 %v2051, %v2158
      %v2244 = vmul.f32 %v2052, %v2163
      %v2245 = vmul.f32 %v2053, %v2168
      %v2246 = vmul.f32 %v2054, %v2173
      %v2247 = vmul.f32 %v2055, %v2178
      %v2248 = vmul.f32 %v2056, %v2183
      %v2249 = vmul.f32 %v2057, %v2188
      %v2250 = vmul.f32 %v2058, %v2193
      %v2251 = vmul.f32 %v2059, %v2198
      %v2252 = vmul.f32 %v2060, %v2203
      %v2253 = vmul.f32 %v2061, %v2208
      %v2254 = vmul.f32 %v2062, %v2213
      %v2255 = vmul.f32 %v2063, %v2218
      %v2256 = vmul.f32 %v2064, %v2223
      %s2257 = scalar_lea.vmem %s4, 8
      %v2258 = vld [vmem:[%s2257] sm:$0xf]
      %v2260 = vsel %vm306, %v2225, 0
      %v2263 = vsel %vm306, %v2226, 0
      %v2266 = vsel %vm306, %v2227, 0
      %v2269 = vsel %vm306, %v2228, 0
      %v2272 = vsel %vm306, %v2229, 0
      %v2275 = vsel %vm306, %v2230, 0
      %v2278 = vsel %vm306, %v2231, 0
      %v2281 = vsel %vm306, %v2232, 0
      %v2284 = vsel %vm306, %v2233, 0
      %v2287 = vsel %vm306, %v2234, 0
      %v2290 = vsel %vm306, %v2235, 0
      %v2293 = vsel %vm306, %v2236, 0
      %v2296 = vsel %vm306, %v2237, 0
      %v2299 = vsel %vm306, %v2238, 0
      %v2302 = vsel %vm306, %v2239, 0
      %v2305 = vsel %vm306, %v2240, 0
      %v2308 = vsel %vm306, %v2241, 0
      %v2311 = vsel %vm306, %v2242, 0
      %v2314 = vsel %vm306, %v2243, 0
      %v2317 = vsel %vm306, %v2244, 0
      %v2320 = vsel %vm306, %v2245, 0
      %v2323 = vsel %vm306, %v2246, 0
      %v2326 = vsel %vm306, %v2247, 0
      %v2329 = vsel %vm306, %v2248, 0
      %v2332 = vsel %vm306, %v2249, 0
      %v2335 = vsel %vm306, %v2250, 0
      %v2338 = vsel %vm306, %v2251, 0
      %v2341 = vsel %vm306, %v2252, 0
      %v2344 = vsel %vm306, %v2253, 0
      %v2347 = vsel %vm306, %v2254, 0
      %v2350 = vsel %vm306, %v2255, 0
      %v2353 = vsel %vm306, %v2256, 0
      %v2356 = vsel %vm1480, %v2258, 0
      %2358 = vmatprep.subr.mxu0 0.0
      %2359 = vmatpush1.msra.mxu0 %v2356
      %2360 = vmatprep.subr.mxu0 0.0
      %2361 = vmatpush1.msra.mxu0 0.0
      %2362 = vmatprep.subr.mxu0 0.0
      %2363 = vmatpush1.msra.mxu0 0.0
      %2364 = vmatprep.subr.mxu0 0.0
      %2365 = vmatpush1.msra.mxu0 0.0
      %2366 = vmatprep.subr.mxu0 0.0
      %2367 = vmatpush1.msra.mxu0 0.0
      %2368 = vmatprep.subr.mxu0 0.0
      %2369 = vmatpush1.msra.mxu0 0.0
      %2370 = vmatprep.subr.mxu0 0.0
      %2371 = vmatpush1.msra.mxu0 0.0
      %2372 = vmatprep.subr.mxu0 0.0
      %2373 = vmatpush1.msra.mxu0 0.0
      %2374 = vmatprep.subr.mxu0 0.0
      %2375 = vmatpush1.msra.mxu0 0.0
      %2376 = vmatprep.subr.mxu0 0.0
      %2377 = vmatpush1.msra.mxu0 0.0
      %2378 = vmatprep.subr.mxu0 0.0
      %2379 = vmatpush1.msra.mxu0 0.0
      %2380 = vmatprep.subr.mxu0 0.0
      %2381 = vmatpush1.msra.mxu0 0.0
      %2382 = vmatprep.subr.mxu0 0.0
      %2383 = vmatpush1.msra.mxu0 0.0
      %2384 = vmatprep.subr.mxu0 0.0
      %2385 = vmatpush1.msra.mxu0 0.0
      %2386 = vmatprep.subr.mxu0 0.0
      %2387 = vmatpush1.msra.mxu0 0.0
      %2388 = vmatprep.subr.mxu0 0.0
      %2389 = vmatpush1.msra.mxu0 0.0
      %2390 = vmatprep.subr.mxu0 0.0
      %2391 = vmatpush1.msra.mxu0 0.0
      %2392 = vmatprep.subr.mxu0 0.0
      %2393 = vmatpush1.msra.mxu0 0.0
      %2394 = vmatprep.subr.mxu0 0.0
      %2395 = vmatpush1.msra.mxu0 0.0
      %2396 = vmatprep.subr.mxu0 0.0
      %2397 = vmatpush1.msra.mxu0 0.0
      %2398 = vmatprep.subr.mxu0 0.0
      %2399 = vmatpush1.msra.mxu0 0.0
      %2400 = vmatprep.subr.mxu0 0.0
      %2401 = vmatpush1.msra.mxu0 0.0
      %2402 = vmatprep.subr.mxu0 0.0
      %2403 = vmatpush1.msra.mxu0 0.0
      %2404 = vmatprep.subr.mxu0 0.0
      %2405 = vmatpush1.msra.mxu0 0.0
      %2406 = vmatprep.subr.mxu0 0.0
      %2407 = vmatpush1.msra.mxu0 0.0
      %2408 = vmatprep.subr.mxu0 0.0
      %2409 = vmatpush1.msra.mxu0 0.0
      %2410 = vmatprep.subr.mxu0 0.0
      %2411 = vmatpush1.msra.mxu0 0.0
      %2412 = vmatprep.subr.mxu0 0.0
      %2413 = vmatpush1.msra.mxu0 0.0
      %2414 = vmatprep.subr.mxu0 0.0
      %2415 = vmatpush1.msra.mxu0 0.0
      %2416 = vmatprep.subr.mxu0 0.0
      %2417 = vmatpush1.msra.mxu0 0.0
      %2418 = vmatprep.subr.mxu0 0.0
      %2419 = vmatpush1.msra.mxu0 0.0
      %2420 = vmatprep.subr.mxu0 0.0
      %2421 = vmatpush1.msra.mxu0 0.0
      %2422 = vmatprep.mubr.f32.mxu0 0.0
      %2423 = vmatmul.mubr.f32.gmra.mrb[0].mxu0 %v2260
      %v2424 = vpop.f32.mrb[0].mxu0
      %v2425 = vadd.f32 0.0, %v2424
      %v2426 = vpop.f32.mrb[0].mxu0
      %2427 = vmatprep.mubr.f32.mxu0 0.0
      %2428 = vmatmul.mubr.f32.gmra.mrb[0].mxu0 %v2263
      %v2429 = vpop.f32.mrb[0].mxu0
      %v2430 = vadd.f32 0.0, %v2429
      %v2431 = vpop.f32.mrb[0].mxu0
      %2432 = vmatprep.mubr.f32.mxu0 0.0
      %2433 = vmatmul.mubr.f32.gmra.mrb[0].mxu0 %v2266
      %v2434 = vpop.f32.mrb[0].mxu0
      %v2435 = vadd.f32 0.0, %v2434
      %v2436 = vpop.f32.mrb[0].mxu0
      %2437 = vmatprep.mubr.f32.mxu0 0.0
      %2438 = vmatmul.mubr.f32.gmra.mrb[0].mxu0 %v2269
      %v2439 = vpop.f32.mrb[0].mxu0
      %v2440 = vadd.f32 0.0, %v2439
      %v2441 = vpop.f32.mrb[0].mxu0
      %2442 = vmatprep.mubr.f32.mxu0 0.0
      %2443 = vmatmul.mubr.f32.gmra.mrb[0].mxu0 %v2272
      %v2444 = vpop.f32.mrb[0].mxu0
      %v2445 = vadd.f32 0.0, %v2444
      %v2446 = vpop.f32.mrb[0].mxu0
      %2447 = vmatprep.mubr.f32.mxu0 0.0
      %2448 = vmatmul.mubr.f32.gmra.mrb[0].mxu0 %v2275
      %v2449 = vpop.f32.mrb[0].mxu0
      %v2450 = vadd.f32 0.0, %v2449
      %v2451 = vpop.f32.mrb[0].mxu0
      %2452 = vmatprep.mubr.f32.mxu0 0.0
      %2453 = vmatmul.mubr.f32.gmra.mrb[0].mxu0 %v2278
      %v2454 = vpop.f32.mrb[0].mxu0
      %v2455 = vadd.f32 0.0, %v2454
      %v2456 = vpop.f32.mrb[0].mxu0
      %2457 = vmatprep.mubr.f32.mxu0 0.0
      %2458 = vmatmul.mubr.f32.gmra.mrb[0].mxu0 %v2281
      %v2459 = vpop.f32.mrb[0].mxu0
      %v2460 = vadd.f32 0.0, %v2459
      %v2461 = vpop.f32.mrb[0].mxu0
      %2462 = vmatprep.mubr.f32.mxu0 0.0
      %2463 = vmatmul.mubr.f32.gmra.mrb[0].mxu0 %v2284
      %v2464 = vpop.f32.mrb[0].mxu0
      %v2465 = vadd.f32 0.0, %v2464
      %v2466 = vpop.f32.mrb[0].mxu0
      %2467 = vmatprep.mubr.f32.mxu0 0.0
      %2468 = vmatmul.mubr.f32.gmra.mrb[0].mxu0 %v2287
      %v2469 = vpop.f32.mrb[0].mxu0
      %v2470 = vadd.f32 0.0, %v2469
      %v2471 = vpop.f32.mrb[0].mxu0
      %2472 = vmatprep.mubr.f32.mxu0 0.0
      %2473 = vmatmul.mubr.f32.gmra.mrb[0].mxu0 %v2290
      %v2474 = vpop.f32.mrb[0].mxu0
      %v2475 = vadd.f32 0.0, %v2474
      %v2476 = vpop.f32.mrb[0].mxu0
      %2477 = vmatprep.mubr.f32.mxu0 0.0
      %2478 = vmatmul.mubr.f32.gmra.mrb[0].mxu0 %v2293
      %v2479 = vpop.f32.mrb[0].mxu0
      %v2480 = vadd.f32 0.0, %v2479
      %v2481 = vpop.f32.mrb[0].mxu0
      %2482 = vmatprep.mubr.f32.mxu0 0.0
      %2483 = vmatmul.mubr.f32.gmra.mrb[0].mxu0 %v2296
      %v2484 = vpop.f32.mrb[0].mxu0
      %v2485 = vadd.f32 0.0, %v2484
      %v2486 = vpop.f32.mrb[0].mxu0
      %2487 = vmatprep.mubr.f32.mxu0 0.0
      %2488 = vmatmul.mubr.f32.gmra.mrb[0].mxu0 %v2299
      %v2489 = vpop.f32.mrb[0].mxu0
      %v2490 = vadd.f32 0.0, %v2489
      %v2491 = vpop.f32.mrb[0].mxu0
      %2492 = vmatprep.mubr.f32.mxu0 0.0
      %2493 = vmatmul.mubr.f32.gmra.mrb[0].mxu0 %v2302
      %v2494 = vpop.f32.mrb[0].mxu0
      %v2495 = vadd.f32 0.0, %v2494
      %v2496 = vpop.f32.mrb[0].mxu0
      %2497 = vmatprep.mubr.f32.mxu0 0.0
      %2498 = vmatmul.mubr.f32.gmra.mrb[0].mxu0 %v2305
      %v2499 = vpop.f32.mrb[0].mxu0
      %v2500 = vadd.f32 0.0, %v2499
      %v2501 = vpop.f32.mrb[0].mxu0
      %2502 = vmatprep.mubr.f32.mxu0 0.0
      %2503 = vmatmul.mubr.f32.gmra.mrb[0].mxu0 %v2308
      %v2504 = vpop.f32.mrb[0].mxu0
      %v2505 = vadd.f32 0.0, %v2504
      %v2506 = vpop.f32.mrb[0].mxu0
      %2507 = vmatprep.mubr.f32.mxu0 0.0
      %2508 = vmatmul.mubr.f32.gmra.mrb[0].mxu0 %v2311
      %v2509 = vpop.f32.mrb[0].mxu0
      %v2510 = vadd.f32 0.0, %v2509
      %v2511 = vpop.f32.mrb[0].mxu0
      %2512 = vmatprep.mubr.f32.mxu0 0.0
      %2513 = vmatmul.mubr.f32.gmra.mrb[0].mxu0 %v2314
      %v2514 = vpop.f32.mrb[0].mxu0
      %v2515 = vadd.f32 0.0, %v2514
      %v2516 = vpop.f32.mrb[0].mxu0
      %2517 = vmatprep.mubr.f32.mxu0 0.0
      %2518 = vmatmul.mubr.f32.gmra.mrb[0].mxu0 %v2317
      %v2519 = vpop.f32.mrb[0].mxu0
      %v2520 = vadd.f32 0.0, %v2519
      %v2521 = vpop.f32.mrb[0].mxu0
      %2522 = vmatprep.mubr.f32.mxu0 0.0
      %2523 = vmatmul.mubr.f32.gmra.mrb[0].mxu0 %v2320
      %v2524 = vpop.f32.mrb[0].mxu0
      %v2525 = vadd.f32 0.0, %v2524
      %v2526 = vpop.f32.mrb[0].mxu0
      %2527 = vmatprep.mubr.f32.mxu0 0.0
      %2528 = vmatmul.mubr.f32.gmra.mrb[0].mxu0 %v2323
      %v2529 = vpop.f32.mrb[0].mxu0
      %v2530 = vadd.f32 0.0, %v2529
      %v2531 = vpop.f32.mrb[0].mxu0
      %2532 = vmatprep.mubr.f32.mxu0 0.0
      %2533 = vmatmul.mubr.f32.gmra.mrb[0].mxu0 %v2326
      %v2534 = vpop.f32.mrb[0].mxu0
      %v2535 = vadd.f32 0.0, %v2534
      %v2536 = vpop.f32.mrb[0].mxu0
      %2537 = vmatprep.mubr.f32.mxu0 0.0
      %2538 = vmatmul.mubr.f32.gmra.mrb[0].mxu0 %v2329
      %v2539 = vpop.f32.mrb[0].mxu0
      %v2540 = vadd.f32 0.0, %v2539
      %v2541 = vpop.f32.mrb[0].mxu0
      %2542 = vmatprep.mubr.f32.mxu0 0.0
      %2543 = vmatmul.mubr.f32.gmra.mrb[0].mxu0 %v2332
      %v2544 = vpop.f32.mrb[0].mxu0
      %v2545 = vadd.f32 0.0, %v2544
      %v2546 = vpop.f32.mrb[0].mxu0
      %2547 = vmatprep.mubr.f32.mxu0 0.0
      %2548 = vmatmul.mubr.f32.gmra.mrb[0].mxu0 %v2335
      %v2549 = vpop.f32.mrb[0].mxu0
      %v2550 = vadd.f32 0.0, %v2549
      %v2551 = vpop.f32.mrb[0].mxu0
      %2552 = vmatprep.mubr.f32.mxu0 0.0
      %2553 = vmatmul.mubr.f32.gmra.mrb[0].mxu0 %v2338
      %v2554 = vpop.f32.mrb[0].mxu0
      %v2555 = vadd.f32 0.0, %v2554
      %v2556 = vpop.f32.mrb[0].mxu0
      %2557 = vmatprep.mubr.f32.mxu0 0.0
      %2558 = vmatmul.mubr.f32.gmra.mrb[0].mxu0 %v2341
      %v2559 = vpop.f32.mrb[0].mxu0
      %v2560 = vadd.f32 0.0, %v2559
      %v2561 = vpop.f32.mrb[0].mxu0
      %2562 = vmatprep.mubr.f32.mxu0 0.0
      %2563 = vmatmul.mubr.f32.gmra.mrb[0].mxu0 %v2344
      %v2564 = vpop.f32.mrb[0].mxu0
      %v2565 = vadd.f32 0.0, %v2564
      %v2566 = vpop.f32.mrb[0].mxu0
      %2567 = vmatprep.mubr.f32.mxu0 0.0
      %2568 = vmatmul.mubr.f32.gmra.mrb[0].mxu0 %v2347
      %v2569 = vpop.f32.mrb[0].mxu0
      %v2570 = vadd.f32 0.0, %v2569
      %v2571 = vpop.f32.mrb[0].mxu0
      %2572 = vmatprep.mubr.f32.mxu0 0.0
      %2573 = vmatmul.mubr.f32.gmra.mrb[0].mxu0 %v2350
      %v2574 = vpop.f32.mrb[0].mxu0
      %v2575 = vadd.f32 0.0, %v2574
      %v2576 = vpop.f32.mrb[0].mxu0
      %2577 = vmatprep.mubr.f32.mxu0 0.0
      %2578 = vmatmul.mubr.f32.gmra.mrb[0].mxu0 %v2353
      %v2579 = vpop.f32.mrb[0].mxu0
      %v2580 = vadd.f32 0.0, %v2579
      %v2581 = vpop.f32.mrb[0].mxu0
      %2582 = vdwg.mxu0
      %v2583 = vadd.f32 %v1875, %v2425
      %v2584 = vadd.f32 %v1880, %v2430
      %v2585 = vadd.f32 %v1885, %v2435
      %v2586 = vadd.f32 %v1890, %v2440
      %v2587 = vadd.f32 %v1895, %v2445
      %v2588 = vadd.f32 %v1900, %v2450
      %v2589 = vadd.f32 %v1905, %v2455
      %v2590 = vadd.f32 %v1910, %v2460
      %v2591 = vadd.f32 %v1915, %v2465
      %v2592 = vadd.f32 %v1920, %v2470
      %v2593 = vadd.f32 %v1925, %v2475
      %v2594 = vadd.f32 %v1930, %v2480
      %v2595 = vadd.f32 %v1935, %v2485
      %v2596 = vadd.f32 %v1940, %v2490
      %v2597 = vadd.f32 %v1945, %v2495
      %v2598 = vadd.f32 %v1950, %v2500
      %v2599 = vadd.f32 %v1955, %v2505
      %v2600 = vadd.f32 %v1960, %v2510
      %v2601 = vadd.f32 %v1965, %v2515
      %v2602 = vadd.f32 %v1970, %v2520
      %v2603 = vadd.f32 %v1975, %v2525
      %v2604 = vadd.f32 %v1980, %v2530
      %v2605 = vadd.f32 %v1985, %v2535
      %v2606 = vadd.f32 %v1990, %v2540
      %v2607 = vadd.f32 %v1995, %v2545
      %v2608 = vadd.f32 %v2000, %v2550
      %v2609 = vadd.f32 %v2005, %v2555
      %v2610 = vadd.f32 %v2010, %v2560
      %v2611 = vadd.f32 %v2015, %v2565
      %v2612 = vadd.f32 %v2020, %v2570
      %v2613 = vadd.f32 %v2025, %v2575
      %v2614 = vadd.f32 %v2030, %v2580
      %v2615 = vld [vmem:[#allocation2 + $0x17] sm:$0xff]
      %v2616 = vld [vmem:[#allocation2 + $0x1f] sm:$0xff]
      %v2617 = vld [vmem:[#allocation2 + $0x27] sm:$0xff]
      %v2618 = vld [vmem:[#allocation2 + $0x2f] sm:$0xff]
      %v2619 = vld [vmem:[#allocation2 + $0x37] sm:$0xff]
      %v2620 = vld [vmem:[#allocation2 + $0x3f] sm:$0xff]
      %v2621 = vld [vmem:[#allocation2 + $0x47] sm:$0xff]
      %v2622 = vld [vmem:[#allocation2 + $0x4f] sm:$0xff]
      %v2623 = vld [vmem:[#allocation2 + $0x57] sm:$0xff]
      %v2624 = vld [vmem:[#allocation2 + $0x5f] sm:$0xff]
      %v2625 = vld [vmem:[#allocation2 + $0x67] sm:$0xff]
      %v2626 = vld [vmem:[#allocation2 + $0x6f] sm:$0xff]
      %v2627 = vld [vmem:[#allocation2 + $0x77] sm:$0xff]
      %v2628 = vld [vmem:[#allocation2 + $0x7f] sm:$0xff]
      %v2629 = vld [vmem:[#allocation2 + $0x87] sm:$0xff]
      %v2630 = vld [vmem:[#allocation2 + $0x8f] sm:$0xff]
      %v2631 = vld [vmem:[#allocation2 + $0x97] sm:$0xff]
      %v2632 = vld [vmem:[#allocation2 + $0x9f] sm:$0xff]
      %v2633 = vld [vmem:[#allocation2 + $0xa7] sm:$0xff]
      %v2634 = vld [vmem:[#allocation2 + $0xaf] sm:$0xff]
      %v2635 = vld [vmem:[#allocation2 + $0xb7] sm:$0xff]
      %v2636 = vld [vmem:[#allocation2 + $0xbf] sm:$0xff]
      %v2637 = vld [vmem:[#allocation2 + $0xc7] sm:$0xff]
      %v2638 = vld [vmem:[#allocation2 + $0xcf] sm:$0xff]
      %v2639 = vld [vmem:[#allocation2 + $0xd7] sm:$0xff]
      %v2640 = vld [vmem:[#allocation2 + $0xdf] sm:$0xff]
      %v2641 = vld [vmem:[#allocation2 + $0xe7] sm:$0xff]
      %v2642 = vld [vmem:[#allocation2 + $0xef] sm:$0xff]
      %v2643 = vld [vmem:[#allocation2 + $0xf7] sm:$0xff]
      %v2644 = vld [vmem:[#allocation2 + $0xff] sm:$0xff]
      %v2645 = vld [vmem:[#allocation2 + $0x107] sm:$0xff]
      %v2646 = vld [vmem:[#allocation2 + $0x10f] sm:$0xff]
      %v2647 = vmul.f32 %v2615, %v1160
      %v2648 = vmul.f32 %v2616, %v1165
      %v2649 = vmul.f32 %v2617, %v1170
      %v2650 = vmul.f32 %v2618, %v1175
      %v2651 = vmul.f32 %v2619, %v1180
      %v2652 = vmul.f32 %v2620, %v1185
      %v2653 = vmul.f32 %v2621, %v1190
      %v2654 = vmul.f32 %v2622, %v1195
      %v2655 = vmul.f32 %v2623, %v1200
      %v2656 = vmul.f32 %v2624, %v1205
      %v2657 = vmul.f32 %v2625, %v1210
      %v2658 = vmul.f32 %v2626, %v1215
      %v2659 = vmul.f32 %v2627, %v1220
      %v2660 = vmul.f32 %v2628, %v1225
      %v2661 = vmul.f32 %v2629, %v1230
      %v2662 = vmul.f32 %v2630, %v1235
      %v2663 = vmul.f32 %v2631, %v1240
      %v2664 = vmul.f32 %v2632, %v1245
      %v2665 = vmul.f32 %v2633, %v1250
      %v2666 = vmul.f32 %v2634, %v1255
      %v2667 = vmul.f32 %v2635, %v1260
      %v2668 = vmul.f32 %v2636, %v1265
      %v2669 = vmul.f32 %v2637, %v1270
      %v2670 = vmul.f32 %v2638, %v1275
      %v2671 = vmul.f32 %v2639, %v1280
      %v2672 = vmul.f32 %v2640, %v1285
      %v2673 = vmul.f32 %v2641, %v1290
      %v2674 = vmul.f32 %v2642, %v1295
      %v2675 = vmul.f32 %v2643, %v1300
      %v2676 = vmul.f32 %v2644, %v1305
      %v2677 = vmul.f32 %v2645, %v1310
      %v2678 = vmul.f32 %v2646, %v1315
      %s2679 = scalar_lea.vmem %s4, 12
      %v2680 = vld [vmem:[%s2679] sm:$0xf]
      %v2682 = vsel %vm306, %v2647, 0
      %v2685 = vsel %vm306, %v2648, 0
      %v2688 = vsel %vm306, %v2649, 0
      %v2691 = vsel %vm306, %v2650, 0
      %v2694 = vsel %vm306, %v2651, 0
      %v2697 = vsel %vm306, %v2652, 0
      %v2700 = vsel %vm306, %v2653, 0
      %v2703 = vsel %vm306, %v2654, 0
      %v2706 = vsel %vm306, %v2655, 0
      %v2709 = vsel %vm306, %v2656, 0
      %v2712 = vsel %vm306, %v2657, 0
      %v2715 = vsel %vm306, %v2658, 0
      %v2718 = vsel %vm306, %v2659, 0
      %v2721 = vsel %vm306, %v2660, 0
      %v2724 = vsel %vm306, %v2661, 0
      %v2727 = vsel %vm306, %v2662, 0
      %v2730 = vsel %vm306, %v2663, 0
      %v2733 = vsel %vm306, %v2664, 0
      %v2736 = vsel %vm306, %v2665, 0
      %v2739 = vsel %vm306, %v2666, 0
      %v2742 = vsel %vm306, %v2667, 0
      %v2745 = vsel %vm306, %v2668, 0
      %v2748 = vsel %vm306, %v2669, 0
      %v2751 = vsel %vm306, %v2670, 0
      %v2754 = vsel %vm306, %v2671, 0
      %v2757 = vsel %vm306, %v2672, 0
      %v2760 = vsel %vm306, %v2673, 0
      %v2763 = vsel %vm306, %v2674, 0
      %v2766 = vsel %vm306, %v2675, 0
      %v2769 = vsel %vm306, %v2676, 0
      %v2772 = vsel %vm306, %v2677, 0
      %v2775 = vsel %vm306, %v2678, 0
      %v2778 = vsel %vm1480, %v2680, 0
      %2780 = vmatprep.subr.mxu0 0.0
      %2781 = vmatpush1.msra.mxu0 %v2778
      %2782 = vmatprep.subr.mxu0 0.0
      %2783 = vmatpush1.msra.mxu0 0.0
      %2784 = vmatprep.subr.mxu0 0.0
      %2785 = vmatpush1.msra.mxu0 0.0
      %2786 = vmatprep.subr.mxu0 0.0
      %2787 = vmatpush1.msra.mxu0 0.0
      %2788 = vmatprep.subr.mxu0 0.0
      %2789 = vmatpush1.msra.mxu0 0.0
      %2790 = vmatprep.subr.mxu0 0.0
      %2791 = vmatpush1.msra.mxu0 0.0
      %2792 = vmatprep.subr.mxu0 0.0
      %2793 = vmatpush1.msra.mxu0 0.0
      %2794 = vmatprep.subr.mxu0 0.0
      %2795 = vmatpush1.msra.mxu0 0.0
      %2796 = vmatprep.subr.mxu0 0.0
      %2797 = vmatpush1.msra.mxu0 0.0
      %2798 = vmatprep.subr.mxu0 0.0
      %2799 = vmatpush1.msra.mxu0 0.0
      %2800 = vmatprep.subr.mxu0 0.0
      %2801 = vmatpush1.msra.mxu0 0.0
      %2802 = vmatprep.subr.mxu0 0.0
      %2803 = vmatpush1.msra.mxu0 0.0
      %2804 = vmatprep.subr.mxu0 0.0
      %2805 = vmatpush1.msra.mxu0 0.0
      %2806 = vmatprep.subr.mxu0 0.0
      %2807 = vmatpush1.msra.mxu0 0.0
      %2808 = vmatprep.subr.mxu0 0.0
      %2809 = vmatpush1.msra.mxu0 0.0
      %2810 = vmatprep.subr.mxu0 0.0
      %2811 = vmatpush1.msra.mxu0 0.0
      %2812 = vmatprep.subr.mxu0 0.0
      %2813 = vmatpush1.msra.mxu0 0.0
      %2814 = vmatprep.subr.mxu0 0.0
      %2815 = vmatpush1.msra.mxu0 0.0
      %2816 = vmatprep.subr.mxu0 0.0
      %2817 = vmatpush1.msra.mxu0 0.0
      %2818 = vmatprep.subr.mxu0 0.0
      %2819 = vmatpush1.msra.mxu0 0.0
      %2820 = vmatprep.subr.mxu0 0.0
      %2821 = vmatpush1.msra.mxu0 0.0
      %2822 = vmatprep.subr.mxu0 0.0
      %2823 = vmatpush1.msra.mxu0 0.0
      %2824 = vmatprep.subr.mxu0 0.0
      %2825 = vmatpush1.msra.mxu0 0.0
      %2826 = vmatprep.subr.mxu0 0.0
      %2827 = vmatpush1.msra.mxu0 0.0
      %2828 = vmatprep.subr.mxu0 0.0
      %2829 = vmatpush1.msra.mxu0 0.0
      %2830 = vmatprep.subr.mxu0 0.0
      %2831 = vmatpush1.msra.mxu0 0.0
      %2832 = vmatprep.subr.mxu0 0.0
      %2833 = vmatpush1.msra.mxu0 0.0
      %2834 = vmatprep.subr.mxu0 0.0
      %2835 = vmatpush1.msra.mxu0 0.0
      %2836 = vmatprep.subr.mxu0 0.0
      %2837 = vmatpush1.msra.mxu0 0.0
      %2838 = vmatprep.subr.mxu0 0.0
      %2839 = vmatpush1.msra.mxu0 0.0
      %2840 = vmatprep.subr.mxu0 0.0
      %2841 = vmatpush1.msra.mxu0 0.0
      %2842 = vmatprep.subr.mxu0 0.0
      %2843 = vmatpush1.msra.mxu0 0.0
      %2844 = vmatprep.mubr.f32.mxu0 0.0
      %2845 = vmatmul.mubr.f32.gmra.mrb[0].mxu0 %v2682
      %v2846 = vpop.f32.mrb[0].mxu0
      %v2847 = vadd.f32 0.0, %v2846
      %v2848 = vpop.f32.mrb[0].mxu0
      %2849 = vmatprep.mubr.f32.mxu0 0.0
      %2850 = vmatmul.mubr.f32.gmra.mrb[0].mxu0 %v2685
      %v2851 = vpop.f32.mrb[0].mxu0
      %v2852 = vadd.f32 0.0, %v2851
      %v2853 = vpop.f32.mrb[0].mxu0
      %2854 = vmatprep.mubr.f32.mxu0 0.0
      %2855 = vmatmul.mubr.f32.gmra.mrb[0].mxu0 %v2688
      %v2856 = vpop.f32.mrb[0].mxu0
      %v2857 = vadd.f32 0.0, %v2856
      %v2858 = vpop.f32.mrb[0].mxu0
      %2859 = vmatprep.mubr.f32.mxu0 0.0
      %2860 = vmatmul.mubr.f32.gmra.mrb[0].mxu0 %v2691
      %v2861 = vpop.f32.mrb[0].mxu0
      %v2862 = vadd.f32 0.0, %v2861
      %v2863 = vpop.f32.mrb[0].mxu0
      %2864 = vmatprep.mubr.f32.mxu0 0.0
      %2865 = vmatmul.mubr.f32.gmra.mrb[0].mxu0 %v2694
      %v2866 = vpop.f32.mrb[0].mxu0
      %v2867 = vadd.f32 0.0, %v2866
      %v2868 = vpop.f32.mrb[0].mxu0
      %2869 = vmatprep.mubr.f32.mxu0 0.0
      %2870 = vmatmul.mubr.f32.gmra.mrb[0].mxu0 %v2697
      %v2871 = vpop.f32.mrb[0].mxu0
      %v2872 = vadd.f32 0.0, %v2871
      %v2873 = vpop.f32.mrb[0].mxu0
      %2874 = vmatprep.mubr.f32.mxu0 0.0
      %2875 = vmatmul.mubr.f32.gmra.mrb[0].mxu0 %v2700
      %v2876 = vpop.f32.mrb[0].mxu0
      %v2877 = vadd.f32 0.0, %v2876
      %v2878 = vpop.f32.mrb[0].mxu0
      %2879 = vmatprep.mubr.f32.mxu0 0.0
      %2880 = vmatmul.mubr.f32.gmra.mrb[0].mxu0 %v2703
      %v2881 = vpop.f32.mrb[0].mxu0
      %v2882 = vadd.f32 0.0, %v2881
      %v2883 = vpop.f32.mrb[0].mxu0
      %2884 = vmatprep.mubr.f32.mxu0 0.0
      %2885 = vmatmul.mubr.f32.gmra.mrb[0].mxu0 %v2706
      %v2886 = vpop.f32.mrb[0].mxu0
      %v2887 = vadd.f32 0.0, %v2886
      %v2888 = vpop.f32.mrb[0].mxu0
      %2889 = vmatprep.mubr.f32.mxu0 0.0
      %2890 = vmatmul.mubr.f32.gmra.mrb[0].mxu0 %v2709
      %v2891 = vpop.f32.mrb[0].mxu0
      %v2892 = vadd.f32 0.0, %v2891
      %v2893 = vpop.f32.mrb[0].mxu0
      %2894 = vmatprep.mubr.f32.mxu0 0.0
      %2895 = vmatmul.mubr.f32.gmra.mrb[0].mxu0 %v2712
      %v2896 = vpop.f32.mrb[0].mxu0
      %v2897 = vadd.f32 0.0, %v2896
      %v2898 = vpop.f32.mrb[0].mxu0
      %2899 = vmatprep.mubr.f32.mxu0 0.0
      %2900 = vmatmul.mubr.f32.gmra.mrb[0].mxu0 %v2715
      %v2901 = vpop.f32.mrb[0].mxu0
      %v2902 = vadd.f32 0.0, %v2901
      %v2903 = vpop.f32.mrb[0].mxu0
      %2904 = vmatprep.mubr.f32.mxu0 0.0
      %2905 = vmatmul.mubr.f32.gmra.mrb[0].mxu0 %v2718
      %v2906 = vpop.f32.mrb[0].mxu0
      %v2907 = vadd.f32 0.0, %v2906
      %v2908 = vpop.f32.mrb[0].mxu0
      %2909 = vmatprep.mubr.f32.mxu0 0.0
      %2910 = vmatmul.mubr.f32.gmra.mrb[0].mxu0 %v2721
      %v2911 = vpop.f32.mrb[0].mxu0
      %v2912 = vadd.f32 0.0, %v2911
      %v2913 = vpop.f32.mrb[0].mxu0
      %2914 = vmatprep.mubr.f32.mxu0 0.0
      %2915 = vmatmul.mubr.f32.gmra.mrb[0].mxu0 %v2724
      %v2916 = vpop.f32.mrb[0].mxu0
      %v2917 = vadd.f32 0.0, %v2916
      %v2918 = vpop.f32.mrb[0].mxu0
      %2919 = vmatprep.mubr.f32.mxu0 0.0
      %2920 = vmatmul.mubr.f32.gmra.mrb[0].mxu0 %v2727
      %v2921 = vpop.f32.mrb[0].mxu0
      %v2922 = vadd.f32 0.0, %v2921
      %v2923 = vpop.f32.mrb[0].mxu0
      %2924 = vmatprep.mubr.f32.mxu0 0.0
      %2925 = vmatmul.mubr.f32.gmra.mrb[0].mxu0 %v2730
      %v2926 = vpop.f32.mrb[0].mxu0
      %v2927 = vadd.f32 0.0, %v2926
      %v2928 = vpop.f32.mrb[0].mxu0
      %2929 = vmatprep.mubr.f32.mxu0 0.0
      %2930 = vmatmul.mubr.f32.gmra.mrb[0].mxu0 %v2733
      %v2931 = vpop.f32.mrb[0].mxu0
      %v2932 = vadd.f32 0.0, %v2931
      %v2933 = vpop.f32.mrb[0].mxu0
      %2934 = vmatprep.mubr.f32.mxu0 0.0
      %2935 = vmatmul.mubr.f32.gmra.mrb[0].mxu0 %v2736
      %v2936 = vpop.f32.mrb[0].mxu0
      %v2937 = vadd.f32 0.0, %v2936
      %v2938 = vpop.f32.mrb[0].mxu0
      %2939 = vmatprep.mubr.f32.mxu0 0.0
      %2940 = vmatmul.mubr.f32.gmra.mrb[0].mxu0 %v2739
      %v2941 = vpop.f32.mrb[0].mxu0
      %v2942 = vadd.f32 0.0, %v2941
      %v2943 = vpop.f32.mrb[0].mxu0
      %2944 = vmatprep.mubr.f32.mxu0 0.0
      %2945 = vmatmul.mubr.f32.gmra.mrb[0].mxu0 %v2742
      %v2946 = vpop.f32.mrb[0].mxu0
      %v2947 = vadd.f32 0.0, %v2946
      %v2948 = vpop.f32.mrb[0].mxu0
      %2949 = vmatprep.mubr.f32.mxu0 0.0
      %2950 = vmatmul.mubr.f32.gmra.mrb[0].mxu0 %v2745
      %v2951 = vpop.f32.mrb[0].mxu0
      %v2952 = vadd.f32 0.0, %v2951
      %v2953 = vpop.f32.mrb[0].mxu0
      %2954 = vmatprep.mubr.f32.mxu0 0.0
      %2955 = vmatmul.mubr.f32.gmra.mrb[0].mxu0 %v2748
      %v2956 = vpop.f32.mrb[0].mxu0
      %v2957 = vadd.f32 0.0, %v2956
      %v2958 = vpop.f32.mrb[0].mxu0
      %2959 = vmatprep.mubr.f32.mxu0 0.0
      %2960 = vmatmul.mubr.f32.gmra.mrb[0].mxu0 %v2751
      %v2961 = vpop.f32.mrb[0].mxu0
      %v2962 = vadd.f32 0.0, %v2961
      %v2963 = vpop.f32.mrb[0].mxu0
      %2964 = vmatprep.mubr.f32.mxu0 0.0
      %2965 = vmatmul.mubr.f32.gmra.mrb[0].mxu0 %v2754
      %v2966 = vpop.f32.mrb[0].mxu0
      %v2967 = vadd.f32 0.0, %v2966
      %v2968 = vpop.f32.mrb[0].mxu0
      %2969 = vmatprep.mubr.f32.mxu0 0.0
      %2970 = vmatmul.mubr.f32.gmra.mrb[0].mxu0 %v2757
      %v2971 = vpop.f32.mrb[0].mxu0
      %v2972 = vadd.f32 0.0, %v2971
      %v2973 = vpop.f32.mrb[0].mxu0
      %2974 = vmatprep.mubr.f32.mxu0 0.0
      %2975 = vmatmul.mubr.f32.gmra.mrb[0].mxu0 %v2760
      %v2976 = vpop.f32.mrb[0].mxu0
      %v2977 = vadd.f32 0.0, %v2976
      %v2978 = vpop.f32.mrb[0].mxu0
      %2979 = vmatprep.mubr.f32.mxu0 0.0
      %2980 = vmatmul.mubr.f32.gmra.mrb[0].mxu0 %v2763
      %v2981 = vpop.f32.mrb[0].mxu0
      %v2982 = vadd.f32 0.0, %v2981
      %v2983 = vpop.f32.mrb[0].mxu0
      %2984 = vmatprep.mubr.f32.mxu0 0.0
      %2985 = vmatmul.mubr.f32.gmra.mrb[0].mxu0 %v2766
      %v2986 = vpop.f32.mrb[0].mxu0
      %v2987 = vadd.f32 0.0, %v2986
      %v2988 = vpop.f32.mrb[0].mxu0
      %2989 = vmatprep.mubr.f32.mxu0 0.0
      %2990 = vmatmul.mubr.f32.gmra.mrb[0].mxu0 %v2769
      %v2991 = vpop.f32.mrb[0].mxu0
      %v2992 = vadd.f32 0.0, %v2991
      %v2993 = vpop.f32.mrb[0].mxu0
      %2994 = vmatprep.mubr.f32.mxu0 0.0
      %2995 = vmatmul.mubr.f32.gmra.mrb[0].mxu0 %v2772
      %v2996 = vpop.f32.mrb[0].mxu0
      %v2997 = vadd.f32 0.0, %v2996
      %v2998 = vpop.f32.mrb[0].mxu0
      %2999 = vmatprep.mubr.f32.mxu0 0.0
      %3000 = vmatmul.mubr.f32.gmra.mrb[0].mxu0 %v2775
      %v3001 = vpop.f32.mrb[0].mxu0
      %v3002 = vadd.f32 0.0, %v3001
      %v3003 = vpop.f32.mrb[0].mxu0
      %3004 = vdwg.mxu0
      %v3005 = vadd.f32 %v2583, %v2847
      %v3006 = vadd.f32 %v2584, %v2852
      %v3007 = vadd.f32 %v2585, %v2857
      %v3008 = vadd.f32 %v2586, %v2862
      %v3009 = vadd.f32 %v2587, %v2867
      %v3010 = vadd.f32 %v2588, %v2872
      %v3011 = vadd.f32 %v2589, %v2877
      %v3012 = vadd.f32 %v2590, %v2882
      %v3013 = vadd.f32 %v2591, %v2887
      %v3014 = vadd.f32 %v2592, %v2892
      %v3015 = vadd.f32 %v2593, %v2897
      %v3016 = vadd.f32 %v2594, %v2902
      %v3017 = vadd.f32 %v2595, %v2907
      %v3018 = vadd.f32 %v2596, %v2912
      %v3019 = vadd.f32 %v2597, %v2917
      %v3020 = vadd.f32 %v2598, %v2922
      %v3021 = vadd.f32 %v2599, %v2927
      %v3022 = vadd.f32 %v2600, %v2932
      %v3023 = vadd.f32 %v2601, %v2937
      %v3024 = vadd.f32 %v2602, %v2942
      %v3025 = vadd.f32 %v2603, %v2947
      %v3026 = vadd.f32 %v2604, %v2952
      %v3027 = vadd.f32 %v2605, %v2957
      %v3028 = vadd.f32 %v2606, %v2962
      %v3029 = vadd.f32 %v2607, %v2967
      %v3030 = vadd.f32 %v2608, %v2972
      %v3031 = vadd.f32 %v2609, %v2977
      %v3032 = vadd.f32 %v2610, %v2982
      %v3033 = vadd.f32 %v2611, %v2987
      %v3034 = vadd.f32 %v2612, %v2992
      %v3035 = vadd.f32 %v2613, %v2997
      %v3036 = vadd.f32 %v2614, %v3002
      %v3037 = vld [vmem:[#allocation2 + $0x18] sm:$0xff]
      %v3038 = vld [vmem:[#allocation2 + $0x20] sm:$0xff]
      %v3039 = vld [vmem:[#allocation2 + $0x28] sm:$0xff]
      %v3040 = vld [vmem:[#allocation2 + $0x30] sm:$0xff]
      %v3041 = vld [vmem:[#allocation2 + $0x38] sm:$0xff]
      %v3042 = vld [vmem:[#allocation2 + $0x40] sm:$0xff]
      %v3043 = vld [vmem:[#allocation2 + $0x48] sm:$0xff]
      %v3044 = vld [vmem:[#allocation2 + $0x50] sm:$0xff]
      %v3045 = vld [vmem:[#allocation2 + $0x58] sm:$0xff]
      %v3046 = vld [vmem:[#allocation2 + $0x60] sm:$0xff]
      %v3047 = vld [vmem:[#allocation2 + $0x68] sm:$0xff]
      %v3048 = vld [vmem:[#allocation2 + $0x70] sm:$0xff]
      %v3049 = vld [vmem:[#allocation2 + $0x78] sm:$0xff]
      %v3050 = vld [vmem:[#allocation2 + $0x80] sm:$0xff]
      %v3051 = vld [vmem:[#allocation2 + $0x88] sm:$0xff]
      %v3052 = vld [vmem:[#allocation2 + $0x90] sm:$0xff]
      %v3053 = vld [vmem:[#allocation2 + $0x98] sm:$0xff]
      %v3054 = vld [vmem:[#allocation2 + $0xa0] sm:$0xff]
      %v3055 = vld [vmem:[#allocation2 + $0xa8] sm:$0xff]
      %v3056 = vld [vmem:[#allocation2 + $0xb0] sm:$0xff]
      %v3057 = vld [vmem:[#allocation2 + $0xb8] sm:$0xff]
      %v3058 = vld [vmem:[#allocation2 + $0xc0] sm:$0xff]
      %v3059 = vld [vmem:[#allocation2 + $0xc8] sm:$0xff]
      %v3060 = vld [vmem:[#allocation2 + $0xd0] sm:$0xff]
      %v3061 = vld [vmem:[#allocation2 + $0xd8] sm:$0xff]
      %v3062 = vld [vmem:[#allocation2 + $0xe0] sm:$0xff]
      %v3063 = vld [vmem:[#allocation2 + $0xe8] sm:$0xff]
      %v3064 = vld [vmem:[#allocation2 + $0xf0] sm:$0xff]
      %v3065 = vld [vmem:[#allocation2 + $0xf8] sm:$0xff]
      %v3066 = vld [vmem:[#allocation2 + $0x100] sm:$0xff]
      %v3067 = vld [vmem:[#allocation2 + $0x108] sm:$0xff]
      %v3068 = vld [vmem:[#allocation2 + $0x110] sm:$0xff]
      %s3069 = scalar_lea.vmem %s4, 16
      %v3070 = vld [vmem:[%s3069] sm:$0xf]
      %v3072 = vsel %vm306, %v3037, 0
      %v3075 = vsel %vm306, %v3038, 0
      %v3078 = vsel %vm306, %v3039, 0
      %v3081 = vsel %vm306, %v3040, 0
      %v3084 = vsel %vm306, %v3041, 0
      %v3087 = vsel %vm306, %v3042, 0
      %v3090 = vsel %vm306, %v3043, 0
      %v3093 = vsel %vm306, %v3044, 0
      %v3096 = vsel %vm306, %v3045, 0
      %v3099 = vsel %vm306, %v3046, 0
      %v3102 = vsel %vm306, %v3047, 0
      %v3105 = vsel %vm306, %v3048, 0
      %v3108 = vsel %vm306, %v3049, 0
      %v3111 = vsel %vm306, %v3050, 0
      %v3114 = vsel %vm306, %v3051, 0
      %v3117 = vsel %vm306, %v3052, 0
      %v3120 = vsel %vm306, %v3053, 0
      %v3123 = vsel %vm306, %v3054, 0
      %v3126 = vsel %vm306, %v3055, 0
      %v3129 = vsel %vm306, %v3056, 0
      %v3132 = vsel %vm306, %v3057, 0
      %v3135 = vsel %vm306, %v3058, 0
      %v3138 = vsel %vm306, %v3059, 0
      %v3141 = vsel %vm306, %v3060, 0
      %v3144 = vsel %vm306, %v3061, 0
      %v3147 = vsel %vm306, %v3062, 0
      %v3150 = vsel %vm306, %v3063, 0
      %v3153 = vsel %vm306, %v3064, 0
      %v3156 = vsel %vm306, %v3065, 0
      %v3159 = vsel %vm306, %v3066, 0
      %v3162 = vsel %vm306, %v3067, 0
      %v3165 = vsel %vm306, %v3068, 0
      %v3168 = vsel %vm1480, %v3070, 0
      %3170 = vmatprep.subr.mxu0 0.0
      %3171 = vmatpush1.msra.mxu0 %v3168
      %3172 = vmatprep.subr.mxu0 0.0
      %3173 = vmatpush1.msra.mxu0 0.0
      %3174 = vmatprep.subr.mxu0 0.0
      %3175 = vmatpush1.msra.mxu0 0.0
      %3176 = vmatprep.subr.mxu0 0.0
      %3177 = vmatpush1.msra.mxu0 0.0
      %3178 = vmatprep.subr.mxu0 0.0
      %3179 = vmatpush1.msra.mxu0 0.0
      %3180 = vmatprep.subr.mxu0 0.0
      %3181 = vmatpush1.msra.mxu0 0.0
      %3182 = vmatprep.subr.mxu0 0.0
      %3183 = vmatpush1.msra.mxu0 0.0
      %3184 = vmatprep.subr.mxu0 0.0
      %3185 = vmatpush1.msra.mxu0 0.0
      %3186 = vmatprep.subr.mxu0 0.0
      %3187 = vmatpush1.msra.mxu0 0.0
      %3188 = vmatprep.subr.mxu0 0.0
      %3189 = vmatpush1.msra.mxu0 0.0
      %3190 = vmatprep.subr.mxu0 0.0
      %3191 = vmatpush1.msra.mxu0 0.0
      %3192 = vmatprep.subr.mxu0 0.0
      %3193 = vmatpush1.msra.mxu0 0.0
      %3194 = vmatprep.subr.mxu0 0.0
      %3195 = vmatpush1.msra.mxu0 0.0
      %3196 = vmatprep.subr.mxu0 0.0
      %3197 = vmatpush1.msra.mxu0 0.0
      %3198 = vmatprep.subr.mxu0 0.0
      %3199 = vmatpush1.msra.mxu0 0.0
      %3200 = vmatprep.subr.mxu0 0.0
      %3201 = vmatpush1.msra.mxu0 0.0
      %3202 = vmatprep.subr.mxu0 0.0
      %3203 = vmatpush1.msra.mxu0 0.0
      %3204 = vmatprep.subr.mxu0 0.0
      %3205 = vmatpush1.msra.mxu0 0.0
      %3206 = vmatprep.subr.mxu0 0.0
      %3207 = vmatpush1.msra.mxu0 0.0
      %3208 = vmatprep.subr.mxu0 0.0
      %3209 = vmatpush1.msra.mxu0 0.0
      %3210 = vmatprep.subr.mxu0 0.0
      %3211 = vmatpush1.msra.mxu0 0.0
      %3212 = vmatprep.subr.mxu0 0.0
      %3213 = vmatpush1.msra.mxu0 0.0
      %3214 = vmatprep.subr.mxu0 0.0
      %3215 = vmatpush1.msra.mxu0 0.0
      %3216 = vmatprep.subr.mxu0 0.0
      %3217 = vmatpush1.msra.mxu0 0.0
      %3218 = vmatprep.subr.mxu0 0.0
      %3219 = vmatpush1.msra.mxu0 0.0
      %3220 = vmatprep.subr.mxu0 0.0
      %3221 = vmatpush1.msra.mxu0 0.0
      %3222 = vmatprep.subr.mxu0 0.0
      %3223 = vmatpush1.msra.mxu0 0.0
      %3224 = vmatprep.subr.mxu0 0.0
      %3225 = vmatpush1.msra.mxu0 0.0
      %3226 = vmatprep.subr.mxu0 0.0
      %3227 = vmatpush1.msra.mxu0 0.0
      %3228 = vmatprep.subr.mxu0 0.0
      %3229 = vmatpush1.msra.mxu0 0.0
      %3230 = vmatprep.subr.mxu0 0.0
      %3231 = vmatpush1.msra.mxu0 0.0
      %3232 = vmatprep.subr.mxu0 0.0
      %3233 = vmatpush1.msra.mxu0 0.0
      %3234 = vmatprep.mubr.f32.mxu0 0.0
      %3235 = vmatmul.mubr.f32.gmra.mrb[0].mxu0 %v3072
      %v3236 = vpop.f32.mrb[0].mxu0
      %v3237 = vadd.f32 0.0, %v3236
      %v3238 = vpop.f32.mrb[0].mxu0
      %3239 = vmatprep.mubr.f32.mxu0 0.0
      %3240 = vmatmul.mubr.f32.gmra.mrb[0].mxu0 %v3075
      %v3241 = vpop.f32.mrb[0].mxu0
      %v3242 = vadd.f32 0.0, %v3241
      %v3243 = vpop.f32.mrb[0].mxu0
      %3244 = vmatprep.mubr.f32.mxu0 0.0
      %3245 = vmatmul.mubr.f32.gmra.mrb[0].mxu0 %v3078
      %v3246 = vpop.f32.mrb[0].mxu0
      %v3247 = vadd.f32 0.0, %v3246
      %v3248 = vpop.f32.mrb[0].mxu0
      %3249 = vmatprep.mubr.f32.mxu0 0.0
      %3250 = vmatmul.mubr.f32.gmra.mrb[0].mxu0 %v3081
      %v3251 = vpop.f32.mrb[0].mxu0
      %v3252 = vadd.f32 0.0, %v3251
      %v3253 = vpop.f32.mrb[0].mxu0
      %3254 = vmatprep.mubr.f32.mxu0 0.0
      %3255 = vmatmul.mubr.f32.gmra.mrb[0].mxu0 %v3084
      %v3256 = vpop.f32.mrb[0].mxu0
      %v3257 = vadd.f32 0.0, %v3256
      %v3258 = vpop.f32.mrb[0].mxu0
      %3259 = vmatprep.mubr.f32.mxu0 0.0
      %3260 = vmatmul.mubr.f32.gmra.mrb[0].mxu0 %v3087
      %v3261 = vpop.f32.mrb[0].mxu0
      %v3262 = vadd.f32 0.0, %v3261
      %v3263 = vpop.f32.mrb[0].mxu0
      %3264 = vmatprep.mubr.f32.mxu0 0.0
      %3265 = vmatmul.mubr.f32.gmra.mrb[0].mxu0 %v3090
      %v3266 = vpop.f32.mrb[0].mxu0
      %v3267 = vadd.f32 0.0, %v3266
      %v3268 = vpop.f32.mrb[0].mxu0
      %3269 = vmatprep.mubr.f32.mxu0 0.0
      %3270 = vmatmul.mubr.f32.gmra.mrb[0].mxu0 %v3093
      %v3271 = vpop.f32.mrb[0].mxu0
      %v3272 = vadd.f32 0.0, %v3271
      %v3273 = vpop.f32.mrb[0].mxu0
      %3274 = vmatprep.mubr.f32.mxu0 0.0
      %3275 = vmatmul.mubr.f32.gmra.mrb[0].mxu0 %v3096
      %v3276 = vpop.f32.mrb[0].mxu0
      %v3277 = vadd.f32 0.0, %v3276
      %v3278 = vpop.f32.mrb[0].mxu0
      %3279 = vmatprep.mubr.f32.mxu0 0.0
      %3280 = vmatmul.mubr.f32.gmra.mrb[0].mxu0 %v3099
      %v3281 = vpop.f32.mrb[0].mxu0
      %v3282 = vadd.f32 0.0, %v3281
      %v3283 = vpop.f32.mrb[0].mxu0
      %3284 = vmatprep.mubr.f32.mxu0 0.0
      %3285 = vmatmul.mubr.f32.gmra.mrb[0].mxu0 %v3102
      %v3286 = vpop.f32.mrb[0].mxu0
      %v3287 = vadd.f32 0.0, %v3286
      %v3288 = vpop.f32.mrb[0].mxu0
      %3289 = vmatprep.mubr.f32.mxu0 0.0
      %3290 = vmatmul.mubr.f32.gmra.mrb[0].mxu0 %v3105
      %v3291 = vpop.f32.mrb[0].mxu0
      %v3292 = vadd.f32 0.0, %v3291
      %v3293 = vpop.f32.mrb[0].mxu0
      %3294 = vmatprep.mubr.f32.mxu0 0.0
      %3295 = vmatmul.mubr.f32.gmra.mrb[0].mxu0 %v3108
      %v3296 = vpop.f32.mrb[0].mxu0
      %v3297 = vadd.f32 0.0, %v3296
      %v3298 = vpop.f32.mrb[0].mxu0
      %3299 = vmatprep.mubr.f32.mxu0 0.0
      %3300 = vmatmul.mubr.f32.gmra.mrb[0].mxu0 %v3111
      %v3301 = vpop.f32.mrb[0].mxu0
      %v3302 = vadd.f32 0.0, %v3301
      %v3303 = vpop.f32.mrb[0].mxu0
      %3304 = vmatprep.mubr.f32.mxu0 0.0
      %3305 = vmatmul.mubr.f32.gmra.mrb[0].mxu0 %v3114
      %v3306 = vpop.f32.mrb[0].mxu0
      %v3307 = vadd.f32 0.0, %v3306
      %v3308 = vpop.f32.mrb[0].mxu0
      %3309 = vmatprep.mubr.f32.mxu0 0.0
      %3310 = vmatmul.mubr.f32.gmra.mrb[0].mxu0 %v3117
      %v3311 = vpop.f32.mrb[0].mxu0
      %v3312 = vadd.f32 0.0, %v3311
      %v3313 = vpop.f32.mrb[0].mxu0
      %3314 = vmatprep.mubr.f32.mxu0 0.0
      %3315 = vmatmul.mubr.f32.gmra.mrb[0].mxu0 %v3120
      %v3316 = vpop.f32.mrb[0].mxu0
      %v3317 = vadd.f32 0.0, %v3316
      %v3318 = vpop.f32.mrb[0].mxu0
      %3319 = vmatprep.mubr.f32.mxu0 0.0
      %3320 = vmatmul.mubr.f32.gmra.mrb[0].mxu0 %v3123
      %v3321 = vpop.f32.mrb[0].mxu0
      %v3322 = vadd.f32 0.0, %v3321
      %v3323 = vpop.f32.mrb[0].mxu0
      %3324 = vmatprep.mubr.f32.mxu0 0.0
      %3325 = vmatmul.mubr.f32.gmra.mrb[0].mxu0 %v3126
      %v3326 = vpop.f32.mrb[0].mxu0
      %v3327 = vadd.f32 0.0, %v3326
      %v3328 = vpop.f32.mrb[0].mxu0
      %3329 = vmatprep.mubr.f32.mxu0 0.0
      %3330 = vmatmul.mubr.f32.gmra.mrb[0].mxu0 %v3129
      %v3331 = vpop.f32.mrb[0].mxu0
      %v3332 = vadd.f32 0.0, %v3331
      %v3333 = vpop.f32.mrb[0].mxu0
      %3334 = vmatprep.mubr.f32.mxu0 0.0
      %3335 = vmatmul.mubr.f32.gmra.mrb[0].mxu0 %v3132
      %v3336 = vpop.f32.mrb[0].mxu0
      %v3337 = vadd.f32 0.0, %v3336
      %v3338 = vpop.f32.mrb[0].mxu0
      %3339 = vmatprep.mubr.f32.mxu0 0.0
      %3340 = vmatmul.mubr.f32.gmra.mrb[0].mxu0 %v3135
      %v3341 = vpop.f32.mrb[0].mxu0
      %v3342 = vadd.f32 0.0, %v3341
      %v3343 = vpop.f32.mrb[0].mxu0
      %3344 = vmatprep.mubr.f32.mxu0 0.0
      %3345 = vmatmul.mubr.f32.gmra.mrb[0].mxu0 %v3138
      %v3346 = vpop.f32.mrb[0].mxu0
      %v3347 = vadd.f32 0.0, %v3346
      %v3348 = vpop.f32.mrb[0].mxu0
      %3349 = vmatprep.mubr.f32.mxu0 0.0
      %3350 = vmatmul.mubr.f32.gmra.mrb[0].mxu0 %v3141
      %v3351 = vpop.f32.mrb[0].mxu0
      %v3352 = vadd.f32 0.0, %v3351
      %v3353 = vpop.f32.mrb[0].mxu0
      %3354 = vmatprep.mubr.f32.mxu0 0.0
      %3355 = vmatmul.mubr.f32.gmra.mrb[0].mxu0 %v3144
      %v3356 = vpop.f32.mrb[0].mxu0
      %v3357 = vadd.f32 0.0, %v3356
      %v3358 = vpop.f32.mrb[0].mxu0
      %3359 = vmatprep.mubr.f32.mxu0 0.0
      %3360 = vmatmul.mubr.f32.gmra.mrb[0].mxu0 %v3147
      %v3361 = vpop.f32.mrb[0].mxu0
      %v3362 = vadd.f32 0.0, %v3361
      %v3363 = vpop.f32.mrb[0].mxu0
      %3364 = vmatprep.mubr.f32.mxu0 0.0
      %3365 = vmatmul.mubr.f32.gmra.mrb[0].mxu0 %v3150
      %v3366 = vpop.f32.mrb[0].mxu0
      %v3367 = vadd.f32 0.0, %v3366
      %v3368 = vpop.f32.mrb[0].mxu0
      %3369 = vmatprep.mubr.f32.mxu0 0.0
      %3370 = vmatmul.mubr.f32.gmra.mrb[0].mxu0 %v3153
      %v3371 = vpop.f32.mrb[0].mxu0
      %v3372 = vadd.f32 0.0, %v3371
      %v3373 = vpop.f32.mrb[0].mxu0
      %3374 = vmatprep.mubr.f32.mxu0 0.0
      %3375 = vmatmul.mubr.f32.gmra.mrb[0].mxu0 %v3156
      %v3376 = vpop.f32.mrb[0].mxu0
      %v3377 = vadd.f32 0.0, %v3376
      %v3378 = vpop.f32.mrb[0].mxu0
      %3379 = vmatprep.mubr.f32.mxu0 0.0
      %3380 = vmatmul.mubr.f32.gmra.mrb[0].mxu0 %v3159
      %v3381 = vpop.f32.mrb[0].mxu0
      %v3382 = vadd.f32 0.0, %v3381
      %v3383 = vpop.f32.mrb[0].mxu0
      %3384 = vmatprep.mubr.f32.mxu0 0.0
      %3385 = vmatmul.mubr.f32.gmra.mrb[0].mxu0 %v3162
      %v3386 = vpop.f32.mrb[0].mxu0
      %v3387 = vadd.f32 0.0, %v3386
      %v3388 = vpop.f32.mrb[0].mxu0
      %3389 = vmatprep.mubr.f32.mxu0 0.0
      %3390 = vmatmul.mubr.f32.gmra.mrb[0].mxu0 %v3165
      %v3391 = vpop.f32.mrb[0].mxu0
      %v3392 = vadd.f32 0.0, %v3391
      %v3393 = vpop.f32.mrb[0].mxu0
      %3394 = vdwg.mxu0
      %v3395 = vadd.f32 %v3005, %v3237
      %v3396 = vadd.f32 %v3006, %v3242
      %v3397 = vadd.f32 %v3007, %v3247
      %v3398 = vadd.f32 %v3008, %v3252
      %v3399 = vadd.f32 %v3009, %v3257
      %v3400 = vadd.f32 %v3010, %v3262
      %v3401 = vadd.f32 %v3011, %v3267
      %v3402 = vadd.f32 %v3012, %v3272
      %v3403 = vadd.f32 %v3013, %v3277
      %v3404 = vadd.f32 %v3014, %v3282
      %v3405 = vadd.f32 %v3015, %v3287
      %v3406 = vadd.f32 %v3016, %v3292
      %v3407 = vadd.f32 %v3017, %v3297
      %v3408 = vadd.f32 %v3018, %v3302
      %v3409 = vadd.f32 %v3019, %v3307
      %v3410 = vadd.f32 %v3020, %v3312
      %v3411 = vadd.f32 %v3021, %v3317
      %v3412 = vadd.f32 %v3022, %v3322
      %v3413 = vadd.f32 %v3023, %v3327
      %v3414 = vadd.f32 %v3024, %v3332
      %v3415 = vadd.f32 %v3025, %v3337
      %v3416 = vadd.f32 %v3026, %v3342
      %v3417 = vadd.f32 %v3027, %v3347
      %v3418 = vadd.f32 %v3028, %v3352
      %v3419 = vadd.f32 %v3029, %v3357
      %v3420 = vadd.f32 %v3030, %v3362
      %v3421 = vadd.f32 %v3031, %v3367
      %v3422 = vadd.f32 %v3032, %v3372
      %v3423 = vadd.f32 %v3033, %v3377
      %v3424 = vadd.f32 %v3034, %v3382
      %v3425 = vadd.f32 %v3035, %v3387
      %v3426 = vadd.f32 %v3036, %v3392
      %v3427 = vld [vmem:[#allocation2 + $0x19] sm:$0xff]
      %v3428 = vld [vmem:[#allocation2 + $0x21] sm:$0xff]
      %v3429 = vld [vmem:[#allocation2 + $0x29] sm:$0xff]
      %v3430 = vld [vmem:[#allocation2 + $0x31] sm:$0xff]
      %v3431 = vld [vmem:[#allocation2 + $0x39] sm:$0xff]
      %v3432 = vld [vmem:[#allocation2 + $0x41] sm:$0xff]
      %v3433 = vld [vmem:[#allocation2 + $0x49] sm:$0xff]
      %v3434 = vld [vmem:[#allocation2 + $0x51] sm:$0xff]
      %v3435 = vld [vmem:[#allocation2 + $0x59] sm:$0xff]
      %v3436 = vld [vmem:[#allocation2 + $0x61] sm:$0xff]
      %v3437 = vld [vmem:[#allocation2 + $0x69] sm:$0xff]
      %v3438 = vld [vmem:[#allocation2 + $0x71] sm:$0xff]
      %v3439 = vld [vmem:[#allocation2 + $0x79] sm:$0xff]
      %v3440 = vld [vmem:[#allocation2 + $0x81] sm:$0xff]
      %v3441 = vld [vmem:[#allocation2 + $0x89] sm:$0xff]
      %v3442 = vld [vmem:[#allocation2 + $0x91] sm:$0xff]
      %v3443 = vld [vmem:[#allocation2 + $0x99] sm:$0xff]
      %v3444 = vld [vmem:[#allocation2 + $0xa1] sm:$0xff]
      %v3445 = vld [vmem:[#allocation2 + $0xa9] sm:$0xff]
      %v3446 = vld [vmem:[#allocation2 + $0xb1] sm:$0xff]
      %v3447 = vld [vmem:[#allocation2 + $0xb9] sm:$0xff]
      %v3448 = vld [vmem:[#allocation2 + $0xc1] sm:$0xff]
      %v3449 = vld [vmem:[#allocation2 + $0xc9] sm:$0xff]
      %v3450 = vld [vmem:[#allocation2 + $0xd1] sm:$0xff]
      %v3451 = vld [vmem:[#allocation2 + $0xd9] sm:$0xff]
      %v3452 = vld [vmem:[#allocation2 + $0xe1] sm:$0xff]
      %v3453 = vld [vmem:[#allocation2 + $0xe9] sm:$0xff]
      %v3454 = vld [vmem:[#allocation2 + $0xf1] sm:$0xff]
      %v3455 = vld [vmem:[#allocation2 + $0xf9] sm:$0xff]
      %v3456 = vld [vmem:[#allocation2 + $0x101] sm:$0xff]
      %v3457 = vld [vmem:[#allocation2 + $0x109] sm:$0xff]
      %v3458 = vld [vmem:[#allocation2 + $0x111] sm:$0xff]
      %v3459 = vmul.f32 %v3427, %v2068
      %v3460 = vmul.f32 %v3428, %v2073
      %v3461 = vmul.f32 %v3429, %v2078
      %v3462 = vmul.f32 %v3430, %v2083
      %v3463 = vmul.f32 %v3431, %v2088
      %v3464 = vmul.f32 %v3432, %v2093
      %v3465 = vmul.f32 %v3433, %v2098
      %v3466 = vmul.f32 %v3434, %v2103
      %v3467 = vmul.f32 %v3435, %v2108
      %v3468 = vmul.f32 %v3436, %v2113
      %v3469 = vmul.f32 %v3437, %v2118
      %v3470 = vmul.f32 %v3438, %v2123
      %v3471 = vmul.f32 %v3439, %v2128
      %v3472 = vmul.f32 %v3440, %v2133
      %v3473 = vmul.f32 %v3441, %v2138
      %v3474 = vmul.f32 %v3442, %v2143
      %v3475 = vmul.f32 %v3443, %v2148
      %v3476 = vmul.f32 %v3444, %v2153
      %v3477 = vmul.f32 %v3445, %v2158
      %v3478 = vmul.f32 %v3446, %v2163
      %v3479 = vmul.f32 %v3447, %v2168
      %v3480 = vmul.f32 %v3448, %v2173
      %v3481 = vmul.f32 %v3449, %v2178
      %v3482 = vmul.f32 %v3450, %v2183
      %v3483 = vmul.f32 %v3451, %v2188
      %v3484 = vmul.f32 %v3452, %v2193
      %v3485 = vmul.f32 %v3453, %v2198
      %v3486 = vmul.f32 %v3454, %v2203
      %v3487 = vmul.f32 %v3455, %v2208
      %v3488 = vmul.f32 %v3456, %v2213
      %v3489 = vmul.f32 %v3457, %v2218
      %v3490 = vmul.f32 %v3458, %v2223
      %s3491 = scalar_lea.vmem %s4, 20
      %v3492 = vld [vmem:[%s3491] sm:$0xf]
      %v3494 = vsel %vm306, %v3459, 0
      %v3497 = vsel %vm306, %v3460, 0
      %v3500 = vsel %vm306, %v3461, 0
      %v3503 = vsel %vm306, %v3462, 0
      %v3506 = vsel %vm306, %v3463, 0
      %v3509 = vsel %vm306, %v3464, 0
      %v3512 = vsel %vm306, %v3465, 0
      %v3515 = vsel %vm306, %v3466, 0
      %v3518 = vsel %vm306, %v3467, 0
      %v3521 = vsel %vm306, %v3468, 0
      %v3524 = vsel %vm306, %v3469, 0
      %v3527 = vsel %vm306, %v3470, 0
      %v3530 = vsel %vm306, %v3471, 0
      %v3533 = vsel %vm306, %v3472, 0
      %v3536 = vsel %vm306, %v3473, 0
      %v3539 = vsel %vm306, %v3474, 0
      %v3542 = vsel %vm306, %v3475, 0
      %v3545 = vsel %vm306, %v3476, 0
      %v3548 = vsel %vm306, %v3477, 0
      %v3551 = vsel %vm306, %v3478, 0
      %v3554 = vsel %vm306, %v3479, 0
      %v3557 = vsel %vm306, %v3480, 0
      %v3560 = vsel %vm306, %v3481, 0
      %v3563 = vsel %vm306, %v3482, 0
      %v3566 = vsel %vm306, %v3483, 0
      %v3569 = vsel %vm306, %v3484, 0
      %v3572 = vsel %vm306, %v3485, 0
      %v3575 = vsel %vm306, %v3486, 0
      %v3578 = vsel %vm306, %v3487, 0
      %v3581 = vsel %vm306, %v3488, 0
      %v3584 = vsel %vm306, %v3489, 0
      %v3587 = vsel %vm306, %v3490, 0
      %v3590 = vsel %vm1480, %v3492, 0
      %3592 = vmatprep.subr.mxu0 0.0
      %3593 = vmatpush1.msra.mxu0 %v3590
      %3594 = vmatprep.subr.mxu0 0.0
      %3595 = vmatpush1.msra.mxu0 0.0
      %3596 = vmatprep.subr.mxu0 0.0
      %3597 = vmatpush1.msra.mxu0 0.0
      %3598 = vmatprep.subr.mxu0 0.0
      %3599 = vmatpush1.msra.mxu0 0.0
      %3600 = vmatprep.subr.mxu0 0.0
      %3601 = vmatpush1.msra.mxu0 0.0
      %3602 = vmatprep.subr.mxu0 0.0
      %3603 = vmatpush1.msra.mxu0 0.0
      %3604 = vmatprep.subr.mxu0 0.0
      %3605 = vmatpush1.msra.mxu0 0.0
      %3606 = vmatprep.subr.mxu0 0.0
      %3607 = vmatpush1.msra.mxu0 0.0
      %3608 = vmatprep.subr.mxu0 0.0
      %3609 = vmatpush1.msra.mxu0 0.0
      %3610 = vmatprep.subr.mxu0 0.0
      %3611 = vmatpush1.msra.mxu0 0.0
      %3612 = vmatprep.subr.mxu0 0.0
      %3613 = vmatpush1.msra.mxu0 0.0
      %3614 = vmatprep.subr.mxu0 0.0
      %3615 = vmatpush1.msra.mxu0 0.0
      %3616 = vmatprep.subr.mxu0 0.0
      %3617 = vmatpush1.msra.mxu0 0.0
      %3618 = vmatprep.subr.mxu0 0.0
      %3619 = vmatpush1.msra.mxu0 0.0
      %3620 = vmatprep.subr.mxu0 0.0
      %3621 = vmatpush1.msra.mxu0 0.0
      %3622 = vmatprep.subr.mxu0 0.0
      %3623 = vmatpush1.msra.mxu0 0.0
      %3624 = vmatprep.subr.mxu0 0.0
      %3625 = vmatpush1.msra.mxu0 0.0
      %3626 = vmatprep.subr.mxu0 0.0
      %3627 = vmatpush1.msra.mxu0 0.0
      %3628 = vmatprep.subr.mxu0 0.0
      %3629 = vmatpush1.msra.mxu0 0.0
      %3630 = vmatprep.subr.mxu0 0.0
      %3631 = vmatpush1.msra.mxu0 0.0
      %3632 = vmatprep.subr.mxu0 0.0
      %3633 = vmatpush1.msra.mxu0 0.0
      %3634 = vmatprep.subr.mxu0 0.0
      %3635 = vmatpush1.msra.mxu0 0.0
      %3636 = vmatprep.subr.mxu0 0.0
      %3637 = vmatpush1.msra.mxu0 0.0
      %3638 = vmatprep.subr.mxu0 0.0
      %3639 = vmatpush1.msra.mxu0 0.0
      %3640 = vmatprep.subr.mxu0 0.0
      %3641 = vmatpush1.msra.mxu0 0.0
      %3642 = vmatprep.subr.mxu0 0.0
      %3643 = vmatpush1.msra.mxu0 0.0
      %3644 = vmatprep.subr.mxu0 0.0
      %3645 = vmatpush1.msra.mxu0 0.0
      %3646 = vmatprep.subr.mxu0 0.0
      %3647 = vmatpush1.msra.mxu0 0.0
      %3648 = vmatprep.subr.mxu0 0.0
      %3649 = vmatpush1.msra.mxu0 0.0
      %3650 = vmatprep.subr.mxu0 0.0
      %3651 = vmatpush1.msra.mxu0 0.0
      %3652 = vmatprep.subr.mxu0 0.0
      %3653 = vmatpush1.msra.mxu0 0.0
      %3654 = vmatprep.subr.mxu0 0.0
      %3655 = vmatpush1.msra.mxu0 0.0
      %3656 = vmatprep.mubr.f32.mxu0 0.0
      %3657 = vmatmul.mubr.f32.gmra.mrb[0].mxu0 %v3494
      %v3658 = vpop.f32.mrb[0].mxu0
      %v3659 = vadd.f32 0.0, %v3658
      %v3660 = vpop.f32.mrb[0].mxu0
      %3661 = vmatprep.mubr.f32.mxu0 0.0
      %3662 = vmatmul.mubr.f32.gmra.mrb[0].mxu0 %v3497
      %v3663 = vpop.f32.mrb[0].mxu0
      %v3664 = vadd.f32 0.0, %v3663
      %v3665 = vpop.f32.mrb[0].mxu0
      %3666 = vmatprep.mubr.f32.mxu0 0.0
      %3667 = vmatmul.mubr.f32.gmra.mrb[0].mxu0 %v3500
      %v3668 = vpop.f32.mrb[0].mxu0
      %v3669 = vadd.f32 0.0, %v3668
      %v3670 = vpop.f32.mrb[0].mxu0
      %3671 = vmatprep.mubr.f32.mxu0 0.0
      %3672 = vmatmul.mubr.f32.gmra.mrb[0].mxu0 %v3503
      %v3673 = vpop.f32.mrb[0].mxu0
      %v3674 = vadd.f32 0.0, %v3673
      %v3675 = vpop.f32.mrb[0].mxu0
      %3676 = vmatprep.mubr.f32.mxu0 0.0
      %3677 = vmatmul.mubr.f32.gmra.mrb[0].mxu0 %v3506
      %v3678 = vpop.f32.mrb[0].mxu0
      %v3679 = vadd.f32 0.0, %v3678
      %v3680 = vpop.f32.mrb[0].mxu0
      %3681 = vmatprep.mubr.f32.mxu0 0.0
      %3682 = vmatmul.mubr.f32.gmra.mrb[0].mxu0 %v3509
      %v3683 = vpop.f32.mrb[0].mxu0
      %v3684 = vadd.f32 0.0, %v3683
      %v3685 = vpop.f32.mrb[0].mxu0
      %3686 = vmatprep.mubr.f32.mxu0 0.0
      %3687 = vmatmul.mubr.f32.gmra.mrb[0].mxu0 %v3512
      %v3688 = vpop.f32.mrb[0].mxu0
      %v3689 = vadd.f32 0.0, %v3688
      %v3690 = vpop.f32.mrb[0].mxu0
      %3691 = vmatprep.mubr.f32.mxu0 0.0
      %3692 = vmatmul.mubr.f32.gmra.mrb[0].mxu0 %v3515
      %v3693 = vpop.f32.mrb[0].mxu0
      %v3694 = vadd.f32 0.0, %v3693
      %v3695 = vpop.f32.mrb[0].mxu0
      %3696 = vmatprep.mubr.f32.mxu0 0.0
      %3697 = vmatmul.mubr.f32.gmra.mrb[0].mxu0 %v3518
      %v3698 = vpop.f32.mrb[0].mxu0
      %v3699 = vadd.f32 0.0, %v3698
      %v3700 = vpop.f32.mrb[0].mxu0
      %3701 = vmatprep.mubr.f32.mxu0 0.0
      %3702 = vmatmul.mubr.f32.gmra.mrb[0].mxu0 %v3521
      %v3703 = vpop.f32.mrb[0].mxu0
      %v3704 = vadd.f32 0.0, %v3703
      %v3705 = vpop.f32.mrb[0].mxu0
      %3706 = vmatprep.mubr.f32.mxu0 0.0
      %3707 = vmatmul.mubr.f32.gmra.mrb[0].mxu0 %v3524
      %v3708 = vpop.f32.mrb[0].mxu0
      %v3709 = vadd.f32 0.0, %v3708
      %v3710 = vpop.f32.mrb[0].mxu0
      %3711 = vmatprep.mubr.f32.mxu0 0.0
      %3712 = vmatmul.mubr.f32.gmra.mrb[0].mxu0 %v3527
      %v3713 = vpop.f32.mrb[0].mxu0
      %v3714 = vadd.f32 0.0, %v3713
      %v3715 = vpop.f32.mrb[0].mxu0
      %3716 = vmatprep.mubr.f32.mxu0 0.0
      %3717 = vmatmul.mubr.f32.gmra.mrb[0].mxu0 %v3530
      %v3718 = vpop.f32.mrb[0].mxu0
      %v3719 = vadd.f32 0.0, %v3718
      %v3720 = vpop.f32.mrb[0].mxu0
      %3721 = vmatprep.mubr.f32.mxu0 0.0
      %3722 = vmatmul.mubr.f32.gmra.mrb[0].mxu0 %v3533
      %v3723 = vpop.f32.mrb[0].mxu0
      %v3724 = vadd.f32 0.0, %v3723
      %v3725 = vpop.f32.mrb[0].mxu0
      %3726 = vmatprep.mubr.f32.mxu0 0.0
      %3727 = vmatmul.mubr.f32.gmra.mrb[0].mxu0 %v3536
      %v3728 = vpop.f32.mrb[0].mxu0
      %v3729 = vadd.f32 0.0, %v3728
      %v3730 = vpop.f32.mrb[0].mxu0
      %3731 = vmatprep.mubr.f32.mxu0 0.0
      %3732 = vmatmul.mubr.f32.gmra.mrb[0].mxu0 %v3539
      %v3733 = vpop.f32.mrb[0].mxu0
      %v3734 = vadd.f32 0.0, %v3733
      %v3735 = vpop.f32.mrb[0].mxu0
      %3736 = vmatprep.mubr.f32.mxu0 0.0
      %3737 = vmatmul.mubr.f32.gmra.mrb[0].mxu0 %v3542
      %v3738 = vpop.f32.mrb[0].mxu0
      %v3739 = vadd.f32 0.0, %v3738
      %v3740 = vpop.f32.mrb[0].mxu0
      %3741 = vmatprep.mubr.f32.mxu0 0.0
      %3742 = vmatmul.mubr.f32.gmra.mrb[0].mxu0 %v3545
      %v3743 = vpop.f32.mrb[0].mxu0
      %v3744 = vadd.f32 0.0, %v3743
      %v3745 = vpop.f32.mrb[0].mxu0
      %3746 = vmatprep.mubr.f32.mxu0 0.0
      %3747 = vmatmul.mubr.f32.gmra.mrb[0].mxu0 %v3548
      %v3748 = vpop.f32.mrb[0].mxu0
      %v3749 = vadd.f32 0.0, %v3748
      %v3750 = vpop.f32.mrb[0].mxu0
      %3751 = vmatprep.mubr.f32.mxu0 0.0
      %3752 = vmatmul.mubr.f32.gmra.mrb[0].mxu0 %v3551
      %v3753 = vpop.f32.mrb[0].mxu0
      %v3754 = vadd.f32 0.0, %v3753
      %v3755 = vpop.f32.mrb[0].mxu0
      %3756 = vmatprep.mubr.f32.mxu0 0.0
      %3757 = vmatmul.mubr.f32.gmra.mrb[0].mxu0 %v3554
      %v3758 = vpop.f32.mrb[0].mxu0
      %v3759 = vadd.f32 0.0, %v3758
      %v3760 = vpop.f32.mrb[0].mxu0
      %3761 = vmatprep.mubr.f32.mxu0 0.0
      %3762 = vmatmul.mubr.f32.gmra.mrb[0].mxu0 %v3557
      %v3763 = vpop.f32.mrb[0].mxu0
      %v3764 = vadd.f32 0.0, %v3763
      %v3765 = vpop.f32.mrb[0].mxu0
      %3766 = vmatprep.mubr.f32.mxu0 0.0
      %3767 = vmatmul.mubr.f32.gmra.mrb[0].mxu0 %v3560
      %v3768 = vpop.f32.mrb[0].mxu0
      %v3769 = vadd.f32 0.0, %v3768
      %v3770 = vpop.f32.mrb[0].mxu0
      %3771 = vmatprep.mubr.f32.mxu0 0.0
      %3772 = vmatmul.mubr.f32.gmra.mrb[0].mxu0 %v3563
      %v3773 = vpop.f32.mrb[0].mxu0
      %v3774 = vadd.f32 0.0, %v3773
      %v3775 = vpop.f32.mrb[0].mxu0
      %3776 = vmatprep.mubr.f32.mxu0 0.0
      %3777 = vmatmul.mubr.f32.gmra.mrb[0].mxu0 %v3566
      %v3778 = vpop.f32.mrb[0].mxu0
      %v3779 = vadd.f32 0.0, %v3778
      %v3780 = vpop.f32.mrb[0].mxu0
      %3781 = vmatprep.mubr.f32.mxu0 0.0
      %3782 = vmatmul.mubr.f32.gmra.mrb[0].mxu0 %v3569
      %v3783 = vpop.f32.mrb[0].mxu0
      %v3784 = vadd.f32 0.0, %v3783
      %v3785 = vpop.f32.mrb[0].mxu0
      %3786 = vmatprep.mubr.f32.mxu0 0.0
      %3787 = vmatmul.mubr.f32.gmra.mrb[0].mxu0 %v3572
      %v3788 = vpop.f32.mrb[0].mxu0
      %v3789 = vadd.f32 0.0, %v3788
      %v3790 = vpop.f32.mrb[0].mxu0
      %3791 = vmatprep.mubr.f32.mxu0 0.0
      %3792 = vmatmul.mubr.f32.gmra.mrb[0].mxu0 %v3575
      %v3793 = vpop.f32.mrb[0].mxu0
      %v3794 = vadd.f32 0.0, %v3793
      %v3795 = vpop.f32.mrb[0].mxu0
      %3796 = vmatprep.mubr.f32.mxu0 0.0
      %3797 = vmatmul.mubr.f32.gmra.mrb[0].mxu0 %v3578
      %v3798 = vpop.f32.mrb[0].mxu0
      %v3799 = vadd.f32 0.0, %v3798
      %v3800 = vpop.f32.mrb[0].mxu0
      %3801 = vmatprep.mubr.f32.mxu0 0.0
      %3802 = vmatmul.mubr.f32.gmra.mrb[0].mxu0 %v3581
      %v3803 = vpop.f32.mrb[0].mxu0
      %v3804 = vadd.f32 0.0, %v3803
      %v3805 = vpop.f32.mrb[0].mxu0
      %3806 = vmatprep.mubr.f32.mxu0 0.0
      %3807 = vmatmul.mubr.f32.gmra.mrb[0].mxu0 %v3584
      %v3808 = vpop.f32.mrb[0].mxu0
      %v3809 = vadd.f32 0.0, %v3808
      %v3810 = vpop.f32.mrb[0].mxu0
      %3811 = vmatprep.mubr.f32.mxu0 0.0
      %3812 = vmatmul.mubr.f32.gmra.mrb[0].mxu0 %v3587
      %v3813 = vpop.f32.mrb[0].mxu0
      %v3814 = vadd.f32 0.0, %v3813
      %v3815 = vpop.f32.mrb[0].mxu0
      %3816 = vdwg.mxu0
      %v3817 = vadd.f32 %v3395, %v3659
      %v3818 = vadd.f32 %v3396, %v3664
      %v3819 = vadd.f32 %v3397, %v3669
      %v3820 = vadd.f32 %v3398, %v3674
      %v3821 = vadd.f32 %v3399, %v3679
      %v3822 = vadd.f32 %v3400, %v3684
      %v3823 = vadd.f32 %v3401, %v3689
      %v3824 = vadd.f32 %v3402, %v3694
      %v3825 = vadd.f32 %v3403, %v3699
      %v3826 = vadd.f32 %v3404, %v3704
      %v3827 = vadd.f32 %v3405, %v3709
      %v3828 = vadd.f32 %v3406, %v3714
      %v3829 = vadd.f32 %v3407, %v3719
      %v3830 = vadd.f32 %v3408, %v3724
      %v3831 = vadd.f32 %v3409, %v3729
      %v3832 = vadd.f32 %v3410, %v3734
      %v3833 = vadd.f32 %v3411, %v3739
      %v3834 = vadd.f32 %v3412, %v3744
      %v3835 = vadd.f32 %v3413, %v3749
      %v3836 = vadd.f32 %v3414, %v3754
      %v3837 = vadd.f32 %v3415, %v3759
      %v3838 = vadd.f32 %v3416, %v3764
      %v3839 = vadd.f32 %v3417, %v3769
      %v3840 = vadd.f32 %v3418, %v3774
      %v3841 = vadd.f32 %v3419, %v3779
      %v3842 = vadd.f32 %v3420, %v3784
      %v3843 = vadd.f32 %v3421, %v3789
      %v3844 = vadd.f32 %v3422, %v3794
      %v3845 = vadd.f32 %v3423, %v3799
      %v3846 = vadd.f32 %v3424, %v3804
      %v3847 = vadd.f32 %v3425, %v3809
      %v3848 = vadd.f32 %v3426, %v3814
      %v3849 = vld [vmem:[#allocation2 + $0x27] sm:$0xff]
      %v3850 = vld [vmem:[#allocation2 + $0x2f] sm:$0xff]
      %v3851 = vld [vmem:[#allocation2 + $0x37] sm:$0xff]
      %v3852 = vld [vmem:[#allocation2 + $0x3f] sm:$0xff]
      %v3853 = vld [vmem:[#allocation2 + $0x47] sm:$0xff]
      %v3854 = vld [vmem:[#allocation2 + $0x4f] sm:$0xff]
      %v3855 = vld [vmem:[#allocation2 + $0x57] sm:$0xff]
      %v3856 = vld [vmem:[#allocation2 + $0x5f] sm:$0xff]
      %v3857 = vld [vmem:[#allocation2 + $0x67] sm:$0xff]
      %v3858 = vld [vmem:[#allocation2 + $0x6f] sm:$0xff]
      %v3859 = vld [vmem:[#allocation2 + $0x77] sm:$0xff]
      %v3860 = vld [vmem:[#allocation2 + $0x7f] sm:$0xff]
      %v3861 = vld [vmem:[#allocation2 + $0x87] sm:$0xff]
      %v3862 = vld [vmem:[#allocation2 + $0x8f] sm:$0xff]
      %v3863 = vld [vmem:[#allocation2 + $0x97] sm:$0xff]
      %v3864 = vld [vmem:[#allocation2 + $0x9f] sm:$0xff]
      %v3865 = vld [vmem:[#allocation2 + $0xa7] sm:$0xff]
      %v3866 = vld [vmem:[#allocation2 + $0xaf] sm:$0xff]
      %v3867 = vld [vmem:[#allocation2 + $0xb7] sm:$0xff]
      %v3868 = vld [vmem:[#allocation2 + $0xbf] sm:$0xff]
      %v3869 = vld [vmem:[#allocation2 + $0xc7] sm:$0xff]
      %v3870 = vld [vmem:[#allocation2 + $0xcf] sm:$0xff]
      %v3871 = vld [vmem:[#allocation2 + $0xd7] sm:$0xff]
      %v3872 = vld [vmem:[#allocation2 + $0xdf] sm:$0xff]
      %v3873 = vld [vmem:[#allocation2 + $0xe7] sm:$0xff]
      %v3874 = vld [vmem:[#allocation2 + $0xef] sm:$0xff]
      %v3875 = vld [vmem:[#allocation2 + $0xf7] sm:$0xff]
      %v3876 = vld [vmem:[#allocation2 + $0xff] sm:$0xff]
      %v3877 = vld [vmem:[#allocation2 + $0x107] sm:$0xff]
      %v3878 = vld [vmem:[#allocation2 + $0x10f] sm:$0xff]
      %v3879 = vld [vmem:[#allocation2 + $0x117] sm:$0xff]
      %v3880 = vld [vmem:[#allocation2 + $0x11f] sm:$0xff]
      %v3881 = vmul.f32 %v3849, %v1160
      %v3882 = vmul.f32 %v3850, %v1165
      %v3883 = vmul.f32 %v3851, %v1170
      %v3884 = vmul.f32 %v3852, %v1175
      %v3885 = vmul.f32 %v3853, %v1180
      %v3886 = vmul.f32 %v3854, %v1185
      %v3887 = vmul.f32 %v3855, %v1190
      %v3888 = vmul.f32 %v3856, %v1195
      %v3889 = vmul.f32 %v3857, %v1200
      %v3890 = vmul.f32 %v3858, %v1205
      %v3891 = vmul.f32 %v3859, %v1210
      %v3892 = vmul.f32 %v3860, %v1215
      %v3893 = vmul.f32 %v3861, %v1220
      %v3894 = vmul.f32 %v3862, %v1225
      %v3895 = vmul.f32 %v3863, %v1230
      %v3896 = vmul.f32 %v3864, %v1235
      %v3897 = vmul.f32 %v3865, %v1240
      %v3898 = vmul.f32 %v3866, %v1245
      %v3899 = vmul.f32 %v3867, %v1250
      %v3900 = vmul.f32 %v3868, %v1255
      %v3901 = vmul.f32 %v3869, %v1260
      %v3902 = vmul.f32 %v3870, %v1265
      %v3903 = vmul.f32 %v3871, %v1270
      %v3904 = vmul.f32 %v3872, %v1275
      %v3905 = vmul.f32 %v3873, %v1280
      %v3906 = vmul.f32 %v3874, %v1285
      %v3907 = vmul.f32 %v3875, %v1290
      %v3908 = vmul.f32 %v3876, %v1295
      %v3909 = vmul.f32 %v3877, %v1300
      %v3910 = vmul.f32 %v3878, %v1305
      %v3911 = vmul.f32 %v3879, %v1310
      %v3912 = vmul.f32 %v3880, %v1315
      %s3913 = scalar_lea.vmem %s4, 24
      %v3914 = vld [vmem:[%s3913] sm:$0xf]
      %v3916 = vsel %vm306, %v3881, 0
      %v3919 = vsel %vm306, %v3882, 0
      %v3922 = vsel %vm306, %v3883, 0
      %v3925 = vsel %vm306, %v3884, 0
      %v3928 = vsel %vm306, %v3885, 0
      %v3931 = vsel %vm306, %v3886, 0
      %v3934 = vsel %vm306, %v3887, 0
      %v3937 = vsel %vm306, %v3888, 0
      %v3940 = vsel %vm306, %v3889, 0
      %v3943 = vsel %vm306, %v3890, 0
      %v3946 = vsel %vm306, %v3891, 0
      %v3949 = vsel %vm306, %v3892, 0
      %v3952 = vsel %vm306, %v3893, 0
      %v3955 = vsel %vm306, %v3894, 0
      %v3958 = vsel %vm306, %v3895, 0
      %v3961 = vsel %vm306, %v3896, 0
      %v3964 = vsel %vm306, %v3897, 0
      %v3967 = vsel %vm306, %v3898, 0
      %v3970 = vsel %vm306, %v3899, 0
      %v3973 = vsel %vm306, %v3900, 0
      %v3976 = vsel %vm306, %v3901, 0
      %v3979 = vsel %vm306, %v3902, 0
      %v3982 = vsel %vm306, %v3903, 0
      %v3985 = vsel %vm306, %v3904, 0
      %v3988 = vsel %vm306, %v3905, 0
      %v3991 = vsel %vm306, %v3906, 0
      %v3994 = vsel %vm306, %v3907, 0
      %v3997 = vsel %vm306, %v3908, 0
      %v4000 = vsel %vm306, %v3909, 0
      %v4003 = vsel %vm306, %v3910, 0
      %v4006 = vsel %vm306, %v3911, 0
      %v4009 = vsel %vm306, %v3912, 0
      %v4012 = vsel %vm1480, %v3914, 0
      %4014 = vmatprep.subr.mxu0 0.0
      %4015 = vmatpush1.msra.mxu0 %v4012
      %4016 = vmatprep.subr.mxu0 0.0
      %4017 = vmatpush1.msra.mxu0 0.0
      %4018 = vmatprep.subr.mxu0 0.0
      %4019 = vmatpush1.msra.mxu0 0.0
      %4020 = vmatprep.subr.mxu0 0.0
      %4021 = vmatpush1.msra.mxu0 0.0
      %4022 = vmatprep.subr.mxu0 0.0
      %4023 = vmatpush1.msra.mxu0 0.0
      %4024 = vmatprep.subr.mxu0 0.0
      %4025 = vmatpush1.msra.mxu0 0.0
      %4026 = vmatprep.subr.mxu0 0.0
      %4027 = vmatpush1.msra.mxu0 0.0
      %4028 = vmatprep.subr.mxu0 0.0
      %4029 = vmatpush1.msra.mxu0 0.0
      %4030 = vmatprep.subr.mxu0 0.0
      %4031 = vmatpush1.msra.mxu0 0.0
      %4032 = vmatprep.subr.mxu0 0.0
      %4033 = vmatpush1.msra.mxu0 0.0
      %4034 = vmatprep.subr.mxu0 0.0
      %4035 = vmatpush1.msra.mxu0 0.0
      %4036 = vmatprep.subr.mxu0 0.0
      %4037 = vmatpush1.msra.mxu0 0.0
      %4038 = vmatprep.subr.mxu0 0.0
      %4039 = vmatpush1.msra.mxu0 0.0
      %4040 = vmatprep.subr.mxu0 0.0
      %4041 = vmatpush1.msra.mxu0 0.0
      %4042 = vmatprep.subr.mxu0 0.0
      %4043 = vmatpush1.msra.mxu0 0.0
      %4044 = vmatprep.subr.mxu0 0.0
      %4045 = vmatpush1.msra.mxu0 0.0
      %4046 = vmatprep.subr.mxu0 0.0
      %4047 = vmatpush1.msra.mxu0 0.0
      %4048 = vmatprep.subr.mxu0 0.0
      %4049 = vmatpush1.msra.mxu0 0.0
      %4050 = vmatprep.subr.mxu0 0.0
      %4051 = vmatpush1.msra.mxu0 0.0
      %4052 = vmatprep.subr.mxu0 0.0
      %4053 = vmatpush1.msra.mxu0 0.0
      %4054 = vmatprep.subr.mxu0 0.0
      %4055 = vmatpush1.msra.mxu0 0.0
      %4056 = vmatprep.subr.mxu0 0.0
      %4057 = vmatpush1.msra.mxu0 0.0
      %4058 = vmatprep.subr.mxu0 0.0
      %4059 = vmatpush1.msra.mxu0 0.0
      %4060 = vmatprep.subr.mxu0 0.0
      %4061 = vmatpush1.msra.mxu0 0.0
      %4062 = vmatprep.subr.mxu0 0.0
      %4063 = vmatpush1.msra.mxu0 0.0
      %4064 = vmatprep.subr.mxu0 0.0
      %4065 = vmatpush1.msra.mxu0 0.0
      %4066 = vmatprep.subr.mxu0 0.0
      %4067 = vmatpush1.msra.mxu0 0.0
      %4068 = vmatprep.subr.mxu0 0.0
      %4069 = vmatpush1.msra.mxu0 0.0
      %4070 = vmatprep.subr.mxu0 0.0
      %4071 = vmatpush1.msra.mxu0 0.0
      %4072 = vmatprep.subr.mxu0 0.0
      %4073 = vmatpush1.msra.mxu0 0.0
      %4074 = vmatprep.subr.mxu0 0.0
      %4075 = vmatpush1.msra.mxu0 0.0
      %4076 = vmatprep.subr.mxu0 0.0
      %4077 = vmatpush1.msra.mxu0 0.0
      %4078 = vmatprep.mubr.f32.mxu0 0.0
      %4079 = vmatmul.mubr.f32.gmra.mrb[0].mxu0 %v3916
      %v4080 = vpop.f32.mrb[0].mxu0
      %v4081 = vadd.f32 0.0, %v4080
      %v4082 = vpop.f32.mrb[0].mxu0
      %4083 = vmatprep.mubr.f32.mxu0 0.0
      %4084 = vmatmul.mubr.f32.gmra.mrb[0].mxu0 %v3919
      %v4085 = vpop.f32.mrb[0].mxu0
      %v4086 = vadd.f32 0.0, %v4085
      %v4087 = vpop.f32.mrb[0].mxu0
      %4088 = vmatprep.mubr.f32.mxu0 0.0
      %4089 = vmatmul.mubr.f32.gmra.mrb[0].mxu0 %v3922
      %v4090 = vpop.f32.mrb[0].mxu0
      %v4091 = vadd.f32 0.0, %v4090
      %v4092 = vpop.f32.mrb[0].mxu0
      %4093 = vmatprep.mubr.f32.mxu0 0.0
      %4094 = vmatmul.mubr.f32.gmra.mrb[0].mxu0 %v3925
      %v4095 = vpop.f32.mrb[0].mxu0
      %v4096 = vadd.f32 0.0, %v4095
      %v4097 = vpop.f32.mrb[0].mxu0
      %4098 = vmatprep.mubr.f32.mxu0 0.0
      %4099 = vmatmul.mubr.f32.gmra.mrb[0].mxu0 %v3928
      %v4100 = vpop.f32.mrb[0].mxu0
      %v4101 = vadd.f32 0.0, %v4100
      %v4102 = vpop.f32.mrb[0].mxu0
      %4103 = vmatprep.mubr.f32.mxu0 0.0
      %4104 = vmatmul.mubr.f32.gmra.mrb[0].mxu0 %v3931
      %v4105 = vpop.f32.mrb[0].mxu0
      %v4106 = vadd.f32 0.0, %v4105
      %v4107 = vpop.f32.mrb[0].mxu0
      %4108 = vmatprep.mubr.f32.mxu0 0.0
      %4109 = vmatmul.mubr.f32.gmra.mrb[0].mxu0 %v3934
      %v4110 = vpop.f32.mrb[0].mxu0
      %v4111 = vadd.f32 0.0, %v4110
      %v4112 = vpop.f32.mrb[0].mxu0
      %4113 = vmatprep.mubr.f32.mxu0 0.0
      %4114 = vmatmul.mubr.f32.gmra.mrb[0].mxu0 %v3937
      %v4115 = vpop.f32.mrb[0].mxu0
      %v4116 = vadd.f32 0.0, %v4115
      %v4117 = vpop.f32.mrb[0].mxu0
      %4118 = vmatprep.mubr.f32.mxu0 0.0
      %4119 = vmatmul.mubr.f32.gmra.mrb[0].mxu0 %v3940
      %v4120 = vpop.f32.mrb[0].mxu0
      %v4121 = vadd.f32 0.0, %v4120
      %v4122 = vpop.f32.mrb[0].mxu0
      %4123 = vmatprep.mubr.f32.mxu0 0.0
      %4124 = vmatmul.mubr.f32.gmra.mrb[0].mxu0 %v3943
      %v4125 = vpop.f32.mrb[0].mxu0
      %v4126 = vadd.f32 0.0, %v4125
      %v4127 = vpop.f32.mrb[0].mxu0
      %4128 = vmatprep.mubr.f32.mxu0 0.0
      %4129 = vmatmul.mubr.f32.gmra.mrb[0].mxu0 %v3946
      %v4130 = vpop.f32.mrb[0].mxu0
      %v4131 = vadd.f32 0.0, %v4130
      %v4132 = vpop.f32.mrb[0].mxu0
      %4133 = vmatprep.mubr.f32.mxu0 0.0
      %4134 = vmatmul.mubr.f32.gmra.mrb[0].mxu0 %v3949
      %v4135 = vpop.f32.mrb[0].mxu0
      %v4136 = vadd.f32 0.0, %v4135
      %v4137 = vpop.f32.mrb[0].mxu0
      %4138 = vmatprep.mubr.f32.mxu0 0.0
      %4139 = vmatmul.mubr.f32.gmra.mrb[0].mxu0 %v3952
      %v4140 = vpop.f32.mrb[0].mxu0
      %v4141 = vadd.f32 0.0, %v4140
      %v4142 = vpop.f32.mrb[0].mxu0
      %4143 = vmatprep.mubr.f32.mxu0 0.0
      %4144 = vmatmul.mubr.f32.gmra.mrb[0].mxu0 %v3955
      %v4145 = vpop.f32.mrb[0].mxu0
      %v4146 = vadd.f32 0.0, %v4145
      %v4147 = vpop.f32.mrb[0].mxu0
      %4148 = vmatprep.mubr.f32.mxu0 0.0
      %4149 = vmatmul.mubr.f32.gmra.mrb[0].mxu0 %v3958
      %v4150 = vpop.f32.mrb[0].mxu0
      %v4151 = vadd.f32 0.0, %v4150
      %v4152 = vpop.f32.mrb[0].mxu0
      %4153 = vmatprep.mubr.f32.mxu0 0.0
      %4154 = vmatmul.mubr.f32.gmra.mrb[0].mxu0 %v3961
      %v4155 = vpop.f32.mrb[0].mxu0
      %v4156 = vadd.f32 0.0, %v4155
      %v4157 = vpop.f32.mrb[0].mxu0
      %4158 = vmatprep.mubr.f32.mxu0 0.0
      %4159 = vmatmul.mubr.f32.gmra.mrb[0].mxu0 %v3964
      %v4160 = vpop.f32.mrb[0].mxu0
      %v4161 = vadd.f32 0.0, %v4160
      %v4162 = vpop.f32.mrb[0].mxu0
      %4163 = vmatprep.mubr.f32.mxu0 0.0
      %4164 = vmatmul.mubr.f32.gmra.mrb[0].mxu0 %v3967
      %v4165 = vpop.f32.mrb[0].mxu0
      %v4166 = vadd.f32 0.0, %v4165
      %v4167 = vpop.f32.mrb[0].mxu0
      %4168 = vmatprep.mubr.f32.mxu0 0.0
      %4169 = vmatmul.mubr.f32.gmra.mrb[0].mxu0 %v3970
      %v4170 = vpop.f32.mrb[0].mxu0
      %v4171 = vadd.f32 0.0, %v4170
      %v4172 = vpop.f32.mrb[0].mxu0
      %4173 = vmatprep.mubr.f32.mxu0 0.0
      %4174 = vmatmul.mubr.f32.gmra.mrb[0].mxu0 %v3973
      %v4175 = vpop.f32.mrb[0].mxu0
      %v4176 = vadd.f32 0.0, %v4175
      %v4177 = vpop.f32.mrb[0].mxu0
      %4178 = vmatprep.mubr.f32.mxu0 0.0
      %4179 = vmatmul.mubr.f32.gmra.mrb[0].mxu0 %v3976
      %v4180 = vpop.f32.mrb[0].mxu0
      %v4181 = vadd.f32 0.0, %v4180
      %v4182 = vpop.f32.mrb[0].mxu0
      %4183 = vmatprep.mubr.f32.mxu0 0.0
      %4184 = vmatmul.mubr.f32.gmra.mrb[0].mxu0 %v3979
      %v4185 = vpop.f32.mrb[0].mxu0
      %v4186 = vadd.f32 0.0, %v4185
      %v4187 = vpop.f32.mrb[0].mxu0
      %4188 = vmatprep.mubr.f32.mxu0 0.0
      %4189 = vmatmul.mubr.f32.gmra.mrb[0].mxu0 %v3982
      %v4190 = vpop.f32.mrb[0].mxu0
      %v4191 = vadd.f32 0.0, %v4190
      %v4192 = vpop.f32.mrb[0].mxu0
      %4193 = vmatprep.mubr.f32.mxu0 0.0
      %4194 = vmatmul.mubr.f32.gmra.mrb[0].mxu0 %v3985
      %v4195 = vpop.f32.mrb[0].mxu0
      %v4196 = vadd.f32 0.0, %v4195
      %v4197 = vpop.f32.mrb[0].mxu0
      %4198 = vmatprep.mubr.f32.mxu0 0.0
      %4199 = vmatmul.mubr.f32.gmra.mrb[0].mxu0 %v3988
      %v4200 = vpop.f32.mrb[0].mxu0
      %v4201 = vadd.f32 0.0, %v4200
      %v4202 = vpop.f32.mrb[0].mxu0
      %4203 = vmatprep.mubr.f32.mxu0 0.0
      %4204 = vmatmul.mubr.f32.gmra.mrb[0].mxu0 %v3991
      %v4205 = vpop.f32.mrb[0].mxu0
      %v4206 = vadd.f32 0.0, %v4205
      %v4207 = vpop.f32.mrb[0].mxu0
      %4208 = vmatprep.mubr.f32.mxu0 0.0
      %4209 = vmatmul.mubr.f32.gmra.mrb[0].mxu0 %v3994
      %v4210 = vpop.f32.mrb[0].mxu0
      %v4211 = vadd.f32 0.0, %v4210
      %v4212 = vpop.f32.mrb[0].mxu0
      %4213 = vmatprep.mubr.f32.mxu0 0.0
      %4214 = vmatmul.mubr.f32.gmra.mrb[0].mxu0 %v3997
      %v4215 = vpop.f32.mrb[0].mxu0
      %v4216 = vadd.f32 0.0, %v4215
      %v4217 = vpop.f32.mrb[0].mxu0
      %4218 = vmatprep.mubr.f32.mxu0 0.0
      %4219 = vmatmul.mubr.f32.gmra.mrb[0].mxu0 %v4000
      %v4220 = vpop.f32.mrb[0].mxu0
      %v4221 = vadd.f32 0.0, %v4220
      %v4222 = vpop.f32.mrb[0].mxu0
      %4223 = vmatprep.mubr.f32.mxu0 0.0
      %4224 = vmatmul.mubr.f32.gmra.mrb[0].mxu0 %v4003
      %v4225 = vpop.f32.mrb[0].mxu0
      %v4226 = vadd.f32 0.0, %v4225
      %v4227 = vpop.f32.mrb[0].mxu0
      %4228 = vmatprep.mubr.f32.mxu0 0.0
      %4229 = vmatmul.mubr.f32.gmra.mrb[0].mxu0 %v4006
      %v4230 = vpop.f32.mrb[0].mxu0
      %v4231 = vadd.f32 0.0, %v4230
      %v4232 = vpop.f32.mrb[0].mxu0
      %4233 = vmatprep.mubr.f32.mxu0 0.0
      %4234 = vmatmul.mubr.f32.gmra.mrb[0].mxu0 %v4009
      %v4235 = vpop.f32.mrb[0].mxu0
      %v4236 = vadd.f32 0.0, %v4235
      %v4237 = vpop.f32.mrb[0].mxu0
      %4238 = vdwg.mxu0
      %v4239 = vadd.f32 %v3817, %v4081
      %v4240 = vadd.f32 %v3818, %v4086
      %v4241 = vadd.f32 %v3819, %v4091
      %v4242 = vadd.f32 %v3820, %v4096
      %v4243 = vadd.f32 %v3821, %v4101
      %v4244 = vadd.f32 %v3822, %v4106
      %v4245 = vadd.f32 %v3823, %v4111
      %v4246 = vadd.f32 %v3824, %v4116
      %v4247 = vadd.f32 %v3825, %v4121
      %v4248 = vadd.f32 %v3826, %v4126
      %v4249 = vadd.f32 %v3827, %v4131
      %v4250 = vadd.f32 %v3828, %v4136
      %v4251 = vadd.f32 %v3829, %v4141
      %v4252 = vadd.f32 %v3830, %v4146
      %v4253 = vadd.f32 %v3831, %v4151
      %v4254 = vadd.f32 %v3832, %v4156
      %v4255 = vadd.f32 %v3833, %v4161
      %v4256 = vadd.f32 %v3834, %v4166
      %v4257 = vadd.f32 %v3835, %v4171
      %v4258 = vadd.f32 %v3836, %v4176
      %v4259 = vadd.f32 %v3837, %v4181
      %v4260 = vadd.f32 %v3838, %v4186
      %v4261 = vadd.f32 %v3839, %v4191
      %v4262 = vadd.f32 %v3840, %v4196
      %v4263 = vadd.f32 %v3841, %v4201
      %v4264 = vadd.f32 %v3842, %v4206
      %v4265 = vadd.f32 %v3843, %v4211
      %v4266 = vadd.f32 %v3844, %v4216
      %v4267 = vadd.f32 %v3845, %v4221
      %v4268 = vadd.f32 %v3846, %v4226
      %v4269 = vadd.f32 %v3847, %v4231
      %v4270 = vadd.f32 %v3848, %v4236
      %v4271 = vld [vmem:[#allocation2 + $0x28] sm:$0xff]
      %v4272 = vld [vmem:[#allocation2 + $0x30] sm:$0xff]
      %v4273 = vld [vmem:[#allocation2 + $0x38] sm:$0xff]
      %v4274 = vld [vmem:[#allocation2 + $0x40] sm:$0xff]
      %v4275 = vld [vmem:[#allocation2 + $0x48] sm:$0xff]
      %v4276 = vld [vmem:[#allocation2 + $0x50] sm:$0xff]
      %v4277 = vld [vmem:[#allocation2 + $0x58] sm:$0xff]
      %v4278 = vld [vmem:[#allocation2 + $0x60] sm:$0xff]
      %v4279 = vld [vmem:[#allocation2 + $0x68] sm:$0xff]
      %v4280 = vld [vmem:[#allocation2 + $0x70] sm:$0xff]
      %v4281 = vld [vmem:[#allocation2 + $0x78] sm:$0xff]
      %v4282 = vld [vmem:[#allocation2 + $0x80] sm:$0xff]
      %v4283 = vld [vmem:[#allocation2 + $0x88] sm:$0xff]
      %v4284 = vld [vmem:[#allocation2 + $0x90] sm:$0xff]
      %v4285 = vld [vmem:[#allocation2 + $0x98] sm:$0xff]
      %v4286 = vld [vmem:[#allocation2 + $0xa0] sm:$0xff]
      %v4287 = vld [vmem:[#allocation2 + $0xa8] sm:$0xff]
      %v4288 = vld [vmem:[#allocation2 + $0xb0] sm:$0xff]
      %v4289 = vld [vmem:[#allocation2 + $0xb8] sm:$0xff]
      %v4290 = vld [vmem:[#allocation2 + $0xc0] sm:$0xff]
      %v4291 = vld [vmem:[#allocation2 + $0xc8] sm:$0xff]
      %v4292 = vld [vmem:[#allocation2 + $0xd0] sm:$0xff]
      %v4293 = vld [vmem:[#allocation2 + $0xd8] sm:$0xff]
      %v4294 = vld [vmem:[#allocation2 + $0xe0] sm:$0xff]
      %v4295 = vld [vmem:[#allocation2 + $0xe8] sm:$0xff]
      %v4296 = vld [vmem:[#allocation2 + $0xf0] sm:$0xff]
      %v4297 = vld [vmem:[#allocation2 + $0xf8] sm:$0xff]
      %v4298 = vld [vmem:[#allocation2 + $0x100] sm:$0xff]
      %v4299 = vld [vmem:[#allocation2 + $0x108] sm:$0xff]
      %v4300 = vld [vmem:[#allocation2 + $0x110] sm:$0xff]
      %v4301 = vld [vmem:[#allocation2 + $0x118] sm:$0xff]
      %v4302 = vld [vmem:[#allocation2 + $0x120] sm:$0xff]
      %s4303 = scalar_lea.vmem %s4, 28
      %v4304 = vld [vmem:[%s4303] sm:$0xf]
      %v4306 = vsel %vm306, %v4271, 0
      %v4309 = vsel %vm306, %v4272, 0
      %v4312 = vsel %vm306, %v4273, 0
      %v4315 = vsel %vm306, %v4274, 0
      %v4318 = vsel %vm306, %v4275, 0
      %v4321 = vsel %vm306, %v4276, 0
      %v4324 = vsel %vm306, %v4277, 0
      %v4327 = vsel %vm306, %v4278, 0
      %v4330 = vsel %vm306, %v4279, 0
      %v4333 = vsel %vm306, %v4280, 0
      %v4336 = vsel %vm306, %v4281, 0
      %v4339 = vsel %vm306, %v4282, 0
      %v4342 = vsel %vm306, %v4283, 0
      %v4345 = vsel %vm306, %v4284, 0
      %v4348 = vsel %vm306, %v4285, 0
      %v4351 = vsel %vm306, %v4286, 0
      %v4354 = vsel %vm306, %v4287, 0
      %v4357 = vsel %vm306, %v4288, 0
      %v4360 = vsel %vm306, %v4289, 0
      %v4363 = vsel %vm306, %v4290, 0
      %v4366 = vsel %vm306, %v4291, 0
      %v4369 = vsel %vm306, %v4292, 0
      %v4372 = vsel %vm306, %v4293, 0
      %v4375 = vsel %vm306, %v4294, 0
      %v4378 = vsel %vm306, %v4295, 0
      %v4381 = vsel %vm306, %v4296, 0
      %v4384 = vsel %vm306, %v4297, 0
      %v4387 = vsel %vm306, %v4298, 0
      %v4390 = vsel %vm306, %v4299, 0
      %v4393 = vsel %vm306, %v4300, 0
      %v4396 = vsel %vm306, %v4301, 0
      %v4399 = vsel %vm306, %v4302, 0
      %v4402 = vsel %vm1480, %v4304, 0
      %4404 = vmatprep.subr.mxu0 0.0
      %4405 = vmatpush1.msra.mxu0 %v4402
      %4406 = vmatprep.subr.mxu0 0.0
      %4407 = vmatpush1.msra.mxu0 0.0
      %4408 = vmatprep.subr.mxu0 0.0
      %4409 = vmatpush1.msra.mxu0 0.0
      %4410 = vmatprep.subr.mxu0 0.0
      %4411 = vmatpush1.msra.mxu0 0.0
      %4412 = vmatprep.subr.mxu0 0.0
      %4413 = vmatpush1.msra.mxu0 0.0
      %4414 = vmatprep.subr.mxu0 0.0
      %4415 = vmatpush1.msra.mxu0 0.0
      %4416 = vmatprep.subr.mxu0 0.0
      %4417 = vmatpush1.msra.mxu0 0.0
      %4418 = vmatprep.subr.mxu0 0.0
      %4419 = vmatpush1.msra.mxu0 0.0
      %4420 = vmatprep.subr.mxu0 0.0
      %4421 = vmatpush1.msra.mxu0 0.0
      %4422 = vmatprep.subr.mxu0 0.0
      %4423 = vmatpush1.msra.mxu0 0.0
      %4424 = vmatprep.subr.mxu0 0.0
      %4425 = vmatpush1.msra.mxu0 0.0
      %4426 = vmatprep.subr.mxu0 0.0
      %4427 = vmatpush1.msra.mxu0 0.0
      %4428 = vmatprep.subr.mxu0 0.0
      %4429 = vmatpush1.msra.mxu0 0.0
      %4430 = vmatprep.subr.mxu0 0.0
      %4431 = vmatpush1.msra.mxu0 0.0
      %4432 = vmatprep.subr.mxu0 0.0
      %4433 = vmatpush1.msra.mxu0 0.0
      %4434 = vmatprep.subr.mxu0 0.0
      %4435 = vmatpush1.msra.mxu0 0.0
      %4436 = vmatprep.subr.mxu0 0.0
      %4437 = vmatpush1.msra.mxu0 0.0
      %4438 = vmatprep.subr.mxu0 0.0
      %4439 = vmatpush1.msra.mxu0 0.0
      %4440 = vmatprep.subr.mxu0 0.0
      %4441 = vmatpush1.msra.mxu0 0.0
      %4442 = vmatprep.subr.mxu0 0.0
      %4443 = vmatpush1.msra.mxu0 0.0
      %4444 = vmatprep.subr.mxu0 0.0
      %4445 = vmatpush1.msra.mxu0 0.0
      %4446 = vmatprep.subr.mxu0 0.0
      %4447 = vmatpush1.msra.mxu0 0.0
      %4448 = vmatprep.subr.mxu0 0.0
      %4449 = vmatpush1.msra.mxu0 0.0
      %4450 = vmatprep.subr.mxu0 0.0
      %4451 = vmatpush1.msra.mxu0 0.0
      %4452 = vmatprep.subr.mxu0 0.0
      %4453 = vmatpush1.msra.mxu0 0.0
      %4454 = vmatprep.subr.mxu0 0.0
      %4455 = vmatpush1.msra.mxu0 0.0
      %4456 = vmatprep.subr.mxu0 0.0
      %4457 = vmatpush1.msra.mxu0 0.0
      %4458 = vmatprep.subr.mxu0 0.0
      %4459 = vmatpush1.msra.mxu0 0.0
      %4460 = vmatprep.subr.mxu0 0.0
      %4461 = vmatpush1.msra.mxu0 0.0
      %4462 = vmatprep.subr.mxu0 0.0
      %4463 = vmatpush1.msra.mxu0 0.0
      %4464 = vmatprep.subr.mxu0 0.0
      %4465 = vmatpush1.msra.mxu0 0.0
      %4466 = vmatprep.subr.mxu0 0.0
      %4467 = vmatpush1.msra.mxu0 0.0
      %4468 = vmatprep.mubr.f32.mxu0 0.0
      %4469 = vmatmul.mubr.f32.gmra.mrb[0].mxu0 %v4306
      %v4470 = vpop.f32.mrb[0].mxu0
      %v4471 = vadd.f32 0.0, %v4470
      %v4472 = vpop.f32.mrb[0].mxu0
      %4473 = vmatprep.mubr.f32.mxu0 0.0
      %4474 = vmatmul.mubr.f32.gmra.mrb[0].mxu0 %v4309
      %v4475 = vpop.f32.mrb[0].mxu0
      %v4476 = vadd.f32 0.0, %v4475
      %v4477 = vpop.f32.mrb[0].mxu0
      %4478 = vmatprep.mubr.f32.mxu0 0.0
      %4479 = vmatmul.mubr.f32.gmra.mrb[0].mxu0 %v4312
      %v4480 = vpop.f32.mrb[0].mxu0
      %v4481 = vadd.f32 0.0, %v4480
      %v4482 = vpop.f32.mrb[0].mxu0
      %4483 = vmatprep.mubr.f32.mxu0 0.0
      %4484 = vmatmul.mubr.f32.gmra.mrb[0].mxu0 %v4315
      %v4485 = vpop.f32.mrb[0].mxu0
      %v4486 = vadd.f32 0.0, %v4485
      %v4487 = vpop.f32.mrb[0].mxu0
      %4488 = vmatprep.mubr.f32.mxu0 0.0
      %4489 = vmatmul.mubr.f32.gmra.mrb[0].mxu0 %v4318
      %v4490 = vpop.f32.mrb[0].mxu0
      %v4491 = vadd.f32 0.0, %v4490
      %v4492 = vpop.f32.mrb[0].mxu0
      %4493 = vmatprep.mubr.f32.mxu0 0.0
      %4494 = vmatmul.mubr.f32.gmra.mrb[0].mxu0 %v4321
      %v4495 = vpop.f32.mrb[0].mxu0
      %v4496 = vadd.f32 0.0, %v4495
      %v4497 = vpop.f32.mrb[0].mxu0
      %4498 = vmatprep.mubr.f32.mxu0 0.0
      %4499 = vmatmul.mubr.f32.gmra.mrb[0].mxu0 %v4324
      %v4500 = vpop.f32.mrb[0].mxu0
      %v4501 = vadd.f32 0.0, %v4500
      %v4502 = vpop.f32.mrb[0].mxu0
      %4503 = vmatprep.mubr.f32.mxu0 0.0
      %4504 = vmatmul.mubr.f32.gmra.mrb[0].mxu0 %v4327
      %v4505 = vpop.f32.mrb[0].mxu0
      %v4506 = vadd.f32 0.0, %v4505
      %v4507 = vpop.f32.mrb[0].mxu0
      %4508 = vmatprep.mubr.f32.mxu0 0.0
      %4509 = vmatmul.mubr.f32.gmra.mrb[0].mxu0 %v4330
      %v4510 = vpop.f32.mrb[0].mxu0
      %v4511 = vadd.f32 0.0, %v4510
      %v4512 = vpop.f32.mrb[0].mxu0
      %4513 = vmatprep.mubr.f32.mxu0 0.0
      %4514 = vmatmul.mubr.f32.gmra.mrb[0].mxu0 %v4333
      %v4515 = vpop.f32.mrb[0].mxu0
      %v4516 = vadd.f32 0.0, %v4515
      %v4517 = vpop.f32.mrb[0].mxu0
      %4518 = vmatprep.mubr.f32.mxu0 0.0
      %4519 = vmatmul.mubr.f32.gmra.mrb[0].mxu0 %v4336
      %v4520 = vpop.f32.mrb[0].mxu0
      %v4521 = vadd.f32 0.0, %v4520
      %v4522 = vpop.f32.mrb[0].mxu0
      %4523 = vmatprep.mubr.f32.mxu0 0.0
      %4524 = vmatmul.mubr.f32.gmra.mrb[0].mxu0 %v4339
      %v4525 = vpop.f32.mrb[0].mxu0
      %v4526 = vadd.f32 0.0, %v4525
      %v4527 = vpop.f32.mrb[0].mxu0
      %4528 = vmatprep.mubr.f32.mxu0 0.0
      %4529 = vmatmul.mubr.f32.gmra.mrb[0].mxu0 %v4342
      %v4530 = vpop.f32.mrb[0].mxu0
      %v4531 = vadd.f32 0.0, %v4530
      %v4532 = vpop.f32.mrb[0].mxu0
      %4533 = vmatprep.mubr.f32.mxu0 0.0
      %4534 = vmatmul.mubr.f32.gmra.mrb[0].mxu0 %v4345
      %v4535 = vpop.f32.mrb[0].mxu0
      %v4536 = vadd.f32 0.0, %v4535
      %v4537 = vpop.f32.mrb[0].mxu0
      %4538 = vmatprep.mubr.f32.mxu0 0.0
      %4539 = vmatmul.mubr.f32.gmra.mrb[0].mxu0 %v4348
      %v4540 = vpop.f32.mrb[0].mxu0
      %v4541 = vadd.f32 0.0, %v4540
      %v4542 = vpop.f32.mrb[0].mxu0
      %4543 = vmatprep.mubr.f32.mxu0 0.0
      %4544 = vmatmul.mubr.f32.gmra.mrb[0].mxu0 %v4351
      %v4545 = vpop.f32.mrb[0].mxu0
      %v4546 = vadd.f32 0.0, %v4545
      %v4547 = vpop.f32.mrb[0].mxu0
      %4548 = vmatprep.mubr.f32.mxu0 0.0
      %4549 = vmatmul.mubr.f32.gmra.mrb[0].mxu0 %v4354
      %v4550 = vpop.f32.mrb[0].mxu0
      %v4551 = vadd.f32 0.0, %v4550
      %v4552 = vpop.f32.mrb[0].mxu0
      %4553 = vmatprep.mubr.f32.mxu0 0.0
      %4554 = vmatmul.mubr.f32.gmra.mrb[0].mxu0 %v4357
      %v4555 = vpop.f32.mrb[0].mxu0
      %v4556 = vadd.f32 0.0, %v4555
      %v4557 = vpop.f32.mrb[0].mxu0
      %4558 = vmatprep.mubr.f32.mxu0 0.0
      %4559 = vmatmul.mubr.f32.gmra.mrb[0].mxu0 %v4360
      %v4560 = vpop.f32.mrb[0].mxu0
      %v4561 = vadd.f32 0.0, %v4560
      %v4562 = vpop.f32.mrb[0].mxu0
      %4563 = vmatprep.mubr.f32.mxu0 0.0
      %4564 = vmatmul.mubr.f32.gmra.mrb[0].mxu0 %v4363
      %v4565 = vpop.f32.mrb[0].mxu0
      %v4566 = vadd.f32 0.0, %v4565
      %v4567 = vpop.f32.mrb[0].mxu0
      %4568 = vmatprep.mubr.f32.mxu0 0.0
      %4569 = vmatmul.mubr.f32.gmra.mrb[0].mxu0 %v4366
      %v4570 = vpop.f32.mrb[0].mxu0
      %v4571 = vadd.f32 0.0, %v4570
      %v4572 = vpop.f32.mrb[0].mxu0
      %4573 = vmatprep.mubr.f32.mxu0 0.0
      %4574 = vmatmul.mubr.f32.gmra.mrb[0].mxu0 %v4369
      %v4575 = vpop.f32.mrb[0].mxu0
      %v4576 = vadd.f32 0.0, %v4575
      %v4577 = vpop.f32.mrb[0].mxu0
      %4578 = vmatprep.mubr.f32.mxu0 0.0
      %4579 = vmatmul.mubr.f32.gmra.mrb[0].mxu0 %v4372
      %v4580 = vpop.f32.mrb[0].mxu0
      %v4581 = vadd.f32 0.0, %v4580
      %v4582 = vpop.f32.mrb[0].mxu0
      %4583 = vmatprep.mubr.f32.mxu0 0.0
      %4584 = vmatmul.mubr.f32.gmra.mrb[0].mxu0 %v4375
      %v4585 = vpop.f32.mrb[0].mxu0
      %v4586 = vadd.f32 0.0, %v4585
      %v4587 = vpop.f32.mrb[0].mxu0
      %4588 = vmatprep.mubr.f32.mxu0 0.0
      %4589 = vmatmul.mubr.f32.gmra.mrb[0].mxu0 %v4378
      %v4590 = vpop.f32.mrb[0].mxu0
      %v4591 = vadd.f32 0.0, %v4590
      %v4592 = vpop.f32.mrb[0].mxu0
      %4593 = vmatprep.mubr.f32.mxu0 0.0
      %4594 = vmatmul.mubr.f32.gmra.mrb[0].mxu0 %v4381
      %v4595 = vpop.f32.mrb[0].mxu0
      %v4596 = vadd.f32 0.0, %v4595
      %v4597 = vpop.f32.mrb[0].mxu0
      %4598 = vmatprep.mubr.f32.mxu0 0.0
      %4599 = vmatmul.mubr.f32.gmra.mrb[0].mxu0 %v4384
      %v4600 = vpop.f32.mrb[0].mxu0
      %v4601 = vadd.f32 0.0, %v4600
      %v4602 = vpop.f32.mrb[0].mxu0
      %4603 = vmatprep.mubr.f32.mxu0 0.0
      %4604 = vmatmul.mubr.f32.gmra.mrb[0].mxu0 %v4387
      %v4605 = vpop.f32.mrb[0].mxu0
      %v4606 = vadd.f32 0.0, %v4605
      %v4607 = vpop.f32.mrb[0].mxu0
      %4608 = vmatprep.mubr.f32.mxu0 0.0
      %4609 = vmatmul.mubr.f32.gmra.mrb[0].mxu0 %v4390
      %v4610 = vpop.f32.mrb[0].mxu0
      %v4611 = vadd.f32 0.0, %v4610
      %v4612 = vpop.f32.mrb[0].mxu0
      %4613 = vmatprep.mubr.f32.mxu0 0.0
      %4614 = vmatmul.mubr.f32.gmra.mrb[0].mxu0 %v4393
      %v4615 = vpop.f32.mrb[0].mxu0
      %v4616 = vadd.f32 0.0, %v4615
      %v4617 = vpop.f32.mrb[0].mxu0
      %4618 = vmatprep.mubr.f32.mxu0 0.0
      %4619 = vmatmul.mubr.f32.gmra.mrb[0].mxu0 %v4396
      %v4620 = vpop.f32.mrb[0].mxu0
      %v4621 = vadd.f32 0.0, %v4620
      %v4622 = vpop.f32.mrb[0].mxu0
      %4623 = vmatprep.mubr.f32.mxu0 0.0
      %4624 = vmatmul.mubr.f32.gmra.mrb[0].mxu0 %v4399
      %v4625 = vpop.f32.mrb[0].mxu0
      %v4626 = vadd.f32 0.0, %v4625
      %v4627 = vpop.f32.mrb[0].mxu0
      %4628 = vdwg.mxu0
      %v4629 = vadd.f32 %v4239, %v4471
      %v4630 = vadd.f32 %v4240, %v4476
      %v4631 = vadd.f32 %v4241, %v4481
      %v4632 = vadd.f32 %v4242, %v4486
      %v4633 = vadd.f32 %v4243, %v4491
      %v4634 = vadd.f32 %v4244, %v4496
      %v4635 = vadd.f32 %v4245, %v4501
      %v4636 = vadd.f32 %v4246, %v4506
      %v4637 = vadd.f32 %v4247, %v4511
      %v4638 = vadd.f32 %v4248, %v4516
      %v4639 = vadd.f32 %v4249, %v4521
      %v4640 = vadd.f32 %v4250, %v4526
      %v4641 = vadd.f32 %v4251, %v4531
      %v4642 = vadd.f32 %v4252, %v4536
      %v4643 = vadd.f32 %v4253, %v4541
      %v4644 = vadd.f32 %v4254, %v4546
      %v4645 = vadd.f32 %v4255, %v4551
      %v4646 = vadd.f32 %v4256, %v4556
      %v4647 = vadd.f32 %v4257, %v4561
      %v4648 = vadd.f32 %v4258, %v4566
      %v4649 = vadd.f32 %v4259, %v4571
      %v4650 = vadd.f32 %v4260, %v4576
      %v4651 = vadd.f32 %v4261, %v4581
      %v4652 = vadd.f32 %v4262, %v4586
      %v4653 = vadd.f32 %v4263, %v4591
      %v4654 = vadd.f32 %v4264, %v4596
      %v4655 = vadd.f32 %v4265, %v4601
      %v4656 = vadd.f32 %v4266, %v4606
      %v4657 = vadd.f32 %v4267, %v4611
      %v4658 = vadd.f32 %v4268, %v4616
      %v4659 = vadd.f32 %v4269, %v4621
      %v4660 = vadd.f32 %v4270, %v4626
      %v4661 = vld [vmem:[#allocation2 + $0x29] sm:$0xff]
      %v4662 = vld [vmem:[#allocation2 + $0x31] sm:$0xff]
      %v4663 = vld [vmem:[#allocation2 + $0x39] sm:$0xff]
      %v4664 = vld [vmem:[#allocation2 + $0x41] sm:$0xff]
      %v4665 = vld [vmem:[#allocation2 + $0x49] sm:$0xff]
      %v4666 = vld [vmem:[#allocation2 + $0x51] sm:$0xff]
      %v4667 = vld [vmem:[#allocation2 + $0x59] sm:$0xff]
      %v4668 = vld [vmem:[#allocation2 + $0x61] sm:$0xff]
      %v4669 = vld [vmem:[#allocation2 + $0x69] sm:$0xff]
      %v4670 = vld [vmem:[#allocation2 + $0x71] sm:$0xff]
      %v4671 = vld [vmem:[#allocation2 + $0x79] sm:$0xff]
      %v4672 = vld [vmem:[#allocation2 + $0x81] sm:$0xff]
      %v4673 = vld [vmem:[#allocation2 + $0x89] sm:$0xff]
      %v4674 = vld [vmem:[#allocation2 + $0x91] sm:$0xff]
      %v4675 = vld [vmem:[#allocation2 + $0x99] sm:$0xff]
      %v4676 = vld [vmem:[#allocation2 + $0xa1] sm:$0xff]
      %v4677 = vld [vmem:[#allocation2 + $0xa9] sm:$0xff]
      %v4678 = vld [vmem:[#allocation2 + $0xb1] sm:$0xff]
      %v4679 = vld [vmem:[#allocation2 + $0xb9] sm:$0xff]
      %v4680 = vld [vmem:[#allocation2 + $0xc1] sm:$0xff]
      %v4681 = vld [vmem:[#allocation2 + $0xc9] sm:$0xff]
      %v4682 = vld [vmem:[#allocation2 + $0xd1] sm:$0xff]
      %v4683 = vld [vmem:[#allocation2 + $0xd9] sm:$0xff]
      %v4684 = vld [vmem:[#allocation2 + $0xe1] sm:$0xff]
      %v4685 = vld [vmem:[#allocation2 + $0xe9] sm:$0xff]
      %v4686 = vld [vmem:[#allocation2 + $0xf1] sm:$0xff]
      %v4687 = vld [vmem:[#allocation2 + $0xf9] sm:$0xff]
      %v4688 = vld [vmem:[#allocation2 + $0x101] sm:$0xff]
      %v4689 = vld [vmem:[#allocation2 + $0x109] sm:$0xff]
      %v4690 = vld [vmem:[#allocation2 + $0x111] sm:$0xff]
      %v4691 = vld [vmem:[#allocation2 + $0x119] sm:$0xff]
      %v4692 = vld [vmem:[#allocation2 + $0x121] sm:$0xff]
      %v4693 = vmul.f32 %v4661, %v2068
      %v4694 = vmul.f32 %v4662, %v2073
      %v4695 = vmul.f32 %v4663, %v2078
      %v4696 = vmul.f32 %v4664, %v2083
      %v4697 = vmul.f32 %v4665, %v2088
      %v4698 = vmul.f32 %v4666, %v2093
      %v4699 = vmul.f32 %v4667, %v2098
      %v4700 = vmul.f32 %v4668, %v2103
      %v4701 = vmul.f32 %v4669, %v2108
      %v4702 = vmul.f32 %v4670, %v2113
      %v4703 = vmul.f32 %v4671, %v2118
      %v4704 = vmul.f32 %v4672, %v2123
      %v4705 = vmul.f32 %v4673, %v2128
      %v4706 = vmul.f32 %v4674, %v2133
      %v4707 = vmul.f32 %v4675, %v2138
      %v4708 = vmul.f32 %v4676, %v2143
      %v4709 = vmul.f32 %v4677, %v2148
      %v4710 = vmul.f32 %v4678, %v2153
      %v4711 = vmul.f32 %v4679, %v2158
      %v4712 = vmul.f32 %v4680, %v2163
      %v4713 = vmul.f32 %v4681, %v2168
      %v4714 = vmul.f32 %v4682, %v2173
      %v4715 = vmul.f32 %v4683, %v2178
      %v4716 = vmul.f32 %v4684, %v2183
      %v4717 = vmul.f32 %v4685, %v2188
      %v4718 = vmul.f32 %v4686, %v2193
      %v4719 = vmul.f32 %v4687, %v2198
      %v4720 = vmul.f32 %v4688, %v2203
      %v4721 = vmul.f32 %v4689, %v2208
      %v4722 = vmul.f32 %v4690, %v2213
      %v4723 = vmul.f32 %v4691, %v2218
      %v4724 = vmul.f32 %v4692, %v2223
      %s4725 = scalar_lea.vmem %s4, 32
      %v4726 = vld [vmem:[%s4725] sm:$0xf]
      %v4728 = vsel %vm306, %v4693, 0
      %v4731 = vsel %vm306, %v4694, 0
      %v4734 = vsel %vm306, %v4695, 0
      %v4737 = vsel %vm306, %v4696, 0
      %v4740 = vsel %vm306, %v4697, 0
      %v4743 = vsel %vm306, %v4698, 0
      %v4746 = vsel %vm306, %v4699, 0
      %v4749 = vsel %vm306, %v4700, 0
      %v4752 = vsel %vm306, %v4701, 0
      %v4755 = vsel %vm306, %v4702, 0
      %v4758 = vsel %vm306, %v4703, 0
      %v4761 = vsel %vm306, %v4704, 0
      %v4764 = vsel %vm306, %v4705, 0
      %v4767 = vsel %vm306, %v4706, 0
      %v4770 = vsel %vm306, %v4707, 0
      %v4773 = vsel %vm306, %v4708, 0
      %v4776 = vsel %vm306, %v4709, 0
      %v4779 = vsel %vm306, %v4710, 0
      %v4782 = vsel %vm306, %v4711, 0
      %v4785 = vsel %vm306, %v4712, 0
      %v4788 = vsel %vm306, %v4713, 0
      %v4791 = vsel %vm306, %v4714, 0
      %v4794 = vsel %vm306, %v4715, 0
      %v4797 = vsel %vm306, %v4716, 0
      %v4800 = vsel %vm306, %v4717, 0
      %v4803 = vsel %vm306, %v4718, 0
      %v4806 = vsel %vm306, %v4719, 0
      %v4809 = vsel %vm306, %v4720, 0
      %v4812 = vsel %vm306, %v4721, 0
      %v4815 = vsel %vm306, %v4722, 0
      %v4818 = vsel %vm306, %v4723, 0
      %v4821 = vsel %vm306, %v4724, 0
      %v4824 = vsel %vm1480, %v4726, 0
      %4826 = vmatprep.subr.mxu0 0.0
      %4827 = vmatpush1.msra.mxu0 %v4824
      %4828 = vmatprep.subr.mxu0 0.0
      %4829 = vmatpush1.msra.mxu0 0.0
      %4830 = vmatprep.subr.mxu0 0.0
      %4831 = vmatpush1.msra.mxu0 0.0
      %4832 = vmatprep.subr.mxu0 0.0
      %4833 = vmatpush1.msra.mxu0 0.0
      %4834 = vmatprep.subr.mxu0 0.0
      %4835 = vmatpush1.msra.mxu0 0.0
      %4836 = vmatprep.subr.mxu0 0.0
      %4837 = vmatpush1.msra.mxu0 0.0
      %4838 = vmatprep.subr.mxu0 0.0
      %4839 = vmatpush1.msra.mxu0 0.0
      %4840 = vmatprep.subr.mxu0 0.0
      %4841 = vmatpush1.msra.mxu0 0.0
      %4842 = vmatprep.subr.mxu0 0.0
      %4843 = vmatpush1.msra.mxu0 0.0
      %4844 = vmatprep.subr.mxu0 0.0
      %4845 = vmatpush1.msra.mxu0 0.0
      %4846 = vmatprep.subr.mxu0 0.0
      %4847 = vmatpush1.msra.mxu0 0.0
      %4848 = vmatprep.subr.mxu0 0.0
      %4849 = vmatpush1.msra.mxu0 0.0
      %4850 = vmatprep.subr.mxu0 0.0
      %4851 = vmatpush1.msra.mxu0 0.0
      %4852 = vmatprep.subr.mxu0 0.0
      %4853 = vmatpush1.msra.mxu0 0.0
      %4854 = vmatprep.subr.mxu0 0.0
      %4855 = vmatpush1.msra.mxu0 0.0
      %4856 = vmatprep.subr.mxu0 0.0
      %4857 = vmatpush1.msra.mxu0 0.0
      %4858 = vmatprep.subr.mxu0 0.0
      %4859 = vmatpush1.msra.mxu0 0.0
      %4860 = vmatprep.subr.mxu0 0.0
      %4861 = vmatpush1.msra.mxu0 0.0
      %4862 = vmatprep.subr.mxu0 0.0
      %4863 = vmatpush1.msra.mxu0 0.0
      %4864 = vmatprep.subr.mxu0 0.0
      %4865 = vmatpush1.msra.mxu0 0.0
      %4866 = vmatprep.subr.mxu0 0.0
      %4867 = vmatpush1.msra.mxu0 0.0
      %4868 = vmatprep.subr.mxu0 0.0
      %4869 = vmatpush1.msra.mxu0 0.0
      %4870 = vmatprep.subr.mxu0 0.0
      %4871 = vmatpush1.msra.mxu0 0.0
      %4872 = vmatprep.subr.mxu0 0.0
      %4873 = vmatpush1.msra.mxu0 0.0
      %4874 = vmatprep.subr.mxu0 0.0
      %4875 = vmatpush1.msra.mxu0 0.0
      %4876 = vmatprep.subr.mxu0 0.0
      %4877 = vmatpush1.msra.mxu0 0.0
      %4878 = vmatprep.subr.mxu0 0.0
      %4879 = vmatpush1.msra.mxu0 0.0
      %4880 = vmatprep.subr.mxu0 0.0
      %4881 = vmatpush1.msra.mxu0 0.0
      %4882 = vmatprep.subr.mxu0 0.0
      %4883 = vmatpush1.msra.mxu0 0.0
      %4884 = vmatprep.subr.mxu0 0.0
      %4885 = vmatpush1.msra.mxu0 0.0
      %4886 = vmatprep.subr.mxu0 0.0
      %4887 = vmatpush1.msra.mxu0 0.0
      %4888 = vmatprep.subr.mxu0 0.0
      %4889 = vmatpush1.msra.mxu0 0.0
      %4890 = vmatprep.mubr.f32.mxu0 0.0
      %4891 = vmatmul.mubr.f32.gmra.mrb[0].mxu0 %v4728
      %v4892 = vpop.f32.mrb[0].mxu0
      %v4893 = vadd.f32 0.0, %v4892
      %v4894 = vpop.f32.mrb[0].mxu0
      %4895 = vmatprep.mubr.f32.mxu0 0.0
      %4896 = vmatmul.mubr.f32.gmra.mrb[0].mxu0 %v4731
      %v4897 = vpop.f32.mrb[0].mxu0
      %v4898 = vadd.f32 0.0, %v4897
      %v4899 = vpop.f32.mrb[0].mxu0
      %4900 = vmatprep.mubr.f32.mxu0 0.0
      %4901 = vmatmul.mubr.f32.gmra.mrb[0].mxu0 %v4734
      %v4902 = vpop.f32.mrb[0].mxu0
      %v4903 = vadd.f32 0.0, %v4902
      %v4904 = vpop.f32.mrb[0].mxu0
      %4905 = vmatprep.mubr.f32.mxu0 0.0
      %4906 = vmatmul.mubr.f32.gmra.mrb[0].mxu0 %v4737
      %v4907 = vpop.f32.mrb[0].mxu0
      %v4908 = vadd.f32 0.0, %v4907
      %v4909 = vpop.f32.mrb[0].mxu0
      %4910 = vmatprep.mubr.f32.mxu0 0.0
      %4911 = vmatmul.mubr.f32.gmra.mrb[0].mxu0 %v4740
      %v4912 = vpop.f32.mrb[0].mxu0
      %v4913 = vadd.f32 0.0, %v4912
      %v4914 = vpop.f32.mrb[0].mxu0
      %4915 = vmatprep.mubr.f32.mxu0 0.0
      %4916 = vmatmul.mubr.f32.gmra.mrb[0].mxu0 %v4743
      %v4917 = vpop.f32.mrb[0].mxu0
      %v4918 = vadd.f32 0.0, %v4917
      %v4919 = vpop.f32.mrb[0].mxu0
      %4920 = vmatprep.mubr.f32.mxu0 0.0
      %4921 = vmatmul.mubr.f32.gmra.mrb[0].mxu0 %v4746
      %v4922 = vpop.f32.mrb[0].mxu0
      %v4923 = vadd.f32 0.0, %v4922
      %v4924 = vpop.f32.mrb[0].mxu0
      %4925 = vmatprep.mubr.f32.mxu0 0.0
      %4926 = vmatmul.mubr.f32.gmra.mrb[0].mxu0 %v4749
      %v4927 = vpop.f32.mrb[0].mxu0
      %v4928 = vadd.f32 0.0, %v4927
      %v4929 = vpop.f32.mrb[0].mxu0
      %4930 = vmatprep.mubr.f32.mxu0 0.0
      %4931 = vmatmul.mubr.f32.gmra.mrb[0].mxu0 %v4752
      %v4932 = vpop.f32.mrb[0].mxu0
      %v4933 = vadd.f32 0.0, %v4932
      %v4934 = vpop.f32.mrb[0].mxu0
      %4935 = vmatprep.mubr.f32.mxu0 0.0
      %4936 = vmatmul.mubr.f32.gmra.mrb[0].mxu0 %v4755
      %v4937 = vpop.f32.mrb[0].mxu0
      %v4938 = vadd.f32 0.0, %v4937
      %v4939 = vpop.f32.mrb[0].mxu0
      %4940 = vmatprep.mubr.f32.mxu0 0.0
      %4941 = vmatmul.mubr.f32.gmra.mrb[0].mxu0 %v4758
      %v4942 = vpop.f32.mrb[0].mxu0
      %v4943 = vadd.f32 0.0, %v4942
      %v4944 = vpop.f32.mrb[0].mxu0
      %4945 = vmatprep.mubr.f32.mxu0 0.0
      %4946 = vmatmul.mubr.f32.gmra.mrb[0].mxu0 %v4761
      %v4947 = vpop.f32.mrb[0].mxu0
      %v4948 = vadd.f32 0.0, %v4947
      %v4949 = vpop.f32.mrb[0].mxu0
      %4950 = vmatprep.mubr.f32.mxu0 0.0
      %4951 = vmatmul.mubr.f32.gmra.mrb[0].mxu0 %v4764
      %v4952 = vpop.f32.mrb[0].mxu0
      %v4953 = vadd.f32 0.0, %v4952
      %v4954 = vpop.f32.mrb[0].mxu0
      %4955 = vmatprep.mubr.f32.mxu0 0.0
      %4956 = vmatmul.mubr.f32.gmra.mrb[0].mxu0 %v4767
      %v4957 = vpop.f32.mrb[0].mxu0
      %v4958 = vadd.f32 0.0, %v4957
      %v4959 = vpop.f32.mrb[0].mxu0
      %4960 = vmatprep.mubr.f32.mxu0 0.0
      %4961 = vmatmul.mubr.f32.gmra.mrb[0].mxu0 %v4770
      %v4962 = vpop.f32.mrb[0].mxu0
      %v4963 = vadd.f32 0.0, %v4962
      %v4964 = vpop.f32.mrb[0].mxu0
      %4965 = vmatprep.mubr.f32.mxu0 0.0
      %4966 = vmatmul.mubr.f32.gmra.mrb[0].mxu0 %v4773
      %v4967 = vpop.f32.mrb[0].mxu0
      %v4968 = vadd.f32 0.0, %v4967
      %v4969 = vpop.f32.mrb[0].mxu0
      %4970 = vmatprep.mubr.f32.mxu0 0.0
      %4971 = vmatmul.mubr.f32.gmra.mrb[0].mxu0 %v4776
      %v4972 = vpop.f32.mrb[0].mxu0
      %v4973 = vadd.f32 0.0, %v4972
      %v4974 = vpop.f32.mrb[0].mxu0
      %4975 = vmatprep.mubr.f32.mxu0 0.0
      %4976 = vmatmul.mubr.f32.gmra.mrb[0].mxu0 %v4779
      %v4977 = vpop.f32.mrb[0].mxu0
      %v4978 = vadd.f32 0.0, %v4977
      %v4979 = vpop.f32.mrb[0].mxu0
      %4980 = vmatprep.mubr.f32.mxu0 0.0
      %4981 = vmatmul.mubr.f32.gmra.mrb[0].mxu0 %v4782
      %v4982 = vpop.f32.mrb[0].mxu0
      %v4983 = vadd.f32 0.0, %v4982
      %v4984 = vpop.f32.mrb[0].mxu0
      %4985 = vmatprep.mubr.f32.mxu0 0.0
      %4986 = vmatmul.mubr.f32.gmra.mrb[0].mxu0 %v4785
      %v4987 = vpop.f32.mrb[0].mxu0
      %v4988 = vadd.f32 0.0, %v4987
      %v4989 = vpop.f32.mrb[0].mxu0
      %4990 = vmatprep.mubr.f32.mxu0 0.0
      %4991 = vmatmul.mubr.f32.gmra.mrb[0].mxu0 %v4788
      %v4992 = vpop.f32.mrb[0].mxu0
      %v4993 = vadd.f32 0.0, %v4992
      %v4994 = vpop.f32.mrb[0].mxu0
      %4995 = vmatprep.mubr.f32.mxu0 0.0
      %4996 = vmatmul.mubr.f32.gmra.mrb[0].mxu0 %v4791
      %v4997 = vpop.f32.mrb[0].mxu0
      %v4998 = vadd.f32 0.0, %v4997
      %v4999 = vpop.f32.mrb[0].mxu0
      %5000 = vmatprep.mubr.f32.mxu0 0.0
      %5001 = vmatmul.mubr.f32.gmra.mrb[0].mxu0 %v4794
      %v5002 = vpop.f32.mrb[0].mxu0
      %v5003 = vadd.f32 0.0, %v5002
      %v5004 = vpop.f32.mrb[0].mxu0
      %5005 = vmatprep.mubr.f32.mxu0 0.0
      %5006 = vmatmul.mubr.f32.gmra.mrb[0].mxu0 %v4797
      %v5007 = vpop.f32.mrb[0].mxu0
      %v5008 = vadd.f32 0.0, %v5007
      %v5009 = vpop.f32.mrb[0].mxu0
      %5010 = vmatprep.mubr.f32.mxu0 0.0
      %5011 = vmatmul.mubr.f32.gmra.mrb[0].mxu0 %v4800
      %v5012 = vpop.f32.mrb[0].mxu0
      %v5013 = vadd.f32 0.0, %v5012
      %v5014 = vpop.f32.mrb[0].mxu0
      %5015 = vmatprep.mubr.f32.mxu0 0.0
      %5016 = vmatmul.mubr.f32.gmra.mrb[0].mxu0 %v4803
      %v5017 = vpop.f32.mrb[0].mxu0
      %v5018 = vadd.f32 0.0, %v5017
      %v5019 = vpop.f32.mrb[0].mxu0
      %5020 = vmatprep.mubr.f32.mxu0 0.0
      %5021 = vmatmul.mubr.f32.gmra.mrb[0].mxu0 %v4806
      %v5022 = vpop.f32.mrb[0].mxu0
      %v5023 = vadd.f32 0.0, %v5022
      %v5024 = vpop.f32.mrb[0].mxu0
      %5025 = vmatprep.mubr.f32.mxu0 0.0
      %5026 = vmatmul.mubr.f32.gmra.mrb[0].mxu0 %v4809
      %v5027 = vpop.f32.mrb[0].mxu0
      %v5028 = vadd.f32 0.0, %v5027
      %v5029 = vpop.f32.mrb[0].mxu0
      %5030 = vmatprep.mubr.f32.mxu0 0.0
      %5031 = vmatmul.mubr.f32.gmra.mrb[0].mxu0 %v4812
      %v5032 = vpop.f32.mrb[0].mxu0
      %v5033 = vadd.f32 0.0, %v5032
      %v5034 = vpop.f32.mrb[0].mxu0
      %5035 = vmatprep.mubr.f32.mxu0 0.0
      %5036 = vmatmul.mubr.f32.gmra.mrb[0].mxu0 %v4815
      %v5037 = vpop.f32.mrb[0].mxu0
      %v5038 = vadd.f32 0.0, %v5037
      %v5039 = vpop.f32.mrb[0].mxu0
      %5040 = vmatprep.mubr.f32.mxu0 0.0
      %5041 = vmatmul.mubr.f32.gmra.mrb[0].mxu0 %v4818
      %v5042 = vpop.f32.mrb[0].mxu0
      %v5043 = vadd.f32 0.0, %v5042
      %v5044 = vpop.f32.mrb[0].mxu0
      %5045 = vmatprep.mubr.f32.mxu0 0.0
      %5046 = vmatmul.mubr.f32.gmra.mrb[0].mxu0 %v4821
      %v5047 = vpop.f32.mrb[0].mxu0
      %v5048 = vadd.f32 0.0, %v5047
      %v5049 = vpop.f32.mrb[0].mxu0
      %5050 = vdwg.mxu0
      %v5051 = vadd.f32 %v4629, %v4893
      %v5052 = vadd.f32 %v4630, %v4898
      %v5053 = vadd.f32 %v4631, %v4903
      %v5054 = vadd.f32 %v4632, %v4908
      %v5055 = vadd.f32 %v4633, %v4913
      %v5056 = vadd.f32 %v4634, %v4918
      %v5057 = vadd.f32 %v4635, %v4923
      %v5058 = vadd.f32 %v4636, %v4928
      %v5059 = vadd.f32 %v4637, %v4933
      %v5060 = vadd.f32 %v4638, %v4938
      %v5061 = vadd.f32 %v4639, %v4943
      %v5062 = vadd.f32 %v4640, %v4948
      %v5063 = vadd.f32 %v4641, %v4953
      %v5064 = vadd.f32 %v4642, %v4958
      %v5065 = vadd.f32 %v4643, %v4963
      %v5066 = vadd.f32 %v4644, %v4968
      %v5067 = vadd.f32 %v4645, %v4973
      %v5068 = vadd.f32 %v4646, %v4978
      %v5069 = vadd.f32 %v4647, %v4983
      %v5070 = vadd.f32 %v4648, %v4988
      %v5071 = vadd.f32 %v4649, %v4993
      %v5072 = vadd.f32 %v4650, %v4998
      %v5073 = vadd.f32 %v4651, %v5003
      %v5074 = vadd.f32 %v4652, %v5008
      %v5075 = vadd.f32 %v4653, %v5013
      %v5076 = vadd.f32 %v4654, %v5018
      %v5077 = vadd.f32 %v4655, %v5023
      %v5078 = vadd.f32 %v4656, %v5028
      %v5079 = vadd.f32 %v4657, %v5033
      %v5080 = vadd.f32 %v4658, %v5038
      %v5081 = vadd.f32 %v4659, %v5043
      %v5082 = vadd.f32 %v4660, %v5048
      %v5083 = vld [vmem:[%s5] sm:$0x1]
      %v5085 = vlaneseq
      %v5086 = vshrl.u32 %v5085, 7
      %v5087 = vsub.s32 0, %v5086
      %v5088 = vrot.slane %v5083, %v5087
      %v5090 = vadd.f32 %v5051, %v5088
      %v5091 = vadd.f32 %v5052, %v5088
      %v5092 = vadd.f32 %v5053, %v5088
      %v5093 = vadd.f32 %v5054, %v5088
      %v5094 = vadd.f32 %v5055, %v5088
      %v5095 = vadd.f32 %v5056, %v5088
      %v5096 = vadd.f32 %v5057, %v5088
      %v5097 = vadd.f32 %v5058, %v5088
      %v5098 = vadd.f32 %v5059, %v5088
      %v5099 = vadd.f32 %v5060, %v5088
      %v5100 = vadd.f32 %v5061, %v5088
      %v5101 = vadd.f32 %v5062, %v5088
      %v5102 = vadd.f32 %v5063, %v5088
      %v5103 = vadd.f32 %v5064, %v5088
      %v5104 = vadd.f32 %v5065, %v5088
      %v5105 = vadd.f32 %v5066, %v5088
      %v5106 = vadd.f32 %v5067, %v5088
      %v5107 = vadd.f32 %v5068, %v5088
      %v5108 = vadd.f32 %v5069, %v5088
      %v5109 = vadd.f32 %v5070, %v5088
      %v5110 = vadd.f32 %v5071, %v5088
      %v5111 = vadd.f32 %v5072, %v5088
      %v5112 = vadd.f32 %v5073, %v5088
      %v5113 = vadd.f32 %v5074, %v5088
      %v5114 = vadd.f32 %v5075, %v5088
      %v5115 = vadd.f32 %v5076, %v5088
      %v5116 = vadd.f32 %v5077, %v5088
      %v5117 = vadd.f32 %v5078, %v5088
      %v5118 = vadd.f32 %v5079, %v5088
      %v5119 = vadd.f32 %v5080, %v5088
      %v5120 = vadd.f32 %v5081, %v5088
      %v5121 = vadd.f32 %v5082, %v5088
      %v5122 = vmax.f32 %v5090, 0.0
      %v5123 = vmax.f32 %v5091, 0.0
      %v5124 = vmax.f32 %v5092, 0.0
      %v5125 = vmax.f32 %v5093, 0.0
      %v5126 = vmax.f32 %v5094, 0.0
      %v5127 = vmax.f32 %v5095, 0.0
      %v5128 = vmax.f32 %v5096, 0.0
      %v5129 = vmax.f32 %v5097, 0.0
      %v5130 = vmax.f32 %v5098, 0.0
      %v5131 = vmax.f32 %v5099, 0.0
      %v5132 = vmax.f32 %v5100, 0.0
      %v5133 = vmax.f32 %v5101, 0.0
      %v5134 = vmax.f32 %v5102, 0.0
      %v5135 = vmax.f32 %v5103, 0.0
      %v5136 = vmax.f32 %v5104, 0.0
      %v5137 = vmax.f32 %v5105, 0.0
      %v5138 = vmax.f32 %v5106, 0.0
      %v5139 = vmax.f32 %v5107, 0.0
      %v5140 = vmax.f32 %v5108, 0.0
      %v5141 = vmax.f32 %v5109, 0.0
      %v5142 = vmax.f32 %v5110, 0.0
      %v5143 = vmax.f32 %v5111, 0.0
      %v5144 = vmax.f32 %v5112, 0.0
      %v5145 = vmax.f32 %v5113, 0.0
      %v5146 = vmax.f32 %v5114, 0.0
      %v5147 = vmax.f32 %v5115, 0.0
      %v5148 = vmax.f32 %v5116, 0.0
      %v5149 = vmax.f32 %v5117, 0.0
      %v5150 = vmax.f32 %v5118, 0.0
      %v5151 = vmax.f32 %v5119, 0.0
      %v5152 = vmax.f32 %v5120, 0.0
      %v5153 = vmax.f32 %v5121, 0.0
      %v5154 = vld [vmem:[%s6] sm:$0xf]
      %v5155 = vld [vmem:[%s7] sm:$0x1]
      %v5157 = vlaneseq
      %v5158 = vshrl.u32 %v5157, 7
      %v5159 = vsub.s32 0, %v5158
      %v5160 = vrot.slane %v5155, %v5159
      %v5163 = vsel %vm306, %v5122, 0
      %v5166 = vsel %vm306, %v5123, 0
      %v5169 = vsel %vm306, %v5124, 0
      %v5172 = vsel %vm306, %v5125, 0
      %v5175 = vsel %vm306, %v5126, 0
      %v5178 = vsel %vm306, %v5127, 0
      %v5181 = vsel %vm306, %v5128, 0
      %v5184 = vsel %vm306, %v5129, 0
      %v5187 = vsel %vm306, %v5130, 0
      %v5190 = vsel %vm306, %v5131, 0
      %v5193 = vsel %vm306, %v5132, 0
      %v5196 = vsel %vm306, %v5133, 0
      %v5199 = vsel %vm306, %v5134, 0
      %v5202 = vsel %vm306, %v5135, 0
      %v5205 = vsel %vm306, %v5136, 0
      %v5208 = vsel %vm306, %v5137, 0
      %v5211 = vsel %vm306, %v5138, 0
      %v5214 = vsel %vm306, %v5139, 0
      %v5217 = vsel %vm306, %v5140, 0
      %v5220 = vsel %vm306, %v5141, 0
      %v5223 = vsel %vm306, %v5142, 0
      %v5226 = vsel %vm306, %v5143, 0
      %v5229 = vsel %vm306, %v5144, 0
      %v5232 = vsel %vm306, %v5145, 0
      %v5235 = vsel %vm306, %v5146, 0
      %v5238 = vsel %vm306, %v5147, 0
      %v5241 = vsel %vm306, %v5148, 0
      %v5244 = vsel %vm306, %v5149, 0
      %v5247 = vsel %vm306, %v5150, 0
      %v5250 = vsel %vm306, %v5151, 0
      %v5253 = vsel %vm306, %v5152, 0
      %v5256 = vsel %vm306, %v5153, 0
      %v5259 = vsel %vm1480, %v5154, 0
      %5261 = vmatprep.subr.mxu0 0.0
      %5262 = vmatpush1.msra.mxu0 %v5259
      %5263 = vmatprep.subr.mxu0 0.0
      %5264 = vmatpush1.msra.mxu0 0.0
      %5265 = vmatprep.subr.mxu0 0.0
      %5266 = vmatpush1.msra.mxu0 0.0
      %5267 = vmatprep.subr.mxu0 0.0
      %5268 = vmatpush1.msra.mxu0 0.0
      %5269 = vmatprep.subr.mxu0 0.0
      %5270 = vmatpush1.msra.mxu0 0.0
      %5271 = vmatprep.subr.mxu0 0.0
      %5272 = vmatpush1.msra.mxu0 0.0
      %5273 = vmatprep.subr.mxu0 0.0
      %5274 = vmatpush1.msra.mxu0 0.0
      %5275 = vmatprep.subr.mxu0 0.0
      %5276 = vmatpush1.msra.mxu0 0.0
      %5277 = vmatprep.subr.mxu0 0.0
      %5278 = vmatpush1.msra.mxu0 0.0
      %5279 = vmatprep.subr.mxu0 0.0
      %5280 = vmatpush1.msra.mxu0 0.0
      %5281 = vmatprep.subr.mxu0 0.0
      %5282 = vmatpush1.msra.mxu0 0.0
      %5283 = vmatprep.subr.mxu0 0.0
      %5284 = vmatpush1.msra.mxu0 0.0
      %5285 = vmatprep.subr.mxu0 0.0
      %5286 = vmatpush1.msra.mxu0 0.0
      %5287 = vmatprep.subr.mxu0 0.0
      %5288 = vmatpush1.msra.mxu0 0.0
      %5289 = vmatprep.subr.mxu0 0.0
      %5290 = vmatpush1.msra.mxu0 0.0
      %5291 = vmatprep.subr.mxu0 0.0
      %5292 = vmatpush1.msra.mxu0 0.0
      %5293 = vmatprep.subr.mxu0 0.0
      %5294 = vmatpush1.msra.mxu0 0.0
      %5295 = vmatprep.subr.mxu0 0.0
      %5296 = vmatpush1.msra.mxu0 0.0
      %5297 = vmatprep.subr.mxu0 0.0
      %5298 = vmatpush1.msra.mxu0 0.0
      %5299 = vmatprep.subr.mxu0 0.0
      %5300 = vmatpush1.msra.mxu0 0.0
      %5301 = vmatprep.subr.mxu0 0.0
      %5302 = vmatpush1.msra.mxu0 0.0
      %5303 = vmatprep.subr.mxu0 0.0
      %5304 = vmatpush1.msra.mxu0 0.0
      %5305 = vmatprep.subr.mxu0 0.0
      %5306 = vmatpush1.msra.mxu0 0.0
      %5307 = vmatprep.subr.mxu0 0.0
      %5308 = vmatpush1.msra.mxu0 0.0
      %5309 = vmatprep.subr.mxu0 0.0
      %5310 = vmatpush1.msra.mxu0 0.0
      %5311 = vmatprep.subr.mxu0 0.0
      %5312 = vmatpush1.msra.mxu0 0.0
      %5313 = vmatprep.subr.mxu0 0.0
      %5314 = vmatpush1.msra.mxu0 0.0
      %5315 = vmatprep.subr.mxu0 0.0
      %5316 = vmatpush1.msra.mxu0 0.0
      %5317 = vmatprep.subr.mxu0 0.0
      %5318 = vmatpush1.msra.mxu0 0.0
      %5319 = vmatprep.subr.mxu0 0.0
      %5320 = vmatpush1.msra.mxu0 0.0
      %5321 = vmatprep.subr.mxu0 0.0
      %5322 = vmatpush1.msra.mxu0 0.0
      %5323 = vmatprep.subr.mxu0 0.0
      %5324 = vmatpush1.msra.mxu0 0.0
      %5325 = vmatprep.mubr.f32.mxu0 0.0
      %5326 = vmatmul.mubr.f32.gmra.mrb[0].mxu0 %v5163
      %v5327 = vpop.f32.mrb[0].mxu0
      %v5328 = vadd.f32 %v5160, %v5327
      %v5329 = vpop.f32.mrb[0].mxu0
      %5330 = vmatprep.mubr.f32.mxu0 0.0
      %5331 = vmatmul.mubr.f32.gmra.mrb[0].mxu0 %v5166
      %v5332 = vpop.f32.mrb[0].mxu0
      %v5333 = vadd.f32 %v5160, %v5332
      %v5334 = vpop.f32.mrb[0].mxu0
      %5335 = vmatprep.mubr.f32.mxu0 0.0
      %5336 = vmatmul.mubr.f32.gmra.mrb[0].mxu0 %v5169
      %v5337 = vpop.f32.mrb[0].mxu0
      %v5338 = vadd.f32 %v5160, %v5337
      %v5339 = vpop.f32.mrb[0].mxu0
      %5340 = vmatprep.mubr.f32.mxu0 0.0
      %5341 = vmatmul.mubr.f32.gmra.mrb[0].mxu0 %v5172
      %v5342 = vpop.f32.mrb[0].mxu0
      %v5343 = vadd.f32 %v5160, %v5342
      %v5344 = vpop.f32.mrb[0].mxu0
      %5345 = vmatprep.mubr.f32.mxu0 0.0
      %5346 = vmatmul.mubr.f32.gmra.mrb[0].mxu0 %v5175
      %v5347 = vpop.f32.mrb[0].mxu0
      %v5348 = vadd.f32 %v5160, %v5347
      %v5349 = vpop.f32.mrb[0].mxu0
      %5350 = vmatprep.mubr.f32.mxu0 0.0
      %5351 = vmatmul.mubr.f32.gmra.mrb[0].mxu0 %v5178
      %v5352 = vpop.f32.mrb[0].mxu0
      %v5353 = vadd.f32 %v5160, %v5352
      %v5354 = vpop.f32.mrb[0].mxu0
      %5355 = vmatprep.mubr.f32.mxu0 0.0
      %5356 = vmatmul.mubr.f32.gmra.mrb[0].mxu0 %v5181
      %v5357 = vpop.f32.mrb[0].mxu0
      %v5358 = vadd.f32 %v5160, %v5357
      %v5359 = vpop.f32.mrb[0].mxu0
      %5360 = vmatprep.mubr.f32.mxu0 0.0
      %5361 = vmatmul.mubr.f32.gmra.mrb[0].mxu0 %v5184
      %v5362 = vpop.f32.mrb[0].mxu0
      %v5363 = vadd.f32 %v5160, %v5362
      %v5364 = vpop.f32.mrb[0].mxu0
      %5365 = vmatprep.mubr.f32.mxu0 0.0
      %5366 = vmatmul.mubr.f32.gmra.mrb[0].mxu0 %v5187
      %v5367 = vpop.f32.mrb[0].mxu0
      %v5368 = vadd.f32 %v5160, %v5367
      %v5369 = vpop.f32.mrb[0].mxu0
      %5370 = vmatprep.mubr.f32.mxu0 0.0
      %5371 = vmatmul.mubr.f32.gmra.mrb[0].mxu0 %v5190
      %v5372 = vpop.f32.mrb[0].mxu0
      %v5373 = vadd.f32 %v5160, %v5372
      %v5374 = vpop.f32.mrb[0].mxu0
      %5375 = vmatprep.mubr.f32.mxu0 0.0
      %5376 = vmatmul.mubr.f32.gmra.mrb[0].mxu0 %v5193
      %v5377 = vpop.f32.mrb[0].mxu0
      %v5378 = vadd.f32 %v5160, %v5377
      %v5379 = vpop.f32.mrb[0].mxu0
      %5380 = vmatprep.mubr.f32.mxu0 0.0
      %5381 = vmatmul.mubr.f32.gmra.mrb[0].mxu0 %v5196
      %v5382 = vpop.f32.mrb[0].mxu0
      %v5383 = vadd.f32 %v5160, %v5382
      %v5384 = vpop.f32.mrb[0].mxu0
      %5385 = vmatprep.mubr.f32.mxu0 0.0
      %5386 = vmatmul.mubr.f32.gmra.mrb[0].mxu0 %v5199
      %v5387 = vpop.f32.mrb[0].mxu0
      %v5388 = vadd.f32 %v5160, %v5387
      %v5389 = vpop.f32.mrb[0].mxu0
      %5390 = vmatprep.mubr.f32.mxu0 0.0
      %5391 = vmatmul.mubr.f32.gmra.mrb[0].mxu0 %v5202
      %v5392 = vpop.f32.mrb[0].mxu0
      %v5393 = vadd.f32 %v5160, %v5392
      %v5394 = vpop.f32.mrb[0].mxu0
      %5395 = vmatprep.mubr.f32.mxu0 0.0
      %5396 = vmatmul.mubr.f32.gmra.mrb[0].mxu0 %v5205
      %v5397 = vpop.f32.mrb[0].mxu0
      %v5398 = vadd.f32 %v5160, %v5397
      %v5399 = vpop.f32.mrb[0].mxu0
      %5400 = vmatprep.mubr.f32.mxu0 0.0
      %5401 = vmatmul.mubr.f32.gmra.mrb[0].mxu0 %v5208
      %v5402 = vpop.f32.mrb[0].mxu0
      %v5403 = vadd.f32 %v5160, %v5402
      %v5404 = vpop.f32.mrb[0].mxu0
      %5405 = vmatprep.mubr.f32.mxu0 0.0
      %5406 = vmatmul.mubr.f32.gmra.mrb[0].mxu0 %v5211
      %v5407 = vpop.f32.mrb[0].mxu0
      %v5408 = vadd.f32 %v5160, %v5407
      %v5409 = vpop.f32.mrb[0].mxu0
      %5410 = vmatprep.mubr.f32.mxu0 0.0
      %5411 = vmatmul.mubr.f32.gmra.mrb[0].mxu0 %v5214
      %v5412 = vpop.f32.mrb[0].mxu0
      %v5413 = vadd.f32 %v5160, %v5412
      %v5414 = vpop.f32.mrb[0].mxu0
      %5415 = vmatprep.mubr.f32.mxu0 0.0
      %5416 = vmatmul.mubr.f32.gmra.mrb[0].mxu0 %v5217
      %v5417 = vpop.f32.mrb[0].mxu0
      %v5418 = vadd.f32 %v5160, %v5417
      %v5419 = vpop.f32.mrb[0].mxu0
      %5420 = vmatprep.mubr.f32.mxu0 0.0
      %5421 = vmatmul.mubr.f32.gmra.mrb[0].mxu0 %v5220
      %v5422 = vpop.f32.mrb[0].mxu0
      %v5423 = vadd.f32 %v5160, %v5422
      %v5424 = vpop.f32.mrb[0].mxu0
      %5425 = vmatprep.mubr.f32.mxu0 0.0
      %5426 = vmatmul.mubr.f32.gmra.mrb[0].mxu0 %v5223
      %v5427 = vpop.f32.mrb[0].mxu0
      %v5428 = vadd.f32 %v5160, %v5427
      %v5429 = vpop.f32.mrb[0].mxu0
      %5430 = vmatprep.mubr.f32.mxu0 0.0
      %5431 = vmatmul.mubr.f32.gmra.mrb[0].mxu0 %v5226
      %v5432 = vpop.f32.mrb[0].mxu0
      %v5433 = vadd.f32 %v5160, %v5432
      %v5434 = vpop.f32.mrb[0].mxu0
      %5435 = vmatprep.mubr.f32.mxu0 0.0
      %5436 = vmatmul.mubr.f32.gmra.mrb[0].mxu0 %v5229
      %v5437 = vpop.f32.mrb[0].mxu0
      %v5438 = vadd.f32 %v5160, %v5437
      %v5439 = vpop.f32.mrb[0].mxu0
      %5440 = vmatprep.mubr.f32.mxu0 0.0
      %5441 = vmatmul.mubr.f32.gmra.mrb[0].mxu0 %v5232
      %v5442 = vpop.f32.mrb[0].mxu0
      %v5443 = vadd.f32 %v5160, %v5442
      %v5444 = vpop.f32.mrb[0].mxu0
      %5445 = vmatprep.mubr.f32.mxu0 0.0
      %5446 = vmatmul.mubr.f32.gmra.mrb[0].mxu0 %v5235
      %v5447 = vpop.f32.mrb[0].mxu0
      %v5448 = vadd.f32 %v5160, %v5447
      %v5449 = vpop.f32.mrb[0].mxu0
      %5450 = vmatprep.mubr.f32.mxu0 0.0
      %5451 = vmatmul.mubr.f32.gmra.mrb[0].mxu0 %v5238
      %v5452 = vpop.f32.mrb[0].mxu0
      %v5453 = vadd.f32 %v5160, %v5452
      %v5454 = vpop.f32.mrb[0].mxu0
      %5455 = vmatprep.mubr.f32.mxu0 0.0
      %5456 = vmatmul.mubr.f32.gmra.mrb[0].mxu0 %v5241
      %v5457 = vpop.f32.mrb[0].mxu0
      %v5458 = vadd.f32 %v5160, %v5457
      %v5459 = vpop.f32.mrb[0].mxu0
      %5460 = vmatprep.mubr.f32.mxu0 0.0
      %5461 = vmatmul.mubr.f32.gmra.mrb[0].mxu0 %v5244
      %v5462 = vpop.f32.mrb[0].mxu0
      %v5463 = vadd.f32 %v5160, %v5462
      %v5464 = vpop.f32.mrb[0].mxu0
      %5465 = vmatprep.mubr.f32.mxu0 0.0
      %5466 = vmatmul.mubr.f32.gmra.mrb[0].mxu0 %v5247
      %v5467 = vpop.f32.mrb[0].mxu0
      %v5468 = vadd.f32 %v5160, %v5467
      %v5469 = vpop.f32.mrb[0].mxu0
      %5470 = vmatprep.mubr.f32.mxu0 0.0
      %5471 = vmatmul.mubr.f32.gmra.mrb[0].mxu0 %v5250
      %v5472 = vpop.f32.mrb[0].mxu0
      %v5473 = vadd.f32 %v5160, %v5472
      %v5474 = vpop.f32.mrb[0].mxu0
      %5475 = vmatprep.mubr.f32.mxu0 0.0
      %5476 = vmatmul.mubr.f32.gmra.mrb[0].mxu0 %v5253
      %v5477 = vpop.f32.mrb[0].mxu0
      %v5478 = vadd.f32 %v5160, %v5477
      %v5479 = vpop.f32.mrb[0].mxu0
      %5480 = vmatprep.mubr.f32.mxu0 0.0
      %5481 = vmatmul.mubr.f32.gmra.mrb[0].mxu0 %v5256
      %v5482 = vpop.f32.mrb[0].mxu0
      %v5483 = vadd.f32 %v5160, %v5482
      %v5484 = vpop.f32.mrb[0].mxu0
      %5485 = vdwg.mxu0
      %v5486 = vadd.f32 %v5328, %v378
      %v5487 = vadd.f32 %v5333, %v379
      %v5488 = vadd.f32 %v5338, %v380
      %v5489 = vadd.f32 %v5343, %v381
      %v5490 = vadd.f32 %v5348, %v382
      %v5491 = vadd.f32 %v5353, %v383
      %v5492 = vadd.f32 %v5358, %v384
      %v5493 = vadd.f32 %v5363, %v385
      %v5494 = vadd.f32 %v5368, %v386
      %v5495 = vadd.f32 %v5373, %v387
      %v5496 = vadd.f32 %v5378, %v388
      %v5497 = vadd.f32 %v5383, %v389
      %v5498 = vadd.f32 %v5388, %v390
      %v5499 = vadd.f32 %v5393, %v391
      %v5500 = vadd.f32 %v5398, %v392
      %v5501 = vadd.f32 %v5403, %v393
      %v5502 = vadd.f32 %v5408, %v394
      %v5503 = vadd.f32 %v5413, %v395
      %v5504 = vadd.f32 %v5418, %v396
      %v5505 = vadd.f32 %v5423, %v397
      %v5506 = vadd.f32 %v5428, %v398
      %v5507 = vadd.f32 %v5433, %v399
      %v5508 = vadd.f32 %v5438, %v400
      %v5509 = vadd.f32 %v5443, %v401
      %v5510 = vadd.f32 %v5448, %v402
      %v5511 = vadd.f32 %v5453, %v403
      %v5512 = vadd.f32 %v5458, %v404
      %v5513 = vadd.f32 %v5463, %v405
      %v5514 = vadd.f32 %v5468, %v406
      %v5515 = vadd.f32 %v5473, %v407
      %v5516 = vadd.f32 %v5478, %v408
      %v5517 = vadd.f32 %v5483, %v409
      %v5518 = vmax.f32 %v5486, 0.0
      %v5519 = vmax.f32 %v5487, 0.0
      %v5520 = vmax.f32 %v5488, 0.0
      %v5521 = vmax.f32 %v5489, 0.0
      %v5522 = vmax.f32 %v5490, 0.0
      %v5523 = vmax.f32 %v5491, 0.0
      %v5524 = vmax.f32 %v5492, 0.0
      %v5525 = vmax.f32 %v5493, 0.0
      %v5526 = vmax.f32 %v5494, 0.0
      %v5527 = vmax.f32 %v5495, 0.0
      %v5528 = vmax.f32 %v5496, 0.0
      %v5529 = vmax.f32 %v5497, 0.0
      %v5530 = vmax.f32 %v5498, 0.0
      %v5531 = vmax.f32 %v5499, 0.0
      %v5532 = vmax.f32 %v5500, 0.0
      %v5533 = vmax.f32 %v5501, 0.0
      %v5534 = vmax.f32 %v5502, 0.0
      %v5535 = vmax.f32 %v5503, 0.0
      %v5536 = vmax.f32 %v5504, 0.0
      %v5537 = vmax.f32 %v5505, 0.0
      %v5538 = vmax.f32 %v5506, 0.0
      %v5539 = vmax.f32 %v5507, 0.0
      %v5540 = vmax.f32 %v5508, 0.0
      %v5541 = vmax.f32 %v5509, 0.0
      %v5542 = vmax.f32 %v5510, 0.0
      %v5543 = vmax.f32 %v5511, 0.0
      %v5544 = vmax.f32 %v5512, 0.0
      %v5545 = vmax.f32 %v5513, 0.0
      %v5546 = vmax.f32 %v5514, 0.0
      %v5547 = vmax.f32 %v5515, 0.0
      %v5548 = vmax.f32 %v5516, 0.0
      %v5549 = vmax.f32 %v5517, 0.0
      %5550 = vst.msk [vmem:[%s305] sm:$0xff] %vm451, %v5518
      %5551 = vst.msk [vmem:[%s305 + $0x8] sm:$0xff] %vm451, %v5519
      %5552 = vst.msk [vmem:[%s305 + $0x10] sm:$0xff] %vm451, %v5520
      %5553 = vst.msk [vmem:[%s305 + $0x18] sm:$0xff] %vm451, %v5521
      %5554 = vst.msk [vmem:[%s305 + $0x20] sm:$0xff] %vm451, %v5522
      %5555 = vst.msk [vmem:[%s305 + $0x28] sm:$0xff] %vm451, %v5523
      %5556 = vst.msk [vmem:[%s305 + $0x30] sm:$0xff] %vm451, %v5524
      %5557 = vst.msk [vmem:[%s305 + $0x38] sm:$0xff] %vm451, %v5525
      %5558 = vst.msk [vmem:[%s305 + $0x40] sm:$0xff] %vm451, %v5526
      %5559 = vst.msk [vmem:[%s305 + $0x48] sm:$0xff] %vm451, %v5527
      %5560 = vst.msk [vmem:[%s305 + $0x50] sm:$0xff] %vm451, %v5528
      %5561 = vst.msk [vmem:[%s305 + $0x58] sm:$0xff] %vm451, %v5529
      %5562 = vst.msk [vmem:[%s305 + $0x60] sm:$0xff] %vm451, %v5530
      %5563 = vst.msk [vmem:[%s305 + $0x68] sm:$0xff] %vm451, %v5531
      %5564 = vst.msk [vmem:[%s305 + $0x70] sm:$0xff] %vm451, %v5532
      %5565 = vst.msk [vmem:[%s305 + $0x78] sm:$0xff] %vm451, %v5533
      %5566 = vst.msk [vmem:[%s305 + $0x80] sm:$0xff] %vm451, %v5534
      %5567 = vst.msk [vmem:[%s305 + $0x88] sm:$0xff] %vm451, %v5535
      %5568 = vst.msk [vmem:[%s305 + $0x90] sm:$0xff] %vm451, %v5536
      %5569 = vst.msk [vmem:[%s305 + $0x98] sm:$0xff] %vm451, %v5537
      %5570 = vst.msk [vmem:[%s305 + $0xa0] sm:$0xff] %vm451, %v5538
      %5571 = vst.msk [vmem:[%s305 + $0xa8] sm:$0xff] %vm451, %v5539
      %5572 = vst.msk [vmem:[%s305 + $0xb0] sm:$0xff] %vm451, %v5540
      %5573 = vst.msk [vmem:[%s305 + $0xb8] sm:$0xff] %vm451, %v5541
      %5574 = vst.msk [vmem:[%s305 + $0xc0] sm:$0xff] %vm451, %v5542
      %5575 = vst.msk [vmem:[%s305 + $0xc8] sm:$0xff] %vm451, %v5543
      %5576 = vst.msk [vmem:[%s305 + $0xd0] sm:$0xff] %vm451, %v5544
      %5577 = vst.msk [vmem:[%s305 + $0xd8] sm:$0xff] %vm451, %v5545
      %5578 = vst.msk [vmem:[%s305 + $0xe0] sm:$0xff] %vm451, %v5546
      %5579 = vst.msk [vmem:[%s305 + $0xe8] sm:$0xff] %vm451, %v5547
      %5580 = vst.msk [vmem:[%s305 + $0xf0] sm:$0xff] %vm451, %v5548
      %5581 = vst.msk [vmem:[%s305 + $0xf8] sm:$0xff] %vm451, %v5549
      %5582 = vst.msk [vmem:[#allocation2 + $0x18] sm:$0xff] %vm306, %v1061
      %5583 = vst.msk [vmem:[#allocation2 + $0x20] sm:$0xff] %vm306, %v1062
      %5584 = vst.msk [vmem:[#allocation2 + $0x28] sm:$0xff] %vm306, %v1063
      %5585 = vst.msk [vmem:[#allocation2 + $0x30] sm:$0xff] %vm306, %v1064
      %5586 = vst.msk [vmem:[#allocation2 + $0x38] sm:$0xff] %vm306, %v1065
      %5587 = vst.msk [vmem:[#allocation2 + $0x40] sm:$0xff] %vm306, %v1066
      %5588 = vst.msk [vmem:[#allocation2 + $0x48] sm:$0xff] %vm306, %v1067
      %5589 = vst.msk [vmem:[#allocation2 + $0x50] sm:$0xff] %vm306, %v1068
      %5590 = vst.msk [vmem:[#allocation2 + $0x58] sm:$0xff] %vm306, %v1069
      %5591 = vst.msk [vmem:[#allocation2 + $0x60] sm:$0xff] %vm306, %v1070
      %5592 = vst.msk [vmem:[#allocation2 + $0x68] sm:$0xff] %vm306, %v1071
      %5593 = vst.msk [vmem:[#allocation2 + $0x70] sm:$0xff] %vm306, %v1072
      %5594 = vst.msk [vmem:[#allocation2 + $0x78] sm:$0xff] %vm306, %v1073
      %5595 = vst.msk [vmem:[#allocation2 + $0x80] sm:$0xff] %vm306, %v1074
      %5596 = vst.msk [vmem:[#allocation2 + $0x88] sm:$0xff] %vm306, %v1075
      %5597 = vst.msk [vmem:[#allocation2 + $0x90] sm:$0xff] %vm306, %v1076
      %5598 = vst.msk [vmem:[#allocation2 + $0x98] sm:$0xff] %vm306, %v1077
      %5599 = vst.msk [vmem:[#allocation2 + $0xa0] sm:$0xff] %vm306, %v1078
      %5600 = vst.msk [vmem:[#allocation2 + $0xa8] sm:$0xff] %vm306, %v1079
      %5601 = vst.msk [vmem:[#allocation2 + $0xb0] sm:$0xff] %vm306, %v1080
      %5602 = vst.msk [vmem:[#allocation2 + $0xb8] sm:$0xff] %vm306, %v1081
      %5603 = vst.msk [vmem:[#allocation2 + $0xc0] sm:$0xff] %vm306, %v1082
      %5604 = vst.msk [vmem:[#allocation2 + $0xc8] sm:$0xff] %vm306, %v1083
      %5605 = vst.msk [vmem:[#allocation2 + $0xd0] sm:$0xff] %vm306, %v1084
      %5606 = vst.msk [vmem:[#allocation2 + $0xd8] sm:$0xff] %vm306, %v1085
      %5607 = vst.msk [vmem:[#allocation2 + $0xe0] sm:$0xff] %vm306, %v1086
      %5608 = vst.msk [vmem:[#allocation2 + $0xe8] sm:$0xff] %vm306, %v1087
      %5609 = vst.msk [vmem:[#allocation2 + $0xf0] sm:$0xff] %vm306, %v1088
      %5610 = vst.msk [vmem:[#allocation2 + $0xf8] sm:$0xff] %vm306, %v1089
      %5611 = vst.msk [vmem:[#allocation2 + $0x100] sm:$0xff] %vm306, %v1090
      %5612 = vst.msk [vmem:[#allocation2 + $0x108] sm:$0xff] %vm306, %v1091
      %5613 = vst.msk [vmem:[#allocation2 + $0x110] sm:$0xff] %vm306, %v1092
      %v5614 = vld [vmem:[#allocation2 + $0x7] sm:$0xff]
      %v5615 = vld [vmem:[#allocation2 + $0xf] sm:$0xff]
      %v5616 = vld [vmem:[#allocation2 + $0x17] sm:$0xff]
      %v5617 = vld [vmem:[#allocation2 + $0x1f] sm:$0xff]
      %v5618 = vld [vmem:[#allocation2 + $0x27] sm:$0xff]
      %v5619 = vld [vmem:[#allocation2 + $0x2f] sm:$0xff]
      %v5620 = vld [vmem:[#allocation2 + $0x37] sm:$0xff]
      %v5621 = vld [vmem:[#allocation2 + $0x3f] sm:$0xff]
      %v5622 = vld [vmem:[#allocation2 + $0x47] sm:$0xff]
      %v5623 = vld [vmem:[#allocation2 + $0x4f] sm:$0xff]
      %v5624 = vld [vmem:[#allocation2 + $0x57] sm:$0xff]
      %v5625 = vld [vmem:[#allocation2 + $0x5f] sm:$0xff]
      %v5626 = vld [vmem:[#allocation2 + $0x67] sm:$0xff]
      %v5627 = vld [vmem:[#allocation2 + $0x6f] sm:$0xff]
      %v5628 = vld [vmem:[#allocation2 + $0x77] sm:$0xff]
      %v5629 = vld [vmem:[#allocation2 + $0x7f] sm:$0xff]
      %v5630 = vld [vmem:[#allocation2 + $0x87] sm:$0xff]
      %v5631 = vld [vmem:[#allocation2 + $0x8f] sm:$0xff]
      %v5632 = vld [vmem:[#allocation2 + $0x97] sm:$0xff]
      %v5633 = vld [vmem:[#allocation2 + $0x9f] sm:$0xff]
      %v5634 = vld [vmem:[#allocation2 + $0xa7] sm:$0xff]
      %v5635 = vld [vmem:[#allocation2 + $0xaf] sm:$0xff]
      %v5636 = vld [vmem:[#allocation2 + $0xb7] sm:$0xff]
      %v5637 = vld [vmem:[#allocation2 + $0xbf] sm:$0xff]
      %v5638 = vld [vmem:[#allocation2 + $0xc7] sm:$0xff]
      %v5639 = vld [vmem:[#allocation2 + $0xcf] sm:$0xff]
      %v5640 = vld [vmem:[#allocation2 + $0xd7] sm:$0xff]
      %v5641 = vld [vmem:[#allocation2 + $0xdf] sm:$0xff]
      %v5642 = vld [vmem:[#allocation2 + $0xe7] sm:$0xff]
      %v5643 = vld [vmem:[#allocation2 + $0xef] sm:$0xff]
      %v5644 = vld [vmem:[#allocation2 + $0xf7] sm:$0xff]
      %v5645 = vld [vmem:[#allocation2 + $0xff] sm:$0xff]
      %v5646 = vmul.f32 %v5614, %v1160
      %v5647 = vmul.f32 %v5615, %v1165
      %v5648 = vmul.f32 %v5616, %v1170
      %v5649 = vmul.f32 %v5617, %v1175
      %v5650 = vmul.f32 %v5618, %v1180
      %v5651 = vmul.f32 %v5619, %v1185
      %v5652 = vmul.f32 %v5620, %v1190
      %v5653 = vmul.f32 %v5621, %v1195
      %v5654 = vmul.f32 %v5622, %v1200
      %v5655 = vmul.f32 %v5623, %v1205
      %v5656 = vmul.f32 %v5624, %v1210
      %v5657 = vmul.f32 %v5625, %v1215
      %v5658 = vmul.f32 %v5626, %v1220
      %v5659 = vmul.f32 %v5627, %v1225
      %v5660 = vmul.f32 %v5628, %v1230
      %v5661 = vmul.f32 %v5629, %v1235
      %v5662 = vmul.f32 %v5630, %v1240
      %v5663 = vmul.f32 %v5631, %v1245
      %v5664 = vmul.f32 %v5632, %v1250
      %v5665 = vmul.f32 %v5633, %v1255
      %v5666 = vmul.f32 %v5634, %v1260
      %v5667 = vmul.f32 %v5635, %v1265
      %v5668 = vmul.f32 %v5636, %v1270
      %v5669 = vmul.f32 %v5637, %v1275
      %v5670 = vmul.f32 %v5638, %v1280
      %v5671 = vmul.f32 %v5639, %v1285
      %v5672 = vmul.f32 %v5640, %v1290
      %v5673 = vmul.f32 %v5641, %v1295
      %v5674 = vmul.f32 %v5642, %v1300
      %v5675 = vmul.f32 %v5643, %v1305
      %v5676 = vmul.f32 %v5644, %v1310
      %v5677 = vmul.f32 %v5645, %v1315
      %v5678 = vld [vmem:[%s4] sm:$0xf]
      %v5679 = vld [vmem:[#allocation2 + $0x8] sm:$0xff]
      %v5680 = vld [vmem:[#allocation2 + $0x10] sm:$0xff]
      %v5681 = vld [vmem:[#allocation2 + $0x18] sm:$0xff]
      %v5682 = vld [vmem:[#allocation2 + $0x20] sm:$0xff]
      %v5683 = vld [vmem:[#allocation2 + $0x28] sm:$0xff]
      %v5684 = vld [vmem:[#allocation2 + $0x30] sm:$0xff]
      %v5685 = vld [vmem:[#allocation2 + $0x38] sm:$0xff]
      %v5686 = vld [vmem:[#allocation2 + $0x40] sm:$0xff]
      %v5687 = vld [vmem:[#allocation2 + $0x48] sm:$0xff]
      %v5688 = vld [vmem:[#allocation2 + $0x50] sm:$0xff]
      %v5689 = vld [vmem:[#allocation2 + $0x58] sm:$0xff]
      %v5690 = vld [vmem:[#allocation2 + $0x60] sm:$0xff]
      %v5691 = vld [vmem:[#allocation2 + $0x68] sm:$0xff]
      %v5692 = vld [vmem:[#allocation2 + $0x70] sm:$0xff]
      %v5693 = vld [vmem:[#allocation2 + $0x78] sm:$0xff]
      %v5694 = vld [vmem:[#allocation2 + $0x80] sm:$0xff]
      %v5695 = vld [vmem:[#allocation2 + $0x88] sm:$0xff]
      %v5696 = vld [vmem:[#allocation2 + $0x90] sm:$0xff]
      %v5697 = vld [vmem:[#allocation2 + $0x98] sm:$0xff]
      %v5698 = vld [vmem:[#allocation2 + $0xa0] sm:$0xff]
      %v5699 = vld [vmem:[#allocation2 + $0xa8] sm:$0xff]
      %v5700 = vld [vmem:[#allocation2 + $0xb0] sm:$0xff]
      %v5701 = vld [vmem:[#allocation2 + $0xb8] sm:$0xff]
      %v5702 = vld [vmem:[#allocation2 + $0xc0] sm:$0xff]
      %v5703 = vld [vmem:[#allocation2 + $0xc8] sm:$0xff]
      %v5704 = vld [vmem:[#allocation2 + $0xd0] sm:$0xff]
      %v5705 = vld [vmem:[#allocation2 + $0xd8] sm:$0xff]
      %v5706 = vld [vmem:[#allocation2 + $0xe0] sm:$0xff]
      %v5707 = vld [vmem:[#allocation2 + $0xe8] sm:$0xff]
      %v5708 = vld [vmem:[#allocation2 + $0xf0] sm:$0xff]
      %v5709 = vld [vmem:[#allocation2 + $0xf8] sm:$0xff]
      %v5710 = vld [vmem:[#allocation2 + $0x100] sm:$0xff]
      %v5711 = vld [vmem:[%s1382] sm:$0xf]
      %v5713 = vsel %vm306, %v5679, 0
      %v5716 = vsel %vm306, %v5680, 0
      %v5719 = vsel %vm306, %v5681, 0
      %v5722 = vsel %vm306, %v5682, 0
      %v5725 = vsel %vm306, %v5683, 0
      %v5728 = vsel %vm306, %v5684, 0
      %v5731 = vsel %vm306, %v5685, 0
      %v5734 = vsel %vm306, %v5686, 0
      %v5737 = vsel %vm306, %v5687, 0
      %v5740 = vsel %vm306, %v5688, 0
      %v5743 = vsel %vm306, %v5689, 0
      %v5746 = vsel %vm306, %v5690, 0
      %v5749 = vsel %vm306, %v5691, 0
      %v5752 = vsel %vm306, %v5692, 0
      %v5755 = vsel %vm306, %v5693, 0
      %v5758 = vsel %vm306, %v5694, 0
      %v5761 = vsel %vm306, %v5695, 0
      %v5764 = vsel %vm306, %v5696, 0
      %v5767 = vsel %vm306, %v5697, 0
      %v5770 = vsel %vm306, %v5698, 0
      %v5773 = vsel %vm306, %v5699, 0
      %v5776 = vsel %vm306, %v5700, 0
      %v5779 = vsel %vm306, %v5701, 0
      %v5782 = vsel %vm306, %v5702, 0
      %v5785 = vsel %vm306, %v5703, 0
      %v5788 = vsel %vm306, %v5704, 0
      %v5791 = vsel %vm306, %v5705, 0
      %v5794 = vsel %vm306, %v5706, 0
      %v5797 = vsel %vm306, %v5707, 0
      %v5800 = vsel %vm306, %v5708, 0
      %v5803 = vsel %vm306, %v5709, 0
      %v5806 = vsel %vm306, %v5710, 0
      %v5809 = vsel %vm1480, %v5711, 0
      %5811 = vmatprep.subr.mxu0 0.0
      %5812 = vmatpush1.msra.mxu0 %v5809
      %5813 = vmatprep.subr.mxu0 0.0
      %5814 = vmatpush1.msra.mxu0 0.0
      %5815 = vmatprep.subr.mxu0 0.0
      %5816 = vmatpush1.msra.mxu0 0.0
      %5817 = vmatprep.subr.mxu0 0.0
      %5818 = vmatpush1.msra.mxu0 0.0
      %5819 = vmatprep.subr.mxu0 0.0
      %5820 = vmatpush1.msra.mxu0 0.0
      %5821 = vmatprep.subr.mxu0 0.0
      %5822 = vmatpush1.msra.mxu0 0.0
      %5823 = vmatprep.subr.mxu0 0.0
      %5824 = vmatpush1.msra.mxu0 0.0
      %5825 = vmatprep.subr.mxu0 0.0
      %5826 = vmatpush1.msra.mxu0 0.0
      %5827 = vmatprep.subr.mxu0 0.0
      %5828 = vmatpush1.msra.mxu0 0.0
      %5829 = vmatprep.subr.mxu0 0.0
      %5830 = vmatpush1.msra.mxu0 0.0
      %5831 = vmatprep.subr.mxu0 0.0
      %5832 = vmatpush1.msra.mxu0 0.0
      %5833 = vmatprep.subr.mxu0 0.0
      %5834 = vmatpush1.msra.mxu0 0.0
      %5835 = vmatprep.subr.mxu0 0.0
      %5836 = vmatpush1.msra.mxu0 0.0
      %5837 = vmatprep.subr.mxu0 0.0
      %5838 = vmatpush1.msra.mxu0 0.0
      %5839 = vmatprep.subr.mxu0 0.0
      %5840 = vmatpush1.msra.mxu0 0.0
      %5841 = vmatprep.subr.mxu0 0.0
      %5842 = vmatpush1.msra.mxu0 0.0
      %5843 = vmatprep.subr.mxu0 0.0
      %5844 = vmatpush1.msra.mxu0 0.0
      %5845 = vmatprep.subr.mxu0 0.0
      %5846 = vmatpush1.msra.mxu0 0.0
      %5847 = vmatprep.subr.mxu0 0.0
      %5848 = vmatpush1.msra.mxu0 0.0
      %5849 = vmatprep.subr.mxu0 0.0
      %5850 = vmatpush1.msra.mxu0 0.0
      %5851 = vmatprep.subr.mxu0 0.0
      %5852 = vmatpush1.msra.mxu0 0.0
      %5853 = vmatprep.subr.mxu0 0.0
      %5854 = vmatpush1.msra.mxu0 0.0
      %5855 = vmatprep.subr.mxu0 0.0
      %5856 = vmatpush1.msra.mxu0 0.0
      %5857 = vmatprep.subr.mxu0 0.0
      %5858 = vmatpush1.msra.mxu0 0.0
      %5859 = vmatprep.subr.mxu0 0.0
      %5860 = vmatpush1.msra.mxu0 0.0
      %5861 = vmatprep.subr.mxu0 0.0
      %5862 = vmatpush1.msra.mxu0 0.0
      %5863 = vmatprep.subr.mxu0 0.0
      %5864 = vmatpush1.msra.mxu0 0.0
      %5865 = vmatprep.subr.mxu0 0.0
      %5866 = vmatpush1.msra.mxu0 0.0
      %5867 = vmatprep.subr.mxu0 0.0
      %5868 = vmatpush1.msra.mxu0 0.0
      %5869 = vmatprep.subr.mxu0 0.0
      %5870 = vmatpush1.msra.mxu0 0.0
      %5871 = vmatprep.subr.mxu0 0.0
      %5872 = vmatpush1.msra.mxu0 0.0
      %5873 = vmatprep.subr.mxu0 0.0
      %5874 = vmatpush1.msra.mxu0 0.0
      %5875 = vmatprep.mubr.f32.mxu0 0.0
      %5876 = vmatmul.mubr.f32.gmra.mrb[0].mxu0 %v5713
      %v5877 = vpop.f32.mrb[0].mxu0
      %v5878 = vadd.f32 0.0, %v5877
      %v5879 = vpop.f32.mrb[0].mxu0
      %5880 = vmatprep.mubr.f32.mxu0 0.0
      %5881 = vmatmul.mubr.f32.gmra.mrb[0].mxu0 %v5716
      %v5882 = vpop.f32.mrb[0].mxu0
      %v5883 = vadd.f32 0.0, %v5882
      %v5884 = vpop.f32.mrb[0].mxu0
      %5885 = vmatprep.mubr.f32.mxu0 0.0
      %5886 = vmatmul.mubr.f32.gmra.mrb[0].mxu0 %v5719
      %v5887 = vpop.f32.mrb[0].mxu0
      %v5888 = vadd.f32 0.0, %v5887
      %v5889 = vpop.f32.mrb[0].mxu0
      %5890 = vmatprep.mubr.f32.mxu0 0.0
      %5891 = vmatmul.mubr.f32.gmra.mrb[0].mxu0 %v5722
      %v5892 = vpop.f32.mrb[0].mxu0
      %v5893 = vadd.f32 0.0, %v5892
      %v5894 = vpop.f32.mrb[0].mxu0
      %5895 = vmatprep.mubr.f32.mxu0 0.0
      %5896 = vmatmul.mubr.f32.gmra.mrb[0].mxu0 %v5725
      %v5897 = vpop.f32.mrb[0].mxu0
      %v5898 = vadd.f32 0.0, %v5897
      %v5899 = vpop.f32.mrb[0].mxu0
      %5900 = vmatprep.mubr.f32.mxu0 0.0
      %5901 = vmatmul.mubr.f32.gmra.mrb[0].mxu0 %v5728
      %v5902 = vpop.f32.mrb[0].mxu0
      %v5903 = vadd.f32 0.0, %v5902
      %v5904 = vpop.f32.mrb[0].mxu0
      %5905 = vmatprep.mubr.f32.mxu0 0.0
      %5906 = vmatmul.mubr.f32.gmra.mrb[0].mxu0 %v5731
      %v5907 = vpop.f32.mrb[0].mxu0
      %v5908 = vadd.f32 0.0, %v5907
      %v5909 = vpop.f32.mrb[0].mxu0
      %5910 = vmatprep.mubr.f32.mxu0 0.0
      %5911 = vmatmul.mubr.f32.gmra.mrb[0].mxu0 %v5734
      %v5912 = vpop.f32.mrb[0].mxu0
      %v5913 = vadd.f32 0.0, %v5912
      %v5914 = vpop.f32.mrb[0].mxu0
      %5915 = vmatprep.mubr.f32.mxu0 0.0
      %5916 = vmatmul.mubr.f32.gmra.mrb[0].mxu0 %v5737
      %v5917 = vpop.f32.mrb[0].mxu0
      %v5918 = vadd.f32 0.0, %v5917
      %v5919 = vpop.f32.mrb[0].mxu0
      %5920 = vmatprep.mubr.f32.mxu0 0.0
      %5921 = vmatmul.mubr.f32.gmra.mrb[0].mxu0 %v5740
      %v5922 = vpop.f32.mrb[0].mxu0
      %v5923 = vadd.f32 0.0, %v5922
      %v5924 = vpop.f32.mrb[0].mxu0
      %5925 = vmatprep.mubr.f32.mxu0 0.0
      %5926 = vmatmul.mubr.f32.gmra.mrb[0].mxu0 %v5743
      %v5927 = vpop.f32.mrb[0].mxu0
      %v5928 = vadd.f32 0.0, %v5927
      %v5929 = vpop.f32.mrb[0].mxu0
      %5930 = vmatprep.mubr.f32.mxu0 0.0
      %5931 = vmatmul.mubr.f32.gmra.mrb[0].mxu0 %v5746
      %v5932 = vpop.f32.mrb[0].mxu0
      %v5933 = vadd.f32 0.0, %v5932
      %v5934 = vpop.f32.mrb[0].mxu0
      %5935 = vmatprep.mubr.f32.mxu0 0.0
      %5936 = vmatmul.mubr.f32.gmra.mrb[0].mxu0 %v5749
      %v5937 = vpop.f32.mrb[0].mxu0
      %v5938 = vadd.f32 0.0, %v5937
      %v5939 = vpop.f32.mrb[0].mxu0
      %5940 = vmatprep.mubr.f32.mxu0 0.0
      %5941 = vmatmul.mubr.f32.gmra.mrb[0].mxu0 %v5752
      %v5942 = vpop.f32.mrb[0].mxu0
      %v5943 = vadd.f32 0.0, %v5942
      %v5944 = vpop.f32.mrb[0].mxu0
      %5945 = vmatprep.mubr.f32.mxu0 0.0
      %5946 = vmatmul.mubr.f32.gmra.mrb[0].mxu0 %v5755
      %v5947 = vpop.f32.mrb[0].mxu0
      %v5948 = vadd.f32 0.0, %v5947
      %v5949 = vpop.f32.mrb[0].mxu0
      %5950 = vmatprep.mubr.f32.mxu0 0.0
      %5951 = vmatmul.mubr.f32.gmra.mrb[0].mxu0 %v5758
      %v5952 = vpop.f32.mrb[0].mxu0
      %v5953 = vadd.f32 0.0, %v5952
      %v5954 = vpop.f32.mrb[0].mxu0
      %5955 = vmatprep.mubr.f32.mxu0 0.0
      %5956 = vmatmul.mubr.f32.gmra.mrb[0].mxu0 %v5761
      %v5957 = vpop.f32.mrb[0].mxu0
      %v5958 = vadd.f32 0.0, %v5957
      %v5959 = vpop.f32.mrb[0].mxu0
      %5960 = vmatprep.mubr.f32.mxu0 0.0
      %5961 = vmatmul.mubr.f32.gmra.mrb[0].mxu0 %v5764
      %v5962 = vpop.f32.mrb[0].mxu0
      %v5963 = vadd.f32 0.0, %v5962
      %v5964 = vpop.f32.mrb[0].mxu0
      %5965 = vmatprep.mubr.f32.mxu0 0.0
      %5966 = vmatmul.mubr.f32.gmra.mrb[0].mxu0 %v5767
      %v5967 = vpop.f32.mrb[0].mxu0
      %v5968 = vadd.f32 0.0, %v5967
      %v5969 = vpop.f32.mrb[0].mxu0
      %5970 = vmatprep.mubr.f32.mxu0 0.0
      %5971 = vmatmul.mubr.f32.gmra.mrb[0].mxu0 %v5770
      %v5972 = vpop.f32.mrb[0].mxu0
      %v5973 = vadd.f32 0.0, %v5972
      %v5974 = vpop.f32.mrb[0].mxu0
      %5975 = vmatprep.mubr.f32.mxu0 0.0
      %5976 = vmatmul.mubr.f32.gmra.mrb[0].mxu0 %v5773
      %v5977 = vpop.f32.mrb[0].mxu0
      %v5978 = vadd.f32 0.0, %v5977
      %v5979 = vpop.f32.mrb[0].mxu0
      %5980 = vmatprep.mubr.f32.mxu0 0.0
      %5981 = vmatmul.mubr.f32.gmra.mrb[0].mxu0 %v5776
      %v5982 = vpop.f32.mrb[0].mxu0
      %v5983 = vadd.f32 0.0, %v5982
      %v5984 = vpop.f32.mrb[0].mxu0
      %5985 = vmatprep.mubr.f32.mxu0 0.0
      %5986 = vmatmul.mubr.f32.gmra.mrb[0].mxu0 %v5779
      %v5987 = vpop.f32.mrb[0].mxu0
      %v5988 = vadd.f32 0.0, %v5987
      %v5989 = vpop.f32.mrb[0].mxu0
      %5990 = vmatprep.mubr.f32.mxu0 0.0
      %5991 = vmatmul.mubr.f32.gmra.mrb[0].mxu0 %v5782
      %v5992 = vpop.f32.mrb[0].mxu0
      %v5993 = vadd.f32 0.0, %v5992
      %v5994 = vpop.f32.mrb[0].mxu0
      %5995 = vmatprep.mubr.f32.mxu0 0.0
      %5996 = vmatmul.mubr.f32.gmra.mrb[0].mxu0 %v5785
      %v5997 = vpop.f32.mrb[0].mxu0
      %v5998 = vadd.f32 0.0, %v5997
      %v5999 = vpop.f32.mrb[0].mxu0
      %6000 = vmatprep.mubr.f32.mxu0 0.0
      %6001 = vmatmul.mubr.f32.gmra.mrb[0].mxu0 %v5788
      %v6002 = vpop.f32.mrb[0].mxu0
      %v6003 = vadd.f32 0.0, %v6002
      %v6004 = vpop.f32.mrb[0].mxu0
      %6005 = vmatprep.mubr.f32.mxu0 0.0
      %6006 = vmatmul.mubr.f32.gmra.mrb[0].mxu0 %v5791
      %v6007 = vpop.f32.mrb[0].mxu0
      %v6008 = vadd.f32 0.0, %v6007
      %v6009 = vpop.f32.mrb[0].mxu0
      %6010 = vmatprep.mubr.f32.mxu0 0.0
      %6011 = vmatmul.mubr.f32.gmra.mrb[0].mxu0 %v5794
      %v6012 = vpop.f32.mrb[0].mxu0
      %v6013 = vadd.f32 0.0, %v6012
      %v6014 = vpop.f32.mrb[0].mxu0
      %6015 = vmatprep.mubr.f32.mxu0 0.0
      %6016 = vmatmul.mubr.f32.gmra.mrb[0].mxu0 %v5797
      %v6017 = vpop.f32.mrb[0].mxu0
      %v6018 = vadd.f32 0.0, %v6017
      %v6019 = vpop.f32.mrb[0].mxu0
      %6020 = vmatprep.mubr.f32.mxu0 0.0
      %6021 = vmatmul.mubr.f32.gmra.mrb[0].mxu0 %v5800
      %v6022 = vpop.f32.mrb[0].mxu0
      %v6023 = vadd.f32 0.0, %v6022
      %v6024 = vpop.f32.mrb[0].mxu0
      %6025 = vmatprep.mubr.f32.mxu0 0.0
      %6026 = vmatmul.mubr.f32.gmra.mrb[0].mxu0 %v5803
      %v6027 = vpop.f32.mrb[0].mxu0
      %v6028 = vadd.f32 0.0, %v6027
      %v6029 = vpop.f32.mrb[0].mxu0
      %6030 = vmatprep.mubr.f32.mxu0 0.0
      %6031 = vmatmul.mubr.f32.gmra.mrb[0].mxu0 %v5806
      %v6032 = vpop.f32.mrb[0].mxu0
      %v6033 = vadd.f32 0.0, %v6032
      %v6034 = vpop.f32.mrb[0].mxu0
      %6035 = vdwg.mxu0
      %v6037 = vsel %vm306, %v5646, 0
      %v6040 = vsel %vm306, %v5647, 0
      %v6043 = vsel %vm306, %v5648, 0
      %v6046 = vsel %vm306, %v5649, 0
      %v6049 = vsel %vm306, %v5650, 0
      %v6052 = vsel %vm306, %v5651, 0
      %v6055 = vsel %vm306, %v5652, 0
      %v6058 = vsel %vm306, %v5653, 0
      %v6061 = vsel %vm306, %v5654, 0
      %v6064 = vsel %vm306, %v5655, 0
      %v6067 = vsel %vm306, %v5656, 0
      %v6070 = vsel %vm306, %v5657, 0
      %v6073 = vsel %vm306, %v5658, 0
      %v6076 = vsel %vm306, %v5659, 0
      %v6079 = vsel %vm306, %v5660, 0
      %v6082 = vsel %vm306, %v5661, 0
      %v6085 = vsel %vm306, %v5662, 0
      %v6088 = vsel %vm306, %v5663, 0
      %v6091 = vsel %vm306, %v5664, 0
      %v6094 = vsel %vm306, %v5665, 0
      %v6097 = vsel %vm306, %v5666, 0
      %v6100 = vsel %vm306, %v5667, 0
      %v6103 = vsel %vm306, %v5668, 0
      %v6106 = vsel %vm306, %v5669, 0
      %v6109 = vsel %vm306, %v5670, 0
      %v6112 = vsel %vm306, %v5671, 0
      %v6115 = vsel %vm306, %v5672, 0
      %v6118 = vsel %vm306, %v5673, 0
      %v6121 = vsel %vm306, %v5674, 0
      %v6124 = vsel %vm306, %v5675, 0
      %v6127 = vsel %vm306, %v5676, 0
      %v6130 = vsel %vm306, %v5677, 0
      %v6133 = vsel %vm1480, %v5678, 0
      %6135 = vmatprep.subr.mxu0 0.0
      %6136 = vmatpush1.msra.mxu0 %v6133
      %6137 = vmatprep.subr.mxu0 0.0
      %6138 = vmatpush1.msra.mxu0 0.0
      %6139 = vmatprep.subr.mxu0 0.0
      %6140 = vmatpush1.msra.mxu0 0.0
      %6141 = vmatprep.subr.mxu0 0.0
      %6142 = vmatpush1.msra.mxu0 0.0
      %6143 = vmatprep.subr.mxu0 0.0
      %6144 = vmatpush1.msra.mxu0 0.0
      %6145 = vmatprep.subr.mxu0 0.0
      %6146 = vmatpush1.msra.mxu0 0.0
      %6147 = vmatprep.subr.mxu0 0.0
      %6148 = vmatpush1.msra.mxu0 0.0
      %6149 = vmatprep.subr.mxu0 0.0
      %6150 = vmatpush1.msra.mxu0 0.0
      %6151 = vmatprep.subr.mxu0 0.0
      %6152 = vmatpush1.msra.mxu0 0.0
      %6153 = vmatprep.subr.mxu0 0.0
      %6154 = vmatpush1.msra.mxu0 0.0
      %6155 = vmatprep.subr.mxu0 0.0
      %6156 = vmatpush1.msra.mxu0 0.0
      %6157 = vmatprep.subr.mxu0 0.0
      %6158 = vmatpush1.msra.mxu0 0.0
      %6159 = vmatprep.subr.mxu0 0.0
      %6160 = vmatpush1.msra.mxu0 0.0
      %6161 = vmatprep.subr.mxu0 0.0
      %6162 = vmatpush1.msra.mxu0 0.0
      %6163 = vmatprep.subr.mxu0 0.0
      %6164 = vmatpush1.msra.mxu0 0.0
      %6165 = vmatprep.subr.mxu0 0.0
      %6166 = vmatpush1.msra.mxu0 0.0
      %6167 = vmatprep.subr.mxu0 0.0
      %6168 = vmatpush1.msra.mxu0 0.0
      %6169 = vmatprep.subr.mxu0 0.0
      %6170 = vmatpush1.msra.mxu0 0.0
      %6171 = vmatprep.subr.mxu0 0.0
      %6172 = vmatpush1.msra.mxu0 0.0
      %6173 = vmatprep.subr.mxu0 0.0
      %6174 = vmatpush1.msra.mxu0 0.0
      %6175 = vmatprep.subr.mxu0 0.0
      %6176 = vmatpush1.msra.mxu0 0.0
      %6177 = vmatprep.subr.mxu0 0.0
      %6178 = vmatpush1.msra.mxu0 0.0
      %6179 = vmatprep.subr.mxu0 0.0
      %6180 = vmatpush1.msra.mxu0 0.0
      %6181 = vmatprep.subr.mxu0 0.0
      %6182 = vmatpush1.msra.mxu0 0.0
      %6183 = vmatprep.subr.mxu0 0.0
      %6184 = vmatpush1.msra.mxu0 0.0
      %6185 = vmatprep.subr.mxu0 0.0
      %6186 = vmatpush1.msra.mxu0 0.0
      %6187 = vmatprep.subr.mxu0 0.0
      %6188 = vmatpush1.msra.mxu0 0.0
      %6189 = vmatprep.subr.mxu0 0.0
      %6190 = vmatpush1.msra.mxu0 0.0
      %6191 = vmatprep.subr.mxu0 0.0
      %6192 = vmatpush1.msra.mxu0 0.0
      %6193 = vmatprep.subr.mxu0 0.0
      %6194 = vmatpush1.msra.mxu0 0.0
      %6195 = vmatprep.subr.mxu0 0.0
      %6196 = vmatpush1.msra.mxu0 0.0
      %6197 = vmatprep.subr.mxu0 0.0
      %6198 = vmatpush1.msra.mxu0 0.0
      %6199 = vmatprep.mubr.f32.mxu0 0.0
      %6200 = vmatmul.mubr.f32.gmra.mrb[0].mxu0 %v6037
      %v6201 = vpop.f32.mrb[0].mxu0
      %v6202 = vadd.f32 %v5878, %v6201
      %v6203 = vpop.f32.mrb[0].mxu0
      %6204 = vmatprep.mubr.f32.mxu0 0.0
      %6205 = vmatmul.mubr.f32.gmra.mrb[0].mxu0 %v6040
      %v6206 = vpop.f32.mrb[0].mxu0
      %v6207 = vadd.f32 %v5883, %v6206
      %v6208 = vpop.f32.mrb[0].mxu0
      %6209 = vmatprep.mubr.f32.mxu0 0.0
      %6210 = vmatmul.mubr.f32.gmra.mrb[0].mxu0 %v6043
      %v6211 = vpop.f32.mrb[0].mxu0
      %v6212 = vadd.f32 %v5888, %v6211
      %v6213 = vpop.f32.mrb[0].mxu0
      %6214 = vmatprep.mubr.f32.mxu0 0.0
      %6215 = vmatmul.mubr.f32.gmra.mrb[0].mxu0 %v6046
      %v6216 = vpop.f32.mrb[0].mxu0
      %v6217 = vadd.f32 %v5893, %v6216
      %v6218 = vpop.f32.mrb[0].mxu0
      %6219 = vmatprep.mubr.f32.mxu0 0.0
      %6220 = vmatmul.mubr.f32.gmra.mrb[0].mxu0 %v6049
      %v6221 = vpop.f32.mrb[0].mxu0
      %v6222 = vadd.f32 %v5898, %v6221
      %v6223 = vpop.f32.mrb[0].mxu0
      %6224 = vmatprep.mubr.f32.mxu0 0.0
      %6225 = vmatmul.mubr.f32.gmra.mrb[0].mxu0 %v6052
      %v6226 = vpop.f32.mrb[0].mxu0
      %v6227 = vadd.f32 %v5903, %v6226
      %v6228 = vpop.f32.mrb[0].mxu0
      %6229 = vmatprep.mubr.f32.mxu0 0.0
      %6230 = vmatmul.mubr.f32.gmra.mrb[0].mxu0 %v6055
      %v6231 = vpop.f32.mrb[0].mxu0
      %v6232 = vadd.f32 %v5908, %v6231
      %v6233 = vpop.f32.mrb[0].mxu0
      %6234 = vmatprep.mubr.f32.mxu0 0.0
      %6235 = vmatmul.mubr.f32.gmra.mrb[0].mxu0 %v6058
      %v6236 = vpop.f32.mrb[0].mxu0
      %v6237 = vadd.f32 %v5913, %v6236
      %v6238 = vpop.f32.mrb[0].mxu0
      %6239 = vmatprep.mubr.f32.mxu0 0.0
      %6240 = vmatmul.mubr.f32.gmra.mrb[0].mxu0 %v6061
      %v6241 = vpop.f32.mrb[0].mxu0
      %v6242 = vadd.f32 %v5918, %v6241
      %v6243 = vpop.f32.mrb[0].mxu0
      %6244 = vmatprep.mubr.f32.mxu0 0.0
      %6245 = vmatmul.mubr.f32.gmra.mrb[0].mxu0 %v6064
      %v6246 = vpop.f32.mrb[0].mxu0
      %v6247 = vadd.f32 %v5923, %v6246
      %v6248 = vpop.f32.mrb[0].mxu0
      %6249 = vmatprep.mubr.f32.mxu0 0.0
      %6250 = vmatmul.mubr.f32.gmra.mrb[0].mxu0 %v6067
      %v6251 = vpop.f32.mrb[0].mxu0
      %v6252 = vadd.f32 %v5928, %v6251
      %v6253 = vpop.f32.mrb[0].mxu0
      %6254 = vmatprep.mubr.f32.mxu0 0.0
      %6255 = vmatmul.mubr.f32.gmra.mrb[0].mxu0 %v6070
      %v6256 = vpop.f32.mrb[0].mxu0
      %v6257 = vadd.f32 %v5933, %v6256
      %v6258 = vpop.f32.mrb[0].mxu0
      %6259 = vmatprep.mubr.f32.mxu0 0.0
      %6260 = vmatmul.mubr.f32.gmra.mrb[0].mxu0 %v6073
      %v6261 = vpop.f32.mrb[0].mxu0
      %v6262 = vadd.f32 %v5938, %v6261
      %v6263 = vpop.f32.mrb[0].mxu0
      %6264 = vmatprep.mubr.f32.mxu0 0.0
      %6265 = vmatmul.mubr.f32.gmra.mrb[0].mxu0 %v6076
      %v6266 = vpop.f32.mrb[0].mxu0
      %v6267 = vadd.f32 %v5943, %v6266
      %v6268 = vpop.f32.mrb[0].mxu0
      %6269 = vmatprep.mubr.f32.mxu0 0.0
      %6270 = vmatmul.mubr.f32.gmra.mrb[0].mxu0 %v6079
      %v6271 = vpop.f32.mrb[0].mxu0
      %v6272 = vadd.f32 %v5948, %v6271
      %v6273 = vpop.f32.mrb[0].mxu0
      %6274 = vmatprep.mubr.f32.mxu0 0.0
      %6275 = vmatmul.mubr.f32.gmra.mrb[0].mxu0 %v6082
      %v6276 = vpop.f32.mrb[0].mxu0
      %v6277 = vadd.f32 %v5953, %v6276
      %v6278 = vpop.f32.mrb[0].mxu0
      %6279 = vmatprep.mubr.f32.mxu0 0.0
      %6280 = vmatmul.mubr.f32.gmra.mrb[0].mxu0 %v6085
      %v6281 = vpop.f32.mrb[0].mxu0
      %v6282 = vadd.f32 %v5958, %v6281
      %v6283 = vpop.f32.mrb[0].mxu0
      %6284 = vmatprep.mubr.f32.mxu0 0.0
      %6285 = vmatmul.mubr.f32.gmra.mrb[0].mxu0 %v6088
      %v6286 = vpop.f32.mrb[0].mxu0
      %v6287 = vadd.f32 %v5963, %v6286
      %v6288 = vpop.f32.mrb[0].mxu0
      %6289 = vmatprep.mubr.f32.mxu0 0.0
      %6290 = vmatmul.mubr.f32.gmra.mrb[0].mxu0 %v6091
      %v6291 = vpop.f32.mrb[0].mxu0
      %v6292 = vadd.f32 %v5968, %v6291
      %v6293 = vpop.f32.mrb[0].mxu0
      %6294 = vmatprep.mubr.f32.mxu0 0.0
      %6295 = vmatmul.mubr.f32.gmra.mrb[0].mxu0 %v6094
      %v6296 = vpop.f32.mrb[0].mxu0
      %v6297 = vadd.f32 %v5973, %v6296
      %v6298 = vpop.f32.mrb[0].mxu0
      %6299 = vmatprep.mubr.f32.mxu0 0.0
      %6300 = vmatmul.mubr.f32.gmra.mrb[0].mxu0 %v6097
      %v6301 = vpop.f32.mrb[0].mxu0
      %v6302 = vadd.f32 %v5978, %v6301
      %v6303 = vpop.f32.mrb[0].mxu0
      %6304 = vmatprep.mubr.f32.mxu0 0.0
      %6305 = vmatmul.mubr.f32.gmra.mrb[0].mxu0 %v6100
      %v6306 = vpop.f32.mrb[0].mxu0
      %v6307 = vadd.f32 %v5983, %v6306
      %v6308 = vpop.f32.mrb[0].mxu0
      %6309 = vmatprep.mubr.f32.mxu0 0.0
      %6310 = vmatmul.mubr.f32.gmra.mrb[0].mxu0 %v6103
      %v6311 = vpop.f32.mrb[0].mxu0
      %v6312 = vadd.f32 %v5988, %v6311
      %v6313 = vpop.f32.mrb[0].mxu0
      %6314 = vmatprep.mubr.f32.mxu0 0.0
      %6315 = vmatmul.mubr.f32.gmra.mrb[0].mxu0 %v6106
      %v6316 = vpop.f32.mrb[0].mxu0
      %v6317 = vadd.f32 %v5993, %v6316
      %v6318 = vpop.f32.mrb[0].mxu0
      %6319 = vmatprep.mubr.f32.mxu0 0.0
      %6320 = vmatmul.mubr.f32.gmra.mrb[0].mxu0 %v6109
      %v6321 = vpop.f32.mrb[0].mxu0
      %v6322 = vadd.f32 %v5998, %v6321
      %v6323 = vpop.f32.mrb[0].mxu0
      %6324 = vmatprep.mubr.f32.mxu0 0.0
      %6325 = vmatmul.mubr.f32.gmra.mrb[0].mxu0 %v6112
      %v6326 = vpop.f32.mrb[0].mxu0
      %v6327 = vadd.f32 %v6003, %v6326
      %v6328 = vpop.f32.mrb[0].mxu0
      %6329 = vmatprep.mubr.f32.mxu0 0.0
      %6330 = vmatmul.mubr.f32.gmra.mrb[0].mxu0 %v6115
      %v6331 = vpop.f32.mrb[0].mxu0
      %v6332 = vadd.f32 %v6008, %v6331
      %v6333 = vpop.f32.mrb[0].mxu0
      %6334 = vmatprep.mubr.f32.mxu0 0.0
      %6335 = vmatmul.mubr.f32.gmra.mrb[0].mxu0 %v6118
      %v6336 = vpop.f32.mrb[0].mxu0
      %v6337 = vadd.f32 %v6013, %v6336
      %v6338 = vpop.f32.mrb[0].mxu0
      %6339 = vmatprep.mubr.f32.mxu0 0.0
      %6340 = vmatmul.mubr.f32.gmra.mrb[0].mxu0 %v6121
      %v6341 = vpop.f32.mrb[0].mxu0
      %v6342 = vadd.f32 %v6018, %v6341
      %v6343 = vpop.f32.mrb[0].mxu0
      %6344 = vmatprep.mubr.f32.mxu0 0.0
      %6345 = vmatmul.mubr.f32.gmra.mrb[0].mxu0 %v6124
      %v6346 = vpop.f32.mrb[0].mxu0
      %v6347 = vadd.f32 %v6023, %v6346
      %v6348 = vpop.f32.mrb[0].mxu0
      %6349 = vmatprep.mubr.f32.mxu0 0.0
      %6350 = vmatmul.mubr.f32.gmra.mrb[0].mxu0 %v6127
      %v6351 = vpop.f32.mrb[0].mxu0
      %v6352 = vadd.f32 %v6028, %v6351
      %v6353 = vpop.f32.mrb[0].mxu0
      %6354 = vmatprep.mubr.f32.mxu0 0.0
      %6355 = vmatmul.mubr.f32.gmra.mrb[0].mxu0 %v6130
      %v6356 = vpop.f32.mrb[0].mxu0
      %v6357 = vadd.f32 %v6033, %v6356
      %v6358 = vpop.f32.mrb[0].mxu0
      %6359 = vdwg.mxu0
      %v6360 = vld [vmem:[#allocation2 + $0x9] sm:$0xff]
      %v6361 = vld [vmem:[#allocation2 + $0x11] sm:$0xff]
      %v6362 = vld [vmem:[#allocation2 + $0x19] sm:$0xff]
      %v6363 = vld [vmem:[#allocation2 + $0x21] sm:$0xff]
      %v6364 = vld [vmem:[#allocation2 + $0x29] sm:$0xff]
      %v6365 = vld [vmem:[#allocation2 + $0x31] sm:$0xff]
      %v6366 = vld [vmem:[#allocation2 + $0x39] sm:$0xff]
      %v6367 = vld [vmem:[#allocation2 + $0x41] sm:$0xff]
      %v6368 = vld [vmem:[#allocation2 + $0x49] sm:$0xff]
      %v6369 = vld [vmem:[#allocation2 + $0x51] sm:$0xff]
      %v6370 = vld [vmem:[#allocation2 + $0x59] sm:$0xff]
      %v6371 = vld [vmem:[#allocation2 + $0x61] sm:$0xff]
      %v6372 = vld [vmem:[#allocation2 + $0x69] sm:$0xff]
      %v6373 = vld [vmem:[#allocation2 + $0x71] sm:$0xff]
      %v6374 = vld [vmem:[#allocation2 + $0x79] sm:$0xff]
      %v6375 = vld [vmem:[#allocation2 + $0x81] sm:$0xff]
      %v6376 = vld [vmem:[#allocation2 + $0x89] sm:$0xff]
      %v6377 = vld [vmem:[#allocation2 + $0x91] sm:$0xff]
      %v6378 = vld [vmem:[#allocation2 + $0x99] sm:$0xff]
      %v6379 = vld [vmem:[#allocation2 + $0xa1] sm:$0xff]
      %v6380 = vld [vmem:[#allocation2 + $0xa9] sm:$0xff]
      %v6381 = vld [vmem:[#allocation2 + $0xb1] sm:$0xff]
      %v6382 = vld [vmem:[#allocation2 + $0xb9] sm:$0xff]
      %v6383 = vld [vmem:[#allocation2 + $0xc1] sm:$0xff]
      %v6384 = vld [vmem:[#allocation2 + $0xc9] sm:$0xff]
      %v6385 = vld [vmem:[#allocation2 + $0xd1] sm:$0xff]
      %v6386 = vld [vmem:[#allocation2 + $0xd9] sm:$0xff]
      %v6387 = vld [vmem:[#allocation2 + $0xe1] sm:$0xff]
      %v6388 = vld [vmem:[#allocation2 + $0xe9] sm:$0xff]
      %v6389 = vld [vmem:[#allocation2 + $0xf1] sm:$0xff]
      %v6390 = vld [vmem:[#allocation2 + $0xf9] sm:$0xff]
      %v6391 = vld [vmem:[#allocation2 + $0x101] sm:$0xff]
      %v6392 = vmul.f32 %v6360, %v2068
      %v6393 = vmul.f32 %v6361, %v2073
      %v6394 = vmul.f32 %v6362, %v2078
      %v6395 = vmul.f32 %v6363, %v2083
      %v6396 = vmul.f32 %v6364, %v2088
      %v6397 = vmul.f32 %v6365, %v2093
      %v6398 = vmul.f32 %v6366, %v2098
      %v6399 = vmul.f32 %v6367, %v2103
      %v6400 = vmul.f32 %v6368, %v2108
      %v6401 = vmul.f32 %v6369, %v2113
      %v6402 = vmul.f32 %v6370, %v2118
      %v6403 = vmul.f32 %v6371, %v2123
      %v6404 = vmul.f32 %v6372, %v2128
      %v6405 = vmul.f32 %v6373, %v2133
      %v6406 = vmul.f32 %v6374, %v2138
      %v6407 = vmul.f32 %v6375, %v2143
      %v6408 = vmul.f32 %v6376, %v2148
      %v6409 = vmul.f32 %v6377, %v2153
      %v6410 = vmul.f32 %v6378, %v2158
      %v6411 = vmul.f32 %v6379, %v2163
      %v6412 = vmul.f32 %v6380, %v2168
      %v6413 = vmul.f32 %v6381, %v2173
      %v6414 = vmul.f32 %v6382, %v2178
      %v6415 = vmul.f32 %v6383, %v2183
      %v6416 = vmul.f32 %v6384, %v2188
      %v6417 = vmul.f32 %v6385, %v2193
      %v6418 = vmul.f32 %v6386, %v2198
      %v6419 = vmul.f32 %v6387, %v2203
      %v6420 = vmul.f32 %v6388, %v2208
      %v6421 = vmul.f32 %v6389, %v2213
      %v6422 = vmul.f32 %v6390, %v2218
      %v6423 = vmul.f32 %v6391, %v2223
      %v6424 = vld [vmem:[%s2257] sm:$0xf]
      %v6426 = vsel %vm306, %v6392, 0
      %v6429 = vsel %vm306, %v6393, 0
      %v6432 = vsel %vm306, %v6394, 0
      %v6435 = vsel %vm306, %v6395, 0
      %v6438 = vsel %vm306, %v6396, 0
      %v6441 = vsel %vm306, %v6397, 0
      %v6444 = vsel %vm306, %v6398, 0
      %v6447 = vsel %vm306, %v6399, 0
      %v6450 = vsel %vm306, %v6400, 0
      %v6453 = vsel %vm306, %v6401, 0
      %v6456 = vsel %vm306, %v6402, 0
      %v6459 = vsel %vm306, %v6403, 0
      %v6462 = vsel %vm306, %v6404, 0
      %v6465 = vsel %vm306, %v6405, 0
      %v6468 = vsel %vm306, %v6406, 0
      %v6471 = vsel %vm306, %v6407, 0
      %v6474 = vsel %vm306, %v6408, 0
      %v6477 = vsel %vm306, %v6409, 0
      %v6480 = vsel %vm306, %v6410, 0
      %v6483 = vsel %vm306, %v6411, 0
      %v6486 = vsel %vm306, %v6412, 0
      %v6489 = vsel %vm306, %v6413, 0
      %v6492 = vsel %vm306, %v6414, 0
      %v6495 = vsel %vm306, %v6415, 0
      %v6498 = vsel %vm306, %v6416, 0
      %v6501 = vsel %vm306, %v6417, 0
      %v6504 = vsel %vm306, %v6418, 0
      %v6507 = vsel %vm306, %v6419, 0
      %v6510 = vsel %vm306, %v6420, 0
      %v6513 = vsel %vm306, %v6421, 0
      %v6516 = vsel %vm306, %v6422, 0
      %v6519 = vsel %vm306, %v6423, 0
      %v6522 = vsel %vm1480, %v6424, 0
      %6524 = vmatprep.subr.mxu0 0.0
      %6525 = vmatpush1.msra.mxu0 %v6522
      %6526 = vmatprep.subr.mxu0 0.0
      %6527 = vmatpush1.msra.mxu0 0.0
      %6528 = vmatprep.subr.mxu0 0.0
      %6529 = vmatpush1.msra.mxu0 0.0
      %6530 = vmatprep.subr.mxu0 0.0
      %6531 = vmatpush1.msra.mxu0 0.0
      %6532 = vmatprep.subr.mxu0 0.0
      %6533 = vmatpush1.msra.mxu0 0.0
      %6534 = vmatprep.subr.mxu0 0.0
      %6535 = vmatpush1.msra.mxu0 0.0
      %6536 = vmatprep.subr.mxu0 0.0
      %6537 = vmatpush1.msra.mxu0 0.0
      %6538 = vmatprep.subr.mxu0 0.0
      %6539 = vmatpush1.msra.mxu0 0.0
      %6540 = vmatprep.subr.mxu0 0.0
      %6541 = vmatpush1.msra.mxu0 0.0
      %6542 = vmatprep.subr.mxu0 0.0
      %6543 = vmatpush1.msra.mxu0 0.0
      %6544 = vmatprep.subr.mxu0 0.0
      %6545 = vmatpush1.msra.mxu0 0.0
      %6546 = vmatprep.subr.mxu0 0.0
      %6547 = vmatpush1.msra.mxu0 0.0
      %6548 = vmatprep.subr.mxu0 0.0
      %6549 = vmatpush1.msra.mxu0 0.0
      %6550 = vmatprep.subr.mxu0 0.0
      %6551 = vmatpush1.msra.mxu0 0.0
      %6552 = vmatprep.subr.mxu0 0.0
      %6553 = vmatpush1.msra.mxu0 0.0
      %6554 = vmatprep.subr.mxu0 0.0
      %6555 = vmatpush1.msra.mxu0 0.0
      %6556 = vmatprep.subr.mxu0 0.0
      %6557 = vmatpush1.msra.mxu0 0.0
      %6558 = vmatprep.subr.mxu0 0.0
      %6559 = vmatpush1.msra.mxu0 0.0
      %6560 = vmatprep.subr.mxu0 0.0
      %6561 = vmatpush1.msra.mxu0 0.0
      %6562 = vmatprep.subr.mxu0 0.0
      %6563 = vmatpush1.msra.mxu0 0.0
      %6564 = vmatprep.subr.mxu0 0.0
      %6565 = vmatpush1.msra.mxu0 0.0
      %6566 = vmatprep.subr.mxu0 0.0
      %6567 = vmatpush1.msra.mxu0 0.0
      %6568 = vmatprep.subr.mxu0 0.0
      %6569 = vmatpush1.msra.mxu0 0.0
      %6570 = vmatprep.subr.mxu0 0.0
      %6571 = vmatpush1.msra.mxu0 0.0
      %6572 = vmatprep.subr.mxu0 0.0
      %6573 = vmatpush1.msra.mxu0 0.0
      %6574 = vmatprep.subr.mxu0 0.0
      %6575 = vmatpush1.msra.mxu0 0.0
      %6576 = vmatprep.subr.mxu0 0.0
      %6577 = vmatpush1.msra.mxu0 0.0
      %6578 = vmatprep.subr.mxu0 0.0
      %6579 = vmatpush1.msra.mxu0 0.0
      %6580 = vmatprep.subr.mxu0 0.0
      %6581 = vmatpush1.msra.mxu0 0.0
      %6582 = vmatprep.subr.mxu0 0.0
      %6583 = vmatpush1.msra.mxu0 0.0
      %6584 = vmatprep.subr.mxu0 0.0
      %6585 = vmatpush1.msra.mxu0 0.0
      %6586 = vmatprep.subr.mxu0 0.0
      %6587 = vmatpush1.msra.mxu0 0.0
      %6588 = vmatprep.mubr.f32.mxu0 0.0
      %6589 = vmatmul.mubr.f32.gmra.mrb[0].mxu0 %v6426
      %v6590 = vpop.f32.mrb[0].mxu0
      %v6591 = vadd.f32 0.0, %v6590
      %v6592 = vpop.f32.mrb[0].mxu0
      %6593 = vmatprep.mubr.f32.mxu0 0.0
      %6594 = vmatmul.mubr.f32.gmra.mrb[0].mxu0 %v6429
      %v6595 = vpop.f32.mrb[0].mxu0
      %v6596 = vadd.f32 0.0, %v6595
      %v6597 = vpop.f32.mrb[0].mxu0
      %6598 = vmatprep.mubr.f32.mxu0 0.0
      %6599 = vmatmul.mubr.f32.gmra.mrb[0].mxu0 %v6432
      %v6600 = vpop.f32.mrb[0].mxu0
      %v6601 = vadd.f32 0.0, %v6600
      %v6602 = vpop.f32.mrb[0].mxu0
      %6603 = vmatprep.mubr.f32.mxu0 0.0
      %6604 = vmatmul.mubr.f32.gmra.mrb[0].mxu0 %v6435
      %v6605 = vpop.f32.mrb[0].mxu0
      %v6606 = vadd.f32 0.0, %v6605
      %v6607 = vpop.f32.mrb[0].mxu0
      %6608 = vmatprep.mubr.f32.mxu0 0.0
      %6609 = vmatmul.mubr.f32.gmra.mrb[0].mxu0 %v6438
      %v6610 = vpop.f32.mrb[0].mxu0
      %v6611 = vadd.f32 0.0, %v6610
      %v6612 = vpop.f32.mrb[0].mxu0
      %6613 = vmatprep.mubr.f32.mxu0 0.0
      %6614 = vmatmul.mubr.f32.gmra.mrb[0].mxu0 %v6441
      %v6615 = vpop.f32.mrb[0].mxu0
      %v6616 = vadd.f32 0.0, %v6615
      %v6617 = vpop.f32.mrb[0].mxu0
      %6618 = vmatprep.mubr.f32.mxu0 0.0
      %6619 = vmatmul.mubr.f32.gmra.mrb[0].mxu0 %v6444
      %v6620 = vpop.f32.mrb[0].mxu0
      %v6621 = vadd.f32 0.0, %v6620
      %v6622 = vpop.f32.mrb[0].mxu0
      %6623 = vmatprep.mubr.f32.mxu0 0.0
      %6624 = vmatmul.mubr.f32.gmra.mrb[0].mxu0 %v6447
      %v6625 = vpop.f32.mrb[0].mxu0
      %v6626 = vadd.f32 0.0, %v6625
      %v6627 = vpop.f32.mrb[0].mxu0
      %6628 = vmatprep.mubr.f32.mxu0 0.0
      %6629 = vmatmul.mubr.f32.gmra.mrb[0].mxu0 %v6450
      %v6630 = vpop.f32.mrb[0].mxu0
      %v6631 = vadd.f32 0.0, %v6630
      %v6632 = vpop.f32.mrb[0].mxu0
      %6633 = vmatprep.mubr.f32.mxu0 0.0
      %6634 = vmatmul.mubr.f32.gmra.mrb[0].mxu0 %v6453
      %v6635 = vpop.f32.mrb[0].mxu0
      %v6636 = vadd.f32 0.0, %v6635
      %v6637 = vpop.f32.mrb[0].mxu0
      %6638 = vmatprep.mubr.f32.mxu0 0.0
      %6639 = vmatmul.mubr.f32.gmra.mrb[0].mxu0 %v6456
      %v6640 = vpop.f32.mrb[0].mxu0
      %v6641 = vadd.f32 0.0, %v6640
      %v6642 = vpop.f32.mrb[0].mxu0
      %6643 = vmatprep.mubr.f32.mxu0 0.0
      %6644 = vmatmul.mubr.f32.gmra.mrb[0].mxu0 %v6459
      %v6645 = vpop.f32.mrb[0].mxu0
      %v6646 = vadd.f32 0.0, %v6645
      %v6647 = vpop.f32.mrb[0].mxu0
      %6648 = vmatprep.mubr.f32.mxu0 0.0
      %6649 = vmatmul.mubr.f32.gmra.mrb[0].mxu0 %v6462
      %v6650 = vpop.f32.mrb[0].mxu0
      %v6651 = vadd.f32 0.0, %v6650
      %v6652 = vpop.f32.mrb[0].mxu0
      %6653 = vmatprep.mubr.f32.mxu0 0.0
      %6654 = vmatmul.mubr.f32.gmra.mrb[0].mxu0 %v6465
      %v6655 = vpop.f32.mrb[0].mxu0
      %v6656 = vadd.f32 0.0, %v6655
      %v6657 = vpop.f32.mrb[0].mxu0
      %6658 = vmatprep.mubr.f32.mxu0 0.0
      %6659 = vmatmul.mubr.f32.gmra.mrb[0].mxu0 %v6468
      %v6660 = vpop.f32.mrb[0].mxu0
      %v6661 = vadd.f32 0.0, %v6660
      %v6662 = vpop.f32.mrb[0].mxu0
      %6663 = vmatprep.mubr.f32.mxu0 0.0
      %6664 = vmatmul.mubr.f32.gmra.mrb[0].mxu0 %v6471
      %v6665 = vpop.f32.mrb[0].mxu0
      %v6666 = vadd.f32 0.0, %v6665
      %v6667 = vpop.f32.mrb[0].mxu0
      %6668 = vmatprep.mubr.f32.mxu0 0.0
      %6669 = vmatmul.mubr.f32.gmra.mrb[0].mxu0 %v6474
      %v6670 = vpop.f32.mrb[0].mxu0
      %v6671 = vadd.f32 0.0, %v6670
      %v6672 = vpop.f32.mrb[0].mxu0
      %6673 = vmatprep.mubr.f32.mxu0 0.0
      %6674 = vmatmul.mubr.f32.gmra.mrb[0].mxu0 %v6477
      %v6675 = vpop.f32.mrb[0].mxu0
      %v6676 = vadd.f32 0.0, %v6675
      %v6677 = vpop.f32.mrb[0].mxu0
      %6678 = vmatprep.mubr.f32.mxu0 0.0
      %6679 = vmatmul.mubr.f32.gmra.mrb[0].mxu0 %v6480
      %v6680 = vpop.f32.mrb[0].mxu0
      %v6681 = vadd.f32 0.0, %v6680
      %v6682 = vpop.f32.mrb[0].mxu0
      %6683 = vmatprep.mubr.f32.mxu0 0.0
      %6684 = vmatmul.mubr.f32.gmra.mrb[0].mxu0 %v6483
      %v6685 = vpop.f32.mrb[0].mxu0
      %v6686 = vadd.f32 0.0, %v6685
      %v6687 = vpop.f32.mrb[0].mxu0
      %6688 = vmatprep.mubr.f32.mxu0 0.0
      %6689 = vmatmul.mubr.f32.gmra.mrb[0].mxu0 %v6486
      %v6690 = vpop.f32.mrb[0].mxu0
      %v6691 = vadd.f32 0.0, %v6690
      %v6692 = vpop.f32.mrb[0].mxu0
      %6693 = vmatprep.mubr.f32.mxu0 0.0
      %6694 = vmatmul.mubr.f32.gmra.mrb[0].mxu0 %v6489
      %v6695 = vpop.f32.mrb[0].mxu0
      %v6696 = vadd.f32 0.0, %v6695
      %v6697 = vpop.f32.mrb[0].mxu0
      %6698 = vmatprep.mubr.f32.mxu0 0.0
      %6699 = vmatmul.mubr.f32.gmra.mrb[0].mxu0 %v6492
      %v6700 = vpop.f32.mrb[0].mxu0
      %v6701 = vadd.f32 0.0, %v6700
      %v6702 = vpop.f32.mrb[0].mxu0
      %6703 = vmatprep.mubr.f32.mxu0 0.0
      %6704 = vmatmul.mubr.f32.gmra.mrb[0].mxu0 %v6495
      %v6705 = vpop.f32.mrb[0].mxu0
      %v6706 = vadd.f32 0.0, %v6705
      %v6707 = vpop.f32.mrb[0].mxu0
      %6708 = vmatprep.mubr.f32.mxu0 0.0
      %6709 = vmatmul.mubr.f32.gmra.mrb[0].mxu0 %v6498
      %v6710 = vpop.f32.mrb[0].mxu0
      %v6711 = vadd.f32 0.0, %v6710
      %v6712 = vpop.f32.mrb[0].mxu0
      %6713 = vmatprep.mubr.f32.mxu0 0.0
      %6714 = vmatmul.mubr.f32.gmra.mrb[0].mxu0 %v6501
      %v6715 = vpop.f32.mrb[0].mxu0
      %v6716 = vadd.f32 0.0, %v6715
      %v6717 = vpop.f32.mrb[0].mxu0
      %6718 = vmatprep.mubr.f32.mxu0 0.0
      %6719 = vmatmul.mubr.f32.gmra.mrb[0].mxu0 %v6504
      %v6720 = vpop.f32.mrb[0].mxu0
      %v6721 = vadd.f32 0.0, %v6720
      %v6722 = vpop.f32.mrb[0].mxu0
      %6723 = vmatprep.mubr.f32.mxu0 0.0
      %6724 = vmatmul.mubr.f32.gmra.mrb[0].mxu0 %v6507
      %v6725 = vpop.f32.mrb[0].mxu0
      %v6726 = vadd.f32 0.0, %v6725
      %v6727 = vpop.f32.mrb[0].mxu0
      %6728 = vmatprep.mubr.f32.mxu0 0.0
      %6729 = vmatmul.mubr.f32.gmra.mrb[0].mxu0 %v6510
      %v6730 = vpop.f32.mrb[0].mxu0
      %v6731 = vadd.f32 0.0, %v6730
      %v6732 = vpop.f32.mrb[0].mxu0
      %6733 = vmatprep.mubr.f32.mxu0 0.0
      %6734 = vmatmul.mubr.f32.gmra.mrb[0].mxu0 %v6513
      %v6735 = vpop.f32.mrb[0].mxu0
      %v6736 = vadd.f32 0.0, %v6735
      %v6737 = vpop.f32.mrb[0].mxu0
      %6738 = vmatprep.mubr.f32.mxu0 0.0
      %6739 = vmatmul.mubr.f32.gmra.mrb[0].mxu0 %v6516
      %v6740 = vpop.f32.mrb[0].mxu0
      %v6741 = vadd.f32 0.0, %v6740
      %v6742 = vpop.f32.mrb[0].mxu0
      %6743 = vmatprep.mubr.f32.mxu0 0.0
      %6744 = vmatmul.mubr.f32.gmra.mrb[0].mxu0 %v6519
      %v6745 = vpop.f32.mrb[0].mxu0
      %v6746 = vadd.f32 0.0, %v6745
      %v6747 = vpop.f32.mrb[0].mxu0
      %6748 = vdwg.mxu0
      %v6749 = vadd.f32 %v6202, %v6591
      %v6750 = vadd.f32 %v6207, %v6596
      %v6751 = vadd.f32 %v6212, %v6601
      %v6752 = vadd.f32 %v6217, %v6606
      %v6753 = vadd.f32 %v6222, %v6611
      %v6754 = vadd.f32 %v6227, %v6616
      %v6755 = vadd.f32 %v6232, %v6621
      %v6756 = vadd.f32 %v6237, %v6626
      %v6757 = vadd.f32 %v6242, %v6631
      %v6758 = vadd.f32 %v6247, %v6636
      %v6759 = vadd.f32 %v6252, %v6641
      %v6760 = vadd.f32 %v6257, %v6646
      %v6761 = vadd.f32 %v6262, %v6651
      %v6762 = vadd.f32 %v6267, %v6656
      %v6763 = vadd.f32 %v6272, %v6661
      %v6764 = vadd.f32 %v6277, %v6666
      %v6765 = vadd.f32 %v6282, %v6671
      %v6766 = vadd.f32 %v6287, %v6676
      %v6767 = vadd.f32 %v6292, %v6681
      %v6768 = vadd.f32 %v6297, %v6686
      %v6769 = vadd.f32 %v6302, %v6691
      %v6770 = vadd.f32 %v6307, %v6696
      %v6771 = vadd.f32 %v6312, %v6701
      %v6772 = vadd.f32 %v6317, %v6706
      %v6773 = vadd.f32 %v6322, %v6711
      %v6774 = vadd.f32 %v6327, %v6716
      %v6775 = vadd.f32 %v6332, %v6721
      %v6776 = vadd.f32 %v6337, %v6726
      %v6777 = vadd.f32 %v6342, %v6731
      %v6778 = vadd.f32 %v6347, %v6736
      %v6779 = vadd.f32 %v6352, %v6741
      %v6780 = vadd.f32 %v6357, %v6746
      %v6781 = vld [vmem:[#allocation2 + $0x17] sm:$0xff]
      %v6782 = vld [vmem:[#allocation2 + $0x1f] sm:$0xff]
      %v6783 = vld [vmem:[#allocation2 + $0x27] sm:$0xff]
      %v6784 = vld [vmem:[#allocation2 + $0x2f] sm:$0xff]
      %v6785 = vld [vmem:[#allocation2 + $0x37] sm:$0xff]
      %v6786 = vld [vmem:[#allocation2 + $0x3f] sm:$0xff]
      %v6787 = vld [vmem:[#allocation2 + $0x47] sm:$0xff]
      %v6788 = vld [vmem:[#allocation2 + $0x4f] sm:$0xff]
      %v6789 = vld [vmem:[#allocation2 + $0x57] sm:$0xff]
      %v6790 = vld [vmem:[#allocation2 + $0x5f] sm:$0xff]
      %v6791 = vld [vmem:[#allocation2 + $0x67] sm:$0xff]
      %v6792 = vld [vmem:[#allocation2 + $0x6f] sm:$0xff]
      %v6793 = vld [vmem:[#allocation2 + $0x77] sm:$0xff]
      %v6794 = vld [vmem:[#allocation2 + $0x7f] sm:$0xff]
      %v6795 = vld [vmem:[#allocation2 + $0x87] sm:$0xff]
      %v6796 = vld [vmem:[#allocation2 + $0x8f] sm:$0xff]
      %v6797 = vld [vmem:[#allocation2 + $0x97] sm:$0xff]
      %v6798 = vld [vmem:[#allocation2 + $0x9f] sm:$0xff]
      %v6799 = vld [vmem:[#allocation2 + $0xa7] sm:$0xff]
      %v6800 = vld [vmem:[#allocation2 + $0xaf] sm:$0xff]
      %v6801 = vld [vmem:[#allocation2 + $0xb7] sm:$0xff]
      %v6802 = vld [vmem:[#allocation2 + $0xbf] sm:$0xff]
      %v6803 = vld [vmem:[#allocation2 + $0xc7] sm:$0xff]
      %v6804 = vld [vmem:[#allocation2 + $0xcf] sm:$0xff]
      %v6805 = vld [vmem:[#allocation2 + $0xd7] sm:$0xff]
      %v6806 = vld [vmem:[#allocation2 + $0xdf] sm:$0xff]
      %v6807 = vld [vmem:[#allocation2 + $0xe7] sm:$0xff]
      %v6808 = vld [vmem:[#allocation2 + $0xef] sm:$0xff]
      %v6809 = vld [vmem:[#allocation2 + $0xf7] sm:$0xff]
      %v6810 = vld [vmem:[#allocation2 + $0xff] sm:$0xff]
      %v6811 = vld [vmem:[#allocation2 + $0x107] sm:$0xff]
      %v6812 = vld [vmem:[#allocation2 + $0x10f] sm:$0xff]
      %v6813 = vmul.f32 %v6781, %v1160
      %v6814 = vmul.f32 %v6782, %v1165
      %v6815 = vmul.f32 %v6783, %v1170
      %v6816 = vmul.f32 %v6784, %v1175
      %v6817 = vmul.f32 %v6785, %v1180
      %v6818 = vmul.f32 %v6786, %v1185
      %v6819 = vmul.f32 %v6787, %v1190
      %v6820 = vmul.f32 %v6788, %v1195
      %v6821 = vmul.f32 %v6789, %v1200
      %v6822 = vmul.f32 %v6790, %v1205
      %v6823 = vmul.f32 %v6791, %v1210
      %v6824 = vmul.f32 %v6792, %v1215
      %v6825 = vmul.f32 %v6793, %v1220
      %v6826 = vmul.f32 %v6794, %v1225
      %v6827 = vmul.f32 %v6795, %v1230
      %v6828 = vmul.f32 %v6796, %v1235
      %v6829 = vmul.f32 %v6797, %v1240
      %v6830 = vmul.f32 %v6798, %v1245
      %v6831 = vmul.f32 %v6799, %v1250
      %v6832 = vmul.f32 %v6800, %v1255
      %v6833 = vmul.f32 %v6801, %v1260
      %v6834 = vmul.f32 %v6802, %v1265
      %v6835 = vmul.f32 %v6803, %v1270
      %v6836 = vmul.f32 %v6804, %v1275
      %v6837 = vmul.f32 %v6805, %v1280
      %v6838 = vmul.f32 %v6806, %v1285
      %v6839 = vmul.f32 %v6807, %v1290
      %v6840 = vmul.f32 %v6808, %v1295
      %v6841 = vmul.f32 %v6809, %v1300
      %v6842 = vmul.f32 %v6810, %v1305
      %v6843 = vmul.f32 %v6811, %v1310
      %v6844 = vmul.f32 %v6812, %v1315
      %v6845 = vld [vmem:[%s2679] sm:$0xf]
      %v6847 = vsel %vm306, %v6813, 0
      %v6850 = vsel %vm306, %v6814, 0
      %v6853 = vsel %vm306, %v6815, 0
      %v6856 = vsel %vm306, %v6816, 0
      %v6859 = vsel %vm306, %v6817, 0
      %v6862 = vsel %vm306, %v6818, 0
      %v6865 = vsel %vm306, %v6819, 0
      %v6868 = vsel %vm306, %v6820, 0
      %v6871 = vsel %vm306, %v6821, 0
      %v6874 = vsel %vm306, %v6822, 0
      %v6877 = vsel %vm306, %v6823, 0
      %v6880 = vsel %vm306, %v6824, 0
      %v6883 = vsel %vm306, %v6825, 0
      %v6886 = vsel %vm306, %v6826, 0
      %v6889 = vsel %vm306, %v6827, 0
      %v6892 = vsel %vm306, %v6828, 0
      %v6895 = vsel %vm306, %v6829, 0
      %v6898 = vsel %vm306, %v6830, 0
      %v6901 = vsel %vm306, %v6831, 0
      %v6904 = vsel %vm306, %v6832, 0
      %v6907 = vsel %vm306, %v6833, 0
      %v6910 = vsel %vm306, %v6834, 0
      %v6913 = vsel %vm306, %v6835, 0
      %v6916 = vsel %vm306, %v6836, 0
      %v6919 = vsel %vm306, %v6837, 0
      %v6922 = vsel %vm306, %v6838, 0
      %v6925 = vsel %vm306, %v6839, 0
      %v6928 = vsel %vm306, %v6840, 0
      %v6931 = vsel %vm306, %v6841, 0
      %v6934 = vsel %vm306, %v6842, 0
      %v6937 = vsel %vm306, %v6843, 0
      %v6940 = vsel %vm306, %v6844, 0
      %v6943 = vsel %vm1480, %v6845, 0
      %6945 = vmatprep.subr.mxu0 0.0
      %6946 = vmatpush1.msra.mxu0 %v6943
      %6947 = vmatprep.subr.mxu0 0.0
      %6948 = vmatpush1.msra.mxu0 0.0
      %6949 = vmatprep.subr.mxu0 0.0
      %6950 = vmatpush1.msra.mxu0 0.0
      %6951 = vmatprep.subr.mxu0 0.0
      %6952 = vmatpush1.msra.mxu0 0.0
      %6953 = vmatprep.subr.mxu0 0.0
      %6954 = vmatpush1.msra.mxu0 0.0
      %6955 = vmatprep.subr.mxu0 0.0
      %6956 = vmatpush1.msra.mxu0 0.0
      %6957 = vmatprep.subr.mxu0 0.0
      %6958 = vmatpush1.msra.mxu0 0.0
      %6959 = vmatprep.subr.mxu0 0.0
      %6960 = vmatpush1.msra.mxu0 0.0
      %6961 = vmatprep.subr.mxu0 0.0
      %6962 = vmatpush1.msra.mxu0 0.0
      %6963 = vmatprep.subr.mxu0 0.0
      %6964 = vmatpush1.msra.mxu0 0.0
      %6965 = vmatprep.subr.mxu0 0.0
      %6966 = vmatpush1.msra.mxu0 0.0
      %6967 = vmatprep.subr.mxu0 0.0
      %6968 = vmatpush1.msra.mxu0 0.0
      %6969 = vmatprep.subr.mxu0 0.0
      %6970 = vmatpush1.msra.mxu0 0.0
      %6971 = vmatprep.subr.mxu0 0.0
      %6972 = vmatpush1.msra.mxu0 0.0
      %6973 = vmatprep.subr.mxu0 0.0
      %6974 = vmatpush1.msra.mxu0 0.0
      %6975 = vmatprep.subr.mxu0 0.0
      %6976 = vmatpush1.msra.mxu0 0.0
      %6977 = vmatprep.subr.mxu0 0.0
      %6978 = vmatpush1.msra.mxu0 0.0
      %6979 = vmatprep.subr.mxu0 0.0
      %6980 = vmatpush1.msra.mxu0 0.0
      %6981 = vmatprep.subr.mxu0 0.0
      %6982 = vmatpush1.msra.mxu0 0.0
      %6983 = vmatprep.subr.mxu0 0.0
      %6984 = vmatpush1.msra.mxu0 0.0
      %6985 = vmatprep.subr.mxu0 0.0
      %6986 = vmatpush1.msra.mxu0 0.0
      %6987 = vmatprep.subr.mxu0 0.0
      %6988 = vmatpush1.msra.mxu0 0.0
      %6989 = vmatprep.subr.mxu0 0.0
      %6990 = vmatpush1.msra.mxu0 0.0
      %6991 = vmatprep.subr.mxu0 0.0
      %6992 = vmatpush1.msra.mxu0 0.0
      %6993 = vmatprep.subr.mxu0 0.0
      %6994 = vmatpush1.msra.mxu0 0.0
      %6995 = vmatprep.subr.mxu0 0.0
      %6996 = vmatpush1.msra.mxu0 0.0
      %6997 = vmatprep.subr.mxu0 0.0
      %6998 = vmatpush1.msra.mxu0 0.0
      %6999 = vmatprep.subr.mxu0 0.0
      %7000 = vmatpush1.msra.mxu0 0.0
      %7001 = vmatprep.subr.mxu0 0.0
      %7002 = vmatpush1.msra.mxu0 0.0
      %7003 = vmatprep.subr.mxu0 0.0
      %7004 = vmatpush1.msra.mxu0 0.0
      %7005 = vmatprep.subr.mxu0 0.0
      %7006 = vmatpush1.msra.mxu0 0.0
      %7007 = vmatprep.subr.mxu0 0.0
      %7008 = vmatpush1.msra.mxu0 0.0
      %7009 = vmatprep.mubr.f32.mxu0 0.0
      %7010 = vmatmul.mubr.f32.gmra.mrb[0].mxu0 %v6847
      %v7011 = vpop.f32.mrb[0].mxu0
      %v7012 = vadd.f32 0.0, %v7011
      %v7013 = vpop.f32.mrb[0].mxu0
      %7014 = vmatprep.mubr.f32.mxu0 0.0
      %7015 = vmatmul.mubr.f32.gmra.mrb[0].mxu0 %v6850
      %v7016 = vpop.f32.mrb[0].mxu0
      %v7017 = vadd.f32 0.0, %v7016
      %v7018 = vpop.f32.mrb[0].mxu0
      %7019 = vmatprep.mubr.f32.mxu0 0.0
      %7020 = vmatmul.mubr.f32.gmra.mrb[0].mxu0 %v6853
      %v7021 = vpop.f32.mrb[0].mxu0
      %v7022 = vadd.f32 0.0, %v7021
      %v7023 = vpop.f32.mrb[0].mxu0
      %7024 = vmatprep.mubr.f32.mxu0 0.0
      %7025 = vmatmul.mubr.f32.gmra.mrb[0].mxu0 %v6856
      %v7026 = vpop.f32.mrb[0].mxu0
      %v7027 = vadd.f32 0.0, %v7026
      %v7028 = vpop.f32.mrb[0].mxu0
      %7029 = vmatprep.mubr.f32.mxu0 0.0
      %7030 = vmatmul.mubr.f32.gmra.mrb[0].mxu0 %v6859
      %v7031 = vpop.f32.mrb[0].mxu0
      %v7032 = vadd.f32 0.0, %v7031
      %v7033 = vpop.f32.mrb[0].mxu0
      %7034 = vmatprep.mubr.f32.mxu0 0.0
      %7035 = vmatmul.mubr.f32.gmra.mrb[0].mxu0 %v6862
      %v7036 = vpop.f32.mrb[0].mxu0
      %v7037 = vadd.f32 0.0, %v7036
      %v7038 = vpop.f32.mrb[0].mxu0
      %7039 = vmatprep.mubr.f32.mxu0 0.0
      %7040 = vmatmul.mubr.f32.gmra.mrb[0].mxu0 %v6865
      %v7041 = vpop.f32.mrb[0].mxu0
      %v7042 = vadd.f32 0.0, %v7041
      %v7043 = vpop.f32.mrb[0].mxu0
      %7044 = vmatprep.mubr.f32.mxu0 0.0
      %7045 = vmatmul.mubr.f32.gmra.mrb[0].mxu0 %v6868
      %v7046 = vpop.f32.mrb[0].mxu0
      %v7047 = vadd.f32 0.0, %v7046
      %v7048 = vpop.f32.mrb[0].mxu0
      %7049 = vmatprep.mubr.f32.mxu0 0.0
      %7050 = vmatmul.mubr.f32.gmra.mrb[0].mxu0 %v6871
      %v7051 = vpop.f32.mrb[0].mxu0
      %v7052 = vadd.f32 0.0, %v7051
      %v7053 = vpop.f32.mrb[0].mxu0
      %7054 = vmatprep.mubr.f32.mxu0 0.0
      %7055 = vmatmul.mubr.f32.gmra.mrb[0].mxu0 %v6874
      %v7056 = vpop.f32.mrb[0].mxu0
      %v7057 = vadd.f32 0.0, %v7056
      %v7058 = vpop.f32.mrb[0].mxu0
      %7059 = vmatprep.mubr.f32.mxu0 0.0
      %7060 = vmatmul.mubr.f32.gmra.mrb[0].mxu0 %v6877
      %v7061 = vpop.f32.mrb[0].mxu0
      %v7062 = vadd.f32 0.0, %v7061
      %v7063 = vpop.f32.mrb[0].mxu0
      %7064 = vmatprep.mubr.f32.mxu0 0.0
      %7065 = vmatmul.mubr.f32.gmra.mrb[0].mxu0 %v6880
      %v7066 = vpop.f32.mrb[0].mxu0
      %v7067 = vadd.f32 0.0, %v7066
      %v7068 = vpop.f32.mrb[0].mxu0
      %7069 = vmatprep.mubr.f32.mxu0 0.0
      %7070 = vmatmul.mubr.f32.gmra.mrb[0].mxu0 %v6883
      %v7071 = vpop.f32.mrb[0].mxu0
      %v7072 = vadd.f32 0.0, %v7071
      %v7073 = vpop.f32.mrb[0].mxu0
      %7074 = vmatprep.mubr.f32.mxu0 0.0
      %7075 = vmatmul.mubr.f32.gmra.mrb[0].mxu0 %v6886
      %v7076 = vpop.f32.mrb[0].mxu0
      %v7077 = vadd.f32 0.0, %v7076
      %v7078 = vpop.f32.mrb[0].mxu0
      %7079 = vmatprep.mubr.f32.mxu0 0.0
      %7080 = vmatmul.mubr.f32.gmra.mrb[0].mxu0 %v6889
      %v7081 = vpop.f32.mrb[0].mxu0
      %v7082 = vadd.f32 0.0, %v7081
      %v7083 = vpop.f32.mrb[0].mxu0
      %7084 = vmatprep.mubr.f32.mxu0 0.0
      %7085 = vmatmul.mubr.f32.gmra.mrb[0].mxu0 %v6892
      %v7086 = vpop.f32.mrb[0].mxu0
      %v7087 = vadd.f32 0.0, %v7086
      %v7088 = vpop.f32.mrb[0].mxu0
      %7089 = vmatprep.mubr.f32.mxu0 0.0
      %7090 = vmatmul.mubr.f32.gmra.mrb[0].mxu0 %v6895
      %v7091 = vpop.f32.mrb[0].mxu0
      %v7092 = vadd.f32 0.0, %v7091
      %v7093 = vpop.f32.mrb[0].mxu0
      %7094 = vmatprep.mubr.f32.mxu0 0.0
      %7095 = vmatmul.mubr.f32.gmra.mrb[0].mxu0 %v6898
      %v7096 = vpop.f32.mrb[0].mxu0
      %v7097 = vadd.f32 0.0, %v7096
      %v7098 = vpop.f32.mrb[0].mxu0
      %7099 = vmatprep.mubr.f32.mxu0 0.0
      %7100 = vmatmul.mubr.f32.gmra.mrb[0].mxu0 %v6901
      %v7101 = vpop.f32.mrb[0].mxu0
      %v7102 = vadd.f32 0.0, %v7101
      %v7103 = vpop.f32.mrb[0].mxu0
      %7104 = vmatprep.mubr.f32.mxu0 0.0
      %7105 = vmatmul.mubr.f32.gmra.mrb[0].mxu0 %v6904
      %v7106 = vpop.f32.mrb[0].mxu0
      %v7107 = vadd.f32 0.0, %v7106
      %v7108 = vpop.f32.mrb[0].mxu0
      %7109 = vmatprep.mubr.f32.mxu0 0.0
      %7110 = vmatmul.mubr.f32.gmra.mrb[0].mxu0 %v6907
      %v7111 = vpop.f32.mrb[0].mxu0
      %v7112 = vadd.f32 0.0, %v7111
      %v7113 = vpop.f32.mrb[0].mxu0
      %7114 = vmatprep.mubr.f32.mxu0 0.0
      %7115 = vmatmul.mubr.f32.gmra.mrb[0].mxu0 %v6910
      %v7116 = vpop.f32.mrb[0].mxu0
      %v7117 = vadd.f32 0.0, %v7116
      %v7118 = vpop.f32.mrb[0].mxu0
      %7119 = vmatprep.mubr.f32.mxu0 0.0
      %7120 = vmatmul.mubr.f32.gmra.mrb[0].mxu0 %v6913
      %v7121 = vpop.f32.mrb[0].mxu0
      %v7122 = vadd.f32 0.0, %v7121
      %v7123 = vpop.f32.mrb[0].mxu0
      %7124 = vmatprep.mubr.f32.mxu0 0.0
      %7125 = vmatmul.mubr.f32.gmra.mrb[0].mxu0 %v6916
      %v7126 = vpop.f32.mrb[0].mxu0
      %v7127 = vadd.f32 0.0, %v7126
      %v7128 = vpop.f32.mrb[0].mxu0
      %7129 = vmatprep.mubr.f32.mxu0 0.0
      %7130 = vmatmul.mubr.f32.gmra.mrb[0].mxu0 %v6919
      %v7131 = vpop.f32.mrb[0].mxu0
      %v7132 = vadd.f32 0.0, %v7131
      %v7133 = vpop.f32.mrb[0].mxu0
      %7134 = vmatprep.mubr.f32.mxu0 0.0
      %7135 = vmatmul.mubr.f32.gmra.mrb[0].mxu0 %v6922
      %v7136 = vpop.f32.mrb[0].mxu0
      %v7137 = vadd.f32 0.0, %v7136
      %v7138 = vpop.f32.mrb[0].mxu0
      %7139 = vmatprep.mubr.f32.mxu0 0.0
      %7140 = vmatmul.mubr.f32.gmra.mrb[0].mxu0 %v6925
      %v7141 = vpop.f32.mrb[0].mxu0
      %v7142 = vadd.f32 0.0, %v7141
      %v7143 = vpop.f32.mrb[0].mxu0
      %7144 = vmatprep.mubr.f32.mxu0 0.0
      %7145 = vmatmul.mubr.f32.gmra.mrb[0].mxu0 %v6928
      %v7146 = vpop.f32.mrb[0].mxu0
      %v7147 = vadd.f32 0.0, %v7146
      %v7148 = vpop.f32.mrb[0].mxu0
      %7149 = vmatprep.mubr.f32.mxu0 0.0
      %7150 = vmatmul.mubr.f32.gmra.mrb[0].mxu0 %v6931
      %v7151 = vpop.f32.mrb[0].mxu0
      %v7152 = vadd.f32 0.0, %v7151
      %v7153 = vpop.f32.mrb[0].mxu0
      %7154 = vmatprep.mubr.f32.mxu0 0.0
      %7155 = vmatmul.mubr.f32.gmra.mrb[0].mxu0 %v6934
      %v7156 = vpop.f32.mrb[0].mxu0
      %v7157 = vadd.f32 0.0, %v7156
      %v7158 = vpop.f32.mrb[0].mxu0
      %7159 = vmatprep.mubr.f32.mxu0 0.0
      %7160 = vmatmul.mubr.f32.gmra.mrb[0].mxu0 %v6937
      %v7161 = vpop.f32.mrb[0].mxu0
      %v7162 = vadd.f32 0.0, %v7161
      %v7163 = vpop.f32.mrb[0].mxu0
      %7164 = vmatprep.mubr.f32.mxu0 0.0
      %7165 = vmatmul.mubr.f32.gmra.mrb[0].mxu0 %v6940
      %v7166 = vpop.f32.mrb[0].mxu0
      %v7167 = vadd.f32 0.0, %v7166
      %v7168 = vpop.f32.mrb[0].mxu0
      %7169 = vdwg.mxu0
      %v7170 = vadd.f32 %v6749, %v7012
      %v7171 = vadd.f32 %v6750, %v7017
      %v7172 = vadd.f32 %v6751, %v7022
      %v7173 = vadd.f32 %v6752, %v7027
      %v7174 = vadd.f32 %v6753, %v7032
      %v7175 = vadd.f32 %v6754, %v7037
      %v7176 = vadd.f32 %v6755, %v7042
      %v7177 = vadd.f32 %v6756, %v7047
      %v7178 = vadd.f32 %v6757, %v7052
      %v7179 = vadd.f32 %v6758, %v7057
      %v7180 = vadd.f32 %v6759, %v7062
      %v7181 = vadd.f32 %v6760, %v7067
      %v7182 = vadd.f32 %v6761, %v7072
      %v7183 = vadd.f32 %v6762, %v7077
      %v7184 = vadd.f32 %v6763, %v7082
      %v7185 = vadd.f32 %v6764, %v7087
      %v7186 = vadd.f32 %v6765, %v7092
      %v7187 = vadd.f32 %v6766, %v7097
      %v7188 = vadd.f32 %v6767, %v7102
      %v7189 = vadd.f32 %v6768, %v7107
      %v7190 = vadd.f32 %v6769, %v7112
      %v7191 = vadd.f32 %v6770, %v7117
      %v7192 = vadd.f32 %v6771, %v7122
      %v7193 = vadd.f32 %v6772, %v7127
      %v7194 = vadd.f32 %v6773, %v7132
      %v7195 = vadd.f32 %v6774, %v7137
      %v7196 = vadd.f32 %v6775, %v7142
      %v7197 = vadd.f32 %v6776, %v7147
      %v7198 = vadd.f32 %v6777, %v7152
      %v7199 = vadd.f32 %v6778, %v7157
      %v7200 = vadd.f32 %v6779, %v7162
      %v7201 = vadd.f32 %v6780, %v7167
      %v7202 = vld [vmem:[#allocation2 + $0x18] sm:$0xff]
      %v7203 = vld [vmem:[#allocation2 + $0x20] sm:$0xff]
      %v7204 = vld [vmem:[#allocation2 + $0x28] sm:$0xff]
      %v7205 = vld [vmem:[#allocation2 + $0x30] sm:$0xff]
      %v7206 = vld [vmem:[#allocation2 + $0x38] sm:$0xff]
      %v7207 = vld [vmem:[#allocation2 + $0x40] sm:$0xff]
      %v7208 = vld [vmem:[#allocation2 + $0x48] sm:$0xff]
      %v7209 = vld [vmem:[#allocation2 + $0x50] sm:$0xff]
      %v7210 = vld [vmem:[#allocation2 + $0x58] sm:$0xff]
      %v7211 = vld [vmem:[#allocation2 + $0x60] sm:$0xff]
      %v7212 = vld [vmem:[#allocation2 + $0x68] sm:$0xff]
      %v7213 = vld [vmem:[#allocation2 + $0x70] sm:$0xff]
      %v7214 = vld [vmem:[#allocation2 + $0x78] sm:$0xff]
      %v7215 = vld [vmem:[#allocation2 + $0x80] sm:$0xff]
      %v7216 = vld [vmem:[#allocation2 + $0x88] sm:$0xff]
      %v7217 = vld [vmem:[#allocation2 + $0x90] sm:$0xff]
      %v7218 = vld [vmem:[#allocation2 + $0x98] sm:$0xff]
      %v7219 = vld [vmem:[#allocation2 + $0xa0] sm:$0xff]
      %v7220 = vld [vmem:[#allocation2 + $0xa8] sm:$0xff]
      %v7221 = vld [vmem:[#allocation2 + $0xb0] sm:$0xff]
      %v7222 = vld [vmem:[#allocation2 + $0xb8] sm:$0xff]
      %v7223 = vld [vmem:[#allocation2 + $0xc0] sm:$0xff]
      %v7224 = vld [vmem:[#allocation2 + $0xc8] sm:$0xff]
      %v7225 = vld [vmem:[#allocation2 + $0xd0] sm:$0xff]
      %v7226 = vld [vmem:[#allocation2 + $0xd8] sm:$0xff]
      %v7227 = vld [vmem:[#allocation2 + $0xe0] sm:$0xff]
      %v7228 = vld [vmem:[#allocation2 + $0xe8] sm:$0xff]
      %v7229 = vld [vmem:[#allocation2 + $0xf0] sm:$0xff]
      %v7230 = vld [vmem:[#allocation2 + $0xf8] sm:$0xff]
      %v7231 = vld [vmem:[#allocation2 + $0x100] sm:$0xff]
      %v7232 = vld [vmem:[#allocation2 + $0x108] sm:$0xff]
      %v7233 = vld [vmem:[#allocation2 + $0x110] sm:$0xff]
      %v7234 = vld [vmem:[%s3069] sm:$0xf]
      %v7236 = vsel %vm306, %v7202, 0
      %v7239 = vsel %vm306, %v7203, 0
      %v7242 = vsel %vm306, %v7204, 0
      %v7245 = vsel %vm306, %v7205, 0
      %v7248 = vsel %vm306, %v7206, 0
      %v7251 = vsel %vm306, %v7207, 0
      %v7254 = vsel %vm306, %v7208, 0
      %v7257 = vsel %vm306, %v7209, 0
      %v7260 = vsel %vm306, %v7210, 0
      %v7263 = vsel %vm306, %v7211, 0
      %v7266 = vsel %vm306, %v7212, 0
      %v7269 = vsel %vm306, %v7213, 0
      %v7272 = vsel %vm306, %v7214, 0
      %v7275 = vsel %vm306, %v7215, 0
      %v7278 = vsel %vm306, %v7216, 0
      %v7281 = vsel %vm306, %v7217, 0
      %v7284 = vsel %vm306, %v7218, 0
      %v7287 = vsel %vm306, %v7219, 0
      %v7290 = vsel %vm306, %v7220, 0
      %v7293 = vsel %vm306, %v7221, 0
      %v7296 = vsel %vm306, %v7222, 0
      %v7299 = vsel %vm306, %v7223, 0
      %v7302 = vsel %vm306, %v7224, 0
      %v7305 = vsel %vm306, %v7225, 0
      %v7308 = vsel %vm306, %v7226, 0
      %v7311 = vsel %vm306, %v7227, 0
      %v7314 = vsel %vm306, %v7228, 0
      %v7317 = vsel %vm306, %v7229, 0
      %v7320 = vsel %vm306, %v7230, 0
      %v7323 = vsel %vm306, %v7231, 0
      %v7326 = vsel %vm306, %v7232, 0
      %v7329 = vsel %vm306, %v7233, 0
      %v7332 = vsel %vm1480, %v7234, 0
      %7334 = vmatprep.subr.mxu0 0.0
      %7335 = vmatpush1.msra.mxu0 %v7332
      %7336 = vmatprep.subr.mxu0 0.0
      %7337 = vmatpush1.msra.mxu0 0.0
      %7338 = vmatprep.subr.mxu0 0.0
      %7339 = vmatpush1.msra.mxu0 0.0
      %7340 = vmatprep.subr.mxu0 0.0
      %7341 = vmatpush1.msra.mxu0 0.0
      %7342 = vmatprep.subr.mxu0 0.0
      %7343 = vmatpush1.msra.mxu0 0.0
      %7344 = vmatprep.subr.mxu0 0.0
      %7345 = vmatpush1.msra.mxu0 0.0
      %7346 = vmatprep.subr.mxu0 0.0
      %7347 = vmatpush1.msra.mxu0 0.0
      %7348 = vmatprep.subr.mxu0 0.0
      %7349 = vmatpush1.msra.mxu0 0.0
      %7350 = vmatprep.subr.mxu0 0.0
      %7351 = vmatpush1.msra.mxu0 0.0
      %7352 = vmatprep.subr.mxu0 0.0
      %7353 = vmatpush1.msra.mxu0 0.0
      %7354 = vmatprep.subr.mxu0 0.0
      %7355 = vmatpush1.msra.mxu0 0.0
      %7356 = vmatprep.subr.mxu0 0.0
      %7357 = vmatpush1.msra.mxu0 0.0
      %7358 = vmatprep.subr.mxu0 0.0
      %7359 = vmatpush1.msra.mxu0 0.0
      %7360 = vmatprep.subr.mxu0 0.0
      %7361 = vmatpush1.msra.mxu0 0.0
      %7362 = vmatprep.subr.mxu0 0.0
      %7363 = vmatpush1.msra.mxu0 0.0
      %7364 = vmatprep.subr.mxu0 0.0
      %7365 = vmatpush1.msra.mxu0 0.0
      %7366 = vmatprep.subr.mxu0 0.0
      %7367 = vmatpush1.msra.mxu0 0.0
      %7368 = vmatprep.subr.mxu0 0.0
      %7369 = vmatpush1.msra.mxu0 0.0
      %7370 = vmatprep.subr.mxu0 0.0
      %7371 = vmatpush1.msra.mxu0 0.0
      %7372 = vmatprep.subr.mxu0 0.0
      %7373 = vmatpush1.msra.mxu0 0.0
      %7374 = vmatprep.subr.mxu0 0.0
      %7375 = vmatpush1.msra.mxu0 0.0
      %7376 = vmatprep.subr.mxu0 0.0
      %7377 = vmatpush1.msra.mxu0 0.0
      %7378 = vmatprep.subr.mxu0 0.0
      %7379 = vmatpush1.msra.mxu0 0.0
      %7380 = vmatprep.subr.mxu0 0.0
      %7381 = vmatpush1.msra.mxu0 0.0
      %7382 = vmatprep.subr.mxu0 0.0
      %7383 = vmatpush1.msra.mxu0 0.0
      %7384 = vmatprep.subr.mxu0 0.0
      %7385 = vmatpush1.msra.mxu0 0.0
      %7386 = vmatprep.subr.mxu0 0.0
      %7387 = vmatpush1.msra.mxu0 0.0
      %7388 = vmatprep.subr.mxu0 0.0
      %7389 = vmatpush1.msra.mxu0 0.0
      %7390 = vmatprep.subr.mxu0 0.0
      %7391 = vmatpush1.msra.mxu0 0.0
      %7392 = vmatprep.subr.mxu0 0.0
      %7393 = vmatpush1.msra.mxu0 0.0
      %7394 = vmatprep.subr.mxu0 0.0
      %7395 = vmatpush1.msra.mxu0 0.0
      %7396 = vmatprep.subr.mxu0 0.0
      %7397 = vmatpush1.msra.mxu0 0.0
      %7398 = vmatprep.mubr.f32.mxu0 0.0
      %7399 = vmatmul.mubr.f32.gmra.mrb[0].mxu0 %v7236
      %v7400 = vpop.f32.mrb[0].mxu0
      %v7401 = vadd.f32 0.0, %v7400
      %v7402 = vpop.f32.mrb[0].mxu0
      %7403 = vmatprep.mubr.f32.mxu0 0.0
      %7404 = vmatmul.mubr.f32.gmra.mrb[0].mxu0 %v7239
      %v7405 = vpop.f32.mrb[0].mxu0
      %v7406 = vadd.f32 0.0, %v7405
      %v7407 = vpop.f32.mrb[0].mxu0
      %7408 = vmatprep.mubr.f32.mxu0 0.0
      %7409 = vmatmul.mubr.f32.gmra.mrb[0].mxu0 %v7242
      %v7410 = vpop.f32.mrb[0].mxu0
      %v7411 = vadd.f32 0.0, %v7410
      %v7412 = vpop.f32.mrb[0].mxu0
      %7413 = vmatprep.mubr.f32.mxu0 0.0
      %7414 = vmatmul.mubr.f32.gmra.mrb[0].mxu0 %v7245
      %v7415 = vpop.f32.mrb[0].mxu0
      %v7416 = vadd.f32 0.0, %v7415
      %v7417 = vpop.f32.mrb[0].mxu0
      %7418 = vmatprep.mubr.f32.mxu0 0.0
      %7419 = vmatmul.mubr.f32.gmra.mrb[0].mxu0 %v7248
      %v7420 = vpop.f32.mrb[0].mxu0
      %v7421 = vadd.f32 0.0, %v7420
      %v7422 = vpop.f32.mrb[0].mxu0
      %7423 = vmatprep.mubr.f32.mxu0 0.0
      %7424 = vmatmul.mubr.f32.gmra.mrb[0].mxu0 %v7251
      %v7425 = vpop.f32.mrb[0].mxu0
      %v7426 = vadd.f32 0.0, %v7425
      %v7427 = vpop.f32.mrb[0].mxu0
      %7428 = vmatprep.mubr.f32.mxu0 0.0
      %7429 = vmatmul.mubr.f32.gmra.mrb[0].mxu0 %v7254
      %v7430 = vpop.f32.mrb[0].mxu0
      %v7431 = vadd.f32 0.0, %v7430
      %v7432 = vpop.f32.mrb[0].mxu0
      %7433 = vmatprep.mubr.f32.mxu0 0.0
      %7434 = vmatmul.mubr.f32.gmra.mrb[0].mxu0 %v7257
      %v7435 = vpop.f32.mrb[0].mxu0
      %v7436 = vadd.f32 0.0, %v7435
      %v7437 = vpop.f32.mrb[0].mxu0
      %7438 = vmatprep.mubr.f32.mxu0 0.0
      %7439 = vmatmul.mubr.f32.gmra.mrb[0].mxu0 %v7260
      %v7440 = vpop.f32.mrb[0].mxu0
      %v7441 = vadd.f32 0.0, %v7440
      %v7442 = vpop.f32.mrb[0].mxu0
      %7443 = vmatprep.mubr.f32.mxu0 0.0
      %7444 = vmatmul.mubr.f32.gmra.mrb[0].mxu0 %v7263
      %v7445 = vpop.f32.mrb[0].mxu0
      %v7446 = vadd.f32 0.0, %v7445
      %v7447 = vpop.f32.mrb[0].mxu0
      %7448 = vmatprep.mubr.f32.mxu0 0.0
      %7449 = vmatmul.mubr.f32.gmra.mrb[0].mxu0 %v7266
      %v7450 = vpop.f32.mrb[0].mxu0
      %v7451 = vadd.f32 0.0, %v7450
      %v7452 = vpop.f32.mrb[0].mxu0
      %7453 = vmatprep.mubr.f32.mxu0 0.0
      %7454 = vmatmul.mubr.f32.gmra.mrb[0].mxu0 %v7269
      %v7455 = vpop.f32.mrb[0].mxu0
      %v7456 = vadd.f32 0.0, %v7455
      %v7457 = vpop.f32.mrb[0].mxu0
      %7458 = vmatprep.mubr.f32.mxu0 0.0
      %7459 = vmatmul.mubr.f32.gmra.mrb[0].mxu0 %v7272
      %v7460 = vpop.f32.mrb[0].mxu0
      %v7461 = vadd.f32 0.0, %v7460
      %v7462 = vpop.f32.mrb[0].mxu0
      %7463 = vmatprep.mubr.f32.mxu0 0.0
      %7464 = vmatmul.mubr.f32.gmra.mrb[0].mxu0 %v7275
      %v7465 = vpop.f32.mrb[0].mxu0
      %v7466 = vadd.f32 0.0, %v7465
      %v7467 = vpop.f32.mrb[0].mxu0
      %7468 = vmatprep.mubr.f32.mxu0 0.0
      %7469 = vmatmul.mubr.f32.gmra.mrb[0].mxu0 %v7278
      %v7470 = vpop.f32.mrb[0].mxu0
      %v7471 = vadd.f32 0.0, %v7470
      %v7472 = vpop.f32.mrb[0].mxu0
      %7473 = vmatprep.mubr.f32.mxu0 0.0
      %7474 = vmatmul.mubr.f32.gmra.mrb[0].mxu0 %v7281
      %v7475 = vpop.f32.mrb[0].mxu0
      %v7476 = vadd.f32 0.0, %v7475
      %v7477 = vpop.f32.mrb[0].mxu0
      %7478 = vmatprep.mubr.f32.mxu0 0.0
      %7479 = vmatmul.mubr.f32.gmra.mrb[0].mxu0 %v7284
      %v7480 = vpop.f32.mrb[0].mxu0
      %v7481 = vadd.f32 0.0, %v7480
      %v7482 = vpop.f32.mrb[0].mxu0
      %7483 = vmatprep.mubr.f32.mxu0 0.0
      %7484 = vmatmul.mubr.f32.gmra.mrb[0].mxu0 %v7287
      %v7485 = vpop.f32.mrb[0].mxu0
      %v7486 = vadd.f32 0.0, %v7485
      %v7487 = vpop.f32.mrb[0].mxu0
      %7488 = vmatprep.mubr.f32.mxu0 0.0
      %7489 = vmatmul.mubr.f32.gmra.mrb[0].mxu0 %v7290
      %v7490 = vpop.f32.mrb[0].mxu0
      %v7491 = vadd.f32 0.0, %v7490
      %v7492 = vpop.f32.mrb[0].mxu0
      %7493 = vmatprep.mubr.f32.mxu0 0.0
      %7494 = vmatmul.mubr.f32.gmra.mrb[0].mxu0 %v7293
      %v7495 = vpop.f32.mrb[0].mxu0
      %v7496 = vadd.f32 0.0, %v7495
      %v7497 = vpop.f32.mrb[0].mxu0
      %7498 = vmatprep.mubr.f32.mxu0 0.0
      %7499 = vmatmul.mubr.f32.gmra.mrb[0].mxu0 %v7296
      %v7500 = vpop.f32.mrb[0].mxu0
      %v7501 = vadd.f32 0.0, %v7500
      %v7502 = vpop.f32.mrb[0].mxu0
      %7503 = vmatprep.mubr.f32.mxu0 0.0
      %7504 = vmatmul.mubr.f32.gmra.mrb[0].mxu0 %v7299
      %v7505 = vpop.f32.mrb[0].mxu0
      %v7506 = vadd.f32 0.0, %v7505
      %v7507 = vpop.f32.mrb[0].mxu0
      %7508 = vmatprep.mubr.f32.mxu0 0.0
      %7509 = vmatmul.mubr.f32.gmra.mrb[0].mxu0 %v7302
      %v7510 = vpop.f32.mrb[0].mxu0
      %v7511 = vadd.f32 0.0, %v7510
      %v7512 = vpop.f32.mrb[0].mxu0
      %7513 = vmatprep.mubr.f32.mxu0 0.0
      %7514 = vmatmul.mubr.f32.gmra.mrb[0].mxu0 %v7305
      %v7515 = vpop.f32.mrb[0].mxu0
      %v7516 = vadd.f32 0.0, %v7515
      %v7517 = vpop.f32.mrb[0].mxu0
      %7518 = vmatprep.mubr.f32.mxu0 0.0
      %7519 = vmatmul.mubr.f32.gmra.mrb[0].mxu0 %v7308
      %v7520 = vpop.f32.mrb[0].mxu0
      %v7521 = vadd.f32 0.0, %v7520
      %v7522 = vpop.f32.mrb[0].mxu0
      %7523 = vmatprep.mubr.f32.mxu0 0.0
      %7524 = vmatmul.mubr.f32.gmra.mrb[0].mxu0 %v7311
      %v7525 = vpop.f32.mrb[0].mxu0
      %v7526 = vadd.f32 0.0, %v7525
      %v7527 = vpop.f32.mrb[0].mxu0
      %7528 = vmatprep.mubr.f32.mxu0 0.0
      %7529 = vmatmul.mubr.f32.gmra.mrb[0].mxu0 %v7314
      %v7530 = vpop.f32.mrb[0].mxu0
      %v7531 = vadd.f32 0.0, %v7530
      %v7532 = vpop.f32.mrb[0].mxu0
      %7533 = vmatprep.mubr.f32.mxu0 0.0
      %7534 = vmatmul.mubr.f32.gmra.mrb[0].mxu0 %v7317
      %v7535 = vpop.f32.mrb[0].mxu0
      %v7536 = vadd.f32 0.0, %v7535
      %v7537 = vpop.f32.mrb[0].mxu0
      %7538 = vmatprep.mubr.f32.mxu0 0.0
      %7539 = vmatmul.mubr.f32.gmra.mrb[0].mxu0 %v7320
      %v7540 = vpop.f32.mrb[0].mxu0
      %v7541 = vadd.f32 0.0, %v7540
      %v7542 = vpop.f32.mrb[0].mxu0
      %7543 = vmatprep.mubr.f32.mxu0 0.0
      %7544 = vmatmul.mubr.f32.gmra.mrb[0].mxu0 %v7323
      %v7545 = vpop.f32.mrb[0].mxu0
      %v7546 = vadd.f32 0.0, %v7545
      %v7547 = vpop.f32.mrb[0].mxu0
      %7548 = vmatprep.mubr.f32.mxu0 0.0
      %7549 = vmatmul.mubr.f32.gmra.mrb[0].mxu0 %v7326
      %v7550 = vpop.f32.mrb[0].mxu0
      %v7551 = vadd.f32 0.0, %v7550
      %v7552 = vpop.f32.mrb[0].mxu0
      %7553 = vmatprep.mubr.f32.mxu0 0.0
      %7554 = vmatmul.mubr.f32.gmra.mrb[0].mxu0 %v7329
      %v7555 = vpop.f32.mrb[0].mxu0
      %v7556 = vadd.f32 0.0, %v7555
      %v7557 = vpop.f32.mrb[0].mxu0
      %7558 = vdwg.mxu0
      %v7559 = vadd.f32 %v7170, %v7401
      %v7560 = vadd.f32 %v7171, %v7406
      %v7561 = vadd.f32 %v7172, %v7411
      %v7562 = vadd.f32 %v7173, %v7416
      %v7563 = vadd.f32 %v7174, %v7421
      %v7564 = vadd.f32 %v7175, %v7426
      %v7565 = vadd.f32 %v7176, %v7431
      %v7566 = vadd.f32 %v7177, %v7436
      %v7567 = vadd.f32 %v7178, %v7441
      %v7568 = vadd.f32 %v7179, %v7446
      %v7569 = vadd.f32 %v7180, %v7451
      %v7570 = vadd.f32 %v7181, %v7456
      %v7571 = vadd.f32 %v7182, %v7461
      %v7572 = vadd.f32 %v7183, %v7466
      %v7573 = vadd.f32 %v7184, %v7471
      %v7574 = vadd.f32 %v7185, %v7476
      %v7575 = vadd.f32 %v7186, %v7481
      %v7576 = vadd.f32 %v7187, %v7486
      %v7577 = vadd.f32 %v7188, %v7491
      %v7578 = vadd.f32 %v7189, %v7496
      %v7579 = vadd.f32 %v7190, %v7501
      %v7580 = vadd.f32 %v7191, %v7506
      %v7581 = vadd.f32 %v7192, %v7511
      %v7582 = vadd.f32 %v7193, %v7516
      %v7583 = vadd.f32 %v7194, %v7521
      %v7584 = vadd.f32 %v7195, %v7526
      %v7585 = vadd.f32 %v7196, %v7531
      %v7586 = vadd.f32 %v7197, %v7536
      %v7587 = vadd.f32 %v7198, %v7541
      %v7588 = vadd.f32 %v7199, %v7546
      %v7589 = vadd.f32 %v7200, %v7551
      %v7590 = vadd.f32 %v7201, %v7556
      %v7591 = vld [vmem:[#allocation2 + $0x19] sm:$0xff]
      %v7592 = vld [vmem:[#allocation2 + $0x21] sm:$0xff]
      %v7593 = vld [vmem:[#allocation2 + $0x29] sm:$0xff]
      %v7594 = vld [vmem:[#allocation2 + $0x31] sm:$0xff]
      %v7595 = vld [vmem:[#allocation2 + $0x39] sm:$0xff]
      %v7596 = vld [vmem:[#allocation2 + $0x41] sm:$0xff]
      %v7597 = vld [vmem:[#allocation2 + $0x49] sm:$0xff]
      %v7598 = vld [vmem:[#allocation2 + $0x51] sm:$0xff]
      %v7599 = vld [vmem:[#allocation2 + $0x59] sm:$0xff]
      %v7600 = vld [vmem:[#allocation2 + $0x61] sm:$0xff]
      %v7601 = vld [vmem:[#allocation2 + $0x69] sm:$0xff]
      %v7602 = vld [vmem:[#allocation2 + $0x71] sm:$0xff]
      %v7603 = vld [vmem:[#allocation2 + $0x79] sm:$0xff]
      %v7604 = vld [vmem:[#allocation2 + $0x81] sm:$0xff]
      %v7605 = vld [vmem:[#allocation2 + $0x89] sm:$0xff]
      %v7606 = vld [vmem:[#allocation2 + $0x91] sm:$0xff]
      %v7607 = vld [vmem:[#allocation2 + $0x99] sm:$0xff]
      %v7608 = vld [vmem:[#allocation2 + $0xa1] sm:$0xff]
      %v7609 = vld [vmem:[#allocation2 + $0xa9] sm:$0xff]
      %v7610 = vld [vmem:[#allocation2 + $0xb1] sm:$0xff]
      %v7611 = vld [vmem:[#allocation2 + $0xb9] sm:$0xff]
      %v7612 = vld [vmem:[#allocation2 + $0xc1] sm:$0xff]
      %v7613 = vld [vmem:[#allocation2 + $0xc9] sm:$0xff]
      %v7614 = vld [vmem:[#allocation2 + $0xd1] sm:$0xff]
      %v7615 = vld [vmem:[#allocation2 + $0xd9] sm:$0xff]
      %v7616 = vld [vmem:[#allocation2 + $0xe1] sm:$0xff]
      %v7617 = vld [vmem:[#allocation2 + $0xe9] sm:$0xff]
      %v7618 = vld [vmem:[#allocation2 + $0xf1] sm:$0xff]
      %v7619 = vld [vmem:[#allocation2 + $0xf9] sm:$0xff]
      %v7620 = vld [vmem:[#allocation2 + $0x101] sm:$0xff]
      %v7621 = vld [vmem:[#allocation2 + $0x109] sm:$0xff]
      %v7622 = vld [vmem:[#allocation2 + $0x111] sm:$0xff]
      %v7623 = vmul.f32 %v7591, %v2068
      %v7624 = vmul.f32 %v7592, %v2073
      %v7625 = vmul.f32 %v7593, %v2078
      %v7626 = vmul.f32 %v7594, %v2083
      %v7627 = vmul.f32 %v7595, %v2088
      %v7628 = vmul.f32 %v7596, %v2093
      %v7629 = vmul.f32 %v7597, %v2098
      %v7630 = vmul.f32 %v7598, %v2103
      %v7631 = vmul.f32 %v7599, %v2108
      %v7632 = vmul.f32 %v7600, %v2113
      %v7633 = vmul.f32 %v7601, %v2118
      %v7634 = vmul.f32 %v7602, %v2123
      %v7635 = vmul.f32 %v7603, %v2128
      %v7636 = vmul.f32 %v7604, %v2133
      %v7637 = vmul.f32 %v7605, %v2138
      %v7638 = vmul.f32 %v7606, %v2143
      %v7639 = vmul.f32 %v7607, %v2148
      %v7640 = vmul.f32 %v7608, %v2153
      %v7641 = vmul.f32 %v7609, %v2158
      %v7642 = vmul.f32 %v7610, %v2163
      %v7643 = vmul.f32 %v7611, %v2168
      %v7644 = vmul.f32 %v7612, %v2173
      %v7645 = vmul.f32 %v7613, %v2178
      %v7646 = vmul.f32 %v7614, %v2183
      %v7647 = vmul.f32 %v7615, %v2188
      %v7648 = vmul.f32 %v7616, %v2193
      %v7649 = vmul.f32 %v7617, %v2198
      %v7650 = vmul.f32 %v7618, %v2203
      %v7651 = vmul.f32 %v7619, %v2208
      %v7652 = vmul.f32 %v7620, %v2213
      %v7653 = vmul.f32 %v7621, %v2218
      %v7654 = vmul.f32 %v7622, %v2223
      %v7655 = vld [vmem:[%s3491] sm:$0xf]
      %v7657 = vsel %vm306, %v7623, 0
      %v7660 = vsel %vm306, %v7624, 0
      %v7663 = vsel %vm306, %v7625, 0
      %v7666 = vsel %vm306, %v7626, 0
      %v7669 = vsel %vm306, %v7627, 0
      %v7672 = vsel %vm306, %v7628, 0
      %v7675 = vsel %vm306, %v7629, 0
      %v7678 = vsel %vm306, %v7630, 0
      %v7681 = vsel %vm306, %v7631, 0
      %v7684 = vsel %vm306, %v7632, 0
      %v7687 = vsel %vm306, %v7633, 0
      %v7690 = vsel %vm306, %v7634, 0
      %v7693 = vsel %vm306, %v7635, 0
      %v7696 = vsel %vm306, %v7636, 0
      %v7699 = vsel %vm306, %v7637, 0
      %v7702 = vsel %vm306, %v7638, 0
      %v7705 = vsel %vm306, %v7639, 0
      %v7708 = vsel %vm306, %v7640, 0
      %v7711 = vsel %vm306, %v7641, 0
      %v7714 = vsel %vm306, %v7642, 0
      %v7717 = vsel %vm306, %v7643, 0
      %v7720 = vsel %vm306, %v7644, 0
      %v7723 = vsel %vm306, %v7645, 0
      %v7726 = vsel %vm306, %v7646, 0
      %v7729 = vsel %vm306, %v7647, 0
      %v7732 = vsel %vm306, %v7648, 0
      %v7735 = vsel %vm306, %v7649, 0
      %v7738 = vsel %vm306, %v7650, 0
      %v7741 = vsel %vm306, %v7651, 0
      %v7744 = vsel %vm306, %v7652, 0
      %v7747 = vsel %vm306, %v7653, 0
      %v7750 = vsel %vm306, %v7654, 0
      %v7753 = vsel %vm1480, %v7655, 0
      %7755 = vmatprep.subr.mxu0 0.0
      %7756 = vmatpush1.msra.mxu0 %v7753
      %7757 = vmatprep.subr.mxu0 0.0
      %7758 = vmatpush1.msra.mxu0 0.0
      %7759 = vmatprep.subr.mxu0 0.0
      %7760 = vmatpush1.msra.mxu0 0.0
      %7761 = vmatprep.subr.mxu0 0.0
      %7762 = vmatpush1.msra.mxu0 0.0
      %7763 = vmatprep.subr.mxu0 0.0
      %7764 = vmatpush1.msra.mxu0 0.0
      %7765 = vmatprep.subr.mxu0 0.0
      %7766 = vmatpush1.msra.mxu0 0.0
      %7767 = vmatprep.subr.mxu0 0.0
      %7768 = vmatpush1.msra.mxu0 0.0
      %7769 = vmatprep.subr.mxu0 0.0
      %7770 = vmatpush1.msra.mxu0 0.0
      %7771 = vmatprep.subr.mxu0 0.0
      %7772 = vmatpush1.msra.mxu0 0.0
      %7773 = vmatprep.subr.mxu0 0.0
      %7774 = vmatpush1.msra.mxu0 0.0
      %7775 = vmatprep.subr.mxu0 0.0
      %7776 = vmatpush1.msra.mxu0 0.0
      %7777 = vmatprep.subr.mxu0 0.0
      %7778 = vmatpush1.msra.mxu0 0.0
      %7779 = vmatprep.subr.mxu0 0.0
      %7780 = vmatpush1.msra.mxu0 0.0
      %7781 = vmatprep.subr.mxu0 0.0
      %7782 = vmatpush1.msra.mxu0 0.0
      %7783 = vmatprep.subr.mxu0 0.0
      %7784 = vmatpush1.msra.mxu0 0.0
      %7785 = vmatprep.subr.mxu0 0.0
      %7786 = vmatpush1.msra.mxu0 0.0
      %7787 = vmatprep.subr.mxu0 0.0
      %7788 = vmatpush1.msra.mxu0 0.0
      %7789 = vmatprep.subr.mxu0 0.0
      %7790 = vmatpush1.msra.mxu0 0.0
      %7791 = vmatprep.subr.mxu0 0.0
      %7792 = vmatpush1.msra.mxu0 0.0
      %7793 = vmatprep.subr.mxu0 0.0
      %7794 = vmatpush1.msra.mxu0 0.0
      %7795 = vmatprep.subr.mxu0 0.0
      %7796 = vmatpush1.msra.mxu0 0.0
      %7797 = vmatprep.subr.mxu0 0.0
      %7798 = vmatpush1.msra.mxu0 0.0
      %7799 = vmatprep.subr.mxu0 0.0
      %7800 = vmatpush1.msra.mxu0 0.0
      %7801 = vmatprep.subr.mxu0 0.0
      %7802 = vmatpush1.msra.mxu0 0.0
      %7803 = vmatprep.subr.mxu0 0.0
      %7804 = vmatpush1.msra.mxu0 0.0
      %7805 = vmatprep.subr.mxu0 0.0
      %7806 = vmatpush1.msra.mxu0 0.0
      %7807 = vmatprep.subr.mxu0 0.0
      %7808 = vmatpush1.msra.mxu0 0.0
      %7809 = vmatprep.subr.mxu0 0.0
      %7810 = vmatpush1.msra.mxu0 0.0
      %7811 = vmatprep.subr.mxu0 0.0
      %7812 = vmatpush1.msra.mxu0 0.0
      %7813 = vmatprep.subr.mxu0 0.0
      %7814 = vmatpush1.msra.mxu0 0.0
      %7815 = vmatprep.subr.mxu0 0.0
      %7816 = vmatpush1.msra.mxu0 0.0
      %7817 = vmatprep.subr.mxu0 0.0
      %7818 = vmatpush1.msra.mxu0 0.0
      %7819 = vmatprep.mubr.f32.mxu0 0.0
      %7820 = vmatmul.mubr.f32.gmra.mrb[0].mxu0 %v7657
      %v7821 = vpop.f32.mrb[0].mxu0
      %v7822 = vadd.f32 0.0, %v7821
      %v7823 = vpop.f32.mrb[0].mxu0
      %7824 = vmatprep.mubr.f32.mxu0 0.0
      %7825 = vmatmul.mubr.f32.gmra.mrb[0].mxu0 %v7660
      %v7826 = vpop.f32.mrb[0].mxu0
      %v7827 = vadd.f32 0.0, %v7826
      %v7828 = vpop.f32.mrb[0].mxu0
      %7829 = vmatprep.mubr.f32.mxu0 0.0
      %7830 = vmatmul.mubr.f32.gmra.mrb[0].mxu0 %v7663
      %v7831 = vpop.f32.mrb[0].mxu0
      %v7832 = vadd.f32 0.0, %v7831
      %v7833 = vpop.f32.mrb[0].mxu0
      %7834 = vmatprep.mubr.f32.mxu0 0.0
      %7835 = vmatmul.mubr.f32.gmra.mrb[0].mxu0 %v7666
      %v7836 = vpop.f32.mrb[0].mxu0
      %v7837 = vadd.f32 0.0, %v7836
      %v7838 = vpop.f32.mrb[0].mxu0
      %7839 = vmatprep.mubr.f32.mxu0 0.0
      %7840 = vmatmul.mubr.f32.gmra.mrb[0].mxu0 %v7669
      %v7841 = vpop.f32.mrb[0].mxu0
      %v7842 = vadd.f32 0.0, %v7841
      %v7843 = vpop.f32.mrb[0].mxu0
      %7844 = vmatprep.mubr.f32.mxu0 0.0
      %7845 = vmatmul.mubr.f32.gmra.mrb[0].mxu0 %v7672
      %v7846 = vpop.f32.mrb[0].mxu0
      %v7847 = vadd.f32 0.0, %v7846
      %v7848 = vpop.f32.mrb[0].mxu0
      %7849 = vmatprep.mubr.f32.mxu0 0.0
      %7850 = vmatmul.mubr.f32.gmra.mrb[0].mxu0 %v7675
      %v7851 = vpop.f32.mrb[0].mxu0
      %v7852 = vadd.f32 0.0, %v7851
      %v7853 = vpop.f32.mrb[0].mxu0
      %7854 = vmatprep.mubr.f32.mxu0 0.0
      %7855 = vmatmul.mubr.f32.gmra.mrb[0].mxu0 %v7678
      %v7856 = vpop.f32.mrb[0].mxu0
      %v7857 = vadd.f32 0.0, %v7856
      %v7858 = vpop.f32.mrb[0].mxu0
      %7859 = vmatprep.mubr.f32.mxu0 0.0
      %7860 = vmatmul.mubr.f32.gmra.mrb[0].mxu0 %v7681
      %v7861 = vpop.f32.mrb[0].mxu0
      %v7862 = vadd.f32 0.0, %v7861
      %v7863 = vpop.f32.mrb[0].mxu0
      %7864 = vmatprep.mubr.f32.mxu0 0.0
      %7865 = vmatmul.mubr.f32.gmra.mrb[0].mxu0 %v7684
      %v7866 = vpop.f32.mrb[0].mxu0
      %v7867 = vadd.f32 0.0, %v7866
      %v7868 = vpop.f32.mrb[0].mxu0
      %7869 = vmatprep.mubr.f32.mxu0 0.0
      %7870 = vmatmul.mubr.f32.gmra.mrb[0].mxu0 %v7687
      %v7871 = vpop.f32.mrb[0].mxu0
      %v7872 = vadd.f32 0.0, %v7871
      %v7873 = vpop.f32.mrb[0].mxu0
      %7874 = vmatprep.mubr.f32.mxu0 0.0
      %7875 = vmatmul.mubr.f32.gmra.mrb[0].mxu0 %v7690
      %v7876 = vpop.f32.mrb[0].mxu0
      %v7877 = vadd.f32 0.0, %v7876
      %v7878 = vpop.f32.mrb[0].mxu0
      %7879 = vmatprep.mubr.f32.mxu0 0.0
      %7880 = vmatmul.mubr.f32.gmra.mrb[0].mxu0 %v7693
      %v7881 = vpop.f32.mrb[0].mxu0
      %v7882 = vadd.f32 0.0, %v7881
      %v7883 = vpop.f32.mrb[0].mxu0
      %7884 = vmatprep.mubr.f32.mxu0 0.0
      %7885 = vmatmul.mubr.f32.gmra.mrb[0].mxu0 %v7696
      %v7886 = vpop.f32.mrb[0].mxu0
      %v7887 = vadd.f32 0.0, %v7886
      %v7888 = vpop.f32.mrb[0].mxu0
      %7889 = vmatprep.mubr.f32.mxu0 0.0
      %7890 = vmatmul.mubr.f32.gmra.mrb[0].mxu0 %v7699
      %v7891 = vpop.f32.mrb[0].mxu0
      %v7892 = vadd.f32 0.0, %v7891
      %v7893 = vpop.f32.mrb[0].mxu0
      %7894 = vmatprep.mubr.f32.mxu0 0.0
      %7895 = vmatmul.mubr.f32.gmra.mrb[0].mxu0 %v7702
      %v7896 = vpop.f32.mrb[0].mxu0
      %v7897 = vadd.f32 0.0, %v7896
      %v7898 = vpop.f32.mrb[0].mxu0
      %7899 = vmatprep.mubr.f32.mxu0 0.0
      %7900 = vmatmul.mubr.f32.gmra.mrb[0].mxu0 %v7705
      %v7901 = vpop.f32.mrb[0].mxu0
      %v7902 = vadd.f32 0.0, %v7901
      %v7903 = vpop.f32.mrb[0].mxu0
      %7904 = vmatprep.mubr.f32.mxu0 0.0
      %7905 = vmatmul.mubr.f32.gmra.mrb[0].mxu0 %v7708
      %v7906 = vpop.f32.mrb[0].mxu0
      %v7907 = vadd.f32 0.0, %v7906
      %v7908 = vpop.f32.mrb[0].mxu0
      %7909 = vmatprep.mubr.f32.mxu0 0.0
      %7910 = vmatmul.mubr.f32.gmra.mrb[0].mxu0 %v7711
      %v7911 = vpop.f32.mrb[0].mxu0
      %v7912 = vadd.f32 0.0, %v7911
      %v7913 = vpop.f32.mrb[0].mxu0
      %7914 = vmatprep.mubr.f32.mxu0 0.0
      %7915 = vmatmul.mubr.f32.gmra.mrb[0].mxu0 %v7714
      %v7916 = vpop.f32.mrb[0].mxu0
      %v7917 = vadd.f32 0.0, %v7916
      %v7918 = vpop.f32.mrb[0].mxu0
      %7919 = vmatprep.mubr.f32.mxu0 0.0
      %7920 = vmatmul.mubr.f32.gmra.mrb[0].mxu0 %v7717
      %v7921 = vpop.f32.mrb[0].mxu0
      %v7922 = vadd.f32 0.0, %v7921
      %v7923 = vpop.f32.mrb[0].mxu0
      %7924 = vmatprep.mubr.f32.mxu0 0.0
      %7925 = vmatmul.mubr.f32.gmra.mrb[0].mxu0 %v7720
      %v7926 = vpop.f32.mrb[0].mxu0
      %v7927 = vadd.f32 0.0, %v7926
      %v7928 = vpop.f32.mrb[0].mxu0
      %7929 = vmatprep.mubr.f32.mxu0 0.0
      %7930 = vmatmul.mubr.f32.gmra.mrb[0].mxu0 %v7723
      %v7931 = vpop.f32.mrb[0].mxu0
      %v7932 = vadd.f32 0.0, %v7931
      %v7933 = vpop.f32.mrb[0].mxu0
      %7934 = vmatprep.mubr.f32.mxu0 0.0
      %7935 = vmatmul.mubr.f32.gmra.mrb[0].mxu0 %v7726
      %v7936 = vpop.f32.mrb[0].mxu0
      %v7937 = vadd.f32 0.0, %v7936
      %v7938 = vpop.f32.mrb[0].mxu0
      %7939 = vmatprep.mubr.f32.mxu0 0.0
      %7940 = vmatmul.mubr.f32.gmra.mrb[0].mxu0 %v7729
      %v7941 = vpop.f32.mrb[0].mxu0
      %v7942 = vadd.f32 0.0, %v7941
      %v7943 = vpop.f32.mrb[0].mxu0
      %7944 = vmatprep.mubr.f32.mxu0 0.0
      %7945 = vmatmul.mubr.f32.gmra.mrb[0].mxu0 %v7732
      %v7946 = vpop.f32.mrb[0].mxu0
      %v7947 = vadd.f32 0.0, %v7946
      %v7948 = vpop.f32.mrb[0].mxu0
      %7949 = vmatprep.mubr.f32.mxu0 0.0
      %7950 = vmatmul.mubr.f32.gmra.mrb[0].mxu0 %v7735
      %v7951 = vpop.f32.mrb[0].mxu0
      %v7952 = vadd.f32 0.0, %v7951
      %v7953 = vpop.f32.mrb[0].mxu0
      %7954 = vmatprep.mubr.f32.mxu0 0.0
      %7955 = vmatmul.mubr.f32.gmra.mrb[0].mxu0 %v7738
      %v7956 = vpop.f32.mrb[0].mxu0
      %v7957 = vadd.f32 0.0, %v7956
      %v7958 = vpop.f32.mrb[0].mxu0
      %7959 = vmatprep.mubr.f32.mxu0 0.0
      %7960 = vmatmul.mubr.f32.gmra.mrb[0].mxu0 %v7741
      %v7961 = vpop.f32.mrb[0].mxu0
      %v7962 = vadd.f32 0.0, %v7961
      %v7963 = vpop.f32.mrb[0].mxu0
      %7964 = vmatprep.mubr.f32.mxu0 0.0
      %7965 = vmatmul.mubr.f32.gmra.mrb[0].mxu0 %v7744
      %v7966 = vpop.f32.mrb[0].mxu0
      %v7967 = vadd.f32 0.0, %v7966
      %v7968 = vpop.f32.mrb[0].mxu0
      %7969 = vmatprep.mubr.f32.mxu0 0.0
      %7970 = vmatmul.mubr.f32.gmra.mrb[0].mxu0 %v7747
      %v7971 = vpop.f32.mrb[0].mxu0
      %v7972 = vadd.f32 0.0, %v7971
      %v7973 = vpop.f32.mrb[0].mxu0
      %7974 = vmatprep.mubr.f32.mxu0 0.0
      %7975 = vmatmul.mubr.f32.gmra.mrb[0].mxu0 %v7750
      %v7976 = vpop.f32.mrb[0].mxu0
      %v7977 = vadd.f32 0.0, %v7976
      %v7978 = vpop.f32.mrb[0].mxu0
      %7979 = vdwg.mxu0
      %v7980 = vadd.f32 %v7559, %v7822
      %v7981 = vadd.f32 %v7560, %v7827
      %v7982 = vadd.f32 %v7561, %v7832
      %v7983 = vadd.f32 %v7562, %v7837
      %v7984 = vadd.f32 %v7563, %v7842
      %v7985 = vadd.f32 %v7564, %v7847
      %v7986 = vadd.f32 %v7565, %v7852
      %v7987 = vadd.f32 %v7566, %v7857
      %v7988 = vadd.f32 %v7567, %v7862
      %v7989 = vadd.f32 %v7568, %v7867
      %v7990 = vadd.f32 %v7569, %v7872
      %v7991 = vadd.f32 %v7570, %v7877
      %v7992 = vadd.f32 %v7571, %v7882
      %v7993 = vadd.f32 %v7572, %v7887
      %v7994 = vadd.f32 %v7573, %v7892
      %v7995 = vadd.f32 %v7574, %v7897
      %v7996 = vadd.f32 %v7575, %v7902
      %v7997 = vadd.f32 %v7576, %v7907
      %v7998 = vadd.f32 %v7577, %v7912
      %v7999 = vadd.f32 %v7578, %v7917
      %v8000 = vadd.f32 %v7579, %v7922
      %v8001 = vadd.f32 %v7580, %v7927
      %v8002 = vadd.f32 %v7581, %v7932
      %v8003 = vadd.f32 %v7582, %v7937
      %v8004 = vadd.f32 %v7583, %v7942
      %v8005 = vadd.f32 %v7584, %v7947
      %v8006 = vadd.f32 %v7585, %v7952
      %v8007 = vadd.f32 %v7586, %v7957
      %v8008 = vadd.f32 %v7587, %v7962
      %v8009 = vadd.f32 %v7588, %v7967
      %v8010 = vadd.f32 %v7589, %v7972
      %v8011 = vadd.f32 %v7590, %v7977
      %v8012 = vld [vmem:[#allocation2 + $0x27] sm:$0xff]
      %v8013 = vld [vmem:[#allocation2 + $0x2f] sm:$0xff]
      %v8014 = vld [vmem:[#allocation2 + $0x37] sm:$0xff]
      %v8015 = vld [vmem:[#allocation2 + $0x3f] sm:$0xff]
      %v8016 = vld [vmem:[#allocation2 + $0x47] sm:$0xff]
      %v8017 = vld [vmem:[#allocation2 + $0x4f] sm:$0xff]
      %v8018 = vld [vmem:[#allocation2 + $0x57] sm:$0xff]
      %v8019 = vld [vmem:[#allocation2 + $0x5f] sm:$0xff]
      %v8020 = vld [vmem:[#allocation2 + $0x67] sm:$0xff]
      %v8021 = vld [vmem:[#allocation2 + $0x6f] sm:$0xff]
      %v8022 = vld [vmem:[#allocation2 + $0x77] sm:$0xff]
      %v8023 = vld [vmem:[#allocation2 + $0x7f] sm:$0xff]
      %v8024 = vld [vmem:[#allocation2 + $0x87] sm:$0xff]
      %v8025 = vld [vmem:[#allocation2 + $0x8f] sm:$0xff]
      %v8026 = vld [vmem:[#allocation2 + $0x97] sm:$0xff]
      %v8027 = vld [vmem:[#allocation2 + $0x9f] sm:$0xff]
      %v8028 = vld [vmem:[#allocation2 + $0xa7] sm:$0xff]
      %v8029 = vld [vmem:[#allocation2 + $0xaf] sm:$0xff]
      %v8030 = vld [vmem:[#allocation2 + $0xb7] sm:$0xff]
      %v8031 = vld [vmem:[#allocation2 + $0xbf] sm:$0xff]
      %v8032 = vld [vmem:[#allocation2 + $0xc7] sm:$0xff]
      %v8033 = vld [vmem:[#allocation2 + $0xcf] sm:$0xff]
      %v8034 = vld [vmem:[#allocation2 + $0xd7] sm:$0xff]
      %v8035 = vld [vmem:[#allocation2 + $0xdf] sm:$0xff]
      %v8036 = vld [vmem:[#allocation2 + $0xe7] sm:$0xff]
      %v8037 = vld [vmem:[#allocation2 + $0xef] sm:$0xff]
      %v8038 = vld [vmem:[#allocation2 + $0xf7] sm:$0xff]
      %v8039 = vld [vmem:[#allocation2 + $0xff] sm:$0xff]
      %v8040 = vld [vmem:[#allocation2 + $0x107] sm:$0xff]
      %v8041 = vld [vmem:[#allocation2 + $0x10f] sm:$0xff]
      %v8042 = vld [vmem:[#allocation2 + $0x117] sm:$0xff]
      %v8043 = vld [vmem:[#allocation2 + $0x11f] sm:$0xff]
      %v8044 = vmul.f32 %v8012, %v1160
      %v8045 = vmul.f32 %v8013, %v1165
      %v8046 = vmul.f32 %v8014, %v1170
      %v8047 = vmul.f32 %v8015, %v1175
      %v8048 = vmul.f32 %v8016, %v1180
      %v8049 = vmul.f32 %v8017, %v1185
      %v8050 = vmul.f32 %v8018, %v1190
      %v8051 = vmul.f32 %v8019, %v1195
      %v8052 = vmul.f32 %v8020, %v1200
      %v8053 = vmul.f32 %v8021, %v1205
      %v8054 = vmul.f32 %v8022, %v1210
      %v8055 = vmul.f32 %v8023, %v1215
      %v8056 = vmul.f32 %v8024, %v1220
      %v8057 = vmul.f32 %v8025, %v1225
      %v8058 = vmul.f32 %v8026, %v1230
      %v8059 = vmul.f32 %v8027, %v1235
      %v8060 = vmul.f32 %v8028, %v1240
      %v8061 = vmul.f32 %v8029, %v1245
      %v8062 = vmul.f32 %v8030, %v1250
      %v8063 = vmul.f32 %v8031, %v1255
      %v8064 = vmul.f32 %v8032, %v1260
      %v8065 = vmul.f32 %v8033, %v1265
      %v8066 = vmul.f32 %v8034, %v1270
      %v8067 = vmul.f32 %v8035, %v1275
      %v8068 = vmul.f32 %v8036, %v1280
      %v8069 = vmul.f32 %v8037, %v1285
      %v8070 = vmul.f32 %v8038, %v1290
      %v8071 = vmul.f32 %v8039, %v1295
      %v8072 = vmul.f32 %v8040, %v1300
      %v8073 = vmul.f32 %v8041, %v1305
      %v8074 = vmul.f32 %v8042, %v1310
      %v8075 = vmul.f32 %v8043, %v1315
      %v8076 = vld [vmem:[%s3913] sm:$0xf]
      %v8078 = vsel %vm306, %v8044, 0
      %v8081 = vsel %vm306, %v8045, 0
      %v8084 = vsel %vm306, %v8046, 0
      %v8087 = vsel %vm306, %v8047, 0
      %v8090 = vsel %vm306, %v8048, 0
      %v8093 = vsel %vm306, %v8049, 0
      %v8096 = vsel %vm306, %v8050, 0
      %v8099 = vsel %vm306, %v8051, 0
      %v8102 = vsel %vm306, %v8052, 0
      %v8105 = vsel %vm306, %v8053, 0
      %v8108 = vsel %vm306, %v8054, 0
      %v8111 = vsel %vm306, %v8055, 0
      %v8114 = vsel %vm306, %v8056, 0
      %v8117 = vsel %vm306, %v8057, 0
      %v8120 = vsel %vm306, %v8058, 0
      %v8123 = vsel %vm306, %v8059, 0
      %v8126 = vsel %vm306, %v8060, 0
      %v8129 = vsel %vm306, %v8061, 0
      %v8132 = vsel %vm306, %v8062, 0
      %v8135 = vsel %vm306, %v8063, 0
      %v8138 = vsel %vm306, %v8064, 0
      %v8141 = vsel %vm306, %v8065, 0
      %v8144 = vsel %vm306, %v8066, 0
      %v8147 = vsel %vm306, %v8067, 0
      %v8150 = vsel %vm306, %v8068, 0
      %v8153 = vsel %vm306, %v8069, 0
      %v8156 = vsel %vm306, %v8070, 0
      %v8159 = vsel %vm306, %v8071, 0
      %v8162 = vsel %vm306, %v8072, 0
      %v8165 = vsel %vm306, %v8073, 0
      %v8168 = vsel %vm306, %v8074, 0
      %v8171 = vsel %vm306, %v8075, 0
      %v8174 = vsel %vm1480, %v8076, 0
      %8176 = vmatprep.subr.mxu0 0.0
      %8177 = vmatpush1.msra.mxu0 %v8174
      %8178 = vmatprep.subr.mxu0 0.0
      %8179 = vmatpush1.msra.mxu0 0.0
      %8180 = vmatprep.subr.mxu0 0.0
      %8181 = vmatpush1.msra.mxu0 0.0
      %8182 = vmatprep.subr.mxu0 0.0
      %8183 = vmatpush1.msra.mxu0 0.0
      %8184 = vmatprep.subr.mxu0 0.0
      %8185 = vmatpush1.msra.mxu0 0.0
      %8186 = vmatprep.subr.mxu0 0.0
      %8187 = vmatpush1.msra.mxu0 0.0
      %8188 = vmatprep.subr.mxu0 0.0
      %8189 = vmatpush1.msra.mxu0 0.0
      %8190 = vmatprep.subr.mxu0 0.0
      %8191 = vmatpush1.msra.mxu0 0.0
      %8192 = vmatprep.subr.mxu0 0.0
      %8193 = vmatpush1.msra.mxu0 0.0
      %8194 = vmatprep.subr.mxu0 0.0
      %8195 = vmatpush1.msra.mxu0 0.0
      %8196 = vmatprep.subr.mxu0 0.0
      %8197 = vmatpush1.msra.mxu0 0.0
      %8198 = vmatprep.subr.mxu0 0.0
      %8199 = vmatpush1.msra.mxu0 0.0
      %8200 = vmatprep.subr.mxu0 0.0
      %8201 = vmatpush1.msra.mxu0 0.0
      %8202 = vmatprep.subr.mxu0 0.0
      %8203 = vmatpush1.msra.mxu0 0.0
      %8204 = vmatprep.subr.mxu0 0.0
      %8205 = vmatpush1.msra.mxu0 0.0
      %8206 = vmatprep.subr.mxu0 0.0
      %8207 = vmatpush1.msra.mxu0 0.0
      %8208 = vmatprep.subr.mxu0 0.0
      %8209 = vmatpush1.msra.mxu0 0.0
      %8210 = vmatprep.subr.mxu0 0.0
      %8211 = vmatpush1.msra.mxu0 0.0
      %8212 = vmatprep.subr.mxu0 0.0
      %8213 = vmatpush1.msra.mxu0 0.0
      %8214 = vmatprep.subr.mxu0 0.0
      %8215 = vmatpush1.msra.mxu0 0.0
      %8216 = vmatprep.subr.mxu0 0.0
      %8217 = vmatpush1.msra.mxu0 0.0
      %8218 = vmatprep.subr.mxu0 0.0
      %8219 = vmatpush1.msra.mxu0 0.0
      %8220 = vmatprep.subr.mxu0 0.0
      %8221 = vmatpush1.msra.mxu0 0.0
      %8222 = vmatprep.subr.mxu0 0.0
      %8223 = vmatpush1.msra.mxu0 0.0
      %8224 = vmatprep.subr.mxu0 0.0
      %8225 = vmatpush1.msra.mxu0 0.0
      %8226 = vmatprep.subr.mxu0 0.0
      %8227 = vmatpush1.msra.mxu0 0.0
      %8228 = vmatprep.subr.mxu0 0.0
      %8229 = vmatpush1.msra.mxu0 0.0
      %8230 = vmatprep.subr.mxu0 0.0
      %8231 = vmatpush1.msra.mxu0 0.0
      %8232 = vmatprep.subr.mxu0 0.0
      %8233 = vmatpush1.msra.mxu0 0.0
      %8234 = vmatprep.subr.mxu0 0.0
      %8235 = vmatpush1.msra.mxu0 0.0
      %8236 = vmatprep.subr.mxu0 0.0
      %8237 = vmatpush1.msra.mxu0 0.0
      %8238 = vmatprep.subr.mxu0 0.0
      %8239 = vmatpush1.msra.mxu0 0.0
      %8240 = vmatprep.mubr.f32.mxu0 0.0
      %8241 = vmatmul.mubr.f32.gmra.mrb[0].mxu0 %v8078
      %v8242 = vpop.f32.mrb[0].mxu0
      %v8243 = vadd.f32 0.0, %v8242
      %v8244 = vpop.f32.mrb[0].mxu0
      %8245 = vmatprep.mubr.f32.mxu0 0.0
      %8246 = vmatmul.mubr.f32.gmra.mrb[0].mxu0 %v8081
      %v8247 = vpop.f32.mrb[0].mxu0
      %v8248 = vadd.f32 0.0, %v8247
      %v8249 = vpop.f32.mrb[0].mxu0
      %8250 = vmatprep.mubr.f32.mxu0 0.0
      %8251 = vmatmul.mubr.f32.gmra.mrb[0].mxu0 %v8084
      %v8252 = vpop.f32.mrb[0].mxu0
      %v8253 = vadd.f32 0.0, %v8252
      %v8254 = vpop.f32.mrb[0].mxu0
      %8255 = vmatprep.mubr.f32.mxu0 0.0
      %8256 = vmatmul.mubr.f32.gmra.mrb[0].mxu0 %v8087
      %v8257 = vpop.f32.mrb[0].mxu0
      %v8258 = vadd.f32 0.0, %v8257
      %v8259 = vpop.f32.mrb[0].mxu0
      %8260 = vmatprep.mubr.f32.mxu0 0.0
      %8261 = vmatmul.mubr.f32.gmra.mrb[0].mxu0 %v8090
      %v8262 = vpop.f32.mrb[0].mxu0
      %v8263 = vadd.f32 0.0, %v8262
      %v8264 = vpop.f32.mrb[0].mxu0
      %8265 = vmatprep.mubr.f32.mxu0 0.0
      %8266 = vmatmul.mubr.f32.gmra.mrb[0].mxu0 %v8093
      %v8267 = vpop.f32.mrb[0].mxu0
      %v8268 = vadd.f32 0.0, %v8267
      %v8269 = vpop.f32.mrb[0].mxu0
      %8270 = vmatprep.mubr.f32.mxu0 0.0
      %8271 = vmatmul.mubr.f32.gmra.mrb[0].mxu0 %v8096
      %v8272 = vpop.f32.mrb[0].mxu0
      %v8273 = vadd.f32 0.0, %v8272
      %v8274 = vpop.f32.mrb[0].mxu0
      %8275 = vmatprep.mubr.f32.mxu0 0.0
      %8276 = vmatmul.mubr.f32.gmra.mrb[0].mxu0 %v8099
      %v8277 = vpop.f32.mrb[0].mxu0
      %v8278 = vadd.f32 0.0, %v8277
      %v8279 = vpop.f32.mrb[0].mxu0
      %8280 = vmatprep.mubr.f32.mxu0 0.0
      %8281 = vmatmul.mubr.f32.gmra.mrb[0].mxu0 %v8102
      %v8282 = vpop.f32.mrb[0].mxu0
      %v8283 = vadd.f32 0.0, %v8282
      %v8284 = vpop.f32.mrb[0].mxu0
      %8285 = vmatprep.mubr.f32.mxu0 0.0
      %8286 = vmatmul.mubr.f32.gmra.mrb[0].mxu0 %v8105
      %v8287 = vpop.f32.mrb[0].mxu0
      %v8288 = vadd.f32 0.0, %v8287
      %v8289 = vpop.f32.mrb[0].mxu0
      %8290 = vmatprep.mubr.f32.mxu0 0.0
      %8291 = vmatmul.mubr.f32.gmra.mrb[0].mxu0 %v8108
      %v8292 = vpop.f32.mrb[0].mxu0
      %v8293 = vadd.f32 0.0, %v8292
      %v8294 = vpop.f32.mrb[0].mxu0
      %8295 = vmatprep.mubr.f32.mxu0 0.0
      %8296 = vmatmul.mubr.f32.gmra.mrb[0].mxu0 %v8111
      %v8297 = vpop.f32.mrb[0].mxu0
      %v8298 = vadd.f32 0.0, %v8297
      %v8299 = vpop.f32.mrb[0].mxu0
      %8300 = vmatprep.mubr.f32.mxu0 0.0
      %8301 = vmatmul.mubr.f32.gmra.mrb[0].mxu0 %v8114
      %v8302 = vpop.f32.mrb[0].mxu0
      %v8303 = vadd.f32 0.0, %v8302
      %v8304 = vpop.f32.mrb[0].mxu0
      %8305 = vmatprep.mubr.f32.mxu0 0.0
      %8306 = vmatmul.mubr.f32.gmra.mrb[0].mxu0 %v8117
      %v8307 = vpop.f32.mrb[0].mxu0
      %v8308 = vadd.f32 0.0, %v8307
      %v8309 = vpop.f32.mrb[0].mxu0
      %8310 = vmatprep.mubr.f32.mxu0 0.0
      %8311 = vmatmul.mubr.f32.gmra.mrb[0].mxu0 %v8120
      %v8312 = vpop.f32.mrb[0].mxu0
      %v8313 = vadd.f32 0.0, %v8312
      %v8314 = vpop.f32.mrb[0].mxu0
      %8315 = vmatprep.mubr.f32.mxu0 0.0
      %8316 = vmatmul.mubr.f32.gmra.mrb[0].mxu0 %v8123
      %v8317 = vpop.f32.mrb[0].mxu0
      %v8318 = vadd.f32 0.0, %v8317
      %v8319 = vpop.f32.mrb[0].mxu0
      %8320 = vmatprep.mubr.f32.mxu0 0.0
      %8321 = vmatmul.mubr.f32.gmra.mrb[0].mxu0 %v8126
      %v8322 = vpop.f32.mrb[0].mxu0
      %v8323 = vadd.f32 0.0, %v8322
      %v8324 = vpop.f32.mrb[0].mxu0
      %8325 = vmatprep.mubr.f32.mxu0 0.0
      %8326 = vmatmul.mubr.f32.gmra.mrb[0].mxu0 %v8129
      %v8327 = vpop.f32.mrb[0].mxu0
      %v8328 = vadd.f32 0.0, %v8327
      %v8329 = vpop.f32.mrb[0].mxu0
      %8330 = vmatprep.mubr.f32.mxu0 0.0
      %8331 = vmatmul.mubr.f32.gmra.mrb[0].mxu0 %v8132
      %v8332 = vpop.f32.mrb[0].mxu0
      %v8333 = vadd.f32 0.0, %v8332
      %v8334 = vpop.f32.mrb[0].mxu0
      %8335 = vmatprep.mubr.f32.mxu0 0.0
      %8336 = vmatmul.mubr.f32.gmra.mrb[0].mxu0 %v8135
      %v8337 = vpop.f32.mrb[0].mxu0
      %v8338 = vadd.f32 0.0, %v8337
      %v8339 = vpop.f32.mrb[0].mxu0
      %8340 = vmatprep.mubr.f32.mxu0 0.0
      %8341 = vmatmul.mubr.f32.gmra.mrb[0].mxu0 %v8138
      %v8342 = vpop.f32.mrb[0].mxu0
      %v8343 = vadd.f32 0.0, %v8342
      %v8344 = vpop.f32.mrb[0].mxu0
      %8345 = vmatprep.mubr.f32.mxu0 0.0
      %8346 = vmatmul.mubr.f32.gmra.mrb[0].mxu0 %v8141
      %v8347 = vpop.f32.mrb[0].mxu0
      %v8348 = vadd.f32 0.0, %v8347
      %v8349 = vpop.f32.mrb[0].mxu0
      %8350 = vmatprep.mubr.f32.mxu0 0.0
      %8351 = vmatmul.mubr.f32.gmra.mrb[0].mxu0 %v8144
      %v8352 = vpop.f32.mrb[0].mxu0
      %v8353 = vadd.f32 0.0, %v8352
      %v8354 = vpop.f32.mrb[0].mxu0
      %8355 = vmatprep.mubr.f32.mxu0 0.0
      %8356 = vmatmul.mubr.f32.gmra.mrb[0].mxu0 %v8147
      %v8357 = vpop.f32.mrb[0].mxu0
      %v8358 = vadd.f32 0.0, %v8357
      %v8359 = vpop.f32.mrb[0].mxu0
      %8360 = vmatprep.mubr.f32.mxu0 0.0
      %8361 = vmatmul.mubr.f32.gmra.mrb[0].mxu0 %v8150
      %v8362 = vpop.f32.mrb[0].mxu0
      %v8363 = vadd.f32 0.0, %v8362
      %v8364 = vpop.f32.mrb[0].mxu0
      %8365 = vmatprep.mubr.f32.mxu0 0.0
      %8366 = vmatmul.mubr.f32.gmra.mrb[0].mxu0 %v8153
      %v8367 = vpop.f32.mrb[0].mxu0
      %v8368 = vadd.f32 0.0, %v8367
      %v8369 = vpop.f32.mrb[0].mxu0
      %8370 = vmatprep.mubr.f32.mxu0 0.0
      %8371 = vmatmul.mubr.f32.gmra.mrb[0].mxu0 %v8156
      %v8372 = vpop.f32.mrb[0].mxu0
      %v8373 = vadd.f32 0.0, %v8372
      %v8374 = vpop.f32.mrb[0].mxu0
      %8375 = vmatprep.mubr.f32.mxu0 0.0
      %8376 = vmatmul.mubr.f32.gmra.mrb[0].mxu0 %v8159
      %v8377 = vpop.f32.mrb[0].mxu0
      %v8378 = vadd.f32 0.0, %v8377
      %v8379 = vpop.f32.mrb[0].mxu0
      %8380 = vmatprep.mubr.f32.mxu0 0.0
      %8381 = vmatmul.mubr.f32.gmra.mrb[0].mxu0 %v8162
      %v8382 = vpop.f32.mrb[0].mxu0
      %v8383 = vadd.f32 0.0, %v8382
      %v8384 = vpop.f32.mrb[0].mxu0
      %8385 = vmatprep.mubr.f32.mxu0 0.0
      %8386 = vmatmul.mubr.f32.gmra.mrb[0].mxu0 %v8165
      %v8387 = vpop.f32.mrb[0].mxu0
      %v8388 = vadd.f32 0.0, %v8387
      %v8389 = vpop.f32.mrb[0].mxu0
      %8390 = vmatprep.mubr.f32.mxu0 0.0
      %8391 = vmatmul.mubr.f32.gmra.mrb[0].mxu0 %v8168
      %v8392 = vpop.f32.mrb[0].mxu0
      %v8393 = vadd.f32 0.0, %v8392
      %v8394 = vpop.f32.mrb[0].mxu0
      %8395 = vmatprep.mubr.f32.mxu0 0.0
      %8396 = vmatmul.mubr.f32.gmra.mrb[0].mxu0 %v8171
      %v8397 = vpop.f32.mrb[0].mxu0
      %v8398 = vadd.f32 0.0, %v8397
      %v8399 = vpop.f32.mrb[0].mxu0
      %8400 = vdwg.mxu0
      %v8401 = vadd.f32 %v7980, %v8243
      %v8402 = vadd.f32 %v7981, %v8248
      %v8403 = vadd.f32 %v7982, %v8253
      %v8404 = vadd.f32 %v7983, %v8258
      %v8405 = vadd.f32 %v7984, %v8263
      %v8406 = vadd.f32 %v7985, %v8268
      %v8407 = vadd.f32 %v7986, %v8273
      %v8408 = vadd.f32 %v7987, %v8278
      %v8409 = vadd.f32 %v7988, %v8283
      %v8410 = vadd.f32 %v7989, %v8288
      %v8411 = vadd.f32 %v7990, %v8293
      %v8412 = vadd.f32 %v7991, %v8298
      %v8413 = vadd.f32 %v7992, %v8303
      %v8414 = vadd.f32 %v7993, %v8308
      %v8415 = vadd.f32 %v7994, %v8313
      %v8416 = vadd.f32 %v7995, %v8318
      %v8417 = vadd.f32 %v7996, %v8323
      %v8418 = vadd.f32 %v7997, %v8328
      %v8419 = vadd.f32 %v7998, %v8333
      %v8420 = vadd.f32 %v7999, %v8338
      %v8421 = vadd.f32 %v8000, %v8343
      %v8422 = vadd.f32 %v8001, %v8348
      %v8423 = vadd.f32 %v8002, %v8353
      %v8424 = vadd.f32 %v8003, %v8358
      %v8425 = vadd.f32 %v8004, %v8363
      %v8426 = vadd.f32 %v8005, %v8368
      %v8427 = vadd.f32 %v8006, %v8373
      %v8428 = vadd.f32 %v8007, %v8378
      %v8429 = vadd.f32 %v8008, %v8383
      %v8430 = vadd.f32 %v8009, %v8388
      %v8431 = vadd.f32 %v8010, %v8393
      %v8432 = vadd.f32 %v8011, %v8398
      %v8433 = vld [vmem:[#allocation2 + $0x28] sm:$0xff]
      %v8434 = vld [vmem:[#allocation2 + $0x30] sm:$0xff]
      %v8435 = vld [vmem:[#allocation2 + $0x38] sm:$0xff]
      %v8436 = vld [vmem:[#allocation2 + $0x40] sm:$0xff]
      %v8437 = vld [vmem:[#allocation2 + $0x48] sm:$0xff]
      %v8438 = vld [vmem:[#allocation2 + $0x50] sm:$0xff]
      %v8439 = vld [vmem:[#allocation2 + $0x58] sm:$0xff]
      %v8440 = vld [vmem:[#allocation2 + $0x60] sm:$0xff]
      %v8441 = vld [vmem:[#allocation2 + $0x68] sm:$0xff]
      %v8442 = vld [vmem:[#allocation2 + $0x70] sm:$0xff]
      %v8443 = vld [vmem:[#allocation2 + $0x78] sm:$0xff]
      %v8444 = vld [vmem:[#allocation2 + $0x80] sm:$0xff]
      %v8445 = vld [vmem:[#allocation2 + $0x88] sm:$0xff]
      %v8446 = vld [vmem:[#allocation2 + $0x90] sm:$0xff]
      %v8447 = vld [vmem:[#allocation2 + $0x98] sm:$0xff]
      %v8448 = vld [vmem:[#allocation2 + $0xa0] sm:$0xff]
      %v8449 = vld [vmem:[#allocation2 + $0xa8] sm:$0xff]
      %v8450 = vld [vmem:[#allocation2 + $0xb0] sm:$0xff]
      %v8451 = vld [vmem:[#allocation2 + $0xb8] sm:$0xff]
      %v8452 = vld [vmem:[#allocation2 + $0xc0] sm:$0xff]
      %v8453 = vld [vmem:[#allocation2 + $0xc8] sm:$0xff]
      %v8454 = vld [vmem:[#allocation2 + $0xd0] sm:$0xff]
      %v8455 = vld [vmem:[#allocation2 + $0xd8] sm:$0xff]
      %v8456 = vld [vmem:[#allocation2 + $0xe0] sm:$0xff]
      %v8457 = vld [vmem:[#allocation2 + $0xe8] sm:$0xff]
      %v8458 = vld [vmem:[#allocation2 + $0xf0] sm:$0xff]
      %v8459 = vld [vmem:[#allocation2 + $0xf8] sm:$0xff]
      %v8460 = vld [vmem:[#allocation2 + $0x100] sm:$0xff]
      %v8461 = vld [vmem:[#allocation2 + $0x108] sm:$0xff]
      %v8462 = vld [vmem:[#allocation2 + $0x110] sm:$0xff]
      %v8463 = vld [vmem:[#allocation2 + $0x118] sm:$0xff]
      %v8464 = vld [vmem:[#allocation2 + $0x120] sm:$0xff]
      %v8465 = vld [vmem:[%s4303] sm:$0xf]
      %v8467 = vsel %vm306, %v8433, 0
      %v8470 = vsel %vm306, %v8434, 0
      %v8473 = vsel %vm306, %v8435, 0
      %v8476 = vsel %vm306, %v8436, 0
      %v8479 = vsel %vm306, %v8437, 0
      %v8482 = vsel %vm306, %v8438, 0
      %v8485 = vsel %vm306, %v8439, 0
      %v8488 = vsel %vm306, %v8440, 0
      %v8491 = vsel %vm306, %v8441, 0
      %v8494 = vsel %vm306, %v8442, 0
      %v8497 = vsel %vm306, %v8443, 0
      %v8500 = vsel %vm306, %v8444, 0
      %v8503 = vsel %vm306, %v8445, 0
      %v8506 = vsel %vm306, %v8446, 0
      %v8509 = vsel %vm306, %v8447, 0
      %v8512 = vsel %vm306, %v8448, 0
      %v8515 = vsel %vm306, %v8449, 0
      %v8518 = vsel %vm306, %v8450, 0
      %v8521 = vsel %vm306, %v8451, 0
      %v8524 = vsel %vm306, %v8452, 0
      %v8527 = vsel %vm306, %v8453, 0
      %v8530 = vsel %vm306, %v8454, 0
      %v8533 = vsel %vm306, %v8455, 0
      %v8536 = vsel %vm306, %v8456, 0
      %v8539 = vsel %vm306, %v8457, 0
      %v8542 = vsel %vm306, %v8458, 0
      %v8545 = vsel %vm306, %v8459, 0
      %v8548 = vsel %vm306, %v8460, 0
      %v8551 = vsel %vm306, %v8461, 0
      %v8554 = vsel %vm306, %v8462, 0
      %v8557 = vsel %vm306, %v8463, 0
      %v8560 = vsel %vm306, %v8464, 0
      %v8563 = vsel %vm1480, %v8465, 0
      %8565 = vmatprep.subr.mxu0 0.0
      %8566 = vmatpush1.msra.mxu0 %v8563
      %8567 = vmatprep.subr.mxu0 0.0
      %8568 = vmatpush1.msra.mxu0 0.0
      %8569 = vmatprep.subr.mxu0 0.0
      %8570 = vmatpush1.msra.mxu0 0.0
      %8571 = vmatprep.subr.mxu0 0.0
      %8572 = vmatpush1.msra.mxu0 0.0
      %8573 = vmatprep.subr.mxu0 0.0
      %8574 = vmatpush1.msra.mxu0 0.0
      %8575 = vmatprep.subr.mxu0 0.0
      %8576 = vmatpush1.msra.mxu0 0.0
      %8577 = vmatprep.subr.mxu0 0.0
      %8578 = vmatpush1.msra.mxu0 0.0
      %8579 = vmatprep.subr.mxu0 0.0
      %8580 = vmatpush1.msra.mxu0 0.0
      %8581 = vmatprep.subr.mxu0 0.0
      %8582 = vmatpush1.msra.mxu0 0.0
      %8583 = vmatprep.subr.mxu0 0.0
      %8584 = vmatpush1.msra.mxu0 0.0
      %8585 = vmatprep.subr.mxu0 0.0
      %8586 = vmatpush1.msra.mxu0 0.0
      %8587 = vmatprep.subr.mxu0 0.0
      %8588 = vmatpush1.msra.mxu0 0.0
      %8589 = vmatprep.subr.mxu0 0.0
      %8590 = vmatpush1.msra.mxu0 0.0
      %8591 = vmatprep.subr.mxu0 0.0
      %8592 = vmatpush1.msra.mxu0 0.0
      %8593 = vmatprep.subr.mxu0 0.0
      %8594 = vmatpush1.msra.mxu0 0.0
      %8595 = vmatprep.subr.mxu0 0.0
      %8596 = vmatpush1.msra.mxu0 0.0
      %8597 = vmatprep.subr.mxu0 0.0
      %8598 = vmatpush1.msra.mxu0 0.0
      %8599 = vmatprep.subr.mxu0 0.0
      %8600 = vmatpush1.msra.mxu0 0.0
      %8601 = vmatprep.subr.mxu0 0.0
      %8602 = vmatpush1.msra.mxu0 0.0
      %8603 = vmatprep.subr.mxu0 0.0
      %8604 = vmatpush1.msra.mxu0 0.0
      %8605 = vmatprep.subr.mxu0 0.0
      %8606 = vmatpush1.msra.mxu0 0.0
      %8607 = vmatprep.subr.mxu0 0.0
      %8608 = vmatpush1.msra.mxu0 0.0
      %8609 = vmatprep.subr.mxu0 0.0
      %8610 = vmatpush1.msra.mxu0 0.0
      %8611 = vmatprep.subr.mxu0 0.0
      %8612 = vmatpush1.msra.mxu0 0.0
      %8613 = vmatprep.subr.mxu0 0.0
      %8614 = vmatpush1.msra.mxu0 0.0
      %8615 = vmatprep.subr.mxu0 0.0
      %8616 = vmatpush1.msra.mxu0 0.0
      %8617 = vmatprep.subr.mxu0 0.0
      %8618 = vmatpush1.msra.mxu0 0.0
      %8619 = vmatprep.subr.mxu0 0.0
      %8620 = vmatpush1.msra.mxu0 0.0
      %8621 = vmatprep.subr.mxu0 0.0
      %8622 = vmatpush1.msra.mxu0 0.0
      %8623 = vmatprep.subr.mxu0 0.0
      %8624 = vmatpush1.msra.mxu0 0.0
      %8625 = vmatprep.subr.mxu0 0.0
      %8626 = vmatpush1.msra.mxu0 0.0
      %8627 = vmatprep.subr.mxu0 0.0
      %8628 = vmatpush1.msra.mxu0 0.0
      %8629 = vmatprep.mubr.f32.mxu0 0.0
      %8630 = vmatmul.mubr.f32.gmra.mrb[0].mxu0 %v8467
      %v8631 = vpop.f32.mrb[0].mxu0
      %v8632 = vadd.f32 0.0, %v8631
      %v8633 = vpop.f32.mrb[0].mxu0
      %8634 = vmatprep.mubr.f32.mxu0 0.0
      %8635 = vmatmul.mubr.f32.gmra.mrb[0].mxu0 %v8470
      %v8636 = vpop.f32.mrb[0].mxu0
      %v8637 = vadd.f32 0.0, %v8636
      %v8638 = vpop.f32.mrb[0].mxu0
      %8639 = vmatprep.mubr.f32.mxu0 0.0
      %8640 = vmatmul.mubr.f32.gmra.mrb[0].mxu0 %v8473
      %v8641 = vpop.f32.mrb[0].mxu0
      %v8642 = vadd.f32 0.0, %v8641
      %v8643 = vpop.f32.mrb[0].mxu0
      %8644 = vmatprep.mubr.f32.mxu0 0.0
      %8645 = vmatmul.mubr.f32.gmra.mrb[0].mxu0 %v8476
      %v8646 = vpop.f32.mrb[0].mxu0
      %v8647 = vadd.f32 0.0, %v8646
      %v8648 = vpop.f32.mrb[0].mxu0
      %8649 = vmatprep.mubr.f32.mxu0 0.0
      %8650 = vmatmul.mubr.f32.gmra.mrb[0].mxu0 %v8479
      %v8651 = vpop.f32.mrb[0].mxu0
      %v8652 = vadd.f32 0.0, %v8651
      %v8653 = vpop.f32.mrb[0].mxu0
      %8654 = vmatprep.mubr.f32.mxu0 0.0
      %8655 = vmatmul.mubr.f32.gmra.mrb[0].mxu0 %v8482
      %v8656 = vpop.f32.mrb[0].mxu0
      %v8657 = vadd.f32 0.0, %v8656
      %v8658 = vpop.f32.mrb[0].mxu0
      %8659 = vmatprep.mubr.f32.mxu0 0.0
      %8660 = vmatmul.mubr.f32.gmra.mrb[0].mxu0 %v8485
      %v8661 = vpop.f32.mrb[0].mxu0
      %v8662 = vadd.f32 0.0, %v8661
      %v8663 = vpop.f32.mrb[0].mxu0
      %8664 = vmatprep.mubr.f32.mxu0 0.0
      %8665 = vmatmul.mubr.f32.gmra.mrb[0].mxu0 %v8488
      %v8666 = vpop.f32.mrb[0].mxu0
      %v8667 = vadd.f32 0.0, %v8666
      %v8668 = vpop.f32.mrb[0].mxu0
      %8669 = vmatprep.mubr.f32.mxu0 0.0
      %8670 = vmatmul.mubr.f32.gmra.mrb[0].mxu0 %v8491
      %v8671 = vpop.f32.mrb[0].mxu0
      %v8672 = vadd.f32 0.0, %v8671
      %v8673 = vpop.f32.mrb[0].mxu0
      %8674 = vmatprep.mubr.f32.mxu0 0.0
      %8675 = vmatmul.mubr.f32.gmra.mrb[0].mxu0 %v8494
      %v8676 = vpop.f32.mrb[0].mxu0
      %v8677 = vadd.f32 0.0, %v8676
      %v8678 = vpop.f32.mrb[0].mxu0
      %8679 = vmatprep.mubr.f32.mxu0 0.0
      %8680 = vmatmul.mubr.f32.gmra.mrb[0].mxu0 %v8497
      %v8681 = vpop.f32.mrb[0].mxu0
      %v8682 = vadd.f32 0.0, %v8681
      %v8683 = vpop.f32.mrb[0].mxu0
      %8684 = vmatprep.mubr.f32.mxu0 0.0
      %8685 = vmatmul.mubr.f32.gmra.mrb[0].mxu0 %v8500
      %v8686 = vpop.f32.mrb[0].mxu0
      %v8687 = vadd.f32 0.0, %v8686
      %v8688 = vpop.f32.mrb[0].mxu0
      %8689 = vmatprep.mubr.f32.mxu0 0.0
      %8690 = vmatmul.mubr.f32.gmra.mrb[0].mxu0 %v8503
      %v8691 = vpop.f32.mrb[0].mxu0
      %v8692 = vadd.f32 0.0, %v8691
      %v8693 = vpop.f32.mrb[0].mxu0
      %8694 = vmatprep.mubr.f32.mxu0 0.0
      %8695 = vmatmul.mubr.f32.gmra.mrb[0].mxu0 %v8506
      %v8696 = vpop.f32.mrb[0].mxu0
      %v8697 = vadd.f32 0.0, %v8696
      %v8698 = vpop.f32.mrb[0].mxu0
      %8699 = vmatprep.mubr.f32.mxu0 0.0
      %8700 = vmatmul.mubr.f32.gmra.mrb[0].mxu0 %v8509
      %v8701 = vpop.f32.mrb[0].mxu0
      %v8702 = vadd.f32 0.0, %v8701
      %v8703 = vpop.f32.mrb[0].mxu0
      %8704 = vmatprep.mubr.f32.mxu0 0.0
      %8705 = vmatmul.mubr.f32.gmra.mrb[0].mxu0 %v8512
      %v8706 = vpop.f32.mrb[0].mxu0
      %v8707 = vadd.f32 0.0, %v8706
      %v8708 = vpop.f32.mrb[0].mxu0
      %8709 = vmatprep.mubr.f32.mxu0 0.0
      %8710 = vmatmul.mubr.f32.gmra.mrb[0].mxu0 %v8515
      %v8711 = vpop.f32.mrb[0].mxu0
      %v8712 = vadd.f32 0.0, %v8711
      %v8713 = vpop.f32.mrb[0].mxu0
      %8714 = vmatprep.mubr.f32.mxu0 0.0
      %8715 = vmatmul.mubr.f32.gmra.mrb[0].mxu0 %v8518
      %v8716 = vpop.f32.mrb[0].mxu0
      %v8717 = vadd.f32 0.0, %v8716
      %v8718 = vpop.f32.mrb[0].mxu0
      %8719 = vmatprep.mubr.f32.mxu0 0.0
      %8720 = vmatmul.mubr.f32.gmra.mrb[0].mxu0 %v8521
      %v8721 = vpop.f32.mrb[0].mxu0
      %v8722 = vadd.f32 0.0, %v8721
      %v8723 = vpop.f32.mrb[0].mxu0
      %8724 = vmatprep.mubr.f32.mxu0 0.0
      %8725 = vmatmul.mubr.f32.gmra.mrb[0].mxu0 %v8524
      %v8726 = vpop.f32.mrb[0].mxu0
      %v8727 = vadd.f32 0.0, %v8726
      %v8728 = vpop.f32.mrb[0].mxu0
      %8729 = vmatprep.mubr.f32.mxu0 0.0
      %8730 = vmatmul.mubr.f32.gmra.mrb[0].mxu0 %v8527
      %v8731 = vpop.f32.mrb[0].mxu0
      %v8732 = vadd.f32 0.0, %v8731
      %v8733 = vpop.f32.mrb[0].mxu0
      %8734 = vmatprep.mubr.f32.mxu0 0.0
      %8735 = vmatmul.mubr.f32.gmra.mrb[0].mxu0 %v8530
      %v8736 = vpop.f32.mrb[0].mxu0
      %v8737 = vadd.f32 0.0, %v8736
      %v8738 = vpop.f32.mrb[0].mxu0
      %8739 = vmatprep.mubr.f32.mxu0 0.0
      %8740 = vmatmul.mubr.f32.gmra.mrb[0].mxu0 %v8533
      %v8741 = vpop.f32.mrb[0].mxu0
      %v8742 = vadd.f32 0.0, %v8741
      %v8743 = vpop.f32.mrb[0].mxu0
      %8744 = vmatprep.mubr.f32.mxu0 0.0
      %8745 = vmatmul.mubr.f32.gmra.mrb[0].mxu0 %v8536
      %v8746 = vpop.f32.mrb[0].mxu0
      %v8747 = vadd.f32 0.0, %v8746
      %v8748 = vpop.f32.mrb[0].mxu0
      %8749 = vmatprep.mubr.f32.mxu0 0.0
      %8750 = vmatmul.mubr.f32.gmra.mrb[0].mxu0 %v8539
      %v8751 = vpop.f32.mrb[0].mxu0
      %v8752 = vadd.f32 0.0, %v8751
      %v8753 = vpop.f32.mrb[0].mxu0
      %8754 = vmatprep.mubr.f32.mxu0 0.0
      %8755 = vmatmul.mubr.f32.gmra.mrb[0].mxu0 %v8542
      %v8756 = vpop.f32.mrb[0].mxu0
      %v8757 = vadd.f32 0.0, %v8756
      %v8758 = vpop.f32.mrb[0].mxu0
      %8759 = vmatprep.mubr.f32.mxu0 0.0
      %8760 = vmatmul.mubr.f32.gmra.mrb[0].mxu0 %v8545
      %v8761 = vpop.f32.mrb[0].mxu0
      %v8762 = vadd.f32 0.0, %v8761
      %v8763 = vpop.f32.mrb[0].mxu0
      %8764 = vmatprep.mubr.f32.mxu0 0.0
      %8765 = vmatmul.mubr.f32.gmra.mrb[0].mxu0 %v8548
      %v8766 = vpop.f32.mrb[0].mxu0
      %v8767 = vadd.f32 0.0, %v8766
      %v8768 = vpop.f32.mrb[0].mxu0
      %8769 = vmatprep.mubr.f32.mxu0 0.0
      %8770 = vmatmul.mubr.f32.gmra.mrb[0].mxu0 %v8551
      %v8771 = vpop.f32.mrb[0].mxu0
      %v8772 = vadd.f32 0.0, %v8771
      %v8773 = vpop.f32.mrb[0].mxu0
      %8774 = vmatprep.mubr.f32.mxu0 0.0
      %8775 = vmatmul.mubr.f32.gmra.mrb[0].mxu0 %v8554
      %v8776 = vpop.f32.mrb[0].mxu0
      %v8777 = vadd.f32 0.0, %v8776
      %v8778 = vpop.f32.mrb[0].mxu0
      %8779 = vmatprep.mubr.f32.mxu0 0.0
      %8780 = vmatmul.mubr.f32.gmra.mrb[0].mxu0 %v8557
      %v8781 = vpop.f32.mrb[0].mxu0
      %v8782 = vadd.f32 0.0, %v8781
      %v8783 = vpop.f32.mrb[0].mxu0
      %8784 = vmatprep.mubr.f32.mxu0 0.0
      %8785 = vmatmul.mubr.f32.gmra.mrb[0].mxu0 %v8560
      %v8786 = vpop.f32.mrb[0].mxu0
      %v8787 = vadd.f32 0.0, %v8786
      %v8788 = vpop.f32.mrb[0].mxu0
      %8789 = vdwg.mxu0
      %v8790 = vadd.f32 %v8401, %v8632
      %v8791 = vadd.f32 %v8402, %v8637
      %v8792 = vadd.f32 %v8403, %v8642
      %v8793 = vadd.f32 %v8404, %v8647
      %v8794 = vadd.f32 %v8405, %v8652
      %v8795 = vadd.f32 %v8406, %v8657
      %v8796 = vadd.f32 %v8407, %v8662
      %v8797 = vadd.f32 %v8408, %v8667
      %v8798 = vadd.f32 %v8409, %v8672
      %v8799 = vadd.f32 %v8410, %v8677
      %v8800 = vadd.f32 %v8411, %v8682
      %v8801 = vadd.f32 %v8412, %v8687
      %v8802 = vadd.f32 %v8413, %v8692
      %v8803 = vadd.f32 %v8414, %v8697
      %v8804 = vadd.f32 %v8415, %v8702
      %v8805 = vadd.f32 %v8416, %v8707
      %v8806 = vadd.f32 %v8417, %v8712
      %v8807 = vadd.f32 %v8418, %v8717
      %v8808 = vadd.f32 %v8419, %v8722
      %v8809 = vadd.f32 %v8420, %v8727
      %v8810 = vadd.f32 %v8421, %v8732
      %v8811 = vadd.f32 %v8422, %v8737
      %v8812 = vadd.f32 %v8423, %v8742
      %v8813 = vadd.f32 %v8424, %v8747
      %v8814 = vadd.f32 %v8425, %v8752
      %v8815 = vadd.f32 %v8426, %v8757
      %v8816 = vadd.f32 %v8427, %v8762
      %v8817 = vadd.f32 %v8428, %v8767
      %v8818 = vadd.f32 %v8429, %v8772
      %v8819 = vadd.f32 %v8430, %v8777
      %v8820 = vadd.f32 %v8431, %v8782
      %v8821 = vadd.f32 %v8432, %v8787
      %v8822 = vld [vmem:[#allocation2 + $0x29] sm:$0xff]
      %v8823 = vld [vmem:[#allocation2 + $0x31] sm:$0xff]
      %v8824 = vld [vmem:[#allocation2 + $0x39] sm:$0xff]
      %v8825 = vld [vmem:[#allocation2 + $0x41] sm:$0xff]
      %v8826 = vld [vmem:[#allocation2 + $0x49] sm:$0xff]
      %v8827 = vld [vmem:[#allocation2 + $0x51] sm:$0xff]
      %v8828 = vld [vmem:[#allocation2 + $0x59] sm:$0xff]
      %v8829 = vld [vmem:[#allocation2 + $0x61] sm:$0xff]
      %v8830 = vld [vmem:[#allocation2 + $0x69] sm:$0xff]
      %v8831 = vld [vmem:[#allocation2 + $0x71] sm:$0xff]
      %v8832 = vld [vmem:[#allocation2 + $0x79] sm:$0xff]
      %v8833 = vld [vmem:[#allocation2 + $0x81] sm:$0xff]
      %v8834 = vld [vmem:[#allocation2 + $0x89] sm:$0xff]
      %v8835 = vld [vmem:[#allocation2 + $0x91] sm:$0xff]
      %v8836 = vld [vmem:[#allocation2 + $0x99] sm:$0xff]
      %v8837 = vld [vmem:[#allocation2 + $0xa1] sm:$0xff]
      %v8838 = vld [vmem:[#allocation2 + $0xa9] sm:$0xff]
      %v8839 = vld [vmem:[#allocation2 + $0xb1] sm:$0xff]
      %v8840 = vld [vmem:[#allocation2 + $0xb9] sm:$0xff]
      %v8841 = vld [vmem:[#allocation2 + $0xc1] sm:$0xff]
      %v8842 = vld [vmem:[#allocation2 + $0xc9] sm:$0xff]
      %v8843 = vld [vmem:[#allocation2 + $0xd1] sm:$0xff]
      %v8844 = vld [vmem:[#allocation2 + $0xd9] sm:$0xff]
      %v8845 = vld [vmem:[#allocation2 + $0xe1] sm:$0xff]
      %v8846 = vld [vmem:[#allocation2 + $0xe9] sm:$0xff]
      %v8847 = vld [vmem:[#allocation2 + $0xf1] sm:$0xff]
      %v8848 = vld [vmem:[#allocation2 + $0xf9] sm:$0xff]
      %v8849 = vld [vmem:[#allocation2 + $0x101] sm:$0xff]
      %v8850 = vld [vmem:[#allocation2 + $0x109] sm:$0xff]
      %v8851 = vld [vmem:[#allocation2 + $0x111] sm:$0xff]
      %v8852 = vld [vmem:[#allocation2 + $0x119] sm:$0xff]
      %v8853 = vld [vmem:[#allocation2 + $0x121] sm:$0xff]
      %v8854 = vmul.f32 %v8822, %v2068
      %v8855 = vmul.f32 %v8823, %v2073
      %v8856 = vmul.f32 %v8824, %v2078
      %v8857 = vmul.f32 %v8825, %v2083
      %v8858 = vmul.f32 %v8826, %v2088
      %v8859 = vmul.f32 %v8827, %v2093
      %v8860 = vmul.f32 %v8828, %v2098
      %v8861 = vmul.f32 %v8829, %v2103
      %v8862 = vmul.f32 %v8830, %v2108
      %v8863 = vmul.f32 %v8831, %v2113
      %v8864 = vmul.f32 %v8832, %v2118
      %v8865 = vmul.f32 %v8833, %v2123
      %v8866 = vmul.f32 %v8834, %v2128
      %v8867 = vmul.f32 %v8835, %v2133
      %v8868 = vmul.f32 %v8836, %v2138
      %v8869 = vmul.f32 %v8837, %v2143
      %v8870 = vmul.f32 %v8838, %v2148
      %v8871 = vmul.f32 %v8839, %v2153
      %v8872 = vmul.f32 %v8840, %v2158
      %v8873 = vmul.f32 %v8841, %v2163
      %v8874 = vmul.f32 %v8842, %v2168
      %v8875 = vmul.f32 %v8843, %v2173
      %v8876 = vmul.f32 %v8844, %v2178
      %v8877 = vmul.f32 %v8845, %v2183
      %v8878 = vmul.f32 %v8846, %v2188
      %v8879 = vmul.f32 %v8847, %v2193
      %v8880 = vmul.f32 %v8848, %v2198
      %v8881 = vmul.f32 %v8849, %v2203
      %v8882 = vmul.f32 %v8850, %v2208
      %v8883 = vmul.f32 %v8851, %v2213
      %v8884 = vmul.f32 %v8852, %v2218
      %v8885 = vmul.f32 %v8853, %v2223
      %v8886 = vld [vmem:[%s4725] sm:$0xf]
      %v8888 = vsel %vm306, %v8854, 0
      %v8891 = vsel %vm306, %v8855, 0
      %v8894 = vsel %vm306, %v8856, 0
      %v8897 = vsel %vm306, %v8857, 0
      %v8900 = vsel %vm306, %v8858, 0
      %v8903 = vsel %vm306, %v8859, 0
      %v8906 = vsel %vm306, %v8860, 0
      %v8909 = vsel %vm306, %v8861, 0
      %v8912 = vsel %vm306, %v8862, 0
      %v8915 = vsel %vm306, %v8863, 0
      %v8918 = vsel %vm306, %v8864, 0
      %v8921 = vsel %vm306, %v8865, 0
      %v8924 = vsel %vm306, %v8866, 0
      %v8927 = vsel %vm306, %v8867, 0
      %v8930 = vsel %vm306, %v8868, 0
      %v8933 = vsel %vm306, %v8869, 0
      %v8936 = vsel %vm306, %v8870, 0
      %v8939 = vsel %vm306, %v8871, 0
      %v8942 = vsel %vm306, %v8872, 0
      %v8945 = vsel %vm306, %v8873, 0
      %v8948 = vsel %vm306, %v8874, 0
      %v8951 = vsel %vm306, %v8875, 0
      %v8954 = vsel %vm306, %v8876, 0
      %v8957 = vsel %vm306, %v8877, 0
      %v8960 = vsel %vm306, %v8878, 0
      %v8963 = vsel %vm306, %v8879, 0
      %v8966 = vsel %vm306, %v8880, 0
      %v8969 = vsel %vm306, %v8881, 0
      %v8972 = vsel %vm306, %v8882, 0
      %v8975 = vsel %vm306, %v8883, 0
      %v8978 = vsel %vm306, %v8884, 0
      %v8981 = vsel %vm306, %v8885, 0
      %v8984 = vsel %vm1480, %v8886, 0
      %8986 = vmatprep.subr.mxu0 0.0
      %8987 = vmatpush1.msra.mxu0 %v8984
      %8988 = vmatprep.subr.mxu0 0.0
      %8989 = vmatpush1.msra.mxu0 0.0
      %8990 = vmatprep.subr.mxu0 0.0
      %8991 = vmatpush1.msra.mxu0 0.0
      %8992 = vmatprep.subr.mxu0 0.0
      %8993 = vmatpush1.msra.mxu0 0.0
      %8994 = vmatprep.subr.mxu0 0.0
      %8995 = vmatpush1.msra.mxu0 0.0
      %8996 = vmatprep.subr.mxu0 0.0
      %8997 = vmatpush1.msra.mxu0 0.0
      %8998 = vmatprep.subr.mxu0 0.0
      %8999 = vmatpush1.msra.mxu0 0.0
      %9000 = vmatprep.subr.mxu0 0.0
      %9001 = vmatpush1.msra.mxu0 0.0
      %9002 = vmatprep.subr.mxu0 0.0
      %9003 = vmatpush1.msra.mxu0 0.0
      %9004 = vmatprep.subr.mxu0 0.0
      %9005 = vmatpush1.msra.mxu0 0.0
      %9006 = vmatprep.subr.mxu0 0.0
      %9007 = vmatpush1.msra.mxu0 0.0
      %9008 = vmatprep.subr.mxu0 0.0
      %9009 = vmatpush1.msra.mxu0 0.0
      %9010 = vmatprep.subr.mxu0 0.0
      %9011 = vmatpush1.msra.mxu0 0.0
      %9012 = vmatprep.subr.mxu0 0.0
      %9013 = vmatpush1.msra.mxu0 0.0
      %9014 = vmatprep.subr.mxu0 0.0
      %9015 = vmatpush1.msra.mxu0 0.0
      %9016 = vmatprep.subr.mxu0 0.0
      %9017 = vmatpush1.msra.mxu0 0.0
      %9018 = vmatprep.subr.mxu0 0.0
      %9019 = vmatpush1.msra.mxu0 0.0
      %9020 = vmatprep.subr.mxu0 0.0
      %9021 = vmatpush1.msra.mxu0 0.0
      %9022 = vmatprep.subr.mxu0 0.0
      %9023 = vmatpush1.msra.mxu0 0.0
      %9024 = vmatprep.subr.mxu0 0.0
      %9025 = vmatpush1.msra.mxu0 0.0
      %9026 = vmatprep.subr.mxu0 0.0
      %9027 = vmatpush1.msra.mxu0 0.0
      %9028 = vmatprep.subr.mxu0 0.0
      %9029 = vmatpush1.msra.mxu0 0.0
      %9030 = vmatprep.subr.mxu0 0.0
      %9031 = vmatpush1.msra.mxu0 0.0
      %9032 = vmatprep.subr.mxu0 0.0
      %9033 = vmatpush1.msra.mxu0 0.0
      %9034 = vmatprep.subr.mxu0 0.0
      %9035 = vmatpush1.msra.mxu0 0.0
      %9036 = vmatprep.subr.mxu0 0.0
      %9037 = vmatpush1.msra.mxu0 0.0
      %9038 = vmatprep.subr.mxu0 0.0
      %9039 = vmatpush1.msra.mxu0 0.0
      %9040 = vmatprep.subr.mxu0 0.0
      %9041 = vmatpush1.msra.mxu0 0.0
      %9042 = vmatprep.subr.mxu0 0.0
      %9043 = vmatpush1.msra.mxu0 0.0
      %9044 = vmatprep.subr.mxu0 0.0
      %9045 = vmatpush1.msra.mxu0 0.0
      %9046 = vmatprep.subr.mxu0 0.0
      %9047 = vmatpush1.msra.mxu0 0.0
      %9048 = vmatprep.subr.mxu0 0.0
      %9049 = vmatpush1.msra.mxu0 0.0
      %9050 = vmatprep.mubr.f32.mxu0 0.0
      %9051 = vmatmul.mubr.f32.gmra.mrb[0].mxu0 %v8888
      %v9052 = vpop.f32.mrb[0].mxu0
      %v9053 = vadd.f32 0.0, %v9052
      %v9054 = vpop.f32.mrb[0].mxu0
      %9055 = vmatprep.mubr.f32.mxu0 0.0
      %9056 = vmatmul.mubr.f32.gmra.mrb[0].mxu0 %v8891
      %v9057 = vpop.f32.mrb[0].mxu0
      %v9058 = vadd.f32 0.0, %v9057
      %v9059 = vpop.f32.mrb[0].mxu0
      %9060 = vmatprep.mubr.f32.mxu0 0.0
      %9061 = vmatmul.mubr.f32.gmra.mrb[0].mxu0 %v8894
      %v9062 = vpop.f32.mrb[0].mxu0
      %v9063 = vadd.f32 0.0, %v9062
      %v9064 = vpop.f32.mrb[0].mxu0
      %9065 = vmatprep.mubr.f32.mxu0 0.0
      %9066 = vmatmul.mubr.f32.gmra.mrb[0].mxu0 %v8897
      %v9067 = vpop.f32.mrb[0].mxu0
      %v9068 = vadd.f32 0.0, %v9067
      %v9069 = vpop.f32.mrb[0].mxu0
      %9070 = vmatprep.mubr.f32.mxu0 0.0
      %9071 = vmatmul.mubr.f32.gmra.mrb[0].mxu0 %v8900
      %v9072 = vpop.f32.mrb[0].mxu0
      %v9073 = vadd.f32 0.0, %v9072
      %v9074 = vpop.f32.mrb[0].mxu0
      %9075 = vmatprep.mubr.f32.mxu0 0.0
      %9076 = vmatmul.mubr.f32.gmra.mrb[0].mxu0 %v8903
      %v9077 = vpop.f32.mrb[0].mxu0
      %v9078 = vadd.f32 0.0, %v9077
      %v9079 = vpop.f32.mrb[0].mxu0
      %9080 = vmatprep.mubr.f32.mxu0 0.0
      %9081 = vmatmul.mubr.f32.gmra.mrb[0].mxu0 %v8906
      %v9082 = vpop.f32.mrb[0].mxu0
      %v9083 = vadd.f32 0.0, %v9082
      %v9084 = vpop.f32.mrb[0].mxu0
      %9085 = vmatprep.mubr.f32.mxu0 0.0
      %9086 = vmatmul.mubr.f32.gmra.mrb[0].mxu0 %v8909
      %v9087 = vpop.f32.mrb[0].mxu0
      %v9088 = vadd.f32 0.0, %v9087
      %v9089 = vpop.f32.mrb[0].mxu0
      %9090 = vmatprep.mubr.f32.mxu0 0.0
      %9091 = vmatmul.mubr.f32.gmra.mrb[0].mxu0 %v8912
      %v9092 = vpop.f32.mrb[0].mxu0
      %v9093 = vadd.f32 0.0, %v9092
      %v9094 = vpop.f32.mrb[0].mxu0
      %9095 = vmatprep.mubr.f32.mxu0 0.0
      %9096 = vmatmul.mubr.f32.gmra.mrb[0].mxu0 %v8915
      %v9097 = vpop.f32.mrb[0].mxu0
      %v9098 = vadd.f32 0.0, %v9097
      %v9099 = vpop.f32.mrb[0].mxu0
      %9100 = vmatprep.mubr.f32.mxu0 0.0
      %9101 = vmatmul.mubr.f32.gmra.mrb[0].mxu0 %v8918
      %v9102 = vpop.f32.mrb[0].mxu0
      %v9103 = vadd.f32 0.0, %v9102
      %v9104 = vpop.f32.mrb[0].mxu0
      %9105 = vmatprep.mubr.f32.mxu0 0.0
      %9106 = vmatmul.mubr.f32.gmra.mrb[0].mxu0 %v8921
      %v9107 = vpop.f32.mrb[0].mxu0
      %v9108 = vadd.f32 0.0, %v9107
      %v9109 = vpop.f32.mrb[0].mxu0
      %9110 = vmatprep.mubr.f32.mxu0 0.0
      %9111 = vmatmul.mubr.f32.gmra.mrb[0].mxu0 %v8924
      %v9112 = vpop.f32.mrb[0].mxu0
      %v9113 = vadd.f32 0.0, %v9112
      %v9114 = vpop.f32.mrb[0].mxu0
      %9115 = vmatprep.mubr.f32.mxu0 0.0
      %9116 = vmatmul.mubr.f32.gmra.mrb[0].mxu0 %v8927
      %v9117 = vpop.f32.mrb[0].mxu0
      %v9118 = vadd.f32 0.0, %v9117
      %v9119 = vpop.f32.mrb[0].mxu0
      %9120 = vmatprep.mubr.f32.mxu0 0.0
      %9121 = vmatmul.mubr.f32.gmra.mrb[0].mxu0 %v8930
      %v9122 = vpop.f32.mrb[0].mxu0
      %v9123 = vadd.f32 0.0, %v9122
      %v9124 = vpop.f32.mrb[0].mxu0
      %9125 = vmatprep.mubr.f32.mxu0 0.0
      %9126 = vmatmul.mubr.f32.gmra.mrb[0].mxu0 %v8933
      %v9127 = vpop.f32.mrb[0].mxu0
      %v9128 = vadd.f32 0.0, %v9127
      %v9129 = vpop.f32.mrb[0].mxu0
      %9130 = vmatprep.mubr.f32.mxu0 0.0
      %9131 = vmatmul.mubr.f32.gmra.mrb[0].mxu0 %v8936
      %v9132 = vpop.f32.mrb[0].mxu0
      %v9133 = vadd.f32 0.0, %v9132
      %v9134 = vpop.f32.mrb[0].mxu0
      %9135 = vmatprep.mubr.f32.mxu0 0.0
      %9136 = vmatmul.mubr.f32.gmra.mrb[0].mxu0 %v8939
      %v9137 = vpop.f32.mrb[0].mxu0
      %v9138 = vadd.f32 0.0, %v9137
      %v9139 = vpop.f32.mrb[0].mxu0
      %9140 = vmatprep.mubr.f32.mxu0 0.0
      %9141 = vmatmul.mubr.f32.gmra.mrb[0].mxu0 %v8942
      %v9142 = vpop.f32.mrb[0].mxu0
      %v9143 = vadd.f32 0.0, %v9142
      %v9144 = vpop.f32.mrb[0].mxu0
      %9145 = vmatprep.mubr.f32.mxu0 0.0
      %9146 = vmatmul.mubr.f32.gmra.mrb[0].mxu0 %v8945
      %v9147 = vpop.f32.mrb[0].mxu0
      %v9148 = vadd.f32 0.0, %v9147
      %v9149 = vpop.f32.mrb[0].mxu0
      %9150 = vmatprep.mubr.f32.mxu0 0.0
      %9151 = vmatmul.mubr.f32.gmra.mrb[0].mxu0 %v8948
      %v9152 = vpop.f32.mrb[0].mxu0
      %v9153 = vadd.f32 0.0, %v9152
      %v9154 = vpop.f32.mrb[0].mxu0
      %9155 = vmatprep.mubr.f32.mxu0 0.0
      %9156 = vmatmul.mubr.f32.gmra.mrb[0].mxu0 %v8951
      %v9157 = vpop.f32.mrb[0].mxu0
      %v9158 = vadd.f32 0.0, %v9157
      %v9159 = vpop.f32.mrb[0].mxu0
      %9160 = vmatprep.mubr.f32.mxu0 0.0
      %9161 = vmatmul.mubr.f32.gmra.mrb[0].mxu0 %v8954
      %v9162 = vpop.f32.mrb[0].mxu0
      %v9163 = vadd.f32 0.0, %v9162
      %v9164 = vpop.f32.mrb[0].mxu0
      %9165 = vmatprep.mubr.f32.mxu0 0.0
      %9166 = vmatmul.mubr.f32.gmra.mrb[0].mxu0 %v8957
      %v9167 = vpop.f32.mrb[0].mxu0
      %v9168 = vadd.f32 0.0, %v9167
      %v9169 = vpop.f32.mrb[0].mxu0
      %9170 = vmatprep.mubr.f32.mxu0 0.0
      %9171 = vmatmul.mubr.f32.gmra.mrb[0].mxu0 %v8960
      %v9172 = vpop.f32.mrb[0].mxu0
      %v9173 = vadd.f32 0.0, %v9172
      %v9174 = vpop.f32.mrb[0].mxu0
      %9175 = vmatprep.mubr.f32.mxu0 0.0
      %9176 = vmatmul.mubr.f32.gmra.mrb[0].mxu0 %v8963
      %v9177 = vpop.f32.mrb[0].mxu0
      %v9178 = vadd.f32 0.0, %v9177
      %v9179 = vpop.f32.mrb[0].mxu0
      %9180 = vmatprep.mubr.f32.mxu0 0.0
      %9181 = vmatmul.mubr.f32.gmra.mrb[0].mxu0 %v8966
      %v9182 = vpop.f32.mrb[0].mxu0
      %v9183 = vadd.f32 0.0, %v9182
      %v9184 = vpop.f32.mrb[0].mxu0
      %9185 = vmatprep.mubr.f32.mxu0 0.0
      %9186 = vmatmul.mubr.f32.gmra.mrb[0].mxu0 %v8969
      %v9187 = vpop.f32.mrb[0].mxu0
      %v9188 = vadd.f32 0.0, %v9187
      %v9189 = vpop.f32.mrb[0].mxu0
      %9190 = vmatprep.mubr.f32.mxu0 0.0
      %9191 = vmatmul.mubr.f32.gmra.mrb[0].mxu0 %v8972
      %v9192 = vpop.f32.mrb[0].mxu0
      %v9193 = vadd.f32 0.0, %v9192
      %v9194 = vpop.f32.mrb[0].mxu0
      %9195 = vmatprep.mubr.f32.mxu0 0.0
      %9196 = vmatmul.mubr.f32.gmra.mrb[0].mxu0 %v8975
      %v9197 = vpop.f32.mrb[0].mxu0
      %v9198 = vadd.f32 0.0, %v9197
      %v9199 = vpop.f32.mrb[0].mxu0
      %9200 = vmatprep.mubr.f32.mxu0 0.0
      %9201 = vmatmul.mubr.f32.gmra.mrb[0].mxu0 %v8978
      %v9202 = vpop.f32.mrb[0].mxu0
      %v9203 = vadd.f32 0.0, %v9202
      %v9204 = vpop.f32.mrb[0].mxu0
      %9205 = vmatprep.mubr.f32.mxu0 0.0
      %9206 = vmatmul.mubr.f32.gmra.mrb[0].mxu0 %v8981
      %v9207 = vpop.f32.mrb[0].mxu0
      %v9208 = vadd.f32 0.0, %v9207
      %v9209 = vpop.f32.mrb[0].mxu0
      %9210 = vdwg.mxu0
      %v9211 = vadd.f32 %v8790, %v9053
      %v9212 = vadd.f32 %v8791, %v9058
      %v9213 = vadd.f32 %v8792, %v9063
      %v9214 = vadd.f32 %v8793, %v9068
      %v9215 = vadd.f32 %v8794, %v9073
      %v9216 = vadd.f32 %v8795, %v9078
      %v9217 = vadd.f32 %v8796, %v9083
      %v9218 = vadd.f32 %v8797, %v9088
      %v9219 = vadd.f32 %v8798, %v9093
      %v9220 = vadd.f32 %v8799, %v9098
      %v9221 = vadd.f32 %v8800, %v9103
      %v9222 = vadd.f32 %v8801, %v9108
      %v9223 = vadd.f32 %v8802, %v9113
      %v9224 = vadd.f32 %v8803, %v9118
      %v9225 = vadd.f32 %v8804, %v9123
      %v9226 = vadd.f32 %v8805, %v9128
      %v9227 = vadd.f32 %v8806, %v9133
      %v9228 = vadd.f32 %v8807, %v9138
      %v9229 = vadd.f32 %v8808, %v9143
      %v9230 = vadd.f32 %v8809, %v9148
      %v9231 = vadd.f32 %v8810, %v9153
      %v9232 = vadd.f32 %v8811, %v9158
      %v9233 = vadd.f32 %v8812, %v9163
      %v9234 = vadd.f32 %v8813, %v9168
      %v9235 = vadd.f32 %v8814, %v9173
      %v9236 = vadd.f32 %v8815, %v9178
      %v9237 = vadd.f32 %v8816, %v9183
      %v9238 = vadd.f32 %v8817, %v9188
      %v9239 = vadd.f32 %v8818, %v9193
      %v9240 = vadd.f32 %v8819, %v9198
      %v9241 = vadd.f32 %v8820, %v9203
      %v9242 = vadd.f32 %v8821, %v9208
      %v9243 = vld [vmem:[%s5] sm:$0x1]
      %v9245 = vlaneseq
      %v9246 = vshrl.u32 %v9245, 7
      %v9247 = vsub.s32 0, %v9246
      %v9248 = vrot.slane %v9243, %v9247
      %v9250 = vadd.f32 %v9211, %v9248
      %v9251 = vadd.f32 %v9212, %v9248
      %v9252 = vadd.f32 %v9213, %v9248
      %v9253 = vadd.f32 %v9214, %v9248
      %v9254 = vadd.f32 %v9215, %v9248
      %v9255 = vadd.f32 %v9216, %v9248
      %v9256 = vadd.f32 %v9217, %v9248
      %v9257 = vadd.f32 %v9218, %v9248
      %v9258 = vadd.f32 %v9219, %v9248
      %v9259 = vadd.f32 %v9220, %v9248
      %v9260 = vadd.f32 %v9221, %v9248
      %v9261 = vadd.f32 %v9222, %v9248
      %v9262 = vadd.f32 %v9223, %v9248
      %v9263 = vadd.f32 %v9224, %v9248
      %v9264 = vadd.f32 %v9225, %v9248
      %v9265 = vadd.f32 %v9226, %v9248
      %v9266 = vadd.f32 %v9227, %v9248
      %v9267 = vadd.f32 %v9228, %v9248
      %v9268 = vadd.f32 %v9229, %v9248
      %v9269 = vadd.f32 %v9230, %v9248
      %v9270 = vadd.f32 %v9231, %v9248
      %v9271 = vadd.f32 %v9232, %v9248
      %v9272 = vadd.f32 %v9233, %v9248
      %v9273 = vadd.f32 %v9234, %v9248
      %v9274 = vadd.f32 %v9235, %v9248
      %v9275 = vadd.f32 %v9236, %v9248
      %v9276 = vadd.f32 %v9237, %v9248
      %v9277 = vadd.f32 %v9238, %v9248
      %v9278 = vadd.f32 %v9239, %v9248
      %v9279 = vadd.f32 %v9240, %v9248
      %v9280 = vadd.f32 %v9241, %v9248
      %v9281 = vadd.f32 %v9242, %v9248
      %v9282 = vmax.f32 %v9250, 0.0
      %v9283 = vmax.f32 %v9251, 0.0
      %v9284 = vmax.f32 %v9252, 0.0
      %v9285 = vmax.f32 %v9253, 0.0
      %v9286 = vmax.f32 %v9254, 0.0
      %v9287 = vmax.f32 %v9255, 0.0
      %v9288 = vmax.f32 %v9256, 0.0
      %v9289 = vmax.f32 %v9257, 0.0
      %v9290 = vmax.f32 %v9258, 0.0
      %v9291 = vmax.f32 %v9259, 0.0
      %v9292 = vmax.f32 %v9260, 0.0
      %v9293 = vmax.f32 %v9261, 0.0
      %v9294 = vmax.f32 %v9262, 0.0
      %v9295 = vmax.f32 %v9263, 0.0
      %v9296 = vmax.f32 %v9264, 0.0
      %v9297 = vmax.f32 %v9265, 0.0
      %v9298 = vmax.f32 %v9266, 0.0
      %v9299 = vmax.f32 %v9267, 0.0
      %v9300 = vmax.f32 %v9268, 0.0
      %v9301 = vmax.f32 %v9269, 0.0
      %v9302 = vmax.f32 %v9270, 0.0
      %v9303 = vmax.f32 %v9271, 0.0
      %v9304 = vmax.f32 %v9272, 0.0
      %v9305 = vmax.f32 %v9273, 0.0
      %v9306 = vmax.f32 %v9274, 0.0
      %v9307 = vmax.f32 %v9275, 0.0
      %v9308 = vmax.f32 %v9276, 0.0
      %v9309 = vmax.f32 %v9277, 0.0
      %v9310 = vmax.f32 %v9278, 0.0
      %v9311 = vmax.f32 %v9279, 0.0
      %v9312 = vmax.f32 %v9280, 0.0
      %v9313 = vmax.f32 %v9281, 0.0
      %v9314 = vld [vmem:[%s6] sm:$0xf]
      %v9315 = vld [vmem:[%s7] sm:$0x1]
      %v9317 = vlaneseq
      %v9318 = vshrl.u32 %v9317, 7
      %v9319 = vsub.s32 0, %v9318
      %v9320 = vrot.slane %v9315, %v9319
      %v9323 = vsel %vm306, %v9282, 0
      %v9326 = vsel %vm306, %v9283, 0
      %v9329 = vsel %vm306, %v9284, 0
      %v9332 = vsel %vm306, %v9285, 0
      %v9335 = vsel %vm306, %v9286, 0
      %v9338 = vsel %vm306, %v9287, 0
      %v9341 = vsel %vm306, %v9288, 0
      %v9344 = vsel %vm306, %v9289, 0
      %v9347 = vsel %vm306, %v9290, 0
      %v9350 = vsel %vm306, %v9291, 0
      %v9353 = vsel %vm306, %v9292, 0
      %v9356 = vsel %vm306, %v9293, 0
      %v9359 = vsel %vm306, %v9294, 0
      %v9362 = vsel %vm306, %v9295, 0
      %v9365 = vsel %vm306, %v9296, 0
      %v9368 = vsel %vm306, %v9297, 0
      %v9371 = vsel %vm306, %v9298, 0
      %v9374 = vsel %vm306, %v9299, 0
      %v9377 = vsel %vm306, %v9300, 0
      %v9380 = vsel %vm306, %v9301, 0
      %v9383 = vsel %vm306, %v9302, 0
      %v9386 = vsel %vm306, %v9303, 0
      %v9389 = vsel %vm306, %v9304, 0
      %v9392 = vsel %vm306, %v9305, 0
      %v9395 = vsel %vm306, %v9306, 0
      %v9398 = vsel %vm306, %v9307, 0
      %v9401 = vsel %vm306, %v9308, 0
      %v9404 = vsel %vm306, %v9309, 0
      %v9407 = vsel %vm306, %v9310, 0
      %v9410 = vsel %vm306, %v9311, 0
      %v9413 = vsel %vm306, %v9312, 0
      %v9416 = vsel %vm306, %v9313, 0
      %v9419 = vsel %vm1480, %v9314, 0
      %9421 = vmatprep.subr.mxu0 0.0
      %9422 = vmatpush1.msra.mxu0 %v9419
      %9423 = vmatprep.subr.mxu0 0.0
      %9424 = vmatpush1.msra.mxu0 0.0
      %9425 = vmatprep.subr.mxu0 0.0
      %9426 = vmatpush1.msra.mxu0 0.0
      %9427 = vmatprep.subr.mxu0 0.0
      %9428 = vmatpush1.msra.mxu0 0.0
      %9429 = vmatprep.subr.mxu0 0.0
      %9430 = vmatpush1.msra.mxu0 0.0
      %9431 = vmatprep.subr.mxu0 0.0
      %9432 = vmatpush1.msra.mxu0 0.0
      %9433 = vmatprep.subr.mxu0 0.0
      %9434 = vmatpush1.msra.mxu0 0.0
      %9435 = vmatprep.subr.mxu0 0.0
      %9436 = vmatpush1.msra.mxu0 0.0
      %9437 = vmatprep.subr.mxu0 0.0
      %9438 = vmatpush1.msra.mxu0 0.0
      %9439 = vmatprep.subr.mxu0 0.0
      %9440 = vmatpush1.msra.mxu0 0.0
      %9441 = vmatprep.subr.mxu0 0.0
      %9442 = vmatpush1.msra.mxu0 0.0
      %9443 = vmatprep.subr.mxu0 0.0
      %9444 = vmatpush1.msra.mxu0 0.0
      %9445 = vmatprep.subr.mxu0 0.0
      %9446 = vmatpush1.msra.mxu0 0.0
      %9447 = vmatprep.subr.mxu0 0.0
      %9448 = vmatpush1.msra.mxu0 0.0
      %9449 = vmatprep.subr.mxu0 0.0
      %9450 = vmatpush1.msra.mxu0 0.0
      %9451 = vmatprep.subr.mxu0 0.0
      %9452 = vmatpush1.msra.mxu0 0.0
      %9453 = vmatprep.subr.mxu0 0.0
      %9454 = vmatpush1.msra.mxu0 0.0
      %9455 = vmatprep.subr.mxu0 0.0
      %9456 = vmatpush1.msra.mxu0 0.0
      %9457 = vmatprep.subr.mxu0 0.0
      %9458 = vmatpush1.msra.mxu0 0.0
      %9459 = vmatprep.subr.mxu0 0.0
      %9460 = vmatpush1.msra.mxu0 0.0
      %9461 = vmatprep.subr.mxu0 0.0
      %9462 = vmatpush1.msra.mxu0 0.0
      %9463 = vmatprep.subr.mxu0 0.0
      %9464 = vmatpush1.msra.mxu0 0.0
      %9465 = vmatprep.subr.mxu0 0.0
      %9466 = vmatpush1.msra.mxu0 0.0
      %9467 = vmatprep.subr.mxu0 0.0
      %9468 = vmatpush1.msra.mxu0 0.0
      %9469 = vmatprep.subr.mxu0 0.0
      %9470 = vmatpush1.msra.mxu0 0.0
      %9471 = vmatprep.subr.mxu0 0.0
      %9472 = vmatpush1.msra.mxu0 0.0
      %9473 = vmatprep.subr.mxu0 0.0
      %9474 = vmatpush1.msra.mxu0 0.0
      %9475 = vmatprep.subr.mxu0 0.0
      %9476 = vmatpush1.msra.mxu0 0.0
      %9477 = vmatprep.subr.mxu0 0.0
      %9478 = vmatpush1.msra.mxu0 0.0
      %9479 = vmatprep.subr.mxu0 0.0
      %9480 = vmatpush1.msra.mxu0 0.0
      %9481 = vmatprep.subr.mxu0 0.0
      %9482 = vmatpush1.msra.mxu0 0.0
      %9483 = vmatprep.subr.mxu0 0.0
      %9484 = vmatpush1.msra.mxu0 0.0
      %9485 = vmatprep.mubr.f32.mxu0 0.0
      %9486 = vmatmul.mubr.f32.gmra.mrb[0].mxu0 %v9323
      %v9487 = vpop.f32.mrb[0].mxu0
      %v9488 = vadd.f32 %v9320, %v9487
      %v9489 = vpop.f32.mrb[0].mxu0
      %9490 = vmatprep.mubr.f32.mxu0 0.0
      %9491 = vmatmul.mubr.f32.gmra.mrb[0].mxu0 %v9326
      %v9492 = vpop.f32.mrb[0].mxu0
      %v9493 = vadd.f32 %v9320, %v9492
      %v9494 = vpop.f32.mrb[0].mxu0
      %9495 = vmatprep.mubr.f32.mxu0 0.0
      %9496 = vmatmul.mubr.f32.gmra.mrb[0].mxu0 %v9329
      %v9497 = vpop.f32.mrb[0].mxu0
      %v9498 = vadd.f32 %v9320, %v9497
      %v9499 = vpop.f32.mrb[0].mxu0
      %9500 = vmatprep.mubr.f32.mxu0 0.0
      %9501 = vmatmul.mubr.f32.gmra.mrb[0].mxu0 %v9332
      %v9502 = vpop.f32.mrb[0].mxu0
      %v9503 = vadd.f32 %v9320, %v9502
      %v9504 = vpop.f32.mrb[0].mxu0
      %9505 = vmatprep.mubr.f32.mxu0 0.0
      %9506 = vmatmul.mubr.f32.gmra.mrb[0].mxu0 %v9335
      %v9507 = vpop.f32.mrb[0].mxu0
      %v9508 = vadd.f32 %v9320, %v9507
      %v9509 = vpop.f32.mrb[0].mxu0
      %9510 = vmatprep.mubr.f32.mxu0 0.0
      %9511 = vmatmul.mubr.f32.gmra.mrb[0].mxu0 %v9338
      %v9512 = vpop.f32.mrb[0].mxu0
      %v9513 = vadd.f32 %v9320, %v9512
      %v9514 = vpop.f32.mrb[0].mxu0
      %9515 = vmatprep.mubr.f32.mxu0 0.0
      %9516 = vmatmul.mubr.f32.gmra.mrb[0].mxu0 %v9341
      %v9517 = vpop.f32.mrb[0].mxu0
      %v9518 = vadd.f32 %v9320, %v9517
      %v9519 = vpop.f32.mrb[0].mxu0
      %9520 = vmatprep.mubr.f32.mxu0 0.0
      %9521 = vmatmul.mubr.f32.gmra.mrb[0].mxu0 %v9344
      %v9522 = vpop.f32.mrb[0].mxu0
      %v9523 = vadd.f32 %v9320, %v9522
      %v9524 = vpop.f32.mrb[0].mxu0
      %9525 = vmatprep.mubr.f32.mxu0 0.0
      %9526 = vmatmul.mubr.f32.gmra.mrb[0].mxu0 %v9347
      %v9527 = vpop.f32.mrb[0].mxu0
      %v9528 = vadd.f32 %v9320, %v9527
      %v9529 = vpop.f32.mrb[0].mxu0
      %9530 = vmatprep.mubr.f32.mxu0 0.0
      %9531 = vmatmul.mubr.f32.gmra.mrb[0].mxu0 %v9350
      %v9532 = vpop.f32.mrb[0].mxu0
      %v9533 = vadd.f32 %v9320, %v9532
      %v9534 = vpop.f32.mrb[0].mxu0
      %9535 = vmatprep.mubr.f32.mxu0 0.0
      %9536 = vmatmul.mubr.f32.gmra.mrb[0].mxu0 %v9353
      %v9537 = vpop.f32.mrb[0].mxu0
      %v9538 = vadd.f32 %v9320, %v9537
      %v9539 = vpop.f32.mrb[0].mxu0
      %9540 = vmatprep.mubr.f32.mxu0 0.0
      %9541 = vmatmul.mubr.f32.gmra.mrb[0].mxu0 %v9356
      %v9542 = vpop.f32.mrb[0].mxu0
      %v9543 = vadd.f32 %v9320, %v9542
      %v9544 = vpop.f32.mrb[0].mxu0
      %9545 = vmatprep.mubr.f32.mxu0 0.0
      %9546 = vmatmul.mubr.f32.gmra.mrb[0].mxu0 %v9359
      %v9547 = vpop.f32.mrb[0].mxu0
      %v9548 = vadd.f32 %v9320, %v9547
      %v9549 = vpop.f32.mrb[0].mxu0
      %9550 = vmatprep.mubr.f32.mxu0 0.0
      %9551 = vmatmul.mubr.f32.gmra.mrb[0].mxu0 %v9362
      %v9552 = vpop.f32.mrb[0].mxu0
      %v9553 = vadd.f32 %v9320, %v9552
      %v9554 = vpop.f32.mrb[0].mxu0
      %9555 = vmatprep.mubr.f32.mxu0 0.0
      %9556 = vmatmul.mubr.f32.gmra.mrb[0].mxu0 %v9365
      %v9557 = vpop.f32.mrb[0].mxu0
      %v9558 = vadd.f32 %v9320, %v9557
      %v9559 = vpop.f32.mrb[0].mxu0
      %9560 = vmatprep.mubr.f32.mxu0 0.0
      %9561 = vmatmul.mubr.f32.gmra.mrb[0].mxu0 %v9368
      %v9562 = vpop.f32.mrb[0].mxu0
      %v9563 = vadd.f32 %v9320, %v9562
      %v9564 = vpop.f32.mrb[0].mxu0
      %9565 = vmatprep.mubr.f32.mxu0 0.0
      %9566 = vmatmul.mubr.f32.gmra.mrb[0].mxu0 %v9371
      %v9567 = vpop.f32.mrb[0].mxu0
      %v9568 = vadd.f32 %v9320, %v9567
      %v9569 = vpop.f32.mrb[0].mxu0
      %9570 = vmatprep.mubr.f32.mxu0 0.0
      %9571 = vmatmul.mubr.f32.gmra.mrb[0].mxu0 %v9374
      %v9572 = vpop.f32.mrb[0].mxu0
      %v9573 = vadd.f32 %v9320, %v9572
      %v9574 = vpop.f32.mrb[0].mxu0
      %9575 = vmatprep.mubr.f32.mxu0 0.0
      %9576 = vmatmul.mubr.f32.gmra.mrb[0].mxu0 %v9377
      %v9577 = vpop.f32.mrb[0].mxu0
      %v9578 = vadd.f32 %v9320, %v9577
      %v9579 = vpop.f32.mrb[0].mxu0
      %9580 = vmatprep.mubr.f32.mxu0 0.0
      %9581 = vmatmul.mubr.f32.gmra.mrb[0].mxu0 %v9380
      %v9582 = vpop.f32.mrb[0].mxu0
      %v9583 = vadd.f32 %v9320, %v9582
      %v9584 = vpop.f32.mrb[0].mxu0
      %9585 = vmatprep.mubr.f32.mxu0 0.0
      %9586 = vmatmul.mubr.f32.gmra.mrb[0].mxu0 %v9383
      %v9587 = vpop.f32.mrb[0].mxu0
      %v9588 = vadd.f32 %v9320, %v9587
      %v9589 = vpop.f32.mrb[0].mxu0
      %9590 = vmatprep.mubr.f32.mxu0 0.0
      %9591 = vmatmul.mubr.f32.gmra.mrb[0].mxu0 %v9386
      %v9592 = vpop.f32.mrb[0].mxu0
      %v9593 = vadd.f32 %v9320, %v9592
      %v9594 = vpop.f32.mrb[0].mxu0
      %9595 = vmatprep.mubr.f32.mxu0 0.0
      %9596 = vmatmul.mubr.f32.gmra.mrb[0].mxu0 %v9389
      %v9597 = vpop.f32.mrb[0].mxu0
      %v9598 = vadd.f32 %v9320, %v9597
      %v9599 = vpop.f32.mrb[0].mxu0
      %9600 = vmatprep.mubr.f32.mxu0 0.0
      %9601 = vmatmul.mubr.f32.gmra.mrb[0].mxu0 %v9392
      %v9602 = vpop.f32.mrb[0].mxu0
      %v9603 = vadd.f32 %v9320, %v9602
      %v9604 = vpop.f32.mrb[0].mxu0
      %9605 = vmatprep.mubr.f32.mxu0 0.0
      %9606 = vmatmul.mubr.f32.gmra.mrb[0].mxu0 %v9395
      %v9607 = vpop.f32.mrb[0].mxu0
      %v9608 = vadd.f32 %v9320, %v9607
      %v9609 = vpop.f32.mrb[0].mxu0
      %9610 = vmatprep.mubr.f32.mxu0 0.0
      %9611 = vmatmul.mubr.f32.gmra.mrb[0].mxu0 %v9398
      %v9612 = vpop.f32.mrb[0].mxu0
      %v9613 = vadd.f32 %v9320, %v9612
      %v9614 = vpop.f32.mrb[0].mxu0
      %9615 = vmatprep.mubr.f32.mxu0 0.0
      %9616 = vmatmul.mubr.f32.gmra.mrb[0].mxu0 %v9401
      %v9617 = vpop.f32.mrb[0].mxu0
      %v9618 = vadd.f32 %v9320, %v9617
      %v9619 = vpop.f32.mrb[0].mxu0
      %9620 = vmatprep.mubr.f32.mxu0 0.0
      %9621 = vmatmul.mubr.f32.gmra.mrb[0].mxu0 %v9404
      %v9622 = vpop.f32.mrb[0].mxu0
      %v9623 = vadd.f32 %v9320, %v9622
      %v9624 = vpop.f32.mrb[0].mxu0
      %9625 = vmatprep.mubr.f32.mxu0 0.0
      %9626 = vmatmul.mubr.f32.gmra.mrb[0].mxu0 %v9407
      %v9627 = vpop.f32.mrb[0].mxu0
      %v9628 = vadd.f32 %v9320, %v9627
      %v9629 = vpop.f32.mrb[0].mxu0
      %9630 = vmatprep.mubr.f32.mxu0 0.0
      %9631 = vmatmul.mubr.f32.gmra.mrb[0].mxu0 %v9410
      %v9632 = vpop.f32.mrb[0].mxu0
      %v9633 = vadd.f32 %v9320, %v9632
      %v9634 = vpop.f32.mrb[0].mxu0
      %9635 = vmatprep.mubr.f32.mxu0 0.0
      %9636 = vmatmul.mubr.f32.gmra.mrb[0].mxu0 %v9413
      %v9637 = vpop.f32.mrb[0].mxu0
      %v9638 = vadd.f32 %v9320, %v9637
      %v9639 = vpop.f32.mrb[0].mxu0
      %9640 = vmatprep.mubr.f32.mxu0 0.0
      %9641 = vmatmul.mubr.f32.gmra.mrb[0].mxu0 %v9416
      %v9642 = vpop.f32.mrb[0].mxu0
      %v9643 = vadd.f32 %v9320, %v9642
      %v9644 = vpop.f32.mrb[0].mxu0
      %9645 = vdwg.mxu0
      %v9646 = vadd.f32 %v9488, %v410
      %v9647 = vadd.f32 %v9493, %v411
      %v9648 = vadd.f32 %v9498, %v412
      %v9649 = vadd.f32 %v9503, %v413
      %v9650 = vadd.f32 %v9508, %v414
      %v9651 = vadd.f32 %v9513, %v415
      %v9652 = vadd.f32 %v9518, %v416
      %v9653 = vadd.f32 %v9523, %v417
      %v9654 = vadd.f32 %v9528, %v418
      %v9655 = vadd.f32 %v9533, %v419
      %v9656 = vadd.f32 %v9538, %v420
      %v9657 = vadd.f32 %v9543, %v421
      %v9658 = vadd.f32 %v9548, %v422
      %v9659 = vadd.f32 %v9553, %v423
      %v9660 = vadd.f32 %v9558, %v424
      %v9661 = vadd.f32 %v9563, %v425
      %v9662 = vadd.f32 %v9568, %v426
      %v9663 = vadd.f32 %v9573, %v427
      %v9664 = vadd.f32 %v9578, %v428
      %v9665 = vadd.f32 %v9583, %v429
      %v9666 = vadd.f32 %v9588, %v430
      %v9667 = vadd.f32 %v9593, %v431
      %v9668 = vadd.f32 %v9598, %v432
      %v9669 = vadd.f32 %v9603, %v433
      %v9670 = vadd.f32 %v9608, %v434
      %v9671 = vadd.f32 %v9613, %v435
      %v9672 = vadd.f32 %v9618, %v436
      %v9673 = vadd.f32 %v9623, %v437
      %v9674 = vadd.f32 %v9628, %v438
      %v9675 = vadd.f32 %v9633, %v439
      %v9676 = vadd.f32 %v9638, %v440
      %v9677 = vadd.f32 %v9643, %v441
      %v9678 = vmax.f32 %v9646, 0.0
      %v9679 = vmax.f32 %v9647, 0.0
      %v9680 = vmax.f32 %v9648, 0.0
      %v9681 = vmax.f32 %v9649, 0.0
      %v9682 = vmax.f32 %v9650, 0.0
      %v9683 = vmax.f32 %v9651, 0.0
      %v9684 = vmax.f32 %v9652, 0.0
      %v9685 = vmax.f32 %v9653, 0.0
      %v9686 = vmax.f32 %v9654, 0.0
      %v9687 = vmax.f32 %v9655, 0.0
      %v9688 = vmax.f32 %v9656, 0.0
      %v9689 = vmax.f32 %v9657, 0.0
      %v9690 = vmax.f32 %v9658, 0.0
      %v9691 = vmax.f32 %v9659, 0.0
      %v9692 = vmax.f32 %v9660, 0.0
      %v9693 = vmax.f32 %v9661, 0.0
      %v9694 = vmax.f32 %v9662, 0.0
      %v9695 = vmax.f32 %v9663, 0.0
      %v9696 = vmax.f32 %v9664, 0.0
      %v9697 = vmax.f32 %v9665, 0.0
      %v9698 = vmax.f32 %v9666, 0.0
      %v9699 = vmax.f32 %v9667, 0.0
      %v9700 = vmax.f32 %v9668, 0.0
      %v9701 = vmax.f32 %v9669, 0.0
      %v9702 = vmax.f32 %v9670, 0.0
      %v9703 = vmax.f32 %v9671, 0.0
      %v9704 = vmax.f32 %v9672, 0.0
      %v9705 = vmax.f32 %v9673, 0.0
      %v9706 = vmax.f32 %v9674, 0.0
      %v9707 = vmax.f32 %v9675, 0.0
      %v9708 = vmax.f32 %v9676, 0.0
      %v9709 = vmax.f32 %v9677, 0.0
      %9710 = vst.msk [vmem:[%s305 + $0x100] sm:$0xff] %vm451, %v9678
      %9711 = vst.msk [vmem:[%s305 + $0x108] sm:$0xff] %vm451, %v9679
      %9712 = vst.msk [vmem:[%s305 + $0x110] sm:$0xff] %vm451, %v9680
      %9713 = vst.msk [vmem:[%s305 + $0x118] sm:$0xff] %vm451, %v9681
      %9714 = vst.msk [vmem:[%s305 + $0x120] sm:$0xff] %vm451, %v9682
      %9715 = vst.msk [vmem:[%s305 + $0x128] sm:$0xff] %vm451, %v9683
      %9716 = vst.msk [vmem:[%s305 + $0x130] sm:$0xff] %vm451, %v9684
      %9717 = vst.msk [vmem:[%s305 + $0x138] sm:$0xff] %vm451, %v9685
      %9718 = vst.msk [vmem:[%s305 + $0x140] sm:$0xff] %vm451, %v9686
      %9719 = vst.msk [vmem:[%s305 + $0x148] sm:$0xff] %vm451, %v9687
      %9720 = vst.msk [vmem:[%s305 + $0x150] sm:$0xff] %vm451, %v9688
      %9721 = vst.msk [vmem:[%s305 + $0x158] sm:$0xff] %vm451, %v9689
      %9722 = vst.msk [vmem:[%s305 + $0x160] sm:$0xff] %vm451, %v9690
      %9723 = vst.msk [vmem:[%s305 + $0x168] sm:$0xff] %vm451, %v9691
      %9724 = vst.msk [vmem:[%s305 + $0x170] sm:$0xff] %vm451, %v9692
      %9725 = vst.msk [vmem:[%s305 + $0x178] sm:$0xff] %vm451, %v9693
      %9726 = vst.msk [vmem:[%s305 + $0x180] sm:$0xff] %vm451, %v9694
      %9727 = vst.msk [vmem:[%s305 + $0x188] sm:$0xff] %vm451, %v9695
      %9728 = vst.msk [vmem:[%s305 + $0x190] sm:$0xff] %vm451, %v9696
      %9729 = vst.msk [vmem:[%s305 + $0x198] sm:$0xff] %vm451, %v9697
      %9730 = vst.msk [vmem:[%s305 + $0x1a0] sm:$0xff] %vm451, %v9698
      %9731 = vst.msk [vmem:[%s305 + $0x1a8] sm:$0xff] %vm451, %v9699
      %9732 = vst.msk [vmem:[%s305 + $0x1b0] sm:$0xff] %vm451, %v9700
      %9733 = vst.msk [vmem:[%s305 + $0x1b8] sm:$0xff] %vm451, %v9701
      %9734 = vst.msk [vmem:[%s305 + $0x1c0] sm:$0xff] %vm451, %v9702
      %9735 = vst.msk [vmem:[%s305 + $0x1c8] sm:$0xff] %vm451, %v9703
      %9736 = vst.msk [vmem:[%s305 + $0x1d0] sm:$0xff] %vm451, %v9704
      %9737 = vst.msk [vmem:[%s305 + $0x1d8] sm:$0xff] %vm451, %v9705
      %9738 = vst.msk [vmem:[%s305 + $0x1e0] sm:$0xff] %vm451, %v9706
      %9739 = vst.msk [vmem:[%s305 + $0x1e8] sm:$0xff] %vm451, %v9707
      %9740 = vst.msk [vmem:[%s305 + $0x1f0] sm:$0xff] %vm451, %v9708
      %9741 = vst.msk [vmem:[%s305 + $0x1f8] sm:$0xff] %vm451, %v9709
      %p9742 = scmp.lt.s32.totalorder %s19, 1
      %s9743 = scalar_select %p9742, %s19, 1
      %s9744 = smul.addr %s9743, 64
      %s9745 = smul.addr %s9744, 8
      %s9746 = scalar_lea.vmem %s8, %s9745
      // Predicated region
      $region53: #{bottleneck_pallas.1} parent=51 // pred_check
        %p9747 = pneg %p210
      $region54: #{bottleneck_pallas.1} parent=51 // pred_check_branch
        %9749 = sbr.rel (%p9747) target = $region56
      $region55: #{bottleneck_pallas.1} parent=51 // pred_region
        _
      $region56: #{bottleneck_pallas.1} parent=51 // pred_fallthru
        _
    $region52: #{bottleneck_pallas.1} parent=5 // pred_fallthru
      _
    %p9750 = scmp.le.s32.totalorder 2, %s14
    // Predicated region
    $region57: #{bottleneck_pallas.1} parent=5 // pred_check
      %p9751 = pneg %p9750
    $region58: #{bottleneck_pallas.1} parent=5 // pred_check_branch
      %9753 = sbr.rel (%p9751) target = $region60
    $region59: #{bottleneck_pallas.1} parent=5 // pred_region
      %s9754 = ssub.s32 %s14, 2
      // Predicated region
      $region61: #{bottleneck_pallas.1} parent=59 // pred_check
        %p9755 = pneg %p216
      $region62: #{bottleneck_pallas.1} parent=59 // pred_check_branch
        %9757 = sbr.rel (%p9755) target = $region64
      $region63: #{bottleneck_pallas.1} parent=59 // pred_region
        %p9758 = scmp.lt.s32.totalorder %s20, 1
        %s9759 = scalar_select %p9758, %s20, 1
        %s9760 = smul.addr %s9759, 64
        %s9761 = smul.addr %s9760, 8
        %s9762 = scalar_lea.vmem %s8, %s9761
      $region64: #{bottleneck_pallas.1} parent=59 // pred_fallthru
        _
    $region60: #{bottleneck_pallas.1} parent=5 // pred_fallthru
      _
  $region6: #{bottleneck_pallas.1} parent=0 // loop_footer
    %s18 = sadd.s32 1, %s14
  $region7: #{bottleneck_pallas.1} parent=0 // loop_footer_branch
    %13 = sbr.rel target = $region3
  $region8: #{bottleneck_pallas.1} parent=0 // loop_exit
    _

</llo_original>
